<compile_context>
chip_gen: v6e
topology: v6e:2x2x1
jax: 0.10.0
libtpu: 0.0.40
codegen_flags: <defaults>
</compile_context>

<pallas_src>
import functools

import jax
import jax.numpy as jnp
import numpy as np
from jax.experimental import pallas as pl
from jax.experimental.pallas import tpu as pltpu

GROUPS = 8
GN_EPS = 1e-5       # nn.GroupNorm default eps
MOD_EPS = 1e-8      # AdaptiveConv2DMod eps
KSIZE = 3           # kernel=3, stride=1, dilation=1 -> same padding = 1
LANE = 128          # TPU lane width


def _round_up(x, m):
    return (x + m - 1) // m * m


# ----------------------------------------------------------------------------
# Fused Pallas kernel: conv3x3 -> GN -> SiLU -> conv3x3 -> GN -> SiLU -> +res
# ----------------------------------------------------------------------------
def _resnet_block_kernel(xbig_ref, w1_ref, w2_ref, g1_ref, b1_ref, g2_ref,
                         b2_ref, gmat_ref, mask_ref, rw_ref, rb_ref,
                         out_ref, h1big_ref, *,
                         cpad, cg, hw, npad, guard, shifts):
    mask = mask_ref[...]            # (npad, 1) f32; 1.0 on interior (real) rows
    gmat = gmat_ref[...]            # (cpad, cpad) same-group 0/1 indicator
    inv_n = 1.0 / float(hw * cg)    # GroupNorm element count per group

    def conv3x3(src_ref, w_ref):
        # 3x3 'same' conv as ONE fat MXU dot: lane-concat the 9 constant-shift
        # row windows (already bf16) -> (npad, 9*cpad), single K=9*cpad matmul.
        # NOTE: shifts of +-1 / +-Wp are sublane-unaligned windows; padding W so
        # Wp % 8 == 0 (or deriving +-1 column taps via pltpu.roll) would cut the
        # relayout copies further at production row counts.
        slabs = [src_ref[pl.ds(guard + s, npad), :] for s in shifts]
        cols = jnp.concatenate(slabs, axis=1)                  # (npad, 9*cpad) bf16
        return jnp.dot(cols, w_ref[...],
                       preferred_element_type=jnp.float32)     # (npad, cpad) f32

    def group_norm_silu(y, gamma, beta):
        # Reduce over spatial rows first (cheap sublane reduction), then
        # broadcast per-group with two tiny (1,C)@(C,C) indicator dots.
        ym = y * mask                                          # exclude pad rows
        srow = jnp.sum(ym, axis=0, keepdims=True)              # (1, cpad) sum
        sqrow = jnp.sum(ym * ym, axis=0, keepdims=True)        # (1, cpad) sum sq
        gsum = jnp.dot(srow, gmat, preferred_element_type=jnp.float32)
        gsq = jnp.dot(sqrow, gmat, preferred_element_type=jnp.float32)
        mean = gsum * inv_n
        # single-pass E[x^2]-E[x]^2 with clamp; fine at these magnitudes.
        var = jnp.maximum(gsq * inv_n - mean * mean, 0.0)
        inv = jax.lax.rsqrt(var + GN_EPS)
        z = (y - mean) * inv * gamma + beta
        return z * jax.nn.sigmoid(z)                           # SiLU (EUP)

    # ---- block 1: AdaptiveConv2DMod -> GroupNorm -> SiLU ----
    y1 = conv3x3(xbig_ref, w1_ref)
    a1 = group_norm_silu(y1, g1_ref[...], b1_ref[...]) * mask  # zero pad rows

    # Keep h1 resident in VMEM (bf16).  Only the guard bands need zeroing:
    # a1's pad rows are already masked to zero.
    zguard = jnp.zeros((guard, cpad), jnp.bfloat16)
    h1big_ref[pl.ds(0, guard), :] = zguard
    h1big_ref[pl.ds(guard + npad, guard), :] = zguard
    h1big_ref[pl.ds(guard, npad), :] = a1.astype(jnp.bfloat16)

    # ---- block 2: AdaptiveConv2DMod -> GroupNorm -> SiLU ----
    y2 = conv3x3(h1big_ref, w2_ref)
    a2 = group_norm_silu(y2, g2_ref[...], b2_ref[...])

    # ---- residual 1x1 conv + add (bf16 MXU inputs, f32 accumulate) ----
    res = jnp.dot(xbig_ref[pl.ds(guard, npad), :], rw_ref[...],
                  preferred_element_type=jnp.float32) + rb_ref[...]
    out_ref[...] = (a2 + res).astype(out_ref.dtype)


# ----------------------------------------------------------------------------
# JAX glue: weight modulation (AdaptiveConv2DMod) and layout prep
# ----------------------------------------------------------------------------
def modulate_weights(Wn, mod, kernel_mod, i_pad, o_pad):
    """Wn: (n, o, i, k, k), mod: (b, i), kernel_mod: (b, n) -> (b, 9*i_pad, o_pad) bf16."""
    attn = jax.nn.softmax(kernel_mod, axis=-1)                    # (b, n)
    wb = jnp.einsum('bn,noikl->boikl', attn, Wn)                  # adaptive mix
    wb = wb * (mod[:, None, :, None, None] + 1.0)                 # modulation
    inv = jax.lax.rsqrt(jnp.maximum(
        jnp.sum(wb * wb, axis=(2, 3, 4), keepdims=True), MOD_EPS))
    wb = wb * inv                                                 # demod (f32)
    i, o = wb.shape[2], wb.shape[1]
    # tap-major (kh, kw, i) contraction order, matching the in-kernel shifts;
    # pad channels to lane width, cast to bf16 ONCE here.
    w = jnp.transpose(wb, (0, 3, 4, 2, 1))                        # (b, k, k, i, o)
    w = jnp.pad(w, ((0, 0), (0, 0), (0, 0), (0, i_pad - i), (0, o_pad - o)))
    return w.reshape(w.shape[0], KSIZE * KSIZE * i_pad, o_pad).astype(jnp.bfloat16)


def group_indicator(channels, channels_pad, groups):
    cg = channels // groups
    ch = jnp.arange(channels_pad)
    gid = ch // cg
    valid = ch < channels
    same = (gid[:, None] == gid[None, :]) & valid[:, None] & valid[None, :]
    return same.astype(jnp.float32)                               # (Cpad, Cpad)


def interior_mask(H, W):
    Hp, Wp = H + 2, W + 2
    m = jnp.zeros((Hp, Wp), jnp.float32).at[1:H + 1, 1:W + 1].set(1.0)
    return m.reshape(Hp * Wp, 1)


# ----------------------------------------------------------------------------
# ResnetBlock forward (Pallas-backed)
# ----------------------------------------------------------------------------
def resnet_block_forward(params, x_nchw, mod1, kmod1, mod2, kmod2):
    B, Cin, H, W = x_nchw.shape
    Cout = params['W1'].shape[1]
    cg = Cout // GROUPS
    Hp, Wp = H + 2, W + 2
    npad = Hp * Wp
    guard = _round_up(Wp + 1, 8)          # 8-aligned zero guard on each side
    R = npad + 2 * guard
    cin_pad = _round_up(max(Cin, LANE), LANE)
    cout_pad = _round_up(max(Cout, LANE), LANE)
    shifts = tuple((kh - 1) * Wp + (kw - 1)
                   for kh in range(KSIZE) for kw in range(KSIZE))

    # NCHW -> NHWC, spatial zero-pad, lane-pad channels, flatten, add guard rows,
    # single bf16 cast.  (At production sizes this glue should move in-kernel.)
    x = jnp.transpose(x_nchw, (0, 2, 3, 1))
    xp = jnp.pad(x, ((0, 0), (1, 1), (1, 1), (0, cin_pad - Cin)))
    xbig = jnp.pad(xp.reshape(B, npad, cin_pad),
                   ((0, 0), (guard, guard), (0, 0))).astype(jnp.bfloat16)

    w1 = modulate_weights(params['W1'], mod1, kmod1, cin_pad, cout_pad)
    w2 = modulate_weights(params['W2'], mod2, kmod2, cout_pad, cout_pad)
    gmat = group_indicator(Cout, cout_pad, GROUPS)
    mask = interior_mask(H, W)

    pad_vec = lambda v: jnp.pad(v, (0, cout_pad - Cout)).astype(jnp.float32)[None, :]
    g1 = pad_vec(params['gamma1'])
    b1 = pad_vec(params['beta1'])
    g2 = pad_vec(params['gamma2'])
    b2 = pad_vec(params['beta2'])
    rw = jnp.pad(params['res_w'],
                 ((0, cin_pad - Cin), (0, cout_pad - Cout))).astype(jnp.bfloat16)
    rb = pad_vec(params['res_b'])

    kernel = functools.partial(
        _resnet_block_kernel, cpad=cout_pad, cg=cg, hw=H * W,
        npad=npad, guard=guard, shifts=shifts)

    shared = lambda b: (0, 0)
    out_pad = pl.pallas_call(
        kernel,
        out_shape=jax.ShapeDtypeStruct((B, npad, cout_pad), jnp.float32),
        grid=(B,),
        in_specs=[
            pl.BlockSpec((None, R, cin_pad), lambda b: (b, 0, 0)),            # x (padded+guard, bf16)
            pl.BlockSpec((None, KSIZE * KSIZE * cin_pad, cout_pad),
                         lambda b: (b, 0, 0)),                                # w1 per sample (bf16)
            pl.BlockSpec((None, KSIZE * KSIZE * cout_pad, cout_pad),
                         lambda b: (b, 0, 0)),                                # w2 per sample (bf16)
            pl.BlockSpec((1, cout_pad), shared),                              # gamma1
            pl.BlockSpec((1, cout_pad), shared),                              # beta1
            pl.BlockSpec((1, cout_pad), shared),                              # gamma2
            pl.BlockSpec((1, cout_pad), shared),                              # beta2
            pl.BlockSpec((cout_pad, cout_pad), shared),                       # group indicator
            pl.BlockSpec((npad, 1), shared),                                  # interior mask
            pl.BlockSpec((cin_pad, cout_pad), shared),                        # res 1x1 weight (bf16)
            pl.BlockSpec((1, cout_pad), shared),                              # res bias
        ],
        out_specs=pl.BlockSpec((None, npad, cout_pad), lambda b: (b, 0, 0)),
        scratch_shapes=[pltpu.VMEM((R, cout_pad), jnp.bfloat16)],             # h1 (padded, bf16)
        compiler_params=pltpu.CompilerParams(
            dimension_semantics=("parallel",),        # batch is independent (2 TCs on v7x)
            vmem_limit_bytes=64 * 1024 * 1024),
    )(xbig, w1, w2, g1, b1, g2, b2, gmat, mask, rw, rb)

    out = out_pad.reshape(B, Hp, Wp, cout_pad)[:, 1:H + 1, 1:W + 1, :Cout]
    return jnp.transpose(out, (0, 3, 1, 2))                                   # back to NCHW


# ----------------------------------------------------------------------------
# Pure-JAX reference (mirrors the PyTorch module) for a sanity check
# ----------------------------------------------------------------------------
def _ref_adaptive_conv(fmap, Wn, mod, kmod):
    b = fmap.shape[0]
    attn = jax.nn.softmax(kmod, axis=-1)
    wb = jnp.einsum('bn,noikl->boikl', attn, Wn)
    wb = wb * (mod[:, None, :, None, None] + 1.0)
    inv = jax.lax.rsqrt(jnp.maximum(
        jnp.sum(wb * wb, axis=(2, 3, 4), keepdims=True), MOD_EPS))
    wb = wb * inv
    o, i = wb.shape[1], wb.shape[2]
    fmap_g = fmap.reshape(1, b * fmap.shape[1], fmap.shape[2], fmap.shape[3])
    w_g = wb.reshape(b * o, i, KSIZE, KSIZE)
    out = jax.lax.conv_general_dilated(
        fmap_g, w_g, (1, 1), ((1, 1), (1, 1)),
        feature_group_count=b, dimension_numbers=('NCHW', 'OIHW', 'NCHW'))
    return out.reshape(b, o, out.shape[2], out.shape[3])


def _ref_group_norm(x, gamma, beta):
    b, c, h, w = x.shape
    cg = c // GROUPS
    xg = x.reshape(b, GROUPS, cg, h, w)
    mean = xg.mean(axis=(2, 3, 4), keepdims=True)
    var = ((xg - mean) ** 2).mean(axis=(2, 3, 4), keepdims=True)
    xn = ((xg - mean) / jnp.sqrt(var + GN_EPS)).reshape(b, c, h, w)
    return xn * gamma[None, :, None, None] + beta[None, :, None, None]


def resnet_block_reference(params, x_nchw, mod1, kmod1, mod2, kmod2):
    silu = lambda v: v * jax.nn.sigmoid(v)
    h = silu(_ref_group_norm(_ref_adaptive_conv(x_nchw, params['W1'], mod1, kmod1),
                             params['gamma1'], params['beta1']))
    h = silu(_ref_group_norm(_ref_adaptive_conv(h, params['W2'], mod2, kmod2),
                             params['gamma2'], params['beta2']))
    res = jnp.einsum('bchw,co->bohw', x_nchw, params['res_w']) \
        + params['res_b'][None, :, None, None]
    return h + res


# ----------------------------------------------------------------------------
if __name__ == "__main__":
    # ResnetBlock(dim=8, dim_out=16, groups=8, num_conv_kernels=2)
    B, dim, dim_out, H, W, nck = 2, 8, 16, 16, 16, 2

    key = jax.random.PRNGKey(0)
    ks = jax.random.split(key, 12)

    params = {
        # AdaptiveConv2DMod weights: (num_conv_kernels, dim_out, dim_in, k, k)
        'W1': jax.random.normal(ks[0], (nck, dim_out, dim, KSIZE, KSIZE),
                                jnp.float32) * np.sqrt(2.0 / (dim * KSIZE * KSIZE)),
        'W2': jax.random.normal(ks[1], (nck, dim_out, dim_out, KSIZE, KSIZE),
                                jnp.float32) * np.sqrt(2.0 / (dim_out * KSIZE * KSIZE)),
        # GroupNorm affine params
        'gamma1': 1.0 + 0.1 * jax.random.normal(ks[2], (dim_out,), jnp.float32),
        'beta1': 0.1 * jax.random.normal(ks[3], (dim_out,), jnp.float32),
        'gamma2': 1.0 + 0.1 * jax.random.normal(ks[4], (dim_out,), jnp.float32),
        'beta2': 0.1 * jax.random.normal(ks[5], (dim_out,), jnp.float32),
        # res_conv = nn.Conv2d(dim, dim_out, 1); stored as (Cin, Cout) + bias
        'res_w': jax.random.normal(ks[6], (dim, dim_out), jnp.float32) / np.sqrt(dim),
        'res_b': 0.1 * jax.random.normal(ks[7], (dim_out,), jnp.float32),
    }

    x = jax.random.normal(ks[8], (B, dim, H, W), jnp.float32)         # NCHW input
    mod1 = 0.5 * jax.random.normal(ks[9], (B, dim), jnp.float32)      # style mods
    kmod1 = jax.random.normal(ks[10], (B, nck), jnp.float32)
    mod2 = 0.5 * jax.random.normal(ks[11], (B, dim_out), jnp.float32)
    kmod2 = jax.random.normal(jax.random.fold_in(key, 99), (B, nck), jnp.float32)

    fwd = jax.jit(resnet_block_forward)
    out = fwd(params, x, mod1, kmod1, mod2, kmod2)
    out = jax.block_until_ready(out)

    ref = jax.block_until_ready(
        resnet_block_reference(params, x, mod1, kmod1, mod2, kmod2))
    # Tolerance reflects bf16 MXU inputs / bf16 h1 storage (f32 accumulation)
    # vs. the all-f32 reference.
    np.testing.assert_allclose(np.asarray(out), np.asarray(ref),
                               rtol=2e-2, atol=3e-2)

    print("KERNEL_OK")
</pallas_src>

<mosaic_0001>
module attributes {stable_mosaic.version = 11 : i64} {
  func.func @_resnet_block_kernel(%arg0: i32, %arg1: memref<1x372x128xbf16, #tpu.memory_space<vmem>>, %arg2: memref<1x1152x128xbf16, #tpu.memory_space<vmem>>, %arg3: memref<1x1152x128xbf16, #tpu.memory_space<vmem>>, %arg4: memref<1x128xf32, #tpu.memory_space<vmem>>, %arg5: memref<1x128xf32, #tpu.memory_space<vmem>>, %arg6: memref<1x128xf32, #tpu.memory_space<vmem>>, %arg7: memref<1x128xf32, #tpu.memory_space<vmem>>, %arg8: memref<128x128xf32, #tpu.memory_space<vmem>>, %arg9: memref<324x1xf32, #tpu.memory_space<vmem>>, %arg10: memref<128x128xbf16, #tpu.memory_space<vmem>>, %arg11: memref<1x128xf32, #tpu.memory_space<vmem>>, %arg12: memref<1x324x128xf32, #tpu.memory_space<vmem>>, %arg13: memref<372x128xbf16, #tpu.memory_space<vmem>>) attributes {dimension_semantics = [#tpu.dimension_semantics<parallel>], iteration_bounds = array<i64: 2>, scalar_prefetch = 0 : i64, scratch_operands = 1 : i64, tpu.core_type = #tpu.core_type<tc>, window_params = [{transform_indices = @transform_0, window_bounds = array<i64: 1, 372, 128>}, {transform_indices = @transform_1, window_bounds = array<i64: 1, 1152, 128>}, {transform_indices = @transform_2, window_bounds = array<i64: 1, 1152, 128>}, {pipeline_mode = #tpu.pipeline_mode<synchronous>, transform_indices = @transform_3, window_bounds = array<i64: 1, 128>}, {pipeline_mode = #tpu.pipeline_mode<synchronous>, transform_indices = @transform_4, window_bounds = array<i64: 1, 128>}, {pipeline_mode = #tpu.pipeline_mode<synchronous>, transform_indices = @transform_5, window_bounds = array<i64: 1, 128>}, {pipeline_mode = #tpu.pipeline_mode<synchronous>, transform_indices = @transform_6, window_bounds = array<i64: 1, 128>}, {pipeline_mode = #tpu.pipeline_mode<synchronous>, transform_indices = @transform_7, window_bounds = array<i64: 128, 128>}, {pipeline_mode = #tpu.pipeline_mode<synchronous>, transform_indices = @transform_8, window_bounds = array<i64: 324, 1>}, {pipeline_mode = #tpu.pipeline_mode<synchronous>, transform_indices = @transform_9, window_bounds = array<i64: 128, 128>}, {pipeline_mode = #tpu.pipeline_mode<synchronous>, transform_indices = @transform_10, window_bounds = array<i64: 1, 128>}, {transform_indices = @transform_11, window_bounds = array<i64: 1, 324, 128>}]} {
    %c0 = arith.constant 0 : index
    %c0_0 = arith.constant 0 : index
    %0 = vector.load %arg9[%c0, %c0_0] : memref<324x1xf32, #tpu.memory_space<vmem>>, vector<324x1xf32>
    %c0_1 = arith.constant 0 : index
    %c0_2 = arith.constant 0 : index
    %1 = vector.load %arg8[%c0_1, %c0_2] : memref<128x128xf32, #tpu.memory_space<vmem>>, vector<128x128xf32>
    %c0_3 = arith.constant 0 : index
    %c5 = arith.constant 5 : index
    %c0_4 = arith.constant 0 : index
    %2 = vector.load %arg1[%c0_3, %c5, %c0_4] : memref<1x372x128xbf16, #tpu.memory_space<vmem>>, vector<1x324x128xbf16>
    %3 = vector.shape_cast %2 : vector<1x324x128xbf16> to vector<324x128xbf16>
    %c0_5 = arith.constant 0 : index
    %c6 = arith.constant 6 : index
    %c0_6 = arith.constant 0 : index
    %4 = vector.load %arg1[%c0_5, %c6, %c0_6] : memref<1x372x128xbf16, #tpu.memory_space<vmem>>, vector<1x324x128xbf16>
    %5 = vector.shape_cast %4 : vector<1x324x128xbf16> to vector<324x128xbf16>
    %c0_7 = arith.constant 0 : index
    %c7 = arith.constant 7 : index
    %c0_8 = arith.constant 0 : index
    %6 = vector.load %arg1[%c0_7, %c7, %c0_8] : memref<1x372x128xbf16, #tpu.memory_space<vmem>>, vector<1x324x128xbf16>
    %7 = vector.shape_cast %6 : vector<1x324x128xbf16> to vector<324x128xbf16>
    %c0_9 = arith.constant 0 : index
    %c23 = arith.constant 23 : index
    %c0_10 = arith.constant 0 : index
    %8 = vector.load %arg1[%c0_9, %c23, %c0_10] : memref<1x372x128xbf16, #tpu.memory_space<vmem>>, vector<1x324x128xbf16>
    %9 = vector.shape_cast %8 : vector<1x324x128xbf16> to vector<324x128xbf16>
    %c0_11 = arith.constant 0 : index
    %c24 = arith.constant 24 : index
    %c0_12 = arith.constant 0 : index
    %10 = vector.load %arg1[%c0_11, %c24, %c0_12] : memref<1x372x128xbf16, #tpu.memory_space<vmem>>, vector<1x324x128xbf16>
    %11 = vector.shape_cast %10 : vector<1x324x128xbf16> to vector<324x128xbf16>
    %c0_13 = arith.constant 0 : index
    %c25 = arith.constant 25 : index
    %c0_14 = arith.constant 0 : index
    %12 = vector.load %arg1[%c0_13, %c25, %c0_14] : memref<1x372x128xbf16, #tpu.memory_space<vmem>>, vector<1x324x128xbf16>
    %13 = vector.shape_cast %12 : vector<1x324x128xbf16> to vector<324x128xbf16>
    %c0_15 = arith.constant 0 : index
    %c41 = arith.constant 41 : index
    %c0_16 = arith.constant 0 : index
    %14 = vector.load %arg1[%c0_15, %c41, %c0_16] : memref<1x372x128xbf16, #tpu.memory_space<vmem>>, vector<1x324x128xbf16>
    %15 = vector.shape_cast %14 : vector<1x324x128xbf16> to vector<324x128xbf16>
    %c0_17 = arith.constant 0 : index
    %c42 = arith.constant 42 : index
    %c0_18 = arith.constant 0 : index
    %16 = vector.load %arg1[%c0_17, %c42, %c0_18] : memref<1x372x128xbf16, #tpu.memory_space<vmem>>, vector<1x324x128xbf16>
    %17 = vector.shape_cast %16 : vector<1x324x128xbf16> to vector<324x128xbf16>
    %c0_19 = arith.constant 0 : index
    %c43 = arith.constant 43 : index
    %c0_20 = arith.constant 0 : index
    %18 = vector.load %arg1[%c0_19, %c43, %c0_20] : memref<1x372x128xbf16, #tpu.memory_space<vmem>>, vector<1x324x128xbf16>
    %19 = vector.shape_cast %18 : vector<1x324x128xbf16> to vector<324x128xbf16>
    %20 = tpu.concatenate %3, %5, %7, %9, %11, %13, %15, %17, %19 in 1 : vector<324x128xbf16>, vector<324x128xbf16>, vector<324x128xbf16>, vector<324x128xbf16>, vector<324x128xbf16>, vector<324x128xbf16>, vector<324x128xbf16>, vector<324x128xbf16>, vector<324x128xbf16> -> vector<324x1152xbf16>
    %c0_21 = arith.constant 0 : index
    %c0_22 = arith.constant 0 : index
    %c0_23 = arith.constant 0 : index
    %21 = vector.load %arg2[%c0_21, %c0_22, %c0_23] : memref<1x1152x128xbf16, #tpu.memory_space<vmem>>, vector<1x1152x128xbf16>
    %22 = vector.shape_cast %21 : vector<1x1152x128xbf16> to vector<1152x128xbf16>
    %cst = arith.constant dense<0.000000e+00> : vector<324x128xf32>
    %23 = tpu.matmul %20, %22, %cst {dimension_numbers = #tpu.dot_dimension_numbers<[1], [0], [0], [1], [0, 0, 1, 1], [], []>} : vector<324x1152xbf16>, vector<1152x128xbf16>, vector<324x128xf32> -> vector<324x128xf32>
    %c0_24 = arith.constant 0 : index
    %c0_25 = arith.constant 0 : index
    %24 = vector.load %arg4[%c0_24, %c0_25] : memref<1x128xf32, #tpu.memory_space<vmem>>, vector<1x128xf32>
    %c0_26 = arith.constant 0 : index
    %c0_27 = arith.constant 0 : index
    %25 = vector.load %arg5[%c0_26, %c0_27] : memref<1x128xf32, #tpu.memory_space<vmem>>, vector<1x128xf32>
    %26 = vector.broadcast %0 : vector<324x1xf32> to vector<324x128xf32>
    %27 = arith.mulf %23, %26 : vector<324x128xf32>
    %cst_28 = arith.constant dense<0.000000e+00> : vector<128xf32>
    %28 = vector.multi_reduction <add>, %27, %cst_28 [0] : vector<324x128xf32> to vector<128xf32>
    %29 = vector.shape_cast %28 : vector<128xf32> to vector<1x128xf32>
    %30 = arith.mulf %27, %27 : vector<324x128xf32>
    %cst_29 = arith.constant dense<0.000000e+00> : vector<128xf32>
    %31 = vector.multi_reduction <add>, %30, %cst_29 [0] : vector<324x128xf32> to vector<128xf32>
    %32 = vector.shape_cast %31 : vector<128xf32> to vector<1x128xf32>
    %cst_30 = arith.constant dense<0.000000e+00> : vector<1x128xf32>
    %33 = tpu.matmul %29, %1, %cst_30 {dimension_numbers = #tpu.dot_dimension_numbers<[1], [0], [0], [1], [0, 0, 1, 1], [], []>} : vector<1x128xf32>, vector<128x128xf32>, vector<1x128xf32> -> vector<1x128xf32>
    %cst_31 = arith.constant dense<0.000000e+00> : vector<1x128xf32>
    %34 = tpu.matmul %32, %1, %cst_31 {dimension_numbers = #tpu.dot_dimension_numbers<[1], [0], [0], [1], [0, 0, 1, 1], [], []>} : vector<1x128xf32>, vector<128x128xf32>, vector<1x128xf32> -> vector<1x128xf32>
    %cst_32 = arith.constant 0.001953125 : f32
    %35 = vector.broadcast %cst_32 : f32 to vector<1x128xf32>
    %36 = arith.mulf %33, %35 : vector<1x128xf32>
    %cst_33 = arith.constant 0.001953125 : f32
    %37 = vector.broadcast %cst_33 : f32 to vector<1x128xf32>
    %38 = arith.mulf %34, %37 : vector<1x128xf32>
    %39 = arith.mulf %36, %36 : vector<1x128xf32>
    %40 = arith.subf %38, %39 : vector<1x128xf32>
    %cst_34 = arith.constant 0.000000e+00 : f32
    %41 = vector.broadcast %cst_34 : f32 to vector<1x128xf32>
    %42 = arith.maximumf %40, %41 : vector<1x128xf32>
    %cst_35 = arith.constant 9.99999974E-6 : f32
    %43 = vector.broadcast %cst_35 : f32 to vector<1x128xf32>
    %44 = arith.addf %42, %43 : vector<1x128xf32>
    %45 = math.rsqrt %44 : vector<1x128xf32>
    %46 = vector.broadcast %36 : vector<1x128xf32> to vector<324x128xf32>
    %47 = arith.subf %23, %46 : vector<324x128xf32>
    %48 = vector.broadcast %45 : vector<1x128xf32> to vector<324x128xf32>
    %49 = arith.mulf %47, %48 : vector<324x128xf32>
    %50 = vector.broadcast %24 : vector<1x128xf32> to vector<324x128xf32>
    %51 = arith.mulf %49, %50 : vector<324x128xf32>
    %52 = vector.broadcast %25 : vector<1x128xf32> to vector<324x128xf32>
    %53 = arith.addf %51, %52 : vector<324x128xf32>
    %54 = arith.negf %53 : vector<324x128xf32>
    %55 = math.exp %54 : vector<324x128xf32>
    %cst_36 = arith.constant 1.000000e+00 : f32
    %56 = vector.broadcast %cst_36 : f32 to vector<324x128xf32>
    %57 = arith.addf %56, %55 : vector<324x128xf32>
    %58 = arith.divf %56, %57 : vector<324x128xf32>
    %59 = arith.mulf %53, %58 : vector<324x128xf32>
    %60 = vector.broadcast %0 : vector<324x1xf32> to vector<324x128xf32>
    %61 = arith.mulf %59, %60 : vector<324x128xf32>
    %cst_37 = arith.constant 0.000000e+00 : bf16
    %62 = vector.broadcast %cst_37 : bf16 to vector<24x128xbf16>
    %c0_38 = arith.constant 0 : index
    %c0_39 = arith.constant 0 : index
    %63 = vector.load %arg13[%c0_38, %c0_39] : memref<372x128xbf16, #tpu.memory_space<vmem>>, vector<24x128xbf16>
    tpu.vector_store %arg13[%c0_38, %c0_39], %62 {strides = array<i32>} : memref<372x128xbf16, #tpu.memory_space<vmem>>, vector<24x128xbf16>,
    %c348 = arith.constant 348 : index
    %c0_40 = arith.constant 0 : index
    %64 = vector.load %arg13[%c348, %c0_40] : memref<372x128xbf16, #tpu.memory_space<vmem>>, vector<24x128xbf16>
    tpu.vector_store %arg13[%c348, %c0_40], %62 {strides = array<i32>} : memref<372x128xbf16, #tpu.memory_space<vmem>>, vector<24x128xbf16>,
    %65 = arith.truncf %61 : vector<324x128xf32> to vector<324x128xbf16>
    %c24_41 = arith.constant 24 : index
    %c0_42 = arith.constant 0 : index
    %66 = vector.load %arg13[%c24_41, %c0_42] : memref<372x128xbf16, #tpu.memory_space<vmem>>, vector<324x128xbf16>
    tpu.vector_store %arg13[%c24_41, %c0_42], %65 {strides = array<i32>} : memref<372x128xbf16, #tpu.memory_space<vmem>>, vector<324x128xbf16>,
    %c5_43 = arith.constant 5 : index
    %c0_44 = arith.constant 0 : index
    %67 = vector.load %arg13[%c5_43, %c0_44] : memref<372x128xbf16, #tpu.memory_space<vmem>>, vector<324x128xbf16>
    %c6_45 = arith.constant 6 : index
    %c0_46 = arith.constant 0 : index
    %68 = vector.load %arg13[%c6_45, %c0_46] : memref<372x128xbf16, #tpu.memory_space<vmem>>, vector<324x128xbf16>
    %c7_47 = arith.constant 7 : index
    %c0_48 = arith.constant 0 : index
    %69 = vector.load %arg13[%c7_47, %c0_48] : memref<372x128xbf16, #tpu.memory_space<vmem>>, vector<324x128xbf16>
    %c23_49 = arith.constant 23 : index
    %c0_50 = arith.constant 0 : index
    %70 = vector.load %arg13[%c23_49, %c0_50] : memref<372x128xbf16, #tpu.memory_space<vmem>>, vector<324x128xbf16>
    %c24_51 = arith.constant 24 : index
    %c0_52 = arith.constant 0 : index
    %71 = vector.load %arg13[%c24_51, %c0_52] : memref<372x128xbf16, #tpu.memory_space<vmem>>, vector<324x128xbf16>
    %c25_53 = arith.constant 25 : index
    %c0_54 = arith.constant 0 : index
    %72 = vector.load %arg13[%c25_53, %c0_54] : memref<372x128xbf16, #tpu.memory_space<vmem>>, vector<324x128xbf16>
    %c41_55 = arith.constant 41 : index
    %c0_56 = arith.constant 0 : index
    %73 = vector.load %arg13[%c41_55, %c0_56] : memref<372x128xbf16, #tpu.memory_space<vmem>>, vector<324x128xbf16>
    %c42_57 = arith.constant 42 : index
    %c0_58 = arith.constant 0 : index
    %74 = vector.load %arg13[%c42_57, %c0_58] : memref<372x128xbf16, #tpu.memory_space<vmem>>, vector<324x128xbf16>
    %c43_59 = arith.constant 43 : index
    %c0_60 = arith.constant 0 : index
    %75 = vector.load %arg13[%c43_59, %c0_60] : memref<372x128xbf16, #tpu.memory_space<vmem>>, vector<324x128xbf16>
    %76 = tpu.concatenate %67, %68, %69, %70, %71, %72, %73, %74, %75 in 1 : vector<324x128xbf16>, vector<324x128xbf16>, vector<324x128xbf16>, vector<324x128xbf16>, vector<324x128xbf16>, vector<324x128xbf16>, vector<324x128xbf16>, vector<324x128xbf16>, vector<324x128xbf16> -> vector<324x1152xbf16>
    %c0_61 = arith.constant 0 : index
    %c0_62 = arith.constant 0 : index
    %c0_63 = arith.constant 0 : index
    %77 = vector.load %arg3[%c0_61, %c0_62, %c0_63] : memref<1x1152x128xbf16, #tpu.memory_space<vmem>>, vector<1x1152x128xbf16>
    %78 = vector.shape_cast %77 : vector<1x1152x128xbf16> to vector<1152x128xbf16>
    %cst_64 = arith.constant dense<0.000000e+00> : vector<324x128xf32>
    %79 = tpu.matmul %76, %78, %cst_64 {dimension_numbers = #tpu.dot_dimension_numbers<[1], [0], [0], [1], [0, 0, 1, 1], [], []>} : vector<324x1152xbf16>, vector<1152x128xbf16>, vector<324x128xf32> -> vector<324x128xf32>
    %c0_65 = arith.constant 0 : index
    %c0_66 = arith.constant 0 : index
    %80 = vector.load %arg6[%c0_65, %c0_66] : memref<1x128xf32, #tpu.memory_space<vmem>>, vector<1x128xf32>
    %c0_67 = arith.constant 0 : index
    %c0_68 = arith.constant 0 : index
    %81 = vector.load %arg7[%c0_67, %c0_68] : memref<1x128xf32, #tpu.memory_space<vmem>>, vector<1x128xf32>
    %82 = vector.broadcast %0 : vector<324x1xf32> to vector<324x128xf32>
    %83 = arith.mulf %79, %82 : vector<324x128xf32>
    %cst_69 = arith.constant dense<0.000000e+00> : vector<128xf32>
    %84 = vector.multi_reduction <add>, %83, %cst_69 [0] : vector<324x128xf32> to vector<128xf32>
    %85 = vector.shape_cast %84 : vector<128xf32> to vector<1x128xf32>
    %86 = arith.mulf %83, %83 : vector<324x128xf32>
    %cst_70 = arith.constant dense<0.000000e+00> : vector<128xf32>
    %87 = vector.multi_reduction <add>, %86, %cst_70 [0] : vector<324x128xf32> to vector<128xf32>
    %88 = vector.shape_cast %87 : vector<128xf32> to vector<1x128xf32>
    %cst_71 = arith.constant dense<0.000000e+00> : vector<1x128xf32>
    %89 = tpu.matmul %85, %1, %cst_71 {dimension_numbers = #tpu.dot_dimension_numbers<[1], [0], [0], [1], [0, 0, 1, 1], [], []>} : vector<1x128xf32>, vector<128x128xf32>, vector<1x128xf32> -> vector<1x128xf32>
    %cst_72 = arith.constant dense<0.000000e+00> : vector<1x128xf32>
    %90 = tpu.matmul %88, %1, %cst_72 {dimension_numbers = #tpu.dot_dimension_numbers<[1], [0], [0], [1], [0, 0, 1, 1], [], []>} : vector<1x128xf32>, vector<128x128xf32>, vector<1x128xf32> -> vector<1x128xf32>
    %cst_73 = arith.constant 0.001953125 : f32
    %91 = vector.broadcast %cst_73 : f32 to vector<1x128xf32>
    %92 = arith.mulf %89, %91 : vector<1x128xf32>
    %cst_74 = arith.constant 0.001953125 : f32
    %93 = vector.broadcast %cst_74 : f32 to vector<1x128xf32>
    %94 = arith.mulf %90, %93 : vector<1x128xf32>
    %95 = arith.mulf %92, %92 : vector<1x128xf32>
    %96 = arith.subf %94, %95 : vector<1x128xf32>
    %cst_75 = arith.constant 0.000000e+00 : f32
    %97 = vector.broadcast %cst_75 : f32 to vector<1x128xf32>
    %98 = arith.maximumf %96, %97 : vector<1x128xf32>
    %cst_76 = arith.constant 9.99999974E-6 : f32
    %99 = vector.broadcast %cst_76 : f32 to vector<1x128xf32>
    %100 = arith.addf %98, %99 : vector<1x128xf32>
    %101 = math.rsqrt %100 : vector<1x128xf32>
    %102 = vector.broadcast %92 : vector<1x128xf32> to vector<324x128xf32>
    %103 = arith.subf %79, %102 : vector<324x128xf32>
    %104 = vector.broadcast %101 : vector<1x128xf32> to vector<324x128xf32>
    %105 = arith.mulf %103, %104 : vector<324x128xf32>
    %106 = vector.broadcast %80 : vector<1x128xf32> to vector<324x128xf32>
    %107 = arith.mulf %105, %106 : vector<324x128xf32>
    %108 = vector.broadcast %81 : vector<1x128xf32> to vector<324x128xf32>
    %109 = arith.addf %107, %108 : vector<324x128xf32>
    %110 = arith.negf %109 : vector<324x128xf32>
    %111 = math.exp %110 : vector<324x128xf32>
    %cst_77 = arith.constant 1.000000e+00 : f32
    %112 = vector.broadcast %cst_77 : f32 to vector<324x128xf32>
    %113 = arith.addf %112, %111 : vector<324x128xf32>
    %114 = arith.divf %112, %113 : vector<324x128xf32>
    %115 = arith.mulf %109, %114 : vector<324x128xf32>
    %c0_78 = arith.constant 0 : index
    %c24_79 = arith.constant 24 : index
    %c0_80 = arith.constant 0 : index
    %116 = vector.load %arg1[%c0_78, %c24_79, %c0_80] : memref<1x372x128xbf16, #tpu.memory_space<vmem>>, vector<1x324x128xbf16>
    %117 = vector.shape_cast %116 : vector<1x324x128xbf16> to vector<324x128xbf16>
    %c0_81 = arith.constant 0 : index
    %c0_82 = arith.constant 0 : index
    %118 = vector.load %arg10[%c0_81, %c0_82] : memref<128x128xbf16, #tpu.memory_space<vmem>>, vector<128x128xbf16>
    %cst_83 = arith.constant dense<0.000000e+00> : vector<324x128xf32>
    %119 = tpu.matmul %117, %118, %cst_83 {dimension_numbers = #tpu.dot_dimension_numbers<[1], [0], [0], [1], [0, 0, 1, 1], [], []>} : vector<324x128xbf16>, vector<128x128xbf16>, vector<324x128xf32> -> vector<324x128xf32>
    %c0_84 = arith.constant 0 : index
    %c0_85 = arith.constant 0 : index
    %120 = vector.load %arg11[%c0_84, %c0_85] : memref<1x128xf32, #tpu.memory_space<vmem>>, vector<1x128xf32>
    %121 = vector.broadcast %120 : vector<1x128xf32> to vector<324x128xf32>
    %122 = arith.addf %119, %121 : vector<324x128xf32>
    %123 = arith.addf %115, %122 : vector<324x128xf32>
    %c0_86 = arith.constant 0 : index
    %c0_87 = arith.constant 0 : index
    %c0_88 = arith.constant 0 : index
    %124 = vector.load %arg12[%c0_86, %c0_87, %c0_88] : memref<1x324x128xf32, #tpu.memory_space<vmem>>, vector<1x324x128xf32>
    %125 = vector.shape_cast %124 : vector<1x324x128xf32> to vector<324x128xf32>
    %126 = vector.shape_cast %123 : vector<324x128xf32> to vector<1x324x128xf32>
    tpu.vector_store %arg12[%c0_86, %c0_87, %c0_88], %126 {strides = array<i32>} : memref<1x324x128xf32, #tpu.memory_space<vmem>>, vector<1x324x128xf32>,
    return
  }
  func.func @transform_0(%arg0: i32) -> (i32, i32, i32) {
    %c0_i32 = arith.constant 0 : i32
    %c0_i32_0 = arith.constant 0 : i32
    %c0_i32_1 = arith.constant 0 : i32
    return %arg0, %c0_i32, %c0_i32_0 : i32, i32, i32
  }
  func.func @transform_1(%arg0: i32) -> (i32, i32, i32) {
    %c0_i32 = arith.constant 0 : i32
    %c0_i32_0 = arith.constant 0 : i32
    %c0_i32_1 = arith.constant 0 : i32
    return %arg0, %c0_i32, %c0_i32_0 : i32, i32, i32
  }
  func.func @transform_2(%arg0: i32) -> (i32, i32, i32) {
    %c0_i32 = arith.constant 0 : i32
    %c0_i32_0 = arith.constant 0 : i32
    %c0_i32_1 = arith.constant 0 : i32
    return %arg0, %c0_i32, %c0_i32_0 : i32, i32, i32
  }
  func.func @transform_3(%arg0: i32) -> (i32, i32) {
    %c0_i32 = arith.constant 0 : i32
    %c0_i32_0 = arith.constant 0 : i32
    %c0_i32_1 = arith.constant 0 : i32
    return %c0_i32, %c0_i32_0 : i32, i32
  }
  func.func @transform_4(%arg0: i32) -> (i32, i32) {
    %c0_i32 = arith.constant 0 : i32
    %c0_i32_0 = arith.constant 0 : i32
    %c0_i32_1 = arith.constant 0 : i32
    return %c0_i32, %c0_i32_0 : i32, i32
  }
  func.func @transform_5(%arg0: i32) -> (i32, i32) {
    %c0_i32 = arith.constant 0 : i32
    %c0_i32_0 = arith.constant 0 : i32
    %c0_i32_1 = arith.constant 0 : i32
    return %c0_i32, %c0_i32_0 : i32, i32
  }
  func.func @transform_6(%arg0: i32) -> (i32, i32) {
    %c0_i32 = arith.constant 0 : i32
    %c0_i32_0 = arith.constant 0 : i32
    %c0_i32_1 = arith.constant 0 : i32
    return %c0_i32, %c0_i32_0 : i32, i32
  }
  func.func @transform_7(%arg0: i32) -> (i32, i32) {
    %c0_i32 = arith.constant 0 : i32
    %c0_i32_0 = arith.constant 0 : i32
    %c0_i32_1 = arith.constant 0 : i32
    return %c0_i32, %c0_i32_0 : i32, i32
  }
  func.func @transform_8(%arg0: i32) -> (i32, i32) {
    %c0_i32 = arith.constant 0 : i32
    %c0_i32_0 = arith.constant 0 : i32
    %c0_i32_1 = arith.constant 0 : i32
    return %c0_i32, %c0_i32_0 : i32, i32
  }
  func.func @transform_9(%arg0: i32) -> (i32, i32) {
    %c0_i32 = arith.constant 0 : i32
    %c0_i32_0 = arith.constant 0 : i32
    %c0_i32_1 = arith.constant 0 : i32
    return %c0_i32, %c0_i32_0 : i32, i32
  }
  func.func @transform_10(%arg0: i32) -> (i32, i32) {
    %c0_i32 = arith.constant 0 : i32
    %c0_i32_0 = arith.constant 0 : i32
    %c0_i32_1 = arith.constant 0 : i32
    return %c0_i32, %c0_i32_0 : i32, i32
  }
  func.func @transform_11(%arg0: i32) -> (i32, i32, i32) {
    %c0_i32 = arith.constant 0 : i32
    %c0_i32_0 = arith.constant 0 : i32
    %c0_i32_1 = arith.constant 0 : i32
    return %arg0, %c0_i32, %c0_i32_0 : i32, i32, i32
  }
}

</mosaic_0001>

<llo_original>
// kernel: resnet_block_forward.1
$region0: #{resnet_block_forward.1}
  #allocation0 [shape = 'u32[]', space=smem, size = 0x4, offset = 0x4, fixed_abs, tag = 'smem constant byte address 0x4 - core index']
  #allocation1 [shape = 'u32[144,128]{1,0:T(1,128)}', space=vmem, size = 0x12000, scoped, tag = 'internal scratch']
  #allocation2 [shape = 'bf16[372,128]{1,0:T(8,128)(2,1)}', space=vmem, size = 0x17800, scoped, tag = 'scratch operand']
  %s0 = inlined_call_operand.vmem [shape: bf16[2,372,128], index: 0, kind: input, shape index: {}]
  %s1 = inlined_call_operand.vmem [shape: bf16[2,1152,128], index: 1, kind: input, shape index: {}]
  %s2 = inlined_call_operand.vmem [shape: bf16[2,1152,128], index: 2, kind: input, shape index: {}]
  %s3 = inlined_call_operand.vmem [shape: f32[1,128], index: 3, kind: input, shape index: {}]
  %s4 = inlined_call_operand.vmem [shape: f32[1,128], index: 4, kind: input, shape index: {}]
  %s5 = inlined_call_operand.vmem [shape: f32[1,128], index: 5, kind: input, shape index: {}]
  %s6 = inlined_call_operand.vmem [shape: f32[1,128], index: 6, kind: input, shape index: {}]
  %s7 = inlined_call_operand.vmem [shape: f32[128,128], index: 7, kind: input, shape index: {}]
  %s8 = inlined_call_operand.vmem [shape: f32[324,1], index: 8, kind: input, shape index: {}]
  %s9 = inlined_call_operand.vmem [shape: bf16[128,128], index: 9, kind: input, shape index: {}]
  %s10 = inlined_call_operand.vmem [shape: f32[1,128], index: 10, kind: input, shape index: {}]
  %s11 = inlined_call_operand.vmem [shape: f32[2,324,128], index: 11, kind: output, shape index: {}]
  %s12 = sld [smem:[#allocation0]]
  $region77: #{resnet_block_forward.1} parent=0
    _
  %s14 = ssub.s32 1, %s12
  %s15 = scalar_select 0, %s14, %s12
  loop: start=0, step=1, limit=4
  $region2: #{resnet_block_forward.1} parent=0 // loop_pre_header
    _
  $region3: #{resnet_block_forward.1} parent=0 // loop_header
    %s17 = sphi 0, %s21
    %p18 = scmp.ge.s32.totalorder %s17, 4
    %s27 = sphi 0, %s29
    %s30 = sphi 0, %s27
    %s31 = sphi 0, %s30
    %s47 = sphi 0, %s31
    %s53 = sphi 0, %s55
    %s56 = sphi 0, %s53
    %s57 = sphi 0, %s56
    %s73 = sphi 0, %s57
    %s79 = sphi 0, %s81
    %s82 = sphi 0, %s79
    %s83 = sphi 0, %s82
    %s99 = sphi 0, %s83
    %s103 = sphi 0, %s103
    %s105 = sphi 0, %s103
    %s106 = sphi 0, %s105
    %s120 = sphi 0, %s106
    %s124 = sphi 0, %s124
    %s126 = sphi 0, %s124
    %s127 = sphi 0, %s126
    %s141 = sphi 0, %s127
    %s145 = sphi 0, %s145
    %s147 = sphi 0, %s145
    %s148 = sphi 0, %s147
    %s162 = sphi 0, %s148
    %s166 = sphi 0, %s166
    %s168 = sphi 0, %s166
    %s169 = sphi 0, %s168
    %s183 = sphi 0, %s169
    %s187 = sphi 0, %s187
    %s189 = sphi 0, %s187
    %s190 = sphi 0, %s189
    %s204 = sphi 0, %s190
    %s208 = sphi 0, %s208
    %s210 = sphi 0, %s208
    %s211 = sphi 0, %s210
    %s225 = sphi 0, %s211
    %s229 = sphi 0, %s229
    %s231 = sphi 0, %s229
    %s232 = sphi 0, %s231
    %s246 = sphi 0, %s232
    %s250 = sphi 0, %s250
    %s252 = sphi 0, %s250
    %s253 = sphi 0, %s252
    %s267 = sphi 0, %s253
    %s273 = sphi 0, %s275
    %s276 = sphi 0, %s273
    %s277 = sphi 0, %s276
    %s293 = sphi 0, %s277
  $region4: #{resnet_block_forward.1} parent=0 // loop_header_branch
    %20 = sbr.rel (%p18) target = $region8
  $region5: #{resnet_block_forward.1} parent=0 // loop_body
    %s22 = ssub.s32 %s17, 1
    %s23 = ssub.s32 %s17, 2
    %s24 = sadd.s32 %s17, 1
    %s25 = ssub.s32 %s17, %s24
    %p26 = scmp.eq.s32.totalorder %s25, 0
    %s28 = sadd.s32 %s27, 1
    %s29 = scalar_select %p26, %s27, %s28
    %p32 = pneg %p26
    %p33 = scmp.eq.s32.totalorder %s17, 1
    %p34 = por %p32, %p33
    %p35 = scmp.ne.s32.totalorder %s27, %s30
    %p36 = scmp.eq.s32.totalorder %s17, 0
    %p37 = por %p35, %p36
    %p38 = scmp.ne.s32.totalorder %s27, %s30
    %p39 = scmp.eq.s32.totalorder %s22, 1
    %p40 = por %p38, %p39
    %p41 = scmp.ne.s32.totalorder %s30, %s31
    %p42 = scmp.eq.s32.totalorder %s22, 0
    %p43 = por %p41, %p42
    %p44 = scmp.ne.s32.totalorder %s30, %s31
    %p45 = scmp.eq.s32.totalorder %s23, 1
    %p46 = por %p44, %p45
    %p48 = scmp.ne.s32.totalorder %s31, %s47
    %p49 = scmp.eq.s32.totalorder %s23, 0
    %p50 = por %p48, %p49
    %s51 = ssub.s32 %s17, %s24
    %p52 = scmp.eq.s32.totalorder %s51, 0
    %s54 = sadd.s32 %s53, 1
    %s55 = scalar_select %p52, %s53, %s54
    %p58 = pneg %p52
    %p59 = scmp.eq.s32.totalorder %s17, 1
    %p60 = por %p58, %p59
    %p61 = scmp.ne.s32.totalorder %s53, %s56
    %p62 = scmp.eq.s32.totalorder %s17, 0
    %p63 = por %p61, %p62
    %p64 = scmp.ne.s32.totalorder %s53, %s56
    %p65 = scmp.eq.s32.totalorder %s22, 1
    %p66 = por %p64, %p65
    %p67 = scmp.ne.s32.totalorder %s56, %s57
    %p68 = scmp.eq.s32.totalorder %s22, 0
    %p69 = por %p67, %p68
    %p70 = scmp.ne.s32.totalorder %s56, %s57
    %p71 = scmp.eq.s32.totalorder %s23, 1
    %p72 = por %p70, %p71
    %p74 = scmp.ne.s32.totalorder %s57, %s73
    %p75 = scmp.eq.s32.totalorder %s23, 0
    %p76 = por %p74, %p75
    %s77 = ssub.s32 %s17, %s24
    %p78 = scmp.eq.s32.totalorder %s77, 0
    %s80 = sadd.s32 %s79, 1
    %s81 = scalar_select %p78, %s79, %s80
    %p84 = pneg %p78
    %p85 = scmp.eq.s32.totalorder %s17, 1
    %p86 = por %p84, %p85
    %p87 = scmp.ne.s32.totalorder %s79, %s82
    %p88 = scmp.eq.s32.totalorder %s17, 0
    %p89 = por %p87, %p88
    %p90 = scmp.ne.s32.totalorder %s79, %s82
    %p91 = scmp.eq.s32.totalorder %s22, 1
    %p92 = por %p90, %p91
    %p93 = scmp.ne.s32.totalorder %s82, %s83
    %p94 = scmp.eq.s32.totalorder %s22, 0
    %p95 = por %p93, %p94
    %p96 = scmp.ne.s32.totalorder %s82, %s83
    %p97 = scmp.eq.s32.totalorder %s23, 1
    %p98 = por %p96, %p97
    %p100 = scmp.ne.s32.totalorder %s83, %s99
    %p101 = scmp.eq.s32.totalorder %s23, 0
    %p102 = por %p100, %p101
    %s104 = sadd.s32 %s103, 1
    %p107 = scmp.eq.s32.totalorder %s17, 1
    %p108 = scmp.ne.s32.totalorder %s103, %s105
    %p109 = scmp.eq.s32.totalorder %s17, 0
    %p110 = por %p108, %p109
    %p111 = scmp.ne.s32.totalorder %s103, %s105
    %p112 = scmp.eq.s32.totalorder %s22, 1
    %p113 = por %p111, %p112
    %p114 = scmp.ne.s32.totalorder %s105, %s106
    %p115 = scmp.eq.s32.totalorder %s22, 0
    %p116 = por %p114, %p115
    %p117 = scmp.ne.s32.totalorder %s105, %s106
    %p118 = scmp.eq.s32.totalorder %s23, 1
    %p119 = por %p117, %p118
    %p121 = scmp.ne.s32.totalorder %s106, %s120
    %p122 = scmp.eq.s32.totalorder %s23, 0
    %p123 = por %p121, %p122
    %s125 = sadd.s32 %s124, 1
    %p128 = scmp.eq.s32.totalorder %s17, 1
    %p129 = scmp.ne.s32.totalorder %s124, %s126
    %p130 = scmp.eq.s32.totalorder %s17, 0
    %p131 = por %p129, %p130
    %p132 = scmp.ne.s32.totalorder %s124, %s126
    %p133 = scmp.eq.s32.totalorder %s22, 1
    %p134 = por %p132, %p133
    %p135 = scmp.ne.s32.totalorder %s126, %s127
    %p136 = scmp.eq.s32.totalorder %s22, 0
    %p137 = por %p135, %p136
    %p138 = scmp.ne.s32.totalorder %s126, %s127
    %p139 = scmp.eq.s32.totalorder %s23, 1
    %p140 = por %p138, %p139
    %p142 = scmp.ne.s32.totalorder %s127, %s141
    %p143 = scmp.eq.s32.totalorder %s23, 0
    %p144 = por %p142, %p143
    %s146 = sadd.s32 %s145, 1
    %p149 = scmp.eq.s32.totalorder %s17, 1
    %p150 = scmp.ne.s32.totalorder %s145, %s147
    %p151 = scmp.eq.s32.totalorder %s17, 0
    %p152 = por %p150, %p151
    %p153 = scmp.ne.s32.totalorder %s145, %s147
    %p154 = scmp.eq.s32.totalorder %s22, 1
    %p155 = por %p153, %p154
    %p156 = scmp.ne.s32.totalorder %s147, %s148
    %p157 = scmp.eq.s32.totalorder %s22, 0
    %p158 = por %p156, %p157
    %p159 = scmp.ne.s32.totalorder %s147, %s148
    %p160 = scmp.eq.s32.totalorder %s23, 1
    %p161 = por %p159, %p160
    %p163 = scmp.ne.s32.totalorder %s148, %s162
    %p164 = scmp.eq.s32.totalorder %s23, 0
    %p165 = por %p163, %p164
    %s167 = sadd.s32 %s166, 1
    %p170 = scmp.eq.s32.totalorder %s17, 1
    %p171 = scmp.ne.s32.totalorder %s166, %s168
    %p172 = scmp.eq.s32.totalorder %s17, 0
    %p173 = por %p171, %p172
    %p174 = scmp.ne.s32.totalorder %s166, %s168
    %p175 = scmp.eq.s32.totalorder %s22, 1
    %p176 = por %p174, %p175
    %p177 = scmp.ne.s32.totalorder %s168, %s169
    %p178 = scmp.eq.s32.totalorder %s22, 0
    %p179 = por %p177, %p178
    %p180 = scmp.ne.s32.totalorder %s168, %s169
    %p181 = scmp.eq.s32.totalorder %s23, 1
    %p182 = por %p180, %p181
    %p184 = scmp.ne.s32.totalorder %s169, %s183
    %p185 = scmp.eq.s32.totalorder %s23, 0
    %p186 = por %p184, %p185
    %s188 = sadd.s32 %s187, 1
    %p191 = scmp.eq.s32.totalorder %s17, 1
    %p192 = scmp.ne.s32.totalorder %s187, %s189
    %p193 = scmp.eq.s32.totalorder %s17, 0
    %p194 = por %p192, %p193
    %p195 = scmp.ne.s32.totalorder %s187, %s189
    %p196 = scmp.eq.s32.totalorder %s22, 1
    %p197 = por %p195, %p196
    %p198 = scmp.ne.s32.totalorder %s189, %s190
    %p199 = scmp.eq.s32.totalorder %s22, 0
    %p200 = por %p198, %p199
    %p201 = scmp.ne.s32.totalorder %s189, %s190
    %p202 = scmp.eq.s32.totalorder %s23, 1
    %p203 = por %p201, %p202
    %p205 = scmp.ne.s32.totalorder %s190, %s204
    %p206 = scmp.eq.s32.totalorder %s23, 0
    %p207 = por %p205, %p206
    %s209 = sadd.s32 %s208, 1
    %p212 = scmp.eq.s32.totalorder %s17, 1
    %p213 = scmp.ne.s32.totalorder %s208, %s210
    %p214 = scmp.eq.s32.totalorder %s17, 0
    %p215 = por %p213, %p214
    %p216 = scmp.ne.s32.totalorder %s208, %s210
    %p217 = scmp.eq.s32.totalorder %s22, 1
    %p218 = por %p216, %p217
    %p219 = scmp.ne.s32.totalorder %s210, %s211
    %p220 = scmp.eq.s32.totalorder %s22, 0
    %p221 = por %p219, %p220
    %p222 = scmp.ne.s32.totalorder %s210, %s211
    %p223 = scmp.eq.s32.totalorder %s23, 1
    %p224 = por %p222, %p223
    %p226 = scmp.ne.s32.totalorder %s211, %s225
    %p227 = scmp.eq.s32.totalorder %s23, 0
    %p228 = por %p226, %p227
    %s230 = sadd.s32 %s229, 1
    %p233 = scmp.eq.s32.totalorder %s17, 1
    %p234 = scmp.ne.s32.totalorder %s229, %s231
    %p235 = scmp.eq.s32.totalorder %s17, 0
    %p236 = por %p234, %p235
    %p237 = scmp.ne.s32.totalorder %s229, %s231
    %p238 = scmp.eq.s32.totalorder %s22, 1
    %p239 = por %p237, %p238
    %p240 = scmp.ne.s32.totalorder %s231, %s232
    %p241 = scmp.eq.s32.totalorder %s22, 0
    %p242 = por %p240, %p241
    %p243 = scmp.ne.s32.totalorder %s231, %s232
    %p244 = scmp.eq.s32.totalorder %s23, 1
    %p245 = por %p243, %p244
    %p247 = scmp.ne.s32.totalorder %s232, %s246
    %p248 = scmp.eq.s32.totalorder %s23, 0
    %p249 = por %p247, %p248
    %s251 = sadd.s32 %s250, 1
    %p254 = scmp.eq.s32.totalorder %s17, 1
    %p255 = scmp.ne.s32.totalorder %s250, %s252
    %p256 = scmp.eq.s32.totalorder %s17, 0
    %p257 = por %p255, %p256
    %p258 = scmp.ne.s32.totalorder %s250, %s252
    %p259 = scmp.eq.s32.totalorder %s22, 1
    %p260 = por %p258, %p259
    %p261 = scmp.ne.s32.totalorder %s252, %s253
    %p262 = scmp.eq.s32.totalorder %s22, 0
    %p263 = por %p261, %p262
    %p264 = scmp.ne.s32.totalorder %s252, %s253
    %p265 = scmp.eq.s32.totalorder %s23, 1
    %p266 = por %p264, %p265
    %p268 = scmp.ne.s32.totalorder %s253, %s267
    %p269 = scmp.eq.s32.totalorder %s23, 0
    %p270 = por %p268, %p269
    %s271 = ssub.s32 %s17, %s24
    %p272 = scmp.eq.s32.totalorder %s271, 0
    %s274 = sadd.s32 %s273, 1
    %s275 = scalar_select %p272, %s273, %s274
    %p278 = pneg %p272
    %p279 = scmp.eq.s32.totalorder %s17, 1
    %p280 = por %p278, %p279
    %p281 = scmp.ne.s32.totalorder %s273, %s276
    %p282 = scmp.eq.s32.totalorder %s17, 0
    %p283 = por %p281, %p282
    %p284 = scmp.ne.s32.totalorder %s273, %s276
    %p285 = scmp.eq.s32.totalorder %s22, 1
    %p286 = por %p284, %p285
    %p287 = scmp.ne.s32.totalorder %s276, %s277
    %p288 = scmp.eq.s32.totalorder %s22, 0
    %p289 = por %p287, %p288
    %p290 = scmp.ne.s32.totalorder %s276, %s277
    %p291 = scmp.eq.s32.totalorder %s23, 1
    %p292 = por %p290, %p291
    %p294 = scmp.ne.s32.totalorder %s277, %s293
    %p295 = scmp.eq.s32.totalorder %s23, 0
    %p296 = por %p294, %p295
    %p297 = scmp.le.s32.totalorder 1, %s17
    %p298 = scmp.lt.s32.totalorder %s17, 3
    %p299 = pnand %p297, %p298
    %p300 = pneg %p299
    // Predicated region
    $region9: #{resnet_block_forward.1} parent=5 // pred_check
      _
    $region10: #{resnet_block_forward.1} parent=5 // pred_check_branch
      %302 = sbr.rel (%p299) target = $region12
    $region11: #{resnet_block_forward.1} parent=5 // pred_region
      %s303 = ssub.s32 %s17, 1
      // Predicated region
      $region13: #{resnet_block_forward.1} parent=11 // pred_check
        %p304 = pneg %p116
      $region14: #{resnet_block_forward.1} parent=11 // pred_check_branch
        %306 = sbr.rel (%p304) target = $region16
      $region15: #{resnet_block_forward.1} parent=11 // pred_region
        _
      $region16: #{resnet_block_forward.1} parent=11 // pred_fallthru
        _
      // Predicated region
      $region17: #{resnet_block_forward.1} parent=11 // pred_check
        %p307 = pneg %p137
      $region18: #{resnet_block_forward.1} parent=11 // pred_check_branch
        %309 = sbr.rel (%p307) target = $region20
      $region19: #{resnet_block_forward.1} parent=11 // pred_region
        _
      $region20: #{resnet_block_forward.1} parent=11 // pred_fallthru
        _
      // Predicated region
      $region21: #{resnet_block_forward.1} parent=11 // pred_check
        %p310 = pneg %p158
      $region22: #{resnet_block_forward.1} parent=11 // pred_check_branch
        %312 = sbr.rel (%p310) target = $region24
      $region23: #{resnet_block_forward.1} parent=11 // pred_region
        _
      $region24: #{resnet_block_forward.1} parent=11 // pred_fallthru
        _
      // Predicated region
      $region25: #{resnet_block_forward.1} parent=11 // pred_check
        %p313 = pneg %p179
      $region26: #{resnet_block_forward.1} parent=11 // pred_check_branch
        %315 = sbr.rel (%p313) target = $region28
      $region27: #{resnet_block_forward.1} parent=11 // pred_region
        _
      $region28: #{resnet_block_forward.1} parent=11 // pred_fallthru
        _
      // Predicated region
      $region29: #{resnet_block_forward.1} parent=11 // pred_check
        %p316 = pneg %p200
      $region30: #{resnet_block_forward.1} parent=11 // pred_check_branch
        %318 = sbr.rel (%p316) target = $region32
      $region31: #{resnet_block_forward.1} parent=11 // pred_region
        _
      $region32: #{resnet_block_forward.1} parent=11 // pred_fallthru
        _
      // Predicated region
      $region33: #{resnet_block_forward.1} parent=11 // pred_check
        %p319 = pneg %p221
      $region34: #{resnet_block_forward.1} parent=11 // pred_check_branch
        %321 = sbr.rel (%p319) target = $region36
      $region35: #{resnet_block_forward.1} parent=11 // pred_region
        _
      $region36: #{resnet_block_forward.1} parent=11 // pred_fallthru
        _
      // Predicated region
      $region37: #{resnet_block_forward.1} parent=11 // pred_check
        %p322 = pneg %p242
      $region38: #{resnet_block_forward.1} parent=11 // pred_check_branch
        %324 = sbr.rel (%p322) target = $region40
      $region39: #{resnet_block_forward.1} parent=11 // pred_region
        _
      $region40: #{resnet_block_forward.1} parent=11 // pred_fallthru
        _
      // Predicated region
      $region41: #{resnet_block_forward.1} parent=11 // pred_check
        %p325 = pneg %p263
      $region42: #{resnet_block_forward.1} parent=11 // pred_check_branch
        %327 = sbr.rel (%p325) target = $region44
      $region43: #{resnet_block_forward.1} parent=11 // pred_region
        _
      $region44: #{resnet_block_forward.1} parent=11 // pred_fallthru
        _
    $region12: #{resnet_block_forward.1} parent=5 // pred_fallthru
      _
    %p328 = scmp.lt.s32.totalorder %s17, 2
    // Predicated region
    $region45: #{resnet_block_forward.1} parent=5 // pred_check
      %p329 = pneg %p328
    $region46: #{resnet_block_forward.1} parent=5 // pred_check_branch
      %331 = sbr.rel (%p329) target = $region48
    $region47: #{resnet_block_forward.1} parent=5 // pred_region
      // Predicated region
      $region49: #{resnet_block_forward.1} parent=47 // pred_check
        %p332 = pneg %p37
      $region50: #{resnet_block_forward.1} parent=47 // pred_check_branch
        %334 = sbr.rel (%p332) target = $region52
      $region51: #{resnet_block_forward.1} parent=47 // pred_region
        %p335 = scmp.lt.s32.totalorder %s17, 1
        %s336 = scalar_select %p335, %s17, 1
        %s337 = smul.addr %s336, 47
        %s338 = smul.addr %s337, 4
        %s339 = scalar_lea.vmem %s0, %s338
      $region52: #{resnet_block_forward.1} parent=47 // pred_fallthru
        _
      // Predicated region
      $region53: #{resnet_block_forward.1} parent=47 // pred_check
        %p340 = pneg %p63
      $region54: #{resnet_block_forward.1} parent=47 // pred_check_branch
        %342 = sbr.rel (%p340) target = $region56
      $region55: #{resnet_block_forward.1} parent=47 // pred_region
        %p343 = scmp.lt.s32.totalorder %s17, 1
        %s344 = scalar_select %p343, %s17, 1
        %s345 = smul.addr %s344, 144
        %s346 = smul.addr %s345, 4
        %s347 = scalar_lea.vmem %s1, %s346
      $region56: #{resnet_block_forward.1} parent=47 // pred_fallthru
        _
      // Predicated region
      $region57: #{resnet_block_forward.1} parent=47 // pred_check
        %p348 = pneg %p89
      $region58: #{resnet_block_forward.1} parent=47 // pred_check_branch
        %350 = sbr.rel (%p348) target = $region60
      $region59: #{resnet_block_forward.1} parent=47 // pred_region
        %p351 = scmp.lt.s32.totalorder %s17, 1
        %s352 = scalar_select %p351, %s17, 1
        %s353 = smul.addr %s352, 144
        %s354 = smul.addr %s353, 4
        %s355 = scalar_lea.vmem %s2, %s354
      $region60: #{resnet_block_forward.1} parent=47 // pred_fallthru
        _
    $region48: #{resnet_block_forward.1} parent=5 // pred_fallthru
      _
    %p356 = scmp.le.s32.totalorder 1, %s17
    %p357 = scmp.lt.s32.totalorder %s17, 3
    %p358 = pnand %p356, %p357
    %p359 = pneg %p358
    // Predicated region
    $region61: #{resnet_block_forward.1} parent=5 // pred_check
      _
    $region62: #{resnet_block_forward.1} parent=5 // pred_check_branch
      %361 = sbr.rel (%p358) target = $region64
    $region63: #{resnet_block_forward.1} parent=5 // pred_region
      %s362 = ssub.s32 %s17, 1
      %p363 = scmp.lt.s32.totalorder %s22, 1
      %s364 = scalar_select %p363, %s22, 1
      %s365 = smul.addr %s364, 47
      %s366 = smul.addr %s365, 4
      %s367 = scalar_lea.vmem %s0, %s366
      %p368 = pneg %p43
      %p369 = pneg %p40
      %p370 = scmp.lt.s32.totalorder %s22, 1
      %s371 = scalar_select %p370, %s22, 1
      %s372 = smul.addr %s371, 144
      %s373 = smul.addr %s372, 4
      %s374 = scalar_lea.vmem %s1, %s373
      %p375 = pneg %p69
      %p376 = pneg %p66
      %p377 = scmp.lt.s32.totalorder %s22, 1
      %s378 = scalar_select %p377, %s22, 1
      %s379 = smul.addr %s378, 144
      %s380 = smul.addr %s379, 4
      %s381 = scalar_lea.vmem %s2, %s380
      %p382 = pneg %p95
      %p383 = pneg %p92
      %p384 = pneg %p116
      %p385 = pneg %p113
      %p386 = pneg %p137
      %p387 = pneg %p134
      %p388 = pneg %p158
      %p389 = pneg %p155
      %p390 = pneg %p179
      %p391 = pneg %p176
      %p392 = pneg %p200
      %p393 = pneg %p197
      %p394 = pneg %p221
      %p395 = pneg %p218
      %p396 = pneg %p242
      %p397 = pneg %p239
      %p398 = pneg %p263
      %p399 = pneg %p260
      %p400 = pneg %p289
      %p401 = pneg %p286
      %p402 = scmp.lt.s32.totalorder %s22, 1
      %s403 = scalar_select %p402, %s22, 1
      %s404 = smul.addr %s403, 41
      %s405 = smul.addr %s404, 8
      %s406 = scalar_lea.vmem %s11, %s405
      %p407 = scmp.lt.s32.totalorder %s22, 1
      %s408 = scalar_select %p407, %s22, 1
      %s409 = smul.addr %s408, 47
      %s410 = smul.addr %s409, 4
      %s411 = scalar_lea.vmem %s0, %s410
      %p412 = scmp.lt.s32.totalorder %s22, 1
      %s413 = scalar_select %p412, %s22, 1
      %s414 = smul.addr %s413, 144
      %s415 = smul.addr %s414, 4
      %s416 = scalar_lea.vmem %s1, %s415
      %p417 = scmp.lt.s32.totalorder %s22, 1
      %s418 = scalar_select %p417, %s22, 1
      %s419 = smul.addr %s418, 144
      %s420 = smul.addr %s419, 4
      %s421 = scalar_lea.vmem %s2, %s420
      %p422 = scmp.lt.s32.totalorder %s22, 1
      %s423 = scalar_select %p422, %s22, 1
      %s424 = smul.addr %s423, 41
      %s425 = smul.addr %s424, 8
      %s426 = scalar_lea.vmem %s11, %s425
      %v428 = vld [vmem:[%s8] sm:$0xff]
      %v429 = vld [vmem:[%s8 + $0x8] sm:$0xff]
      %v430 = vld [vmem:[%s8 + $0x10] sm:$0xff]
      %v431 = vld [vmem:[%s8 + $0x18] sm:$0xff]
      %v432 = vld [vmem:[%s8 + $0x20] sm:$0xff]
      %v433 = vld [vmem:[%s8 + $0x28] sm:$0xff]
      %v434 = vld [vmem:[%s8 + $0x30] sm:$0xff]
      %v435 = vld [vmem:[%s8 + $0x38] sm:$0xff]
      %v436 = vld [vmem:[%s8 + $0x40] sm:$0xff]
      %v437 = vld [vmem:[%s8 + $0x48] sm:$0xff]
      %v438 = vld [vmem:[%s8 + $0x50] sm:$0xff]
      %v439 = vld [vmem:[%s8 + $0x58] sm:$0xff]
      %v440 = vld [vmem:[%s8 + $0x60] sm:$0xff]
      %v441 = vld [vmem:[%s8 + $0x68] sm:$0xff]
      %v442 = vld [vmem:[%s8 + $0x70] sm:$0xff]
      %v443 = vld [vmem:[%s8 + $0x78] sm:$0xff]
      %v444 = vld [vmem:[%s8 + $0x80] sm:$0xff]
      %v445 = vld [vmem:[%s8 + $0x88] sm:$0xff]
      %v446 = vld [vmem:[%s8 + $0x90] sm:$0xff]
      %v447 = vld [vmem:[%s8 + $0x98] sm:$0xff]
      %v448 = vld [vmem:[%s8 + $0xa0] sm:$0xff]
      %v449 = vld [vmem:[%s8 + $0xa8] sm:$0xff]
      %v450 = vld [vmem:[%s8 + $0xb0] sm:$0xff]
      %v451 = vld [vmem:[%s8 + $0xb8] sm:$0xff]
      %v452 = vld [vmem:[%s8 + $0xc0] sm:$0xff]
      %v453 = vld [vmem:[%s8 + $0xc8] sm:$0xff]
      %v454 = vld [vmem:[%s8 + $0xd0] sm:$0xff]
      %v455 = vld [vmem:[%s8 + $0xd8] sm:$0xff]
      %v456 = vld [vmem:[%s8 + $0xe0] sm:$0xff]
      %v457 = vld [vmem:[%s8 + $0xe8] sm:$0xff]
      %v458 = vld [vmem:[%s8 + $0xf0] sm:$0xff]
      %v459 = vld [vmem:[%s8 + $0xf8] sm:$0xff]
      %v460 = vld [vmem:[%s8 + $0x100] sm:$0xff]
      %v461 = vld [vmem:[%s8 + $0x108] sm:$0xff]
      %v462 = vld [vmem:[%s8 + $0x110] sm:$0xff]
      %v463 = vld [vmem:[%s8 + $0x118] sm:$0xff]
      %v464 = vld [vmem:[%s8 + $0x120] sm:$0xff]
      %v465 = vld [vmem:[%s8 + $0x128] sm:$0xff]
      %v466 = vld [vmem:[%s8 + $0x130] sm:$0xff]
      %v467 = vld [vmem:[%s8 + $0x138] sm:$0xff]
      %v468 = vld [vmem:[%s8 + $0x140] sm:$0xf]
      %v469 = vld [vmem:[%s7] sm:$0xff]
      %v470 = vld [vmem:[%s7 + $0x8] sm:$0xff]
      %v471 = vld [vmem:[%s7 + $0x10] sm:$0xff]
      %v472 = vld [vmem:[%s7 + $0x18] sm:$0xff]
      %v473 = vld [vmem:[%s7 + $0x20] sm:$0xff]
      %v474 = vld [vmem:[%s7 + $0x28] sm:$0xff]
      %v475 = vld [vmem:[%s7 + $0x30] sm:$0xff]
      %v476 = vld [vmem:[%s7 + $0x38] sm:$0xff]
      %v477 = vld [vmem:[%s7 + $0x40] sm:$0xff]
      %v478 = vld [vmem:[%s7 + $0x48] sm:$0xff]
      %v479 = vld [vmem:[%s7 + $0x50] sm:$0xff]
      %v480 = vld [vmem:[%s7 + $0x58] sm:$0xff]
      %v481 = vld [vmem:[%s7 + $0x60] sm:$0xff]
      %v482 = vld [vmem:[%s7 + $0x68] sm:$0xff]
      %v483 = vld [vmem:[%s7 + $0x70] sm:$0xff]
      %v484 = vld [vmem:[%s7 + $0x78] sm:$0xff]
      %v485 = vld [vmem:[%s411] sm:$0xc]
      %v486 = vld [vmem:[%s411 + $0x4] sm:$0xf]
      %v487 = vld [vmem:[%s411 + $0x8] sm:$0xf]
      %v488 = vld [vmem:[%s411 + $0xc] sm:$0xf]
      %v489 = vld [vmem:[%s411 + $0x10] sm:$0xf]
      %v490 = vld [vmem:[%s411 + $0x14] sm:$0xf]
      %v491 = vld [vmem:[%s411 + $0x18] sm:$0xf]
      %v492 = vld [vmem:[%s411 + $0x1c] sm:$0xf]
      %v493 = vld [vmem:[%s411 + $0x20] sm:$0xf]
      %v494 = vld [vmem:[%s411 + $0x24] sm:$0xf]
      %v495 = vld [vmem:[%s411 + $0x28] sm:$0xf]
      %v496 = vld [vmem:[%s411 + $0x2c] sm:$0xf]
      %v497 = vld [vmem:[%s411 + $0x30] sm:$0xf]
      %v498 = vld [vmem:[%s411 + $0x34] sm:$0xf]
      %v499 = vld [vmem:[%s411 + $0x38] sm:$0xf]
      %v500 = vld [vmem:[%s411 + $0x3c] sm:$0xf]
      %v501 = vld [vmem:[%s411 + $0x40] sm:$0xf]
      %v502 = vld [vmem:[%s411 + $0x44] sm:$0xf]
      %v503 = vld [vmem:[%s411 + $0x48] sm:$0xf]
      %v504 = vld [vmem:[%s411 + $0x4c] sm:$0xf]
      %v505 = vld [vmem:[%s411 + $0x50] sm:$0xf]
      %v506 = vld [vmem:[%s411 + $0x54] sm:$0xf]
      %v507 = vld [vmem:[%s411 + $0x58] sm:$0xf]
      %v508 = vld [vmem:[%s411 + $0x5c] sm:$0xf]
      %v509 = vld [vmem:[%s411 + $0x60] sm:$0xf]
      %v510 = vld [vmem:[%s411 + $0x64] sm:$0xf]
      %v511 = vld [vmem:[%s411 + $0x68] sm:$0xf]
      %v512 = vld [vmem:[%s411 + $0x6c] sm:$0xf]
      %v513 = vld [vmem:[%s411 + $0x70] sm:$0xf]
      %v514 = vld [vmem:[%s411 + $0x74] sm:$0xf]
      %v515 = vld [vmem:[%s411 + $0x78] sm:$0xf]
      %v516 = vld [vmem:[%s411 + $0x7c] sm:$0xf]
      %v517 = vld [vmem:[%s411 + $0x80] sm:$0xf]
      %v518 = vld [vmem:[%s411 + $0x84] sm:$0xf]
      %v519 = vld [vmem:[%s411 + $0x88] sm:$0xf]
      %v520 = vld [vmem:[%s411 + $0x8c] sm:$0xf]
      %v521 = vld [vmem:[%s411 + $0x90] sm:$0xf]
      %v522 = vld [vmem:[%s411 + $0x94] sm:$0xf]
      %v523 = vld [vmem:[%s411 + $0x98] sm:$0xf]
      %v524 = vld [vmem:[%s411 + $0x9c] sm:$0xf]
      %v525 = vld [vmem:[%s411 + $0xa0] sm:$0xf]
      %v526 = vld [vmem:[%s411 + $0xa4] sm:$0x1]
      %v527 = vld [vmem:[%s411] sm:$0x8]
      %v528 = vld [vmem:[%s411 + $0xa4] sm:$0x3]
      %v529 = vld [vmem:[%s411 + $0x8] sm:$0x8]
      %v530 = vld [vmem:[%s411 + $0xa4] sm:$0xf]
      %v531 = vld [vmem:[%s411 + $0xa8] sm:$0xf]
      %v532 = vld [vmem:[%s411 + $0xac] sm:$0x3]
      %v533 = vld [vmem:[%s411 + $0xac] sm:$0x7]
      %v534 = vld [vmem:[%s411 + $0xac] sm:$0xf]
      %v535 = vld [vmem:[%s411 + $0xb0] sm:$0xf]
      %v536 = vld [vmem:[%s411 + $0xb4] sm:$0x7]
      %v537 = vld [vmem:[%s411 + $0x14] sm:$0xe]
      %v538 = vld [vmem:[%s411 + $0xb4] sm:$0xf]
      %v581 = vunpack.c.l.b16 %v485
      %v582 = vunpack.c.l.b16 %v486
      %v583 = vunpack.c.l.b16 %v487
      %v584 = vunpack.c.l.b16 %v488
      %v585 = vunpack.c.l.b16 %v489
      %v586 = vunpack.c.l.b16 %v490
      %v587 = vunpack.c.l.b16 %v491
      %v588 = vunpack.c.l.b16 %v492
      %v589 = vunpack.c.l.b16 %v493
      %v590 = vunpack.c.l.b16 %v494
      %v591 = vunpack.c.l.b16 %v495
      %v592 = vunpack.c.l.b16 %v496
      %v593 = vunpack.c.l.b16 %v497
      %v594 = vunpack.c.l.b16 %v498
      %v595 = vunpack.c.l.b16 %v499
      %v596 = vunpack.c.l.b16 %v500
      %v597 = vunpack.c.l.b16 %v501
      %v598 = vunpack.c.l.b16 %v502
      %v599 = vunpack.c.l.b16 %v503
      %v600 = vunpack.c.l.b16 %v504
      %v601 = vunpack.c.l.b16 %v505
      %v602 = vunpack.c.l.b16 %v506
      %v603 = vunpack.c.l.b16 %v507
      %v604 = vunpack.c.l.b16 %v508
      %v605 = vunpack.c.l.b16 %v509
      %v606 = vunpack.c.l.b16 %v510
      %v607 = vunpack.c.l.b16 %v511
      %v608 = vunpack.c.l.b16 %v512
      %v609 = vunpack.c.l.b16 %v513
      %v610 = vunpack.c.l.b16 %v514
      %v611 = vunpack.c.l.b16 %v515
      %v612 = vunpack.c.l.b16 %v516
      %v613 = vunpack.c.l.b16 %v517
      %v614 = vunpack.c.l.b16 %v518
      %v615 = vunpack.c.l.b16 %v519
      %v616 = vunpack.c.l.b16 %v520
      %v617 = vunpack.c.l.b16 %v521
      %v618 = vunpack.c.l.b16 %v522
      %v619 = vunpack.c.l.b16 %v523
      %v620 = vunpack.c.l.b16 %v524
      %v621 = vunpack.c.l.b16 %v525
      %v622 = vunpack.c.l.b16 %v526
      %v623 = vpack.c.b16 %v582, %v581
      %v624 = vpack.c.b16 %v584, %v583
      %v625 = vpack.c.b16 %v586, %v585
      %v626 = vpack.c.b16 %v588, %v587
      %v627 = vpack.c.b16 %v590, %v589
      %v628 = vpack.c.b16 %v592, %v591
      %v629 = vpack.c.b16 %v594, %v593
      %v630 = vpack.c.b16 %v596, %v595
      %v631 = vpack.c.b16 %v598, %v597
      %v632 = vpack.c.b16 %v600, %v599
      %v633 = vpack.c.b16 %v602, %v601
      %v634 = vpack.c.b16 %v604, %v603
      %v635 = vpack.c.b16 %v606, %v605
      %v636 = vpack.c.b16 %v608, %v607
      %v637 = vpack.c.b16 %v610, %v609
      %v638 = vpack.c.b16 %v612, %v611
      %v639 = vpack.c.b16 %v614, %v613
      %v640 = vpack.c.b16 %v616, %v615
      %v641 = vpack.c.b16 %v618, %v617
      %v642 = vpack.c.b16 %v620, %v619
      %v643 = vpack.c.b16 %v622, %v621
      %v645 = vunpack.c.l.b16 %v527
      %v646 = vpack.c.b16 %v582, %v645
      %vm647 = vsmask.f32 7424
      %v649 = vshrl.u32 %v646, 16
      %v651 = vshll.u32 %v646, 16
      %v653 = vrot.slane %v651, 1
      %v654 = vor.u32 %v649, %v653
      %v656 = vshll.u32 %v624, 16
      %v658 = vrot.slane %v656, 1
      %v659 = vsel %vm647, %v654, %v658
      %v660 = vshrl.u32 %v624, 16
      %v662 = vor.u32 %v660, %v658
      %v664 = vshll.u32 %v625, 16
      %v666 = vrot.slane %v664, 1
      %v667 = vsel %vm647, %v662, %v666
      %v668 = vshrl.u32 %v625, 16
      %v670 = vor.u32 %v668, %v666
      %v672 = vshll.u32 %v626, 16
      %v674 = vrot.slane %v672, 1
      %v675 = vsel %vm647, %v670, %v674
      %v676 = vshrl.u32 %v626, 16
      %v678 = vor.u32 %v676, %v674
      %v680 = vshll.u32 %v627, 16
      %v682 = vrot.slane %v680, 1
      %v683 = vsel %vm647, %v678, %v682
      %v684 = vshrl.u32 %v627, 16
      %v686 = vor.u32 %v684, %v682
      %v688 = vshll.u32 %v628, 16
      %v690 = vrot.slane %v688, 1
      %v691 = vsel %vm647, %v686, %v690
      %v692 = vshrl.u32 %v628, 16
      %v694 = vor.u32 %v692, %v690
      %v696 = vshll.u32 %v629, 16
      %v698 = vrot.slane %v696, 1
      %v699 = vsel %vm647, %v694, %v698
      %v700 = vshrl.u32 %v629, 16
      %v702 = vor.u32 %v700, %v698
      %v704 = vshll.u32 %v630, 16
      %v706 = vrot.slane %v704, 1
      %v707 = vsel %vm647, %v702, %v706
      %v708 = vshrl.u32 %v630, 16
      %v710 = vor.u32 %v708, %v706
      %v712 = vshll.u32 %v631, 16
      %v714 = vrot.slane %v712, 1
      %v715 = vsel %vm647, %v710, %v714
      %v716 = vshrl.u32 %v631, 16
      %v718 = vor.u32 %v716, %v714
      %v720 = vshll.u32 %v632, 16
      %v722 = vrot.slane %v720, 1
      %v723 = vsel %vm647, %v718, %v722
      %v724 = vshrl.u32 %v632, 16
      %v726 = vor.u32 %v724, %v722
      %v728 = vshll.u32 %v633, 16
      %v730 = vrot.slane %v728, 1
      %v731 = vsel %vm647, %v726, %v730
      %v732 = vshrl.u32 %v633, 16
      %v734 = vor.u32 %v732, %v730
      %v736 = vshll.u32 %v634, 16
      %v738 = vrot.slane %v736, 1
      %v739 = vsel %vm647, %v734, %v738
      %v740 = vshrl.u32 %v634, 16
      %v742 = vor.u32 %v740, %v738
      %v744 = vshll.u32 %v635, 16
      %v746 = vrot.slane %v744, 1
      %v747 = vsel %vm647, %v742, %v746
      %v748 = vshrl.u32 %v635, 16
      %v750 = vor.u32 %v748, %v746
      %v752 = vshll.u32 %v636, 16
      %v754 = vrot.slane %v752, 1
      %v755 = vsel %vm647, %v750, %v754
      %v756 = vshrl.u32 %v636, 16
      %v758 = vor.u32 %v756, %v754
      %v760 = vshll.u32 %v637, 16
      %v762 = vrot.slane %v760, 1
      %v763 = vsel %vm647, %v758, %v762
      %v764 = vshrl.u32 %v637, 16
      %v766 = vor.u32 %v764, %v762
      %v768 = vshll.u32 %v638, 16
      %v770 = vrot.slane %v768, 1
      %v771 = vsel %vm647, %v766, %v770
      %v772 = vshrl.u32 %v638, 16
      %v774 = vor.u32 %v772, %v770
      %v776 = vshll.u32 %v639, 16
      %v778 = vrot.slane %v776, 1
      %v779 = vsel %vm647, %v774, %v778
      %v780 = vshrl.u32 %v639, 16
      %v782 = vor.u32 %v780, %v778
      %v784 = vshll.u32 %v640, 16
      %v786 = vrot.slane %v784, 1
      %v787 = vsel %vm647, %v782, %v786
      %v788 = vshrl.u32 %v640, 16
      %v790 = vor.u32 %v788, %v786
      %v792 = vshll.u32 %v641, 16
      %v794 = vrot.slane %v792, 1
      %v795 = vsel %vm647, %v790, %v794
      %v796 = vshrl.u32 %v641, 16
      %v798 = vor.u32 %v796, %v794
      %v800 = vshll.u32 %v642, 16
      %v802 = vrot.slane %v800, 1
      %v803 = vsel %vm647, %v798, %v802
      %v804 = vshrl.u32 %v642, 16
      %v806 = vor.u32 %v804, %v802
      %v808 = vshll.u32 %v643, 16
      %v810 = vrot.slane %v808, 1
      %v811 = vsel %vm647, %v806, %v810
      %v812 = vshrl.u32 %v643, 16
      %v814 = vor.u32 %v812, %v810
      %v816 = vunpack.c.l.b16 %v528
      %v817 = vpack.c.b16 %v816, %v621
      %vm818 = vcmask 1046528
      %v819 = vrot.slane %v646, 1
      %v820 = vrot.slane %v624, 1
      %v821 = vsel %vm818, %v819, %v820
      %v822 = vrot.slane %v625, 1
      %v823 = vsel %vm818, %v820, %v822
      %v824 = vrot.slane %v626, 1
      %v825 = vsel %vm818, %v822, %v824
      %v826 = vrot.slane %v627, 1
      %v827 = vsel %vm818, %v824, %v826
      %v828 = vrot.slane %v628, 1
      %v829 = vsel %vm818, %v826, %v828
      %v830 = vrot.slane %v629, 1
      %v831 = vsel %vm818, %v828, %v830
      %v832 = vrot.slane %v630, 1
      %v833 = vsel %vm818, %v830, %v832
      %v834 = vrot.slane %v631, 1
      %v835 = vsel %vm818, %v832, %v834
      %v836 = vrot.slane %v632, 1
      %v837 = vsel %vm818, %v834, %v836
      %v838 = vrot.slane %v633, 1
      %v839 = vsel %vm818, %v836, %v838
      %v840 = vrot.slane %v634, 1
      %v841 = vsel %vm818, %v838, %v840
      %v842 = vrot.slane %v635, 1
      %v843 = vsel %vm818, %v840, %v842
      %v844 = vrot.slane %v636, 1
      %v845 = vsel %vm818, %v842, %v844
      %v846 = vrot.slane %v637, 1
      %v847 = vsel %vm818, %v844, %v846
      %v848 = vrot.slane %v638, 1
      %v849 = vsel %vm818, %v846, %v848
      %v850 = vrot.slane %v639, 1
      %v851 = vsel %vm818, %v848, %v850
      %v852 = vrot.slane %v640, 1
      %v853 = vsel %vm818, %v850, %v852
      %v854 = vrot.slane %v641, 1
      %v855 = vsel %vm818, %v852, %v854
      %v856 = vrot.slane %v642, 1
      %v857 = vsel %vm818, %v854, %v856
      %v858 = vrot.slane %v817, 1
      %v859 = vsel %vm818, %v856, %v858
      %v864 = vunpack.c.l.b16 %v529
      %v865 = vunpack.c.l.b16 %v530
      %v866 = vunpack.c.l.b16 %v531
      %v867 = vunpack.c.l.b16 %v532
      %v868 = vpack.c.b16 %v584, %v864
      %v869 = vpack.c.b16 %v865, %v621
      %v870 = vpack.c.b16 %v867, %v866
      %v871 = vrot.slane %v868, 1
      %v872 = vsel %vm818, %v871, %v822
      %v873 = vrot.slane %v869, 1
      %v874 = vsel %vm818, %v856, %v873
      %v875 = vrot.slane %v870, 1
      %v876 = vsel %vm818, %v873, %v875
      %v877 = vpack.c.b16 %v585, %v584
      %v878 = vpack.c.b16 %v587, %v586
      %v879 = vpack.c.b16 %v589, %v588
      %v880 = vpack.c.b16 %v591, %v590
      %v881 = vpack.c.b16 %v593, %v592
      %v882 = vpack.c.b16 %v595, %v594
      %v883 = vpack.c.b16 %v597, %v596
      %v884 = vpack.c.b16 %v599, %v598
      %v885 = vpack.c.b16 %v601, %v600
      %v886 = vpack.c.b16 %v603, %v602
      %v887 = vpack.c.b16 %v605, %v604
      %v888 = vpack.c.b16 %v607, %v606
      %v889 = vpack.c.b16 %v609, %v608
      %v890 = vpack.c.b16 %v611, %v610
      %v891 = vpack.c.b16 %v613, %v612
      %v892 = vpack.c.b16 %v615, %v614
      %v893 = vpack.c.b16 %v617, %v616
      %v894 = vpack.c.b16 %v619, %v618
      %v895 = vpack.c.b16 %v621, %v620
      %v896 = vpack.c.b16 %v866, %v865
      %v897 = vpack.c.b16 %v867, %v867
      %vm898 = vsmask.f32 2304
      %v900 = vshrl.u32 %v877, 16
      %v902 = vrot.slane %v900, 5
      %v903 = vshll.u32 %v877, 16
      %v905 = vrot.slane %v903, 6
      %v906 = vor.u32 %v902, %v905
      %v908 = vshrl.u32 %v878, 16
      %v910 = vrot.slane %v908, 5
      %v911 = vshll.u32 %v878, 16
      %v913 = vrot.slane %v911, 6
      %v914 = vor.u32 %v910, %v913
      %v915 = vsel %vm898, %v906, %v914
      %v917 = vshrl.u32 %v879, 16
      %v919 = vrot.slane %v917, 5
      %v920 = vshll.u32 %v879, 16
      %v922 = vrot.slane %v920, 6
      %v923 = vor.u32 %v919, %v922
      %v924 = vsel %vm898, %v914, %v923
      %v926 = vshrl.u32 %v880, 16
      %v928 = vrot.slane %v926, 5
      %v929 = vshll.u32 %v880, 16
      %v931 = vrot.slane %v929, 6
      %v932 = vor.u32 %v928, %v931
      %v933 = vsel %vm898, %v923, %v932
      %v935 = vshrl.u32 %v881, 16
      %v937 = vrot.slane %v935, 5
      %v938 = vshll.u32 %v881, 16
      %v940 = vrot.slane %v938, 6
      %v941 = vor.u32 %v937, %v940
      %v942 = vsel %vm898, %v932, %v941
      %v944 = vshrl.u32 %v882, 16
      %v946 = vrot.slane %v944, 5
      %v947 = vshll.u32 %v882, 16
      %v949 = vrot.slane %v947, 6
      %v950 = vor.u32 %v946, %v949
      %v951 = vsel %vm898, %v941, %v950
      %v953 = vshrl.u32 %v883, 16
      %v955 = vrot.slane %v953, 5
      %v956 = vshll.u32 %v883, 16
      %v958 = vrot.slane %v956, 6
      %v959 = vor.u32 %v955, %v958
      %v960 = vsel %vm898, %v950, %v959
      %v962 = vshrl.u32 %v884, 16
      %v964 = vrot.slane %v962, 5
      %v965 = vshll.u32 %v884, 16
      %v967 = vrot.slane %v965, 6
      %v968 = vor.u32 %v964, %v967
      %v969 = vsel %vm898, %v959, %v968
      %v971 = vshrl.u32 %v885, 16
      %v973 = vrot.slane %v971, 5
      %v974 = vshll.u32 %v885, 16
      %v976 = vrot.slane %v974, 6
      %v977 = vor.u32 %v973, %v976
      %v978 = vsel %vm898, %v968, %v977
      %v980 = vshrl.u32 %v886, 16
      %v982 = vrot.slane %v980, 5
      %v983 = vshll.u32 %v886, 16
      %v985 = vrot.slane %v983, 6
      %v986 = vor.u32 %v982, %v985
      %v987 = vsel %vm898, %v977, %v986
      %v989 = vshrl.u32 %v887, 16
      %v991 = vrot.slane %v989, 5
      %v992 = vshll.u32 %v887, 16
      %v994 = vrot.slane %v992, 6
      %v995 = vor.u32 %v991, %v994
      %v996 = vsel %vm898, %v986, %v995
      %v998 = vshrl.u32 %v888, 16
      %v1000 = vrot.slane %v998, 5
      %v1001 = vshll.u32 %v888, 16
      %v1003 = vrot.slane %v1001, 6
      %v1004 = vor.u32 %v1000, %v1003
      %v1005 = vsel %vm898, %v995, %v1004
      %v1007 = vshrl.u32 %v889, 16
      %v1009 = vrot.slane %v1007, 5
      %v1010 = vshll.u32 %v889, 16
      %v1012 = vrot.slane %v1010, 6
      %v1013 = vor.u32 %v1009, %v1012
      %v1014 = vsel %vm898, %v1004, %v1013
      %v1016 = vshrl.u32 %v890, 16
      %v1018 = vrot.slane %v1016, 5
      %v1019 = vshll.u32 %v890, 16
      %v1021 = vrot.slane %v1019, 6
      %v1022 = vor.u32 %v1018, %v1021
      %v1023 = vsel %vm898, %v1013, %v1022
      %v1025 = vshrl.u32 %v891, 16
      %v1027 = vrot.slane %v1025, 5
      %v1028 = vshll.u32 %v891, 16
      %v1030 = vrot.slane %v1028, 6
      %v1031 = vor.u32 %v1027, %v1030
      %v1032 = vsel %vm898, %v1022, %v1031
      %v1034 = vshrl.u32 %v892, 16
      %v1036 = vrot.slane %v1034, 5
      %v1037 = vshll.u32 %v892, 16
      %v1039 = vrot.slane %v1037, 6
      %v1040 = vor.u32 %v1036, %v1039
      %v1041 = vsel %vm898, %v1031, %v1040
      %v1043 = vshrl.u32 %v893, 16
      %v1045 = vrot.slane %v1043, 5
      %v1046 = vshll.u32 %v893, 16
      %v1048 = vrot.slane %v1046, 6
      %v1049 = vor.u32 %v1045, %v1048
      %v1050 = vsel %vm898, %v1040, %v1049
      %v1052 = vshrl.u32 %v894, 16
      %v1054 = vrot.slane %v1052, 5
      %v1055 = vshll.u32 %v894, 16
      %v1057 = vrot.slane %v1055, 6
      %v1058 = vor.u32 %v1054, %v1057
      %v1059 = vsel %vm898, %v1049, %v1058
      %v1061 = vshrl.u32 %v895, 16
      %v1063 = vrot.slane %v1061, 5
      %v1064 = vshll.u32 %v895, 16
      %v1066 = vrot.slane %v1064, 6
      %v1067 = vor.u32 %v1063, %v1066
      %v1068 = vsel %vm898, %v1058, %v1067
      %v1070 = vshrl.u32 %v896, 16
      %v1072 = vrot.slane %v1070, 5
      %v1073 = vshll.u32 %v896, 16
      %v1075 = vrot.slane %v1073, 6
      %v1076 = vor.u32 %v1072, %v1075
      %v1077 = vsel %vm898, %v1067, %v1076
      %v1079 = vshrl.u32 %v897, 16
      %v1081 = vrot.slane %v1079, 5
      %v1082 = vshll.u32 %v897, 16
      %v1084 = vrot.slane %v1082, 6
      %v1085 = vor.u32 %v1081, %v1084
      %v1086 = vsel %vm898, %v1076, %v1085
      %v1088 = vunpack.c.l.b16 %v533
      %v1089 = vpack.c.b16 %v1088, %v1088
      %vm1090 = vcmask 1041408
      %v1091 = vrot.slane %v877, 6
      %v1092 = vrot.slane %v878, 6
      %v1093 = vsel %vm1090, %v1091, %v1092
      %v1094 = vrot.slane %v879, 6
      %v1095 = vsel %vm1090, %v1092, %v1094
      %v1096 = vrot.slane %v880, 6
      %v1097 = vsel %vm1090, %v1094, %v1096
      %v1098 = vrot.slane %v881, 6
      %v1099 = vsel %vm1090, %v1096, %v1098
      %v1100 = vrot.slane %v882, 6
      %v1101 = vsel %vm1090, %v1098, %v1100
      %v1102 = vrot.slane %v883, 6
      %v1103 = vsel %vm1090, %v1100, %v1102
      %v1104 = vrot.slane %v884, 6
      %v1105 = vsel %vm1090, %v1102, %v1104
      %v1106 = vrot.slane %v885, 6
      %v1107 = vsel %vm1090, %v1104, %v1106
      %v1108 = vrot.slane %v886, 6
      %v1109 = vsel %vm1090, %v1106, %v1108
      %v1110 = vrot.slane %v887, 6
      %v1111 = vsel %vm1090, %v1108, %v1110
      %v1112 = vrot.slane %v888, 6
      %v1113 = vsel %vm1090, %v1110, %v1112
      %v1114 = vrot.slane %v889, 6
      %v1115 = vsel %vm1090, %v1112, %v1114
      %v1116 = vrot.slane %v890, 6
      %v1117 = vsel %vm1090, %v1114, %v1116
      %v1118 = vrot.slane %v891, 6
      %v1119 = vsel %vm1090, %v1116, %v1118
      %v1120 = vrot.slane %v892, 6
      %v1121 = vsel %vm1090, %v1118, %v1120
      %v1122 = vrot.slane %v893, 6
      %v1123 = vsel %vm1090, %v1120, %v1122
      %v1124 = vrot.slane %v894, 6
      %v1125 = vsel %vm1090, %v1122, %v1124
      %v1126 = vrot.slane %v895, 6
      %v1127 = vsel %vm1090, %v1124, %v1126
      %v1128 = vrot.slane %v896, 6
      %v1129 = vsel %vm1090, %v1126, %v1128
      %v1130 = vrot.slane %v1089, 6
      %v1131 = vsel %vm1090, %v1128, %v1130
      %v1135 = vunpack.c.l.b16 %v534
      %v1136 = vunpack.c.l.b16 %v535
      %v1137 = vunpack.c.l.b16 %v536
      %v1138 = vpack.c.b16 %v1136, %v1135
      %v1139 = vpack.c.b16 %v1137, %v1137
      %v1140 = vrot.slane %v1138, 6
      %v1141 = vsel %vm1090, %v1128, %v1140
      %v1142 = vrot.slane %v1139, 6
      %v1143 = vsel %vm1090, %v1140, %v1142
      %v1145 = vunpack.c.l.b16 %v537
      %v1146 = vpack.c.b16 %v587, %v1145
      %vm1147 = vsmask.f32 1280
      %v1149 = vshrl.u32 %v1146, 16
      %v1151 = vrot.slane %v1149, 6
      %v1152 = vshll.u32 %v1146, 16
      %v1154 = vrot.slane %v1152, 7
      %v1155 = vor.u32 %v1151, %v1154
      %v1156 = vrot.slane %v917, 6
      %v1157 = vrot.slane %v920, 7
      %v1158 = vor.u32 %v1156, %v1157
      %v1159 = vsel %vm1147, %v1155, %v1158
      %v1160 = vrot.slane %v926, 6
      %v1161 = vrot.slane %v929, 7
      %v1162 = vor.u32 %v1160, %v1161
      %v1163 = vsel %vm1147, %v1158, %v1162
      %v1164 = vrot.slane %v935, 6
      %v1165 = vrot.slane %v938, 7
      %v1166 = vor.u32 %v1164, %v1165
      %v1167 = vsel %vm1147, %v1162, %v1166
      %v1168 = vrot.slane %v944, 6
      %v1169 = vrot.slane %v947, 7
      %v1170 = vor.u32 %v1168, %v1169
      %v1171 = vsel %vm1147, %v1166, %v1170
      %v1172 = vrot.slane %v953, 6
      %v1173 = vrot.slane %v956, 7
      %v1174 = vor.u32 %v1172, %v1173
      %v1175 = vsel %vm1147, %v1170, %v1174
      %v1176 = vrot.slane %v962, 6
      %v1177 = vrot.slane %v965, 7
      %v1178 = vor.u32 %v1176, %v1177
      %v1179 = vsel %vm1147, %v1174, %v1178
      %v1180 = vrot.slane %v971, 6
      %v1181 = vrot.slane %v974, 7
      %v1182 = vor.u32 %v1180, %v1181
      %v1183 = vsel %vm1147, %v1178, %v1182
      %v1184 = vrot.slane %v980, 6
      %v1185 = vrot.slane %v983, 7
      %v1186 = vor.u32 %v1184, %v1185
      %v1187 = vsel %vm1147, %v1182, %v1186
      %v1188 = vrot.slane %v989, 6
      %v1189 = vrot.slane %v992, 7
      %v1190 = vor.u32 %v1188, %v1189
      %v1191 = vsel %vm1147, %v1186, %v1190
      %v1192 = vrot.slane %v998, 6
      %v1193 = vrot.slane %v1001, 7
      %v1194 = vor.u32 %v1192, %v1193
      %v1195 = vsel %vm1147, %v1190, %v1194
      %v1196 = vrot.slane %v1007, 6
      %v1197 = vrot.slane %v1010, 7
      %v1198 = vor.u32 %v1196, %v1197
      %v1199 = vsel %vm1147, %v1194, %v1198
      %v1200 = vrot.slane %v1016, 6
      %v1201 = vrot.slane %v1019, 7
      %v1202 = vor.u32 %v1200, %v1201
      %v1203 = vsel %vm1147, %v1198, %v1202
      %v1204 = vrot.slane %v1025, 6
      %v1205 = vrot.slane %v1028, 7
      %v1206 = vor.u32 %v1204, %v1205
      %v1207 = vsel %vm1147, %v1202, %v1206
      %v1208 = vrot.slane %v1034, 6
      %v1209 = vrot.slane %v1037, 7
      %v1210 = vor.u32 %v1208, %v1209
      %v1211 = vsel %vm1147, %v1206, %v1210
      %v1212 = vrot.slane %v1043, 6
      %v1213 = vrot.slane %v1046, 7
      %v1214 = vor.u32 %v1212, %v1213
      %v1215 = vsel %vm1147, %v1210, %v1214
      %v1216 = vrot.slane %v1052, 6
      %v1217 = vrot.slane %v1055, 7
      %v1218 = vor.u32 %v1216, %v1217
      %v1219 = vsel %vm1147, %v1214, %v1218
      %v1220 = vrot.slane %v1061, 6
      %v1221 = vrot.slane %v1064, 7
      %v1222 = vor.u32 %v1220, %v1221
      %v1223 = vsel %vm1147, %v1218, %v1222
      %v1224 = vrot.slane %v1070, 6
      %v1225 = vrot.slane %v1073, 7
      %v1226 = vor.u32 %v1224, %v1225
      %v1227 = vsel %vm1147, %v1222, %v1226
      %v1229 = vshrl.u32 %v1138, 16
      %v1231 = vrot.slane %v1229, 6
      %v1232 = vshll.u32 %v1138, 16
      %v1234 = vrot.slane %v1232, 7
      %v1235 = vor.u32 %v1231, %v1234
      %v1236 = vsel %vm1147, %v1226, %v1235
      %v1238 = vshrl.u32 %v1139, 16
      %v1240 = vrot.slane %v1238, 6
      %v1241 = vshll.u32 %v1139, 16
      %v1243 = vrot.slane %v1241, 7
      %v1244 = vor.u32 %v1240, %v1243
      %v1245 = vsel %vm1147, %v1235, %v1244
      %v1247 = vunpack.c.l.b16 %v538
      %v1248 = vpack.c.b16 %v1247, %v1247
      %vm1249 = vcmask 1040384
      %v1250 = vrot.slane %v1146, 7
      %v1251 = vrot.slane %v879, 7
      %v1252 = vsel %vm1249, %v1250, %v1251
      %v1253 = vrot.slane %v880, 7
      %v1254 = vsel %vm1249, %v1251, %v1253
      %v1255 = vrot.slane %v881, 7
      %v1256 = vsel %vm1249, %v1253, %v1255
      %v1257 = vrot.slane %v882, 7
      %v1258 = vsel %vm1249, %v1255, %v1257
      %v1259 = vrot.slane %v883, 7
      %v1260 = vsel %vm1249, %v1257, %v1259
      %v1261 = vrot.slane %v884, 7
      %v1262 = vsel %vm1249, %v1259, %v1261
      %v1263 = vrot.slane %v885, 7
      %v1264 = vsel %vm1249, %v1261, %v1263
      %v1265 = vrot.slane %v886, 7
      %v1266 = vsel %vm1249, %v1263, %v1265
      %v1267 = vrot.slane %v887, 7
      %v1268 = vsel %vm1249, %v1265, %v1267
      %v1269 = vrot.slane %v888, 7
      %v1270 = vsel %vm1249, %v1267, %v1269
      %v1271 = vrot.slane %v889, 7
      %v1272 = vsel %vm1249, %v1269, %v1271
      %v1273 = vrot.slane %v890, 7
      %v1274 = vsel %vm1249, %v1271, %v1273
      %v1275 = vrot.slane %v891, 7
      %v1276 = vsel %vm1249, %v1273, %v1275
      %v1277 = vrot.slane %v892, 7
      %v1278 = vsel %vm1249, %v1275, %v1277
      %v1279 = vrot.slane %v893, 7
      %v1280 = vsel %vm1249, %v1277, %v1279
      %v1281 = vrot.slane %v894, 7
      %v1282 = vsel %vm1249, %v1279, %v1281
      %v1283 = vrot.slane %v895, 7
      %v1284 = vsel %vm1249, %v1281, %v1283
      %v1285 = vrot.slane %v896, 7
      %v1286 = vsel %vm1249, %v1283, %v1285
      %v1287 = vrot.slane %v1138, 7
      %v1288 = vsel %vm1249, %v1285, %v1287
      %v1289 = vrot.slane %v1248, 7
      %v1290 = vsel %vm1249, %v1287, %v1289
      %v1291 = vld [vmem:[%s416] sm:$0xf]
      %v1292 = vld [vmem:[%s416 + $0x4] sm:$0xf]
      %v1293 = vld [vmem:[%s416 + $0x8] sm:$0xf]
      %v1294 = vld [vmem:[%s416 + $0xc] sm:$0xf]
      %v1295 = vld [vmem:[%s416 + $0x10] sm:$0xf]
      %v1296 = vld [vmem:[%s416 + $0x14] sm:$0xf]
      %v1297 = vld [vmem:[%s416 + $0x18] sm:$0xf]
      %v1298 = vld [vmem:[%s416 + $0x1c] sm:$0xf]
      %v1299 = vld [vmem:[%s416 + $0x20] sm:$0xf]
      %v1300 = vld [vmem:[%s416 + $0x24] sm:$0xf]
      %v1301 = vld [vmem:[%s416 + $0x28] sm:$0xf]
      %v1302 = vld [vmem:[%s416 + $0x2c] sm:$0xf]
      %v1303 = vld [vmem:[%s416 + $0x30] sm:$0xf]
      %v1304 = vld [vmem:[%s416 + $0x34] sm:$0xf]
      %v1305 = vld [vmem:[%s416 + $0x38] sm:$0xf]
      %v1306 = vld [vmem:[%s416 + $0x3c] sm:$0xf]
      %v1307 = vld [vmem:[%s416 + $0x40] sm:$0xf]
      %v1308 = vld [vmem:[%s416 + $0x44] sm:$0xf]
      %v1309 = vld [vmem:[%s416 + $0x48] sm:$0xf]
      %v1310 = vld [vmem:[%s416 + $0x4c] sm:$0xf]
      %v1311 = vld [vmem:[%s416 + $0x50] sm:$0xf]
      %v1312 = vld [vmem:[%s416 + $0x54] sm:$0xf]
      %v1313 = vld [vmem:[%s416 + $0x58] sm:$0xf]
      %v1314 = vld [vmem:[%s416 + $0x5c] sm:$0xf]
      %v1315 = vld [vmem:[%s416 + $0x60] sm:$0xf]
      %v1316 = vld [vmem:[%s416 + $0x64] sm:$0xf]
      %v1317 = vld [vmem:[%s416 + $0x68] sm:$0xf]
      %v1318 = vld [vmem:[%s416 + $0x6c] sm:$0xf]
      %v1319 = vld [vmem:[%s416 + $0x70] sm:$0xf]
      %v1320 = vld [vmem:[%s416 + $0x74] sm:$0xf]
      %v1321 = vld [vmem:[%s416 + $0x78] sm:$0xf]
      %v1322 = vld [vmem:[%s416 + $0x7c] sm:$0xf]
      %v1323 = vld [vmem:[%s416 + $0x80] sm:$0xf]
      %v1324 = vld [vmem:[%s416 + $0x84] sm:$0xf]
      %v1325 = vld [vmem:[%s416 + $0x88] sm:$0xf]
      %v1326 = vld [vmem:[%s416 + $0x8c] sm:$0xf]
      %v1327 = vld [vmem:[%s416 + $0x90] sm:$0xf]
      %v1328 = vld [vmem:[%s416 + $0x94] sm:$0xf]
      %v1329 = vld [vmem:[%s416 + $0x98] sm:$0xf]
      %v1330 = vld [vmem:[%s416 + $0x9c] sm:$0xf]
      %v1331 = vld [vmem:[%s416 + $0xa0] sm:$0xf]
      %v1332 = vld [vmem:[%s416 + $0xa4] sm:$0xf]
      %v1333 = vld [vmem:[%s416 + $0xa8] sm:$0xf]
      %v1334 = vld [vmem:[%s416 + $0xac] sm:$0xf]
      %v1335 = vld [vmem:[%s416 + $0xb0] sm:$0xf]
      %v1336 = vld [vmem:[%s416 + $0xb4] sm:$0xf]
      %v1337 = vld [vmem:[%s416 + $0xb8] sm:$0xf]
      %v1338 = vld [vmem:[%s416 + $0xbc] sm:$0xf]
      %v1339 = vld [vmem:[%s416 + $0xc0] sm:$0xf]
      %v1340 = vld [vmem:[%s416 + $0xc4] sm:$0xf]
      %v1341 = vld [vmem:[%s416 + $0xc8] sm:$0xf]
      %v1342 = vld [vmem:[%s416 + $0xcc] sm:$0xf]
      %v1343 = vld [vmem:[%s416 + $0xd0] sm:$0xf]
      %v1344 = vld [vmem:[%s416 + $0xd4] sm:$0xf]
      %v1345 = vld [vmem:[%s416 + $0xd8] sm:$0xf]
      %v1346 = vld [vmem:[%s416 + $0xdc] sm:$0xf]
      %v1347 = vld [vmem:[%s416 + $0xe0] sm:$0xf]
      %v1348 = vld [vmem:[%s416 + $0xe4] sm:$0xf]
      %v1349 = vld [vmem:[%s416 + $0xe8] sm:$0xf]
      %v1350 = vld [vmem:[%s416 + $0xec] sm:$0xf]
      %v1351 = vld [vmem:[%s416 + $0xf0] sm:$0xf]
      %v1352 = vld [vmem:[%s416 + $0xf4] sm:$0xf]
      %v1353 = vld [vmem:[%s416 + $0xf8] sm:$0xf]
      %v1354 = vld [vmem:[%s416 + $0xfc] sm:$0xf]
      %v1355 = vld [vmem:[%s416 + $0x100] sm:$0xf]
      %v1356 = vld [vmem:[%s416 + $0x104] sm:$0xf]
      %v1357 = vld [vmem:[%s416 + $0x108] sm:$0xf]
      %v1358 = vld [vmem:[%s416 + $0x10c] sm:$0xf]
      %v1359 = vld [vmem:[%s416 + $0x110] sm:$0xf]
      %v1360 = vld [vmem:[%s416 + $0x114] sm:$0xf]
      %v1361 = vld [vmem:[%s416 + $0x118] sm:$0xf]
      %v1362 = vld [vmem:[%s416 + $0x11c] sm:$0xf]
      %v1363 = vld [vmem:[%s416 + $0x120] sm:$0xf]
      %v1364 = vld [vmem:[%s416 + $0x124] sm:$0xf]
      %v1365 = vld [vmem:[%s416 + $0x128] sm:$0xf]
      %v1366 = vld [vmem:[%s416 + $0x12c] sm:$0xf]
      %v1367 = vld [vmem:[%s416 + $0x130] sm:$0xf]
      %v1368 = vld [vmem:[%s416 + $0x134] sm:$0xf]
      %v1369 = vld [vmem:[%s416 + $0x138] sm:$0xf]
      %v1370 = vld [vmem:[%s416 + $0x13c] sm:$0xf]
      %v1371 = vld [vmem:[%s416 + $0x140] sm:$0xf]
      %v1372 = vld [vmem:[%s416 + $0x144] sm:$0xf]
      %v1373 = vld [vmem:[%s416 + $0x148] sm:$0xf]
      %v1374 = vld [vmem:[%s416 + $0x14c] sm:$0xf]
      %v1375 = vld [vmem:[%s416 + $0x150] sm:$0xf]
      %v1376 = vld [vmem:[%s416 + $0x154] sm:$0xf]
      %v1377 = vld [vmem:[%s416 + $0x158] sm:$0xf]
      %v1378 = vld [vmem:[%s416 + $0x15c] sm:$0xf]
      %v1379 = vld [vmem:[%s416 + $0x160] sm:$0xf]
      %v1380 = vld [vmem:[%s416 + $0x164] sm:$0xf]
      %v1381 = vld [vmem:[%s416 + $0x168] sm:$0xf]
      %v1382 = vld [vmem:[%s416 + $0x16c] sm:$0xf]
      %v1383 = vld [vmem:[%s416 + $0x170] sm:$0xf]
      %v1384 = vld [vmem:[%s416 + $0x174] sm:$0xf]
      %v1385 = vld [vmem:[%s416 + $0x178] sm:$0xf]
      %v1386 = vld [vmem:[%s416 + $0x17c] sm:$0xf]
      %v1387 = vld [vmem:[%s416 + $0x180] sm:$0xf]
      %v1388 = vld [vmem:[%s416 + $0x184] sm:$0xf]
      %v1389 = vld [vmem:[%s416 + $0x188] sm:$0xf]
      %v1390 = vld [vmem:[%s416 + $0x18c] sm:$0xf]
      %v1391 = vld [vmem:[%s416 + $0x190] sm:$0xf]
      %v1392 = vld [vmem:[%s416 + $0x194] sm:$0xf]
      %v1393 = vld [vmem:[%s416 + $0x198] sm:$0xf]
      %v1394 = vld [vmem:[%s416 + $0x19c] sm:$0xf]
      %v1395 = vld [vmem:[%s416 + $0x1a0] sm:$0xf]
      %v1396 = vld [vmem:[%s416 + $0x1a4] sm:$0xf]
      %v1397 = vld [vmem:[%s416 + $0x1a8] sm:$0xf]
      %v1398 = vld [vmem:[%s416 + $0x1ac] sm:$0xf]
      %v1399 = vld [vmem:[%s416 + $0x1b0] sm:$0xf]
      %v1400 = vld [vmem:[%s416 + $0x1b4] sm:$0xf]
      %v1401 = vld [vmem:[%s416 + $0x1b8] sm:$0xf]
      %v1402 = vld [vmem:[%s416 + $0x1bc] sm:$0xf]
      %v1403 = vld [vmem:[%s416 + $0x1c0] sm:$0xf]
      %v1404 = vld [vmem:[%s416 + $0x1c4] sm:$0xf]
      %v1405 = vld [vmem:[%s416 + $0x1c8] sm:$0xf]
      %v1406 = vld [vmem:[%s416 + $0x1cc] sm:$0xf]
      %v1407 = vld [vmem:[%s416 + $0x1d0] sm:$0xf]
      %v1408 = vld [vmem:[%s416 + $0x1d4] sm:$0xf]
      %v1409 = vld [vmem:[%s416 + $0x1d8] sm:$0xf]
      %v1410 = vld [vmem:[%s416 + $0x1dc] sm:$0xf]
      %v1411 = vld [vmem:[%s416 + $0x1e0] sm:$0xf]
      %v1412 = vld [vmem:[%s416 + $0x1e4] sm:$0xf]
      %v1413 = vld [vmem:[%s416 + $0x1e8] sm:$0xf]
      %v1414 = vld [vmem:[%s416 + $0x1ec] sm:$0xf]
      %v1415 = vld [vmem:[%s416 + $0x1f0] sm:$0xf]
      %v1416 = vld [vmem:[%s416 + $0x1f4] sm:$0xf]
      %v1417 = vld [vmem:[%s416 + $0x1f8] sm:$0xf]
      %v1418 = vld [vmem:[%s416 + $0x1fc] sm:$0xf]
      %v1419 = vld [vmem:[%s416 + $0x200] sm:$0xf]
      %v1420 = vld [vmem:[%s416 + $0x204] sm:$0xf]
      %v1421 = vld [vmem:[%s416 + $0x208] sm:$0xf]
      %v1422 = vld [vmem:[%s416 + $0x20c] sm:$0xf]
      %v1423 = vld [vmem:[%s416 + $0x210] sm:$0xf]
      %v1424 = vld [vmem:[%s416 + $0x214] sm:$0xf]
      %v1425 = vld [vmem:[%s416 + $0x218] sm:$0xf]
      %v1426 = vld [vmem:[%s416 + $0x21c] sm:$0xf]
      %v1427 = vld [vmem:[%s416 + $0x220] sm:$0xf]
      %v1428 = vld [vmem:[%s416 + $0x224] sm:$0xf]
      %v1429 = vld [vmem:[%s416 + $0x228] sm:$0xf]
      %v1430 = vld [vmem:[%s416 + $0x22c] sm:$0xf]
      %v1431 = vld [vmem:[%s416 + $0x230] sm:$0xf]
      %v1432 = vld [vmem:[%s416 + $0x234] sm:$0xf]
      %v1433 = vld [vmem:[%s416 + $0x238] sm:$0xf]
      %v1434 = vld [vmem:[%s416 + $0x23c] sm:$0xf]
      %vm1435 = vsmask.f32 5376
      %v1437 = vshrl.u32 %v623, 16
      %v1439 = vrot.slane %v1437, 2
      %v1440 = vshll.u32 %v623, 16
      %v1442 = vrot.slane %v1440, 3
      %v1443 = vor.u32 %v1439, %v1442
      %v1444 = vrot.slane %v660, 2
      %v1445 = vrot.slane %v656, 3
      %v1446 = vor.u32 %v1444, %v1445
      %v1447 = vsel %vm1435, %v1443, %v1446
      %v1449 = vshrl.u32 %v659, 16
      %v1451 = vrot.slane %v1449, 2
      %v1452 = vshll.u32 %v659, 16
      %v1454 = vrot.slane %v1452, 3
      %v1455 = vor.u32 %v1451, %v1454
      %v1457 = vshrl.u32 %v667, 16
      %v1459 = vrot.slane %v1457, 2
      %v1460 = vshll.u32 %v667, 16
      %v1462 = vrot.slane %v1460, 3
      %v1463 = vor.u32 %v1459, %v1462
      %v1464 = vsel %vm1435, %v1455, %v1463
      %v1466 = vshrl.u32 %v821, 16
      %v1468 = vrot.slane %v1466, 2
      %v1469 = vshll.u32 %v821, 16
      %v1471 = vrot.slane %v1469, 3
      %v1472 = vor.u32 %v1468, %v1471
      %v1474 = vshrl.u32 %v823, 16
      %v1476 = vrot.slane %v1474, 2
      %v1477 = vshll.u32 %v823, 16
      %v1479 = vrot.slane %v1477, 3
      %v1480 = vor.u32 %v1476, %v1479
      %v1481 = vsel %vm1435, %v1472, %v1480
      %v1483 = vshrl.u32 %v872, 16
      %v1485 = vrot.slane %v1483, 2
      %v1486 = vshll.u32 %v872, 16
      %v1488 = vrot.slane %v1486, 3
      %v1489 = vor.u32 %v1485, %v1488
      %v1491 = vshrl.u32 %v825, 16
      %v1493 = vrot.slane %v1491, 2
      %v1494 = vshll.u32 %v825, 16
      %v1496 = vrot.slane %v1494, 3
      %v1497 = vor.u32 %v1493, %v1496
      %v1498 = vsel %vm1435, %v1489, %v1497
      %v1500 = vshrl.u32 %v906, 16
      %v1502 = vrot.slane %v1500, 2
      %v1503 = vshll.u32 %v906, 16
      %v1505 = vrot.slane %v1503, 3
      %v1506 = vor.u32 %v1502, %v1505
      %v1508 = vshrl.u32 %v915, 16
      %v1510 = vrot.slane %v1508, 2
      %v1511 = vshll.u32 %v915, 16
      %v1513 = vrot.slane %v1511, 3
      %v1514 = vor.u32 %v1510, %v1513
      %v1515 = vsel %vm1435, %v1506, %v1514
      %v1517 = vshrl.u32 %v1091, 16
      %v1519 = vrot.slane %v1517, 2
      %v1520 = vshll.u32 %v1091, 16
      %v1522 = vrot.slane %v1520, 3
      %v1523 = vor.u32 %v1519, %v1522
      %v1525 = vshrl.u32 %v1093, 16
      %v1527 = vrot.slane %v1525, 2
      %v1528 = vshll.u32 %v1093, 16
      %v1530 = vrot.slane %v1528, 3
      %v1531 = vor.u32 %v1527, %v1530
      %v1532 = vsel %vm1435, %v1523, %v1531
      %v1534 = vshrl.u32 %v1092, 16
      %v1536 = vrot.slane %v1534, 2
      %v1537 = vshll.u32 %v1092, 16
      %v1539 = vrot.slane %v1537, 3
      %v1540 = vor.u32 %v1536, %v1539
      %v1542 = vshrl.u32 %v1095, 16
      %v1544 = vrot.slane %v1542, 2
      %v1545 = vshll.u32 %v1095, 16
      %v1547 = vrot.slane %v1545, 3
      %v1548 = vor.u32 %v1544, %v1547
      %v1549 = vsel %vm1435, %v1540, %v1548
      %v1551 = vshrl.u32 %v1155, 16
      %v1553 = vrot.slane %v1551, 2
      %v1554 = vshll.u32 %v1155, 16
      %v1556 = vrot.slane %v1554, 3
      %v1557 = vor.u32 %v1553, %v1556
      %v1559 = vshrl.u32 %v1159, 16
      %v1561 = vrot.slane %v1559, 2
      %v1562 = vshll.u32 %v1159, 16
      %v1564 = vrot.slane %v1562, 3
      %v1565 = vor.u32 %v1561, %v1564
      %v1566 = vsel %vm1435, %v1557, %v1565
      %v1568 = vshrl.u32 %v1250, 16
      %v1570 = vrot.slane %v1568, 2
      %v1571 = vshll.u32 %v1250, 16
      %v1573 = vrot.slane %v1571, 3
      %v1574 = vor.u32 %v1570, %v1573
      %v1576 = vshrl.u32 %v1252, 16
      %v1578 = vrot.slane %v1576, 2
      %v1579 = vshll.u32 %v1252, 16
      %v1581 = vrot.slane %v1579, 3
      %v1582 = vor.u32 %v1578, %v1581
      %v1583 = vsel %vm1435, %v1574, %v1582
      %v1584 = vrot.slane %v668, 2
      %v1585 = vrot.slane %v664, 3
      %v1586 = vor.u32 %v1584, %v1585
      %v1587 = vsel %vm1435, %v1446, %v1586
      %v1589 = vshrl.u32 %v675, 16
      %v1591 = vrot.slane %v1589, 2
      %v1592 = vshll.u32 %v675, 16
      %v1594 = vrot.slane %v1592, 3
      %v1595 = vor.u32 %v1591, %v1594
      %v1596 = vsel %vm1435, %v1463, %v1595
      %v1597 = vsel %vm1435, %v1480, %v1497
      %v1599 = vshrl.u32 %v827, 16
      %v1601 = vrot.slane %v1599, 2
      %v1602 = vshll.u32 %v827, 16
      %v1604 = vrot.slane %v1602, 3
      %v1605 = vor.u32 %v1601, %v1604
      %v1606 = vsel %vm1435, %v1497, %v1605
      %v1608 = vshrl.u32 %v924, 16
      %v1610 = vrot.slane %v1608, 2
      %v1611 = vshll.u32 %v924, 16
      %v1613 = vrot.slane %v1611, 3
      %v1614 = vor.u32 %v1610, %v1613
      %v1615 = vsel %vm1435, %v1514, %v1614
      %v1616 = vsel %vm1435, %v1531, %v1548
      %v1618 = vshrl.u32 %v1097, 16
      %v1620 = vrot.slane %v1618, 2
      %v1621 = vshll.u32 %v1097, 16
      %v1623 = vrot.slane %v1621, 3
      %v1624 = vor.u32 %v1620, %v1623
      %v1625 = vsel %vm1435, %v1548, %v1624
      %v1627 = vshrl.u32 %v1163, 16
      %v1629 = vrot.slane %v1627, 2
      %v1630 = vshll.u32 %v1163, 16
      %v1632 = vrot.slane %v1630, 3
      %v1633 = vor.u32 %v1629, %v1632
      %v1634 = vsel %vm1435, %v1565, %v1633
      %v1636 = vshrl.u32 %v1254, 16
      %v1638 = vrot.slane %v1636, 2
      %v1639 = vshll.u32 %v1254, 16
      %v1641 = vrot.slane %v1639, 3
      %v1642 = vor.u32 %v1638, %v1641
      %v1643 = vsel %vm1435, %v1582, %v1642
      %v1644 = vrot.slane %v676, 2
      %v1645 = vrot.slane %v672, 3
      %v1646 = vor.u32 %v1644, %v1645
      %v1647 = vsel %vm1435, %v1586, %v1646
      %v1649 = vshrl.u32 %v683, 16
      %v1651 = vrot.slane %v1649, 2
      %v1652 = vshll.u32 %v683, 16
      %v1654 = vrot.slane %v1652, 3
      %v1655 = vor.u32 %v1651, %v1654
      %v1656 = vsel %vm1435, %v1595, %v1655
      %v1658 = vshrl.u32 %v829, 16
      %v1660 = vrot.slane %v1658, 2
      %v1661 = vshll.u32 %v829, 16
      %v1663 = vrot.slane %v1661, 3
      %v1664 = vor.u32 %v1660, %v1663
      %v1665 = vsel %vm1435, %v1605, %v1664
      %v1667 = vshrl.u32 %v933, 16
      %v1669 = vrot.slane %v1667, 2
      %v1670 = vshll.u32 %v933, 16
      %v1672 = vrot.slane %v1670, 3
      %v1673 = vor.u32 %v1669, %v1672
      %v1674 = vsel %vm1435, %v1614, %v1673
      %v1676 = vshrl.u32 %v1099, 16
      %v1678 = vrot.slane %v1676, 2
      %v1679 = vshll.u32 %v1099, 16
      %v1681 = vrot.slane %v1679, 3
      %v1682 = vor.u32 %v1678, %v1681
      %v1683 = vsel %vm1435, %v1624, %v1682
      %v1685 = vshrl.u32 %v1167, 16
      %v1687 = vrot.slane %v1685, 2
      %v1688 = vshll.u32 %v1167, 16
      %v1690 = vrot.slane %v1688, 3
      %v1691 = vor.u32 %v1687, %v1690
      %v1692 = vsel %vm1435, %v1633, %v1691
      %v1694 = vshrl.u32 %v1256, 16
      %v1696 = vrot.slane %v1694, 2
      %v1697 = vshll.u32 %v1256, 16
      %v1699 = vrot.slane %v1697, 3
      %v1700 = vor.u32 %v1696, %v1699
      %v1701 = vsel %vm1435, %v1642, %v1700
      %v1702 = vrot.slane %v684, 2
      %v1703 = vrot.slane %v680, 3
      %v1704 = vor.u32 %v1702, %v1703
      %v1705 = vsel %vm1435, %v1646, %v1704
      %v1707 = vshrl.u32 %v691, 16
      %v1709 = vrot.slane %v1707, 2
      %v1710 = vshll.u32 %v691, 16
      %v1712 = vrot.slane %v1710, 3
      %v1713 = vor.u32 %v1709, %v1712
      %v1714 = vsel %vm1435, %v1655, %v1713
      %v1716 = vshrl.u32 %v831, 16
      %v1718 = vrot.slane %v1716, 2
      %v1719 = vshll.u32 %v831, 16
      %v1721 = vrot.slane %v1719, 3
      %v1722 = vor.u32 %v1718, %v1721
      %v1723 = vsel %vm1435, %v1664, %v1722
      %v1725 = vshrl.u32 %v942, 16
      %v1727 = vrot.slane %v1725, 2
      %v1728 = vshll.u32 %v942, 16
      %v1730 = vrot.slane %v1728, 3
      %v1731 = vor.u32 %v1727, %v1730
      %v1732 = vsel %vm1435, %v1673, %v1731
      %v1734 = vshrl.u32 %v1101, 16
      %v1736 = vrot.slane %v1734, 2
      %v1737 = vshll.u32 %v1101, 16
      %v1739 = vrot.slane %v1737, 3
      %v1740 = vor.u32 %v1736, %v1739
      %v1741 = vsel %vm1435, %v1682, %v1740
      %v1743 = vshrl.u32 %v1171, 16
      %v1745 = vrot.slane %v1743, 2
      %v1746 = vshll.u32 %v1171, 16
      %v1748 = vrot.slane %v1746, 3
      %v1749 = vor.u32 %v1745, %v1748
      %v1750 = vsel %vm1435, %v1691, %v1749
      %v1752 = vshrl.u32 %v1258, 16
      %v1754 = vrot.slane %v1752, 2
      %v1755 = vshll.u32 %v1258, 16
      %v1757 = vrot.slane %v1755, 3
      %v1758 = vor.u32 %v1754, %v1757
      %v1759 = vsel %vm1435, %v1700, %v1758
      %v1760 = vrot.slane %v692, 2
      %v1761 = vrot.slane %v688, 3
      %v1762 = vor.u32 %v1760, %v1761
      %v1763 = vsel %vm1435, %v1704, %v1762
      %v1765 = vshrl.u32 %v699, 16
      %v1767 = vrot.slane %v1765, 2
      %v1768 = vshll.u32 %v699, 16
      %v1770 = vrot.slane %v1768, 3
      %v1771 = vor.u32 %v1767, %v1770
      %v1772 = vsel %vm1435, %v1713, %v1771
      %v1774 = vshrl.u32 %v833, 16
      %v1776 = vrot.slane %v1774, 2
      %v1777 = vshll.u32 %v833, 16
      %v1779 = vrot.slane %v1777, 3
      %v1780 = vor.u32 %v1776, %v1779
      %v1781 = vsel %vm1435, %v1722, %v1780
      %v1783 = vshrl.u32 %v951, 16
      %v1785 = vrot.slane %v1783, 2
      %v1786 = vshll.u32 %v951, 16
      %v1788 = vrot.slane %v1786, 3
      %v1789 = vor.u32 %v1785, %v1788
      %v1790 = vsel %vm1435, %v1731, %v1789
      %v1792 = vshrl.u32 %v1103, 16
      %v1794 = vrot.slane %v1792, 2
      %v1795 = vshll.u32 %v1103, 16
      %v1797 = vrot.slane %v1795, 3
      %v1798 = vor.u32 %v1794, %v1797
      %v1799 = vsel %vm1435, %v1740, %v1798
      %v1801 = vshrl.u32 %v1175, 16
      %v1803 = vrot.slane %v1801, 2
      %v1804 = vshll.u32 %v1175, 16
      %v1806 = vrot.slane %v1804, 3
      %v1807 = vor.u32 %v1803, %v1806
      %v1808 = vsel %vm1435, %v1749, %v1807
      %v1810 = vshrl.u32 %v1260, 16
      %v1812 = vrot.slane %v1810, 2
      %v1813 = vshll.u32 %v1260, 16
      %v1815 = vrot.slane %v1813, 3
      %v1816 = vor.u32 %v1812, %v1815
      %v1817 = vsel %vm1435, %v1758, %v1816
      %v1818 = vrot.slane %v700, 2
      %v1819 = vrot.slane %v696, 3
      %v1820 = vor.u32 %v1818, %v1819
      %v1821 = vsel %vm1435, %v1762, %v1820
      %v1823 = vshrl.u32 %v707, 16
      %v1825 = vrot.slane %v1823, 2
      %v1826 = vshll.u32 %v707, 16
      %v1828 = vrot.slane %v1826, 3
      %v1829 = vor.u32 %v1825, %v1828
      %v1830 = vsel %vm1435, %v1771, %v1829
      %v1832 = vshrl.u32 %v835, 16
      %v1834 = vrot.slane %v1832, 2
      %v1835 = vshll.u32 %v835, 16
      %v1837 = vrot.slane %v1835, 3
      %v1838 = vor.u32 %v1834, %v1837
      %v1839 = vsel %vm1435, %v1780, %v1838
      %v1841 = vshrl.u32 %v960, 16
      %v1843 = vrot.slane %v1841, 2
      %v1844 = vshll.u32 %v960, 16
      %v1846 = vrot.slane %v1844, 3
      %v1847 = vor.u32 %v1843, %v1846
      %v1848 = vsel %vm1435, %v1789, %v1847
      %v1850 = vshrl.u32 %v1105, 16
      %v1852 = vrot.slane %v1850, 2
      %v1853 = vshll.u32 %v1105, 16
      %v1855 = vrot.slane %v1853, 3
      %v1856 = vor.u32 %v1852, %v1855
      %v1857 = vsel %vm1435, %v1798, %v1856
      %v1859 = vshrl.u32 %v1179, 16
      %v1861 = vrot.slane %v1859, 2
      %v1862 = vshll.u32 %v1179, 16
      %v1864 = vrot.slane %v1862, 3
      %v1865 = vor.u32 %v1861, %v1864
      %v1866 = vsel %vm1435, %v1807, %v1865
      %v1868 = vshrl.u32 %v1262, 16
      %v1870 = vrot.slane %v1868, 2
      %v1871 = vshll.u32 %v1262, 16
      %v1873 = vrot.slane %v1871, 3
      %v1874 = vor.u32 %v1870, %v1873
      %v1875 = vsel %vm1435, %v1816, %v1874
      %v1876 = vrot.slane %v708, 2
      %v1877 = vrot.slane %v704, 3
      %v1878 = vor.u32 %v1876, %v1877
      %v1879 = vsel %vm1435, %v1820, %v1878
      %v1881 = vshrl.u32 %v715, 16
      %v1883 = vrot.slane %v1881, 2
      %v1884 = vshll.u32 %v715, 16
      %v1886 = vrot.slane %v1884, 3
      %v1887 = vor.u32 %v1883, %v1886
      %v1888 = vsel %vm1435, %v1829, %v1887
      %v1890 = vshrl.u32 %v837, 16
      %v1892 = vrot.slane %v1890, 2
      %v1893 = vshll.u32 %v837, 16
      %v1895 = vrot.slane %v1893, 3
      %v1896 = vor.u32 %v1892, %v1895
      %v1897 = vsel %vm1435, %v1838, %v1896
      %v1899 = vshrl.u32 %v969, 16
      %v1901 = vrot.slane %v1899, 2
      %v1902 = vshll.u32 %v969, 16
      %v1904 = vrot.slane %v1902, 3
      %v1905 = vor.u32 %v1901, %v1904
      %v1906 = vsel %vm1435, %v1847, %v1905
      %v1908 = vshrl.u32 %v1107, 16
      %v1910 = vrot.slane %v1908, 2
      %v1911 = vshll.u32 %v1107, 16
      %v1913 = vrot.slane %v1911, 3
      %v1914 = vor.u32 %v1910, %v1913
      %v1915 = vsel %vm1435, %v1856, %v1914
      %v1917 = vshrl.u32 %v1183, 16
      %v1919 = vrot.slane %v1917, 2
      %v1920 = vshll.u32 %v1183, 16
      %v1922 = vrot.slane %v1920, 3
      %v1923 = vor.u32 %v1919, %v1922
      %v1924 = vsel %vm1435, %v1865, %v1923
      %v1926 = vshrl.u32 %v1264, 16
      %v1928 = vrot.slane %v1926, 2
      %v1929 = vshll.u32 %v1264, 16
      %v1931 = vrot.slane %v1929, 3
      %v1932 = vor.u32 %v1928, %v1931
      %v1933 = vsel %vm1435, %v1874, %v1932
      %v1934 = vrot.slane %v716, 2
      %v1935 = vrot.slane %v712, 3
      %v1936 = vor.u32 %v1934, %v1935
      %v1937 = vsel %vm1435, %v1878, %v1936
      %v1939 = vshrl.u32 %v723, 16
      %v1941 = vrot.slane %v1939, 2
      %v1942 = vshll.u32 %v723, 16
      %v1944 = vrot.slane %v1942, 3
      %v1945 = vor.u32 %v1941, %v1944
      %v1946 = vsel %vm1435, %v1887, %v1945
      %v1948 = vshrl.u32 %v839, 16
      %v1950 = vrot.slane %v1948, 2
      %v1951 = vshll.u32 %v839, 16
      %v1953 = vrot.slane %v1951, 3
      %v1954 = vor.u32 %v1950, %v1953
      %v1955 = vsel %vm1435, %v1896, %v1954
      %v1957 = vshrl.u32 %v978, 16
      %v1959 = vrot.slane %v1957, 2
      %v1960 = vshll.u32 %v978, 16
      %v1962 = vrot.slane %v1960, 3
      %v1963 = vor.u32 %v1959, %v1962
      %v1964 = vsel %vm1435, %v1905, %v1963
      %v1966 = vshrl.u32 %v1109, 16
      %v1968 = vrot.slane %v1966, 2
      %v1969 = vshll.u32 %v1109, 16
      %v1971 = vrot.slane %v1969, 3
      %v1972 = vor.u32 %v1968, %v1971
      %v1973 = vsel %vm1435, %v1914, %v1972
      %v1975 = vshrl.u32 %v1187, 16
      %v1977 = vrot.slane %v1975, 2
      %v1978 = vshll.u32 %v1187, 16
      %v1980 = vrot.slane %v1978, 3
      %v1981 = vor.u32 %v1977, %v1980
      %v1982 = vsel %vm1435, %v1923, %v1981
      %v1984 = vshrl.u32 %v1266, 16
      %v1986 = vrot.slane %v1984, 2
      %v1987 = vshll.u32 %v1266, 16
      %v1989 = vrot.slane %v1987, 3
      %v1990 = vor.u32 %v1986, %v1989
      %v1991 = vsel %vm1435, %v1932, %v1990
      %v1992 = vrot.slane %v724, 2
      %v1993 = vrot.slane %v720, 3
      %v1994 = vor.u32 %v1992, %v1993
      %v1995 = vsel %vm1435, %v1936, %v1994
      %v1997 = vshrl.u32 %v731, 16
      %v1999 = vrot.slane %v1997, 2
      %v2000 = vshll.u32 %v731, 16
      %v2002 = vrot.slane %v2000, 3
      %v2003 = vor.u32 %v1999, %v2002
      %v2004 = vsel %vm1435, %v1945, %v2003
      %v2006 = vshrl.u32 %v841, 16
      %v2008 = vrot.slane %v2006, 2
      %v2009 = vshll.u32 %v841, 16
      %v2011 = vrot.slane %v2009, 3
      %v2012 = vor.u32 %v2008, %v2011
      %v2013 = vsel %vm1435, %v1954, %v2012
      %v2015 = vshrl.u32 %v987, 16
      %v2017 = vrot.slane %v2015, 2
      %v2018 = vshll.u32 %v987, 16
      %v2020 = vrot.slane %v2018, 3
      %v2021 = vor.u32 %v2017, %v2020
      %v2022 = vsel %vm1435, %v1963, %v2021
      %v2024 = vshrl.u32 %v1111, 16
      %v2026 = vrot.slane %v2024, 2
      %v2027 = vshll.u32 %v1111, 16
      %v2029 = vrot.slane %v2027, 3
      %v2030 = vor.u32 %v2026, %v2029
      %v2031 = vsel %vm1435, %v1972, %v2030
      %v2033 = vshrl.u32 %v1191, 16
      %v2035 = vrot.slane %v2033, 2
      %v2036 = vshll.u32 %v1191, 16
      %v2038 = vrot.slane %v2036, 3
      %v2039 = vor.u32 %v2035, %v2038
      %v2040 = vsel %vm1435, %v1981, %v2039
      %v2042 = vshrl.u32 %v1268, 16
      %v2044 = vrot.slane %v2042, 2
      %v2045 = vshll.u32 %v1268, 16
      %v2047 = vrot.slane %v2045, 3
      %v2048 = vor.u32 %v2044, %v2047
      %v2049 = vsel %vm1435, %v1990, %v2048
      %v2050 = vrot.slane %v732, 2
      %v2051 = vrot.slane %v728, 3
      %v2052 = vor.u32 %v2050, %v2051
      %v2053 = vsel %vm1435, %v1994, %v2052
      %v2055 = vshrl.u32 %v739, 16
      %v2057 = vrot.slane %v2055, 2
      %v2058 = vshll.u32 %v739, 16
      %v2060 = vrot.slane %v2058, 3
      %v2061 = vor.u32 %v2057, %v2060
      %v2062 = vsel %vm1435, %v2003, %v2061
      %v2064 = vshrl.u32 %v843, 16
      %v2066 = vrot.slane %v2064, 2
      %v2067 = vshll.u32 %v843, 16
      %v2069 = vrot.slane %v2067, 3
      %v2070 = vor.u32 %v2066, %v2069
      %v2071 = vsel %vm1435, %v2012, %v2070
      %v2073 = vshrl.u32 %v996, 16
      %v2075 = vrot.slane %v2073, 2
      %v2076 = vshll.u32 %v996, 16
      %v2078 = vrot.slane %v2076, 3
      %v2079 = vor.u32 %v2075, %v2078
      %v2080 = vsel %vm1435, %v2021, %v2079
      %v2082 = vshrl.u32 %v1113, 16
      %v2084 = vrot.slane %v2082, 2
      %v2085 = vshll.u32 %v1113, 16
      %v2087 = vrot.slane %v2085, 3
      %v2088 = vor.u32 %v2084, %v2087
      %v2089 = vsel %vm1435, %v2030, %v2088
      %v2091 = vshrl.u32 %v1195, 16
      %v2093 = vrot.slane %v2091, 2
      %v2094 = vshll.u32 %v1195, 16
      %v2096 = vrot.slane %v2094, 3
      %v2097 = vor.u32 %v2093, %v2096
      %v2098 = vsel %vm1435, %v2039, %v2097
      %v2100 = vshrl.u32 %v1270, 16
      %v2102 = vrot.slane %v2100, 2
      %v2103 = vshll.u32 %v1270, 16
      %v2105 = vrot.slane %v2103, 3
      %v2106 = vor.u32 %v2102, %v2105
      %v2107 = vsel %vm1435, %v2048, %v2106
      %v2108 = vrot.slane %v740, 2
      %v2109 = vrot.slane %v736, 3
      %v2110 = vor.u32 %v2108, %v2109
      %v2111 = vsel %vm1435, %v2052, %v2110
      %v2113 = vshrl.u32 %v747, 16
      %v2115 = vrot.slane %v2113, 2
      %v2116 = vshll.u32 %v747, 16
      %v2118 = vrot.slane %v2116, 3
      %v2119 = vor.u32 %v2115, %v2118
      %v2120 = vsel %vm1435, %v2061, %v2119
      %v2122 = vshrl.u32 %v845, 16
      %v2124 = vrot.slane %v2122, 2
      %v2125 = vshll.u32 %v845, 16
      %v2127 = vrot.slane %v2125, 3
      %v2128 = vor.u32 %v2124, %v2127
      %v2129 = vsel %vm1435, %v2070, %v2128
      %v2131 = vshrl.u32 %v1005, 16
      %v2133 = vrot.slane %v2131, 2
      %v2134 = vshll.u32 %v1005, 16
      %v2136 = vrot.slane %v2134, 3
      %v2137 = vor.u32 %v2133, %v2136
      %v2138 = vsel %vm1435, %v2079, %v2137
      %v2140 = vshrl.u32 %v1115, 16
      %v2142 = vrot.slane %v2140, 2
      %v2143 = vshll.u32 %v1115, 16
      %v2145 = vrot.slane %v2143, 3
      %v2146 = vor.u32 %v2142, %v2145
      %v2147 = vsel %vm1435, %v2088, %v2146
      %v2149 = vshrl.u32 %v1199, 16
      %v2151 = vrot.slane %v2149, 2
      %v2152 = vshll.u32 %v1199, 16
      %v2154 = vrot.slane %v2152, 3
      %v2155 = vor.u32 %v2151, %v2154
      %v2156 = vsel %vm1435, %v2097, %v2155
      %v2158 = vshrl.u32 %v1272, 16
      %v2160 = vrot.slane %v2158, 2
      %v2161 = vshll.u32 %v1272, 16
      %v2163 = vrot.slane %v2161, 3
      %v2164 = vor.u32 %v2160, %v2163
      %v2165 = vsel %vm1435, %v2106, %v2164
      %v2166 = vrot.slane %v748, 2
      %v2167 = vrot.slane %v744, 3
      %v2168 = vor.u32 %v2166, %v2167
      %v2169 = vsel %vm1435, %v2110, %v2168
      %v2171 = vshrl.u32 %v755, 16
      %v2173 = vrot.slane %v2171, 2
      %v2174 = vshll.u32 %v755, 16
      %v2176 = vrot.slane %v2174, 3
      %v2177 = vor.u32 %v2173, %v2176
      %v2178 = vsel %vm1435, %v2119, %v2177
      %v2180 = vshrl.u32 %v847, 16
      %v2182 = vrot.slane %v2180, 2
      %v2183 = vshll.u32 %v847, 16
      %v2185 = vrot.slane %v2183, 3
      %v2186 = vor.u32 %v2182, %v2185
      %v2187 = vsel %vm1435, %v2128, %v2186
      %v2189 = vshrl.u32 %v1014, 16
      %v2191 = vrot.slane %v2189, 2
      %v2192 = vshll.u32 %v1014, 16
      %v2194 = vrot.slane %v2192, 3
      %v2195 = vor.u32 %v2191, %v2194
      %v2196 = vsel %vm1435, %v2137, %v2195
      %v2198 = vshrl.u32 %v1117, 16
      %v2200 = vrot.slane %v2198, 2
      %v2201 = vshll.u32 %v1117, 16
      %v2203 = vrot.slane %v2201, 3
      %v2204 = vor.u32 %v2200, %v2203
      %v2205 = vsel %vm1435, %v2146, %v2204
      %v2207 = vshrl.u32 %v1203, 16
      %v2209 = vrot.slane %v2207, 2
      %v2210 = vshll.u32 %v1203, 16
      %v2212 = vrot.slane %v2210, 3
      %v2213 = vor.u32 %v2209, %v2212
      %v2214 = vsel %vm1435, %v2155, %v2213
      %v2216 = vshrl.u32 %v1274, 16
      %v2218 = vrot.slane %v2216, 2
      %v2219 = vshll.u32 %v1274, 16
      %v2221 = vrot.slane %v2219, 3
      %v2222 = vor.u32 %v2218, %v2221
      %v2223 = vsel %vm1435, %v2164, %v2222
      %v2224 = vrot.slane %v756, 2
      %v2225 = vrot.slane %v752, 3
      %v2226 = vor.u32 %v2224, %v2225
      %v2227 = vsel %vm1435, %v2168, %v2226
      %v2229 = vshrl.u32 %v763, 16
      %v2231 = vrot.slane %v2229, 2
      %v2232 = vshll.u32 %v763, 16
      %v2234 = vrot.slane %v2232, 3
      %v2235 = vor.u32 %v2231, %v2234
      %v2236 = vsel %vm1435, %v2177, %v2235
      %v2238 = vshrl.u32 %v849, 16
      %v2240 = vrot.slane %v2238, 2
      %v2241 = vshll.u32 %v849, 16
      %v2243 = vrot.slane %v2241, 3
      %v2244 = vor.u32 %v2240, %v2243
      %v2245 = vsel %vm1435, %v2186, %v2244
      %v2247 = vshrl.u32 %v1023, 16
      %v2249 = vrot.slane %v2247, 2
      %v2250 = vshll.u32 %v1023, 16
      %v2252 = vrot.slane %v2250, 3
      %v2253 = vor.u32 %v2249, %v2252
      %v2254 = vsel %vm1435, %v2195, %v2253
      %v2256 = vshrl.u32 %v1119, 16
      %v2258 = vrot.slane %v2256, 2
      %v2259 = vshll.u32 %v1119, 16
      %v2261 = vrot.slane %v2259, 3
      %v2262 = vor.u32 %v2258, %v2261
      %v2263 = vsel %vm1435, %v2204, %v2262
      %v2265 = vshrl.u32 %v1207, 16
      %v2267 = vrot.slane %v2265, 2
      %v2268 = vshll.u32 %v1207, 16
      %v2270 = vrot.slane %v2268, 3
      %v2271 = vor.u32 %v2267, %v2270
      %v2272 = vsel %vm1435, %v2213, %v2271
      %v2274 = vshrl.u32 %v1276, 16
      %v2276 = vrot.slane %v2274, 2
      %v2277 = vshll.u32 %v1276, 16
      %v2279 = vrot.slane %v2277, 3
      %v2280 = vor.u32 %v2276, %v2279
      %v2281 = vsel %vm1435, %v2222, %v2280
      %v2282 = vrot.slane %v764, 2
      %v2283 = vrot.slane %v760, 3
      %v2284 = vor.u32 %v2282, %v2283
      %v2285 = vsel %vm1435, %v2226, %v2284
      %v2287 = vshrl.u32 %v771, 16
      %v2289 = vrot.slane %v2287, 2
      %v2290 = vshll.u32 %v771, 16
      %v2292 = vrot.slane %v2290, 3
      %v2293 = vor.u32 %v2289, %v2292
      %v2294 = vsel %vm1435, %v2235, %v2293
      %v2296 = vshrl.u32 %v851, 16
      %v2298 = vrot.slane %v2296, 2
      %v2299 = vshll.u32 %v851, 16
      %v2301 = vrot.slane %v2299, 3
      %v2302 = vor.u32 %v2298, %v2301
      %v2303 = vsel %vm1435, %v2244, %v2302
      %v2305 = vshrl.u32 %v1032, 16
      %v2307 = vrot.slane %v2305, 2
      %v2308 = vshll.u32 %v1032, 16
      %v2310 = vrot.slane %v2308, 3
      %v2311 = vor.u32 %v2307, %v2310
      %v2312 = vsel %vm1435, %v2253, %v2311
      %v2314 = vshrl.u32 %v1121, 16
      %v2316 = vrot.slane %v2314, 2
      %v2317 = vshll.u32 %v1121, 16
      %v2319 = vrot.slane %v2317, 3
      %v2320 = vor.u32 %v2316, %v2319
      %v2321 = vsel %vm1435, %v2262, %v2320
      %v2323 = vshrl.u32 %v1211, 16
      %v2325 = vrot.slane %v2323, 2
      %v2326 = vshll.u32 %v1211, 16
      %v2328 = vrot.slane %v2326, 3
      %v2329 = vor.u32 %v2325, %v2328
      %v2330 = vsel %vm1435, %v2271, %v2329
      %v2332 = vshrl.u32 %v1278, 16
      %v2334 = vrot.slane %v2332, 2
      %v2335 = vshll.u32 %v1278, 16
      %v2337 = vrot.slane %v2335, 3
      %v2338 = vor.u32 %v2334, %v2337
      %v2339 = vsel %vm1435, %v2280, %v2338
      %v2340 = vrot.slane %v772, 2
      %v2341 = vrot.slane %v768, 3
      %v2342 = vor.u32 %v2340, %v2341
      %v2343 = vsel %vm1435, %v2284, %v2342
      %v2345 = vshrl.u32 %v779, 16
      %v2347 = vrot.slane %v2345, 2
      %v2348 = vshll.u32 %v779, 16
      %v2350 = vrot.slane %v2348, 3
      %v2351 = vor.u32 %v2347, %v2350
      %v2352 = vsel %vm1435, %v2293, %v2351
      %v2354 = vshrl.u32 %v853, 16
      %v2356 = vrot.slane %v2354, 2
      %v2357 = vshll.u32 %v853, 16
      %v2359 = vrot.slane %v2357, 3
      %v2360 = vor.u32 %v2356, %v2359
      %v2361 = vsel %vm1435, %v2302, %v2360
      %v2363 = vshrl.u32 %v1041, 16
      %v2365 = vrot.slane %v2363, 2
      %v2366 = vshll.u32 %v1041, 16
      %v2368 = vrot.slane %v2366, 3
      %v2369 = vor.u32 %v2365, %v2368
      %v2370 = vsel %vm1435, %v2311, %v2369
      %v2372 = vshrl.u32 %v1123, 16
      %v2374 = vrot.slane %v2372, 2
      %v2375 = vshll.u32 %v1123, 16
      %v2377 = vrot.slane %v2375, 3
      %v2378 = vor.u32 %v2374, %v2377
      %v2379 = vsel %vm1435, %v2320, %v2378
      %v2381 = vshrl.u32 %v1215, 16
      %v2383 = vrot.slane %v2381, 2
      %v2384 = vshll.u32 %v1215, 16
      %v2386 = vrot.slane %v2384, 3
      %v2387 = vor.u32 %v2383, %v2386
      %v2388 = vsel %vm1435, %v2329, %v2387
      %v2390 = vshrl.u32 %v1280, 16
      %v2392 = vrot.slane %v2390, 2
      %v2393 = vshll.u32 %v1280, 16
      %v2395 = vrot.slane %v2393, 3
      %v2396 = vor.u32 %v2392, %v2395
      %v2397 = vsel %vm1435, %v2338, %v2396
      %v2398 = vrot.slane %v780, 2
      %v2399 = vrot.slane %v776, 3
      %v2400 = vor.u32 %v2398, %v2399
      %v2401 = vsel %vm1435, %v2342, %v2400
      %v2403 = vshrl.u32 %v787, 16
      %v2405 = vrot.slane %v2403, 2
      %v2406 = vshll.u32 %v787, 16
      %v2408 = vrot.slane %v2406, 3
      %v2409 = vor.u32 %v2405, %v2408
      %v2410 = vsel %vm1435, %v2351, %v2409
      %v2412 = vshrl.u32 %v855, 16
      %v2414 = vrot.slane %v2412, 2
      %v2415 = vshll.u32 %v855, 16
      %v2417 = vrot.slane %v2415, 3
      %v2418 = vor.u32 %v2414, %v2417
      %v2419 = vsel %vm1435, %v2360, %v2418
      %v2421 = vshrl.u32 %v1050, 16
      %v2423 = vrot.slane %v2421, 2
      %v2424 = vshll.u32 %v1050, 16
      %v2426 = vrot.slane %v2424, 3
      %v2427 = vor.u32 %v2423, %v2426
      %v2428 = vsel %vm1435, %v2369, %v2427
      %v2430 = vshrl.u32 %v1125, 16
      %v2432 = vrot.slane %v2430, 2
      %v2433 = vshll.u32 %v1125, 16
      %v2435 = vrot.slane %v2433, 3
      %v2436 = vor.u32 %v2432, %v2435
      %v2437 = vsel %vm1435, %v2378, %v2436
      %v2439 = vshrl.u32 %v1219, 16
      %v2441 = vrot.slane %v2439, 2
      %v2442 = vshll.u32 %v1219, 16
      %v2444 = vrot.slane %v2442, 3
      %v2445 = vor.u32 %v2441, %v2444
      %v2446 = vsel %vm1435, %v2387, %v2445
      %v2448 = vshrl.u32 %v1282, 16
      %v2450 = vrot.slane %v2448, 2
      %v2451 = vshll.u32 %v1282, 16
      %v2453 = vrot.slane %v2451, 3
      %v2454 = vor.u32 %v2450, %v2453
      %v2455 = vsel %vm1435, %v2396, %v2454
      %v2456 = vrot.slane %v788, 2
      %v2457 = vrot.slane %v784, 3
      %v2458 = vor.u32 %v2456, %v2457
      %v2459 = vsel %vm1435, %v2400, %v2458
      %v2461 = vshrl.u32 %v795, 16
      %v2463 = vrot.slane %v2461, 2
      %v2464 = vshll.u32 %v795, 16
      %v2466 = vrot.slane %v2464, 3
      %v2467 = vor.u32 %v2463, %v2466
      %v2468 = vsel %vm1435, %v2409, %v2467
      %v2470 = vshrl.u32 %v857, 16
      %v2472 = vrot.slane %v2470, 2
      %v2473 = vshll.u32 %v857, 16
      %v2475 = vrot.slane %v2473, 3
      %v2476 = vor.u32 %v2472, %v2475
      %v2477 = vsel %vm1435, %v2418, %v2476
      %v2479 = vshrl.u32 %v1059, 16
      %v2481 = vrot.slane %v2479, 2
      %v2482 = vshll.u32 %v1059, 16
      %v2484 = vrot.slane %v2482, 3
      %v2485 = vor.u32 %v2481, %v2484
      %v2486 = vsel %vm1435, %v2427, %v2485
      %v2488 = vshrl.u32 %v1127, 16
      %v2490 = vrot.slane %v2488, 2
      %v2491 = vshll.u32 %v1127, 16
      %v2493 = vrot.slane %v2491, 3
      %v2494 = vor.u32 %v2490, %v2493
      %v2495 = vsel %vm1435, %v2436, %v2494
      %v2497 = vshrl.u32 %v1223, 16
      %v2499 = vrot.slane %v2497, 2
      %v2500 = vshll.u32 %v1223, 16
      %v2502 = vrot.slane %v2500, 3
      %v2503 = vor.u32 %v2499, %v2502
      %v2504 = vsel %vm1435, %v2445, %v2503
      %v2506 = vshrl.u32 %v1284, 16
      %v2508 = vrot.slane %v2506, 2
      %v2509 = vshll.u32 %v1284, 16
      %v2511 = vrot.slane %v2509, 3
      %v2512 = vor.u32 %v2508, %v2511
      %v2513 = vsel %vm1435, %v2454, %v2512
      %v2514 = vrot.slane %v796, 2
      %v2515 = vrot.slane %v792, 3
      %v2516 = vor.u32 %v2514, %v2515
      %v2517 = vsel %vm1435, %v2458, %v2516
      %v2519 = vshrl.u32 %v803, 16
      %v2521 = vrot.slane %v2519, 2
      %v2522 = vshll.u32 %v803, 16
      %v2524 = vrot.slane %v2522, 3
      %v2525 = vor.u32 %v2521, %v2524
      %v2526 = vsel %vm1435, %v2467, %v2525
      %v2528 = vshrl.u32 %v874, 16
      %v2530 = vrot.slane %v2528, 2
      %v2531 = vshll.u32 %v874, 16
      %v2533 = vrot.slane %v2531, 3
      %v2534 = vor.u32 %v2530, %v2533
      %v2535 = vsel %vm1435, %v2476, %v2534
      %v2537 = vshrl.u32 %v1068, 16
      %v2539 = vrot.slane %v2537, 2
      %v2540 = vshll.u32 %v1068, 16
      %v2542 = vrot.slane %v2540, 3
      %v2543 = vor.u32 %v2539, %v2542
      %v2544 = vsel %vm1435, %v2485, %v2543
      %v2546 = vshrl.u32 %v1129, 16
      %v2548 = vrot.slane %v2546, 2
      %v2549 = vshll.u32 %v1129, 16
      %v2551 = vrot.slane %v2549, 3
      %v2552 = vor.u32 %v2548, %v2551
      %v2553 = vsel %vm1435, %v2494, %v2552
      %v2555 = vshrl.u32 %v1227, 16
      %v2557 = vrot.slane %v2555, 2
      %v2558 = vshll.u32 %v1227, 16
      %v2560 = vrot.slane %v2558, 3
      %v2561 = vor.u32 %v2557, %v2560
      %v2562 = vsel %vm1435, %v2503, %v2561
      %v2564 = vshrl.u32 %v1286, 16
      %v2566 = vrot.slane %v2564, 2
      %v2567 = vshll.u32 %v1286, 16
      %v2569 = vrot.slane %v2567, 3
      %v2570 = vor.u32 %v2566, %v2569
      %v2571 = vsel %vm1435, %v2512, %v2570
      %v2572 = vrot.slane %v804, 2
      %v2573 = vrot.slane %v800, 3
      %v2574 = vor.u32 %v2572, %v2573
      %v2575 = vsel %vm1435, %v2516, %v2574
      %v2577 = vshrl.u32 %v811, 16
      %v2579 = vrot.slane %v2577, 2
      %v2580 = vshll.u32 %v811, 16
      %v2582 = vrot.slane %v2580, 3
      %v2583 = vor.u32 %v2579, %v2582
      %v2584 = vsel %vm1435, %v2525, %v2583
      %v2586 = vshrl.u32 %v859, 16
      %v2588 = vrot.slane %v2586, 2
      %v2589 = vshll.u32 %v859, 16
      %v2591 = vrot.slane %v2589, 3
      %v2592 = vor.u32 %v2588, %v2591
      %v2593 = vsel %vm1435, %v2476, %v2592
      %v2595 = vshrl.u32 %v876, 16
      %v2597 = vrot.slane %v2595, 2
      %v2598 = vshll.u32 %v876, 16
      %v2600 = vrot.slane %v2598, 3
      %v2601 = vor.u32 %v2597, %v2600
      %v2602 = vsel %vm1435, %v2534, %v2601
      %v2604 = vshrl.u32 %v1077, 16
      %v2606 = vrot.slane %v2604, 2
      %v2607 = vshll.u32 %v1077, 16
      %v2609 = vrot.slane %v2607, 3
      %v2610 = vor.u32 %v2606, %v2609
      %v2611 = vsel %vm1435, %v2543, %v2610
      %v2613 = vshrl.u32 %v1141, 16
      %v2615 = vrot.slane %v2613, 2
      %v2616 = vshll.u32 %v1141, 16
      %v2618 = vrot.slane %v2616, 3
      %v2619 = vor.u32 %v2615, %v2618
      %v2620 = vsel %vm1435, %v2552, %v2619
      %v2622 = vshrl.u32 %v1236, 16
      %v2624 = vrot.slane %v2622, 2
      %v2625 = vshll.u32 %v1236, 16
      %v2627 = vrot.slane %v2625, 3
      %v2628 = vor.u32 %v2624, %v2627
      %v2629 = vsel %vm1435, %v2561, %v2628
      %v2631 = vshrl.u32 %v1288, 16
      %v2633 = vrot.slane %v2631, 2
      %v2634 = vshll.u32 %v1288, 16
      %v2636 = vrot.slane %v2634, 3
      %v2637 = vor.u32 %v2633, %v2636
      %v2638 = vsel %vm1435, %v2570, %v2637
      %v2639 = vrot.slane %v812, 2
      %v2640 = vrot.slane %v808, 3
      %v2641 = vor.u32 %v2639, %v2640
      %v2642 = vsel %vm1435, %v2574, %v2641
      %v2644 = vshrl.u32 %v814, 16
      %v2646 = vrot.slane %v2644, 2
      %v2647 = vshll.u32 %v814, 16
      %v2649 = vrot.slane %v2647, 3
      %v2650 = vor.u32 %v2646, %v2649
      %v2651 = vsel %vm1435, %v2583, %v2650
      %v2653 = vshrl.u32 %v858, 16
      %v2655 = vrot.slane %v2653, 2
      %v2656 = vshll.u32 %v858, 16
      %v2658 = vrot.slane %v2656, 3
      %v2659 = vor.u32 %v2655, %v2658
      %v2660 = vsel %vm1435, %v2592, %v2659
      %v2662 = vshrl.u32 %v875, 16
      %v2664 = vrot.slane %v2662, 2
      %v2665 = vshll.u32 %v875, 16
      %v2667 = vrot.slane %v2665, 3
      %v2668 = vor.u32 %v2664, %v2667
      %v2669 = vsel %vm1435, %v2601, %v2668
      %v2671 = vshrl.u32 %v1086, 16
      %v2673 = vrot.slane %v2671, 2
      %v2674 = vshll.u32 %v1086, 16
      %v2676 = vrot.slane %v2674, 3
      %v2677 = vor.u32 %v2673, %v2676
      %v2678 = vsel %vm1435, %v2610, %v2677
      %v2680 = vshrl.u32 %v1131, 16
      %v2682 = vrot.slane %v2680, 2
      %v2683 = vshll.u32 %v1131, 16
      %v2685 = vrot.slane %v2683, 3
      %v2686 = vor.u32 %v2682, %v2685
      %v2687 = vsel %vm1435, %v2552, %v2686
      %v2689 = vshrl.u32 %v1143, 16
      %v2691 = vrot.slane %v2689, 2
      %v2692 = vshll.u32 %v1143, 16
      %v2694 = vrot.slane %v2692, 3
      %v2695 = vor.u32 %v2691, %v2694
      %v2696 = vsel %vm1435, %v2619, %v2695
      %v2698 = vshrl.u32 %v1245, 16
      %v2700 = vrot.slane %v2698, 2
      %v2701 = vshll.u32 %v1245, 16
      %v2703 = vrot.slane %v2701, 3
      %v2704 = vor.u32 %v2700, %v2703
      %v2705 = vsel %vm1435, %v2628, %v2704
      %v2707 = vshrl.u32 %v1290, 16
      %v2709 = vrot.slane %v2707, 2
      %v2710 = vshll.u32 %v1290, 16
      %v2712 = vrot.slane %v2710, 3
      %v2713 = vor.u32 %v2709, %v2712
      %v2714 = vsel %vm1435, %v2637, %v2713
      %v3015 = vunpack.c.l.b16 %v1291
      %v3016 = vunpack.c.l.b16 %v1292
      %v3017 = vunpack.c.l.b16 %v1293
      %v3018 = vunpack.c.l.b16 %v1294
      %v3019 = vunpack.c.l.b16 %v1295
      %v3020 = vunpack.c.l.b16 %v1296
      %v3021 = vunpack.c.l.b16 %v1297
      %v3022 = vunpack.c.l.b16 %v1298
      %v3023 = vunpack.c.l.b16 %v1299
      %v3024 = vunpack.c.l.b16 %v1300
      %v3025 = vunpack.c.l.b16 %v1301
      %v3026 = vunpack.c.l.b16 %v1302
      %v3027 = vunpack.c.l.b16 %v1303
      %v3028 = vunpack.c.l.b16 %v1304
      %v3029 = vunpack.c.l.b16 %v1305
      %v3030 = vunpack.c.l.b16 %v1306
      %v3031 = vunpack.c.l.b16 %v1307
      %v3032 = vunpack.c.l.b16 %v1308
      %v3033 = vunpack.c.l.b16 %v1309
      %v3034 = vunpack.c.l.b16 %v1310
      %v3035 = vunpack.c.l.b16 %v1311
      %v3036 = vunpack.c.l.b16 %v1312
      %v3037 = vunpack.c.l.b16 %v1313
      %v3038 = vunpack.c.l.b16 %v1314
      %v3039 = vunpack.c.l.b16 %v1315
      %v3040 = vunpack.c.l.b16 %v1316
      %v3041 = vunpack.c.l.b16 %v1317
      %v3042 = vunpack.c.l.b16 %v1318
      %v3043 = vunpack.c.l.b16 %v1319
      %v3044 = vunpack.c.l.b16 %v1320
      %v3045 = vunpack.c.l.b16 %v1321
      %v3046 = vunpack.c.l.b16 %v1322
      %v3047 = vunpack.c.l.b16 %v1323
      %v3048 = vunpack.c.l.b16 %v1324
      %v3049 = vunpack.c.l.b16 %v1325
      %v3050 = vunpack.c.l.b16 %v1326
      %v3051 = vunpack.c.l.b16 %v1327
      %v3052 = vunpack.c.l.b16 %v1328
      %v3053 = vunpack.c.l.b16 %v1329
      %v3054 = vunpack.c.l.b16 %v1330
      %v3055 = vunpack.c.l.b16 %v1331
      %v3056 = vunpack.c.l.b16 %v1332
      %v3057 = vunpack.c.l.b16 %v1333
      %v3058 = vunpack.c.l.b16 %v1334
      %v3059 = vunpack.c.l.b16 %v1335
      %v3060 = vunpack.c.l.b16 %v1336
      %v3061 = vunpack.c.l.b16 %v1337
      %v3062 = vunpack.c.l.b16 %v1338
      %v3063 = vunpack.c.l.b16 %v1339
      %v3064 = vunpack.c.l.b16 %v1340
      %v3065 = vunpack.c.l.b16 %v1341
      %v3066 = vunpack.c.l.b16 %v1342
      %v3067 = vunpack.c.l.b16 %v1343
      %v3068 = vunpack.c.l.b16 %v1344
      %v3069 = vunpack.c.l.b16 %v1345
      %v3070 = vunpack.c.l.b16 %v1346
      %v3071 = vunpack.c.l.b16 %v1347
      %v3072 = vunpack.c.l.b16 %v1348
      %v3073 = vunpack.c.l.b16 %v1349
      %v3074 = vunpack.c.l.b16 %v1350
      %v3075 = vunpack.c.l.b16 %v1351
      %v3076 = vunpack.c.l.b16 %v1352
      %v3077 = vunpack.c.l.b16 %v1353
      %v3078 = vunpack.c.l.b16 %v1354
      %v3079 = vunpack.c.l.b16 %v1355
      %v3080 = vunpack.c.l.b16 %v1356
      %v3081 = vunpack.c.l.b16 %v1357
      %v3082 = vunpack.c.l.b16 %v1358
      %v3083 = vunpack.c.l.b16 %v1359
      %v3084 = vunpack.c.l.b16 %v1360
      %v3085 = vunpack.c.l.b16 %v1361
      %v3086 = vunpack.c.l.b16 %v1362
      %v3087 = vunpack.c.l.b16 %v1363
      %v3088 = vunpack.c.l.b16 %v1364
      %v3089 = vunpack.c.l.b16 %v1365
      %v3090 = vunpack.c.l.b16 %v1366
      %v3091 = vunpack.c.l.b16 %v1367
      %v3092 = vunpack.c.l.b16 %v1368
      %v3093 = vunpack.c.l.b16 %v1369
      %v3094 = vunpack.c.l.b16 %v1370
      %v3095 = vunpack.c.l.b16 %v1371
      %v3096 = vunpack.c.l.b16 %v1372
      %v3097 = vunpack.c.l.b16 %v1373
      %v3098 = vunpack.c.l.b16 %v1374
      %v3099 = vunpack.c.l.b16 %v1375
      %v3100 = vunpack.c.l.b16 %v1376
      %v3101 = vunpack.c.l.b16 %v1377
      %v3102 = vunpack.c.l.b16 %v1378
      %v3103 = vunpack.c.l.b16 %v1379
      %v3104 = vunpack.c.l.b16 %v1380
      %v3105 = vunpack.c.l.b16 %v1381
      %v3106 = vunpack.c.l.b16 %v1382
      %v3107 = vunpack.c.l.b16 %v1383
      %v3108 = vunpack.c.l.b16 %v1384
      %v3109 = vunpack.c.l.b16 %v1385
      %v3110 = vunpack.c.l.b16 %v1386
      %v3111 = vunpack.c.l.b16 %v1387
      %v3112 = vunpack.c.l.b16 %v1388
      %v3113 = vunpack.c.l.b16 %v1389
      %v3114 = vunpack.c.l.b16 %v1390
      %v3115 = vunpack.c.l.b16 %v1391
      %v3116 = vunpack.c.l.b16 %v1392
      %v3117 = vunpack.c.l.b16 %v1393
      %v3118 = vunpack.c.l.b16 %v1394
      %v3119 = vunpack.c.l.b16 %v1395
      %v3120 = vunpack.c.l.b16 %v1396
      %v3121 = vunpack.c.l.b16 %v1397
      %v3122 = vunpack.c.l.b16 %v1398
      %v3123 = vunpack.c.l.b16 %v1399
      %v3124 = vunpack.c.l.b16 %v1400
      %v3125 = vunpack.c.l.b16 %v1401
      %v3126 = vunpack.c.l.b16 %v1402
      %v3127 = vunpack.c.l.b16 %v1403
      %v3128 = vunpack.c.l.b16 %v1404
      %v3129 = vunpack.c.l.b16 %v1405
      %v3130 = vunpack.c.l.b16 %v1406
      %v3131 = vunpack.c.l.b16 %v1407
      %v3132 = vunpack.c.l.b16 %v1408
      %v3133 = vunpack.c.l.b16 %v1409
      %v3134 = vunpack.c.l.b16 %v1410
      %v3135 = vunpack.c.l.b16 %v1411
      %v3136 = vunpack.c.l.b16 %v1412
      %v3137 = vunpack.c.l.b16 %v1413
      %v3138 = vunpack.c.l.b16 %v1414
      %v3139 = vunpack.c.l.b16 %v1415
      %v3140 = vunpack.c.l.b16 %v1416
      %v3141 = vunpack.c.l.b16 %v1417
      %v3142 = vunpack.c.l.b16 %v1418
      %v3143 = vunpack.c.l.b16 %v1419
      %v3144 = vunpack.c.l.b16 %v1420
      %v3145 = vunpack.c.l.b16 %v1421
      %v3146 = vunpack.c.l.b16 %v1422
      %v3147 = vunpack.c.l.b16 %v1423
      %v3148 = vunpack.c.l.b16 %v1424
      %v3149 = vunpack.c.l.b16 %v1425
      %v3150 = vunpack.c.l.b16 %v1426
      %v3151 = vunpack.c.l.b16 %v1427
      %v3152 = vunpack.c.l.b16 %v1428
      %v3153 = vunpack.c.l.b16 %v1429
      %v3154 = vunpack.c.l.b16 %v1430
      %v3155 = vunpack.c.l.b16 %v1431
      %v3156 = vunpack.c.l.b16 %v1432
      %v3157 = vunpack.c.l.b16 %v1433
      %v3158 = vunpack.c.l.b16 %v1434
      %v3159 = vpack.c.b16 %v3016, %v3015
      %v3160 = vpack.c.b16 %v3018, %v3017
      %v3161 = vpack.c.b16 %v3020, %v3019
      %v3162 = vpack.c.b16 %v3022, %v3021
      %v3163 = vpack.c.b16 %v3024, %v3023
      %v3164 = vpack.c.b16 %v3026, %v3025
      %v3165 = vpack.c.b16 %v3028, %v3027
      %v3166 = vpack.c.b16 %v3030, %v3029
      %v3167 = vpack.c.b16 %v3032, %v3031
      %v3168 = vpack.c.b16 %v3034, %v3033
      %v3169 = vpack.c.b16 %v3036, %v3035
      %v3170 = vpack.c.b16 %v3038, %v3037
      %v3171 = vpack.c.b16 %v3040, %v3039
      %v3172 = vpack.c.b16 %v3042, %v3041
      %v3173 = vpack.c.b16 %v3044, %v3043
      %v3174 = vpack.c.b16 %v3046, %v3045
      %v3175 = vpack.c.b16 %v3048, %v3047
      %v3176 = vpack.c.b16 %v3050, %v3049
      %v3177 = vpack.c.b16 %v3052, %v3051
      %v3178 = vpack.c.b16 %v3054, %v3053
      %v3179 = vpack.c.b16 %v3056, %v3055
      %v3180 = vpack.c.b16 %v3058, %v3057
      %v3181 = vpack.c.b16 %v3060, %v3059
      %v3182 = vpack.c.b16 %v3062, %v3061
      %v3183 = vpack.c.b16 %v3064, %v3063
      %v3184 = vpack.c.b16 %v3066, %v3065
      %v3185 = vpack.c.b16 %v3068, %v3067
      %v3186 = vpack.c.b16 %v3070, %v3069
      %v3187 = vpack.c.b16 %v3072, %v3071
      %v3188 = vpack.c.b16 %v3074, %v3073
      %v3189 = vpack.c.b16 %v3076, %v3075
      %v3190 = vpack.c.b16 %v3078, %v3077
      %v3191 = vpack.c.b16 %v3080, %v3079
      %v3192 = vpack.c.b16 %v3082, %v3081
      %v3193 = vpack.c.b16 %v3084, %v3083
      %v3194 = vpack.c.b16 %v3086, %v3085
      %v3195 = vpack.c.b16 %v3088, %v3087
      %v3196 = vpack.c.b16 %v3090, %v3089
      %v3197 = vpack.c.b16 %v3092, %v3091
      %v3198 = vpack.c.b16 %v3094, %v3093
      %v3199 = vpack.c.b16 %v3096, %v3095
      %v3200 = vpack.c.b16 %v3098, %v3097
      %v3201 = vpack.c.b16 %v3100, %v3099
      %v3202 = vpack.c.b16 %v3102, %v3101
      %v3203 = vpack.c.b16 %v3104, %v3103
      %v3204 = vpack.c.b16 %v3106, %v3105
      %v3205 = vpack.c.b16 %v3108, %v3107
      %v3206 = vpack.c.b16 %v3110, %v3109
      %v3207 = vpack.c.b16 %v3112, %v3111
      %v3208 = vpack.c.b16 %v3114, %v3113
      %v3209 = vpack.c.b16 %v3116, %v3115
      %v3210 = vpack.c.b16 %v3118, %v3117
      %v3211 = vpack.c.b16 %v3120, %v3119
      %v3212 = vpack.c.b16 %v3122, %v3121
      %v3213 = vpack.c.b16 %v3124, %v3123
      %v3214 = vpack.c.b16 %v3126, %v3125
      %v3215 = vpack.c.b16 %v3128, %v3127
      %v3216 = vpack.c.b16 %v3130, %v3129
      %v3217 = vpack.c.b16 %v3132, %v3131
      %v3218 = vpack.c.b16 %v3134, %v3133
      %v3219 = vpack.c.b16 %v3136, %v3135
      %v3220 = vpack.c.b16 %v3138, %v3137
      %v3221 = vpack.c.b16 %v3140, %v3139
      %v3222 = vpack.c.b16 %v3142, %v3141
      %v3223 = vpack.c.b16 %v3144, %v3143
      %v3224 = vpack.c.b16 %v3146, %v3145
      %v3225 = vpack.c.b16 %v3148, %v3147
      %v3226 = vpack.c.b16 %v3150, %v3149
      %v3227 = vpack.c.b16 %v3152, %v3151
      %v3228 = vpack.c.b16 %v3154, %v3153
      %v3229 = vpack.c.b16 %v3156, %v3155
      %v3230 = vpack.c.b16 %v3158, %v3157
      %3303 = vmatprep.subr.bf16.mxu0 0
      %3304 = vmatpush1.bf16.msra.mxu0 %v3166
      %3305 = vmatprep.subr.bf16.mxu0 0
      %3306 = vmatpush1.bf16.msra.mxu0 %v3165
      %3307 = vmatprep.subr.bf16.mxu0 0
      %3308 = vmatpush1.bf16.msra.mxu0 %v3164
      %3309 = vmatprep.subr.bf16.mxu0 0
      %3310 = vmatpush1.bf16.msra.mxu0 %v3163
      %3311 = vmatprep.subr.bf16.mxu0 0
      %3312 = vmatpush1.bf16.msra.mxu0 %v3162
      %3313 = vmatprep.subr.bf16.mxu0 0
      %3314 = vmatpush1.bf16.msra.mxu0 %v3161
      %3315 = vmatprep.subr.bf16.mxu0 0
      %3316 = vmatpush1.bf16.msra.mxu0 %v3160
      %3317 = vmatprep.subr.bf16.mxu0 0
      %3318 = vmatpush1.bf16.msra.mxu0 %v3159
      %3319 = vmatprep.subr.bf16.mxu0 0
      %3320 = vmatpush2.bf16.msra.mxu0 %v3174
      %3321 = vmatprep.subr.bf16.mxu0 0
      %3322 = vmatpush2.bf16.msra.mxu0 %v3173
      %3323 = vmatprep.subr.bf16.mxu0 0
      %3324 = vmatpush2.bf16.msra.mxu0 %v3172
      %3325 = vmatprep.subr.bf16.mxu0 0
      %3326 = vmatpush2.bf16.msra.mxu0 %v3171
      %3327 = vmatprep.subr.bf16.mxu0 0
      %3328 = vmatpush2.bf16.msra.mxu0 %v3170
      %3329 = vmatprep.subr.bf16.mxu0 0
      %3330 = vmatpush2.bf16.msra.mxu0 %v3169
      %3331 = vmatprep.subr.bf16.mxu0 0
      %3332 = vmatpush2.bf16.msra.mxu0 %v3168
      %3333 = vmatprep.subr.bf16.mxu0 0
      %3334 = vmatpush2.bf16.msra.mxu0 %v3167
      %3335 = vmatprep.mubr.bf16.mxu0 %v1464
      %3336 = vmatmul.mubr.bf16.gmra.mxu0 %v1447
      %v3337 = vpop.f32.mrf.mxu0
      %v3338 = vadd.f32 0.0, %v3337
      %v3339 = vpop.f32.mrf.mxu0
      %v3340 = vpop.f32.mrf.mxu0
      %v3341 = vadd.f32 0.0, %v3340
      %v3342 = vpop.f32.mrf.mxu0
      %3343 = vmatprep.mubr.bf16.mxu0 %v1596
      %3344 = vmatmul.mubr.bf16.gmra.mxu0 %v1587
      %v3345 = vpop.f32.mrf.mxu0
      %v3346 = vadd.f32 0.0, %v3345
      %v3347 = vpop.f32.mrf.mxu0
      %v3348 = vpop.f32.mrf.mxu0
      %v3349 = vadd.f32 0.0, %v3348
      %v3350 = vpop.f32.mrf.mxu0
      %3351 = vmatprep.mubr.bf16.mxu0 %v1656
      %3352 = vmatmul.mubr.bf16.gmra.mxu0 %v1647
      %v3353 = vpop.f32.mrf.mxu0
      %v3354 = vadd.f32 0.0, %v3353
      %v3355 = vpop.f32.mrf.mxu0
      %v3356 = vpop.f32.mrf.mxu0
      %v3357 = vadd.f32 0.0, %v3356
      %v3358 = vpop.f32.mrf.mxu0
      %3359 = vmatprep.mubr.bf16.mxu0 %v1714
      %3360 = vmatmul.mubr.bf16.gmra.mxu0 %v1705
      %v3361 = vpop.f32.mrf.mxu0
      %v3362 = vadd.f32 0.0, %v3361
      %v3363 = vpop.f32.mrf.mxu0
      %v3364 = vpop.f32.mrf.mxu0
      %v3365 = vadd.f32 0.0, %v3364
      %v3366 = vpop.f32.mrf.mxu0
      %3367 = vmatprep.mubr.bf16.mxu0 %v1772
      %3368 = vmatmul.mubr.bf16.gmra.mxu0 %v1763
      %v3369 = vpop.f32.mrf.mxu0
      %v3370 = vadd.f32 0.0, %v3369
      %v3371 = vpop.f32.mrf.mxu0
      %v3372 = vpop.f32.mrf.mxu0
      %v3373 = vadd.f32 0.0, %v3372
      %v3374 = vpop.f32.mrf.mxu0
      %3375 = vmatprep.mubr.bf16.mxu0 %v1830
      %3376 = vmatmul.mubr.bf16.gmra.mxu0 %v1821
      %v3377 = vpop.f32.mrf.mxu0
      %v3378 = vadd.f32 0.0, %v3377
      %v3379 = vpop.f32.mrf.mxu0
      %v3380 = vpop.f32.mrf.mxu0
      %v3381 = vadd.f32 0.0, %v3380
      %v3382 = vpop.f32.mrf.mxu0
      %3383 = vmatprep.mubr.bf16.mxu0 %v1888
      %3384 = vmatmul.mubr.bf16.gmra.mxu0 %v1879
      %v3385 = vpop.f32.mrf.mxu0
      %v3386 = vadd.f32 0.0, %v3385
      %v3387 = vpop.f32.mrf.mxu0
      %v3388 = vpop.f32.mrf.mxu0
      %v3389 = vadd.f32 0.0, %v3388
      %v3390 = vpop.f32.mrf.mxu0
      %3391 = vmatprep.mubr.bf16.mxu0 %v1946
      %3392 = vmatmul.mubr.bf16.gmra.mxu0 %v1937
      %v3393 = vpop.f32.mrf.mxu0
      %v3394 = vadd.f32 0.0, %v3393
      %v3395 = vpop.f32.mrf.mxu0
      %v3396 = vpop.f32.mrf.mxu0
      %v3397 = vadd.f32 0.0, %v3396
      %v3398 = vpop.f32.mrf.mxu0
      %3399 = vmatprep.mubr.bf16.mxu0 %v2004
      %3400 = vmatmul.mubr.bf16.gmra.mxu0 %v1995
      %v3401 = vpop.f32.mrf.mxu0
      %v3402 = vadd.f32 0.0, %v3401
      %v3403 = vpop.f32.mrf.mxu0
      %v3404 = vpop.f32.mrf.mxu0
      %v3405 = vadd.f32 0.0, %v3404
      %v3406 = vpop.f32.mrf.mxu0
      %3407 = vmatprep.mubr.bf16.mxu0 %v2062
      %3408 = vmatmul.mubr.bf16.gmra.mxu0 %v2053
      %v3409 = vpop.f32.mrf.mxu0
      %v3410 = vadd.f32 0.0, %v3409
      %v3411 = vpop.f32.mrf.mxu0
      %v3412 = vpop.f32.mrf.mxu0
      %v3413 = vadd.f32 0.0, %v3412
      %v3414 = vpop.f32.mrf.mxu0
      %3415 = vmatprep.mubr.bf16.mxu0 %v2120
      %3416 = vmatmul.mubr.bf16.gmra.mxu0 %v2111
      %v3417 = vpop.f32.mrf.mxu0
      %v3418 = vadd.f32 0.0, %v3417
      %v3419 = vpop.f32.mrf.mxu0
      %v3420 = vpop.f32.mrf.mxu0
      %v3421 = vadd.f32 0.0, %v3420
      %v3422 = vpop.f32.mrf.mxu0
      %3423 = vmatprep.mubr.bf16.mxu0 %v2178
      %3424 = vmatmul.mubr.bf16.gmra.mxu0 %v2169
      %v3425 = vpop.f32.mrf.mxu0
      %v3426 = vadd.f32 0.0, %v3425
      %v3427 = vpop.f32.mrf.mxu0
      %v3428 = vpop.f32.mrf.mxu0
      %v3429 = vadd.f32 0.0, %v3428
      %v3430 = vpop.f32.mrf.mxu0
      %3431 = vmatprep.mubr.bf16.mxu0 %v2236
      %3432 = vmatmul.mubr.bf16.gmra.mxu0 %v2227
      %v3433 = vpop.f32.mrf.mxu0
      %v3434 = vadd.f32 0.0, %v3433
      %v3435 = vpop.f32.mrf.mxu0
      %v3436 = vpop.f32.mrf.mxu0
      %v3437 = vadd.f32 0.0, %v3436
      %v3438 = vpop.f32.mrf.mxu0
      %3439 = vmatprep.mubr.bf16.mxu0 %v2294
      %3440 = vmatmul.mubr.bf16.gmra.mxu0 %v2285
      %v3441 = vpop.f32.mrf.mxu0
      %v3442 = vadd.f32 0.0, %v3441
      %v3443 = vpop.f32.mrf.mxu0
      %v3444 = vpop.f32.mrf.mxu0
      %v3445 = vadd.f32 0.0, %v3444
      %v3446 = vpop.f32.mrf.mxu0
      %3447 = vmatprep.mubr.bf16.mxu0 %v2352
      %3448 = vmatmul.mubr.bf16.gmra.mxu0 %v2343
      %v3449 = vpop.f32.mrf.mxu0
      %v3450 = vadd.f32 0.0, %v3449
      %v3451 = vpop.f32.mrf.mxu0
      %v3452 = vpop.f32.mrf.mxu0
      %v3453 = vadd.f32 0.0, %v3452
      %v3454 = vpop.f32.mrf.mxu0
      %3455 = vmatprep.mubr.bf16.mxu0 %v2410
      %3456 = vmatmul.mubr.bf16.gmra.mxu0 %v2401
      %v3457 = vpop.f32.mrf.mxu0
      %v3458 = vadd.f32 0.0, %v3457
      %v3459 = vpop.f32.mrf.mxu0
      %v3460 = vpop.f32.mrf.mxu0
      %v3461 = vadd.f32 0.0, %v3460
      %v3462 = vpop.f32.mrf.mxu0
      %3463 = vmatprep.mubr.bf16.mxu0 %v2468
      %3464 = vmatmul.mubr.bf16.gmra.mxu0 %v2459
      %v3465 = vpop.f32.mrf.mxu0
      %v3466 = vadd.f32 0.0, %v3465
      %v3467 = vpop.f32.mrf.mxu0
      %v3468 = vpop.f32.mrf.mxu0
      %v3469 = vadd.f32 0.0, %v3468
      %v3470 = vpop.f32.mrf.mxu0
      %3471 = vmatprep.mubr.bf16.mxu0 %v2526
      %3472 = vmatmul.mubr.bf16.gmra.mxu0 %v2517
      %v3473 = vpop.f32.mrf.mxu0
      %v3474 = vadd.f32 0.0, %v3473
      %v3475 = vpop.f32.mrf.mxu0
      %v3476 = vpop.f32.mrf.mxu0
      %v3477 = vadd.f32 0.0, %v3476
      %v3478 = vpop.f32.mrf.mxu0
      %3479 = vmatprep.mubr.bf16.mxu0 %v2584
      %3480 = vmatmul.mubr.bf16.gmra.mxu0 %v2575
      %v3481 = vpop.f32.mrf.mxu0
      %v3482 = vadd.f32 0.0, %v3481
      %v3483 = vpop.f32.mrf.mxu0
      %v3484 = vpop.f32.mrf.mxu0
      %v3485 = vadd.f32 0.0, %v3484
      %v3486 = vpop.f32.mrf.mxu0
      %3487 = vmatprep.mubr.bf16.mxu0 %v2651
      %3488 = vmatmul.mubr.bf16.gmra.mxu0 %v2642
      %v3489 = vpop.f32.mrf.mxu0
      %v3490 = vadd.f32 0.0, %v3489
      %v3491 = vpop.f32.mrf.mxu0
      %v3492 = vpop.f32.mrf.mxu0
      %v3493 = vadd.f32 0.0, %v3492
      %v3494 = vpop.f32.mrf.mxu0
      %3495 = vmatprep.mubr.bf16.mxu0 %v2650
      %3496 = vmatmul.mubr.bf16.gmra.mxu0 %v2641
      %v3497 = vpop.f32.mrf.mxu0
      %v3498 = vadd.f32 0.0, %v3497
      %v3499 = vpop.f32.mrf.mxu0
      %v3500 = vpop.f32.mrf.mxu0
      %v3501 = vpop.f32.mrf.mxu0
      %3502 = vdwg.mxu0
      %3503 = vmatprep.subr.bf16.mxu0 0
      %3504 = vmatpush1.bf16.msra.mxu0 %v3182
      %3505 = vmatprep.subr.bf16.mxu0 0
      %3506 = vmatpush1.bf16.msra.mxu0 %v3181
      %3507 = vmatprep.subr.bf16.mxu0 0
      %3508 = vmatpush1.bf16.msra.mxu0 %v3180
      %3509 = vmatprep.subr.bf16.mxu0 0
      %3510 = vmatpush1.bf16.msra.mxu0 %v3179
      %3511 = vmatprep.subr.bf16.mxu0 0
      %3512 = vmatpush1.bf16.msra.mxu0 %v3178
      %3513 = vmatprep.subr.bf16.mxu0 0
      %3514 = vmatpush1.bf16.msra.mxu0 %v3177
      %3515 = vmatprep.subr.bf16.mxu0 0
      %3516 = vmatpush1.bf16.msra.mxu0 %v3176
      %3517 = vmatprep.subr.bf16.mxu0 0
      %3518 = vmatpush1.bf16.msra.mxu0 %v3175
      %3519 = vmatprep.subr.bf16.mxu0 0
      %3520 = vmatpush2.bf16.msra.mxu0 %v3190
      %3521 = vmatprep.subr.bf16.mxu0 0
      %3522 = vmatpush2.bf16.msra.mxu0 %v3189
      %3523 = vmatprep.subr.bf16.mxu0 0
      %3524 = vmatpush2.bf16.msra.mxu0 %v3188
      %3525 = vmatprep.subr.bf16.mxu0 0
      %3526 = vmatpush2.bf16.msra.mxu0 %v3187
      %3527 = vmatprep.subr.bf16.mxu0 0
      %3528 = vmatpush2.bf16.msra.mxu0 %v3186
      %3529 = vmatprep.subr.bf16.mxu0 0
      %3530 = vmatpush2.bf16.msra.mxu0 %v3185
      %3531 = vmatprep.subr.bf16.mxu0 0
      %3532 = vmatpush2.bf16.msra.mxu0 %v3184
      %3533 = vmatprep.subr.bf16.mxu0 0
      %3534 = vmatpush2.bf16.msra.mxu0 %v3183
      %3535 = vmatprep.mubr.bf16.mxu0 %v1498
      %3536 = vmatmul.mubr.bf16.gmra.mxu0 %v1481
      %v3537 = vpop.f32.mrf.mxu0
      %v3538 = vadd.f32 %v3338, %v3537
      %v3539 = vpop.f32.mrf.mxu0
      %v3540 = vpop.f32.mrf.mxu0
      %v3541 = vadd.f32 %v3341, %v3540
      %v3542 = vpop.f32.mrf.mxu0
      %3543 = vmatprep.mubr.bf16.mxu0 %v1606
      %3544 = vmatmul.mubr.bf16.gmra.mxu0 %v1597
      %v3545 = vpop.f32.mrf.mxu0
      %v3546 = vadd.f32 %v3346, %v3545
      %v3547 = vpop.f32.mrf.mxu0
      %v3548 = vpop.f32.mrf.mxu0
      %v3549 = vadd.f32 %v3349, %v3548
      %v3550 = vpop.f32.mrf.mxu0
      %3551 = vmatprep.mubr.bf16.mxu0 %v1665
      %3552 = vmatmul.mubr.bf16.gmra.mxu0 %v1606
      %v3553 = vpop.f32.mrf.mxu0
      %v3554 = vadd.f32 %v3354, %v3553
      %v3555 = vpop.f32.mrf.mxu0
      %v3556 = vpop.f32.mrf.mxu0
      %v3557 = vadd.f32 %v3357, %v3556
      %v3558 = vpop.f32.mrf.mxu0
      %3559 = vmatprep.mubr.bf16.mxu0 %v1723
      %3560 = vmatmul.mubr.bf16.gmra.mxu0 %v1665
      %v3561 = vpop.f32.mrf.mxu0
      %v3562 = vadd.f32 %v3362, %v3561
      %v3563 = vpop.f32.mrf.mxu0
      %v3564 = vpop.f32.mrf.mxu0
      %v3565 = vadd.f32 %v3365, %v3564
      %v3566 = vpop.f32.mrf.mxu0
      %3567 = vmatprep.mubr.bf16.mxu0 %v1781
      %3568 = vmatmul.mubr.bf16.gmra.mxu0 %v1723
      %v3569 = vpop.f32.mrf.mxu0
      %v3570 = vadd.f32 %v3370, %v3569
      %v3571 = vpop.f32.mrf.mxu0
      %v3572 = vpop.f32.mrf.mxu0
      %v3573 = vadd.f32 %v3373, %v3572
      %v3574 = vpop.f32.mrf.mxu0
      %3575 = vmatprep.mubr.bf16.mxu0 %v1839
      %3576 = vmatmul.mubr.bf16.gmra.mxu0 %v1781
      %v3577 = vpop.f32.mrf.mxu0
      %v3578 = vadd.f32 %v3378, %v3577
      %v3579 = vpop.f32.mrf.mxu0
      %v3580 = vpop.f32.mrf.mxu0
      %v3581 = vadd.f32 %v3381, %v3580
      %v3582 = vpop.f32.mrf.mxu0
      %3583 = vmatprep.mubr.bf16.mxu0 %v1897
      %3584 = vmatmul.mubr.bf16.gmra.mxu0 %v1839
      %v3585 = vpop.f32.mrf.mxu0
      %v3586 = vadd.f32 %v3386, %v3585
      %v3587 = vpop.f32.mrf.mxu0
      %v3588 = vpop.f32.mrf.mxu0
      %v3589 = vadd.f32 %v3389, %v3588
      %v3590 = vpop.f32.mrf.mxu0
      %3591 = vmatprep.mubr.bf16.mxu0 %v1955
      %3592 = vmatmul.mubr.bf16.gmra.mxu0 %v1897
      %v3593 = vpop.f32.mrf.mxu0
      %v3594 = vadd.f32 %v3394, %v3593
      %v3595 = vpop.f32.mrf.mxu0
      %v3596 = vpop.f32.mrf.mxu0
      %v3597 = vadd.f32 %v3397, %v3596
      %v3598 = vpop.f32.mrf.mxu0
      %3599 = vmatprep.mubr.bf16.mxu0 %v2013
      %3600 = vmatmul.mubr.bf16.gmra.mxu0 %v1955
      %v3601 = vpop.f32.mrf.mxu0
      %v3602 = vadd.f32 %v3402, %v3601
      %v3603 = vpop.f32.mrf.mxu0
      %v3604 = vpop.f32.mrf.mxu0
      %v3605 = vadd.f32 %v3405, %v3604
      %v3606 = vpop.f32.mrf.mxu0
      %3607 = vmatprep.mubr.bf16.mxu0 %v2071
      %3608 = vmatmul.mubr.bf16.gmra.mxu0 %v2013
      %v3609 = vpop.f32.mrf.mxu0
      %v3610 = vadd.f32 %v3410, %v3609
      %v3611 = vpop.f32.mrf.mxu0
      %v3612 = vpop.f32.mrf.mxu0
      %v3613 = vadd.f32 %v3413, %v3612
      %v3614 = vpop.f32.mrf.mxu0
      %3615 = vmatprep.mubr.bf16.mxu0 %v2129
      %3616 = vmatmul.mubr.bf16.gmra.mxu0 %v2071
      %v3617 = vpop.f32.mrf.mxu0
      %v3618 = vadd.f32 %v3418, %v3617
      %v3619 = vpop.f32.mrf.mxu0
      %v3620 = vpop.f32.mrf.mxu0
      %v3621 = vadd.f32 %v3421, %v3620
      %v3622 = vpop.f32.mrf.mxu0
      %3623 = vmatprep.mubr.bf16.mxu0 %v2187
      %3624 = vmatmul.mubr.bf16.gmra.mxu0 %v2129
      %v3625 = vpop.f32.mrf.mxu0
      %v3626 = vadd.f32 %v3426, %v3625
      %v3627 = vpop.f32.mrf.mxu0
      %v3628 = vpop.f32.mrf.mxu0
      %v3629 = vadd.f32 %v3429, %v3628
      %v3630 = vpop.f32.mrf.mxu0
      %3631 = vmatprep.mubr.bf16.mxu0 %v2245
      %3632 = vmatmul.mubr.bf16.gmra.mxu0 %v2187
      %v3633 = vpop.f32.mrf.mxu0
      %v3634 = vadd.f32 %v3434, %v3633
      %v3635 = vpop.f32.mrf.mxu0
      %v3636 = vpop.f32.mrf.mxu0
      %v3637 = vadd.f32 %v3437, %v3636
      %v3638 = vpop.f32.mrf.mxu0
      %3639 = vmatprep.mubr.bf16.mxu0 %v2303
      %3640 = vmatmul.mubr.bf16.gmra.mxu0 %v2245
      %v3641 = vpop.f32.mrf.mxu0
      %v3642 = vadd.f32 %v3442, %v3641
      %v3643 = vpop.f32.mrf.mxu0
      %v3644 = vpop.f32.mrf.mxu0
      %v3645 = vadd.f32 %v3445, %v3644
      %v3646 = vpop.f32.mrf.mxu0
      %3647 = vmatprep.mubr.bf16.mxu0 %v2361
      %3648 = vmatmul.mubr.bf16.gmra.mxu0 %v2303
      %v3649 = vpop.f32.mrf.mxu0
      %v3650 = vadd.f32 %v3450, %v3649
      %v3651 = vpop.f32.mrf.mxu0
      %v3652 = vpop.f32.mrf.mxu0
      %v3653 = vadd.f32 %v3453, %v3652
      %v3654 = vpop.f32.mrf.mxu0
      %3655 = vmatprep.mubr.bf16.mxu0 %v2419
      %3656 = vmatmul.mubr.bf16.gmra.mxu0 %v2361
      %v3657 = vpop.f32.mrf.mxu0
      %v3658 = vadd.f32 %v3458, %v3657
      %v3659 = vpop.f32.mrf.mxu0
      %v3660 = vpop.f32.mrf.mxu0
      %v3661 = vadd.f32 %v3461, %v3660
      %v3662 = vpop.f32.mrf.mxu0
      %3663 = vmatprep.mubr.bf16.mxu0 %v2477
      %3664 = vmatmul.mubr.bf16.gmra.mxu0 %v2419
      %v3665 = vpop.f32.mrf.mxu0
      %v3666 = vadd.f32 %v3466, %v3665
      %v3667 = vpop.f32.mrf.mxu0
      %v3668 = vpop.f32.mrf.mxu0
      %v3669 = vadd.f32 %v3469, %v3668
      %v3670 = vpop.f32.mrf.mxu0
      %3671 = vmatprep.mubr.bf16.mxu0 %v2535
      %3672 = vmatmul.mubr.bf16.gmra.mxu0 %v2477
      %v3673 = vpop.f32.mrf.mxu0
      %v3674 = vadd.f32 %v3474, %v3673
      %v3675 = vpop.f32.mrf.mxu0
      %v3676 = vpop.f32.mrf.mxu0
      %v3677 = vadd.f32 %v3477, %v3676
      %v3678 = vpop.f32.mrf.mxu0
      %3679 = vmatprep.mubr.bf16.mxu0 %v2602
      %3680 = vmatmul.mubr.bf16.gmra.mxu0 %v2593
      %v3681 = vpop.f32.mrf.mxu0
      %v3682 = vadd.f32 %v3482, %v3681
      %v3683 = vpop.f32.mrf.mxu0
      %v3684 = vpop.f32.mrf.mxu0
      %v3685 = vadd.f32 %v3485, %v3684
      %v3686 = vpop.f32.mrf.mxu0
      %3687 = vmatprep.mubr.bf16.mxu0 %v2669
      %3688 = vmatmul.mubr.bf16.gmra.mxu0 %v2660
      %v3689 = vpop.f32.mrf.mxu0
      %v3690 = vadd.f32 %v3490, %v3689
      %v3691 = vpop.f32.mrf.mxu0
      %v3692 = vpop.f32.mrf.mxu0
      %v3693 = vadd.f32 %v3493, %v3692
      %v3694 = vpop.f32.mrf.mxu0
      %3695 = vmatprep.mubr.bf16.mxu0 %v2668
      %3696 = vmatmul.mubr.bf16.gmra.mxu0 %v2659
      %v3697 = vpop.f32.mrf.mxu0
      %v3698 = vadd.f32 %v3498, %v3697
      %v3699 = vpop.f32.mrf.mxu0
      %v3700 = vpop.f32.mrf.mxu0
      %v3701 = vpop.f32.mrf.mxu0
      %3702 = vdwg.mxu0
      %3703 = vmatprep.subr.bf16.mxu0 0
      %3704 = vmatpush1.bf16.msra.mxu0 %v3198
      %3705 = vmatprep.subr.bf16.mxu0 0
      %3706 = vmatpush1.bf16.msra.mxu0 %v3197
      %3707 = vmatprep.subr.bf16.mxu0 0
      %3708 = vmatpush1.bf16.msra.mxu0 %v3196
      %3709 = vmatprep.subr.bf16.mxu0 0
      %3710 = vmatpush1.bf16.msra.mxu0 %v3195
      %3711 = vmatprep.subr.bf16.mxu0 0
      %3712 = vmatpush1.bf16.msra.mxu0 %v3194
      %3713 = vmatprep.subr.bf16.mxu0 0
      %3714 = vmatpush1.bf16.msra.mxu0 %v3193
      %3715 = vmatprep.subr.bf16.mxu0 0
      %3716 = vmatpush1.bf16.msra.mxu0 %v3192
      %3717 = vmatprep.subr.bf16.mxu0 0
      %3718 = vmatpush1.bf16.msra.mxu0 %v3191
      %3719 = vmatprep.subr.bf16.mxu0 0
      %3720 = vmatpush2.bf16.msra.mxu0 %v3206
      %3721 = vmatprep.subr.bf16.mxu0 0
      %3722 = vmatpush2.bf16.msra.mxu0 %v3205
      %3723 = vmatprep.subr.bf16.mxu0 0
      %3724 = vmatpush2.bf16.msra.mxu0 %v3204
      %3725 = vmatprep.subr.bf16.mxu0 0
      %3726 = vmatpush2.bf16.msra.mxu0 %v3203
      %3727 = vmatprep.subr.bf16.mxu0 0
      %3728 = vmatpush2.bf16.msra.mxu0 %v3202
      %3729 = vmatprep.subr.bf16.mxu0 0
      %3730 = vmatpush2.bf16.msra.mxu0 %v3201
      %3731 = vmatprep.subr.bf16.mxu0 0
      %3732 = vmatpush2.bf16.msra.mxu0 %v3200
      %3733 = vmatprep.subr.bf16.mxu0 0
      %3734 = vmatpush2.bf16.msra.mxu0 %v3199
      %3735 = vmatprep.mubr.bf16.mxu0 %v1532
      %3736 = vmatmul.mubr.bf16.gmra.mxu0 %v1515
      %v3737 = vpop.f32.mrf.mxu0
      %v3738 = vadd.f32 %v3538, %v3737
      %v3739 = vpop.f32.mrf.mxu0
      %v3740 = vpop.f32.mrf.mxu0
      %v3741 = vadd.f32 %v3541, %v3740
      %v3742 = vpop.f32.mrf.mxu0
      %3743 = vmatprep.mubr.bf16.mxu0 %v1616
      %3744 = vmatmul.mubr.bf16.gmra.mxu0 %v1615
      %v3745 = vpop.f32.mrf.mxu0
      %v3746 = vadd.f32 %v3546, %v3745
      %v3747 = vpop.f32.mrf.mxu0
      %v3748 = vpop.f32.mrf.mxu0
      %v3749 = vadd.f32 %v3549, %v3748
      %v3750 = vpop.f32.mrf.mxu0
      %3751 = vmatprep.mubr.bf16.mxu0 %v1625
      %3752 = vmatmul.mubr.bf16.gmra.mxu0 %v1674
      %v3753 = vpop.f32.mrf.mxu0
      %v3754 = vadd.f32 %v3554, %v3753
      %v3755 = vpop.f32.mrf.mxu0
      %v3756 = vpop.f32.mrf.mxu0
      %v3757 = vadd.f32 %v3557, %v3756
      %v3758 = vpop.f32.mrf.mxu0
      %3759 = vmatprep.mubr.bf16.mxu0 %v1683
      %3760 = vmatmul.mubr.bf16.gmra.mxu0 %v1732
      %v3761 = vpop.f32.mrf.mxu0
      %v3762 = vadd.f32 %v3562, %v3761
      %v3763 = vpop.f32.mrf.mxu0
      %v3764 = vpop.f32.mrf.mxu0
      %v3765 = vadd.f32 %v3565, %v3764
      %v3766 = vpop.f32.mrf.mxu0
      %3767 = vmatprep.mubr.bf16.mxu0 %v1741
      %3768 = vmatmul.mubr.bf16.gmra.mxu0 %v1790
      %v3769 = vpop.f32.mrf.mxu0
      %v3770 = vadd.f32 %v3570, %v3769
      %v3771 = vpop.f32.mrf.mxu0
      %v3772 = vpop.f32.mrf.mxu0
      %v3773 = vadd.f32 %v3573, %v3772
      %v3774 = vpop.f32.mrf.mxu0
      %3775 = vmatprep.mubr.bf16.mxu0 %v1799
      %3776 = vmatmul.mubr.bf16.gmra.mxu0 %v1848
      %v3777 = vpop.f32.mrf.mxu0
      %v3778 = vadd.f32 %v3578, %v3777
      %v3779 = vpop.f32.mrf.mxu0
      %v3780 = vpop.f32.mrf.mxu0
      %v3781 = vadd.f32 %v3581, %v3780
      %v3782 = vpop.f32.mrf.mxu0
      %3783 = vmatprep.mubr.bf16.mxu0 %v1857
      %3784 = vmatmul.mubr.bf16.gmra.mxu0 %v1906
      %v3785 = vpop.f32.mrf.mxu0
      %v3786 = vadd.f32 %v3586, %v3785
      %v3787 = vpop.f32.mrf.mxu0
      %v3788 = vpop.f32.mrf.mxu0
      %v3789 = vadd.f32 %v3589, %v3788
      %v3790 = vpop.f32.mrf.mxu0
      %3791 = vmatprep.mubr.bf16.mxu0 %v1915
      %3792 = vmatmul.mubr.bf16.gmra.mxu0 %v1964
      %v3793 = vpop.f32.mrf.mxu0
      %v3794 = vadd.f32 %v3594, %v3793
      %v3795 = vpop.f32.mrf.mxu0
      %v3796 = vpop.f32.mrf.mxu0
      %v3797 = vadd.f32 %v3597, %v3796
      %v3798 = vpop.f32.mrf.mxu0
      %3799 = vmatprep.mubr.bf16.mxu0 %v1973
      %3800 = vmatmul.mubr.bf16.gmra.mxu0 %v2022
      %v3801 = vpop.f32.mrf.mxu0
      %v3802 = vadd.f32 %v3602, %v3801
      %v3803 = vpop.f32.mrf.mxu0
      %v3804 = vpop.f32.mrf.mxu0
      %v3805 = vadd.f32 %v3605, %v3804
      %v3806 = vpop.f32.mrf.mxu0
      %3807 = vmatprep.mubr.bf16.mxu0 %v2031
      %3808 = vmatmul.mubr.bf16.gmra.mxu0 %v2080
      %v3809 = vpop.f32.mrf.mxu0
      %v3810 = vadd.f32 %v3610, %v3809
      %v3811 = vpop.f32.mrf.mxu0
      %v3812 = vpop.f32.mrf.mxu0
      %v3813 = vadd.f32 %v3613, %v3812
      %v3814 = vpop.f32.mrf.mxu0
      %3815 = vmatprep.mubr.bf16.mxu0 %v2089
      %3816 = vmatmul.mubr.bf16.gmra.mxu0 %v2138
      %v3817 = vpop.f32.mrf.mxu0
      %v3818 = vadd.f32 %v3618, %v3817
      %v3819 = vpop.f32.mrf.mxu0
      %v3820 = vpop.f32.mrf.mxu0
      %v3821 = vadd.f32 %v3621, %v3820
      %v3822 = vpop.f32.mrf.mxu0
      %3823 = vmatprep.mubr.bf16.mxu0 %v2147
      %3824 = vmatmul.mubr.bf16.gmra.mxu0 %v2196
      %v3825 = vpop.f32.mrf.mxu0
      %v3826 = vadd.f32 %v3626, %v3825
      %v3827 = vpop.f32.mrf.mxu0
      %v3828 = vpop.f32.mrf.mxu0
      %v3829 = vadd.f32 %v3629, %v3828
      %v3830 = vpop.f32.mrf.mxu0
      %3831 = vmatprep.mubr.bf16.mxu0 %v2205
      %3832 = vmatmul.mubr.bf16.gmra.mxu0 %v2254
      %v3833 = vpop.f32.mrf.mxu0
      %v3834 = vadd.f32 %v3634, %v3833
      %v3835 = vpop.f32.mrf.mxu0
      %v3836 = vpop.f32.mrf.mxu0
      %v3837 = vadd.f32 %v3637, %v3836
      %v3838 = vpop.f32.mrf.mxu0
      %3839 = vmatprep.mubr.bf16.mxu0 %v2263
      %3840 = vmatmul.mubr.bf16.gmra.mxu0 %v2312
      %v3841 = vpop.f32.mrf.mxu0
      %v3842 = vadd.f32 %v3642, %v3841
      %v3843 = vpop.f32.mrf.mxu0
      %v3844 = vpop.f32.mrf.mxu0
      %v3845 = vadd.f32 %v3645, %v3844
      %v3846 = vpop.f32.mrf.mxu0
      %3847 = vmatprep.mubr.bf16.mxu0 %v2321
      %3848 = vmatmul.mubr.bf16.gmra.mxu0 %v2370
      %v3849 = vpop.f32.mrf.mxu0
      %v3850 = vadd.f32 %v3650, %v3849
      %v3851 = vpop.f32.mrf.mxu0
      %v3852 = vpop.f32.mrf.mxu0
      %v3853 = vadd.f32 %v3653, %v3852
      %v3854 = vpop.f32.mrf.mxu0
      %3855 = vmatprep.mubr.bf16.mxu0 %v2379
      %3856 = vmatmul.mubr.bf16.gmra.mxu0 %v2428
      %v3857 = vpop.f32.mrf.mxu0
      %v3858 = vadd.f32 %v3658, %v3857
      %v3859 = vpop.f32.mrf.mxu0
      %v3860 = vpop.f32.mrf.mxu0
      %v3861 = vadd.f32 %v3661, %v3860
      %v3862 = vpop.f32.mrf.mxu0
      %3863 = vmatprep.mubr.bf16.mxu0 %v2437
      %3864 = vmatmul.mubr.bf16.gmra.mxu0 %v2486
      %v3865 = vpop.f32.mrf.mxu0
      %v3866 = vadd.f32 %v3666, %v3865
      %v3867 = vpop.f32.mrf.mxu0
      %v3868 = vpop.f32.mrf.mxu0
      %v3869 = vadd.f32 %v3669, %v3868
      %v3870 = vpop.f32.mrf.mxu0
      %3871 = vmatprep.mubr.bf16.mxu0 %v2495
      %3872 = vmatmul.mubr.bf16.gmra.mxu0 %v2544
      %v3873 = vpop.f32.mrf.mxu0
      %v3874 = vadd.f32 %v3674, %v3873
      %v3875 = vpop.f32.mrf.mxu0
      %v3876 = vpop.f32.mrf.mxu0
      %v3877 = vadd.f32 %v3677, %v3876
      %v3878 = vpop.f32.mrf.mxu0
      %3879 = vmatprep.mubr.bf16.mxu0 %v2553
      %3880 = vmatmul.mubr.bf16.gmra.mxu0 %v2611
      %v3881 = vpop.f32.mrf.mxu0
      %v3882 = vadd.f32 %v3682, %v3881
      %v3883 = vpop.f32.mrf.mxu0
      %v3884 = vpop.f32.mrf.mxu0
      %v3885 = vadd.f32 %v3685, %v3884
      %v3886 = vpop.f32.mrf.mxu0
      %3887 = vmatprep.mubr.bf16.mxu0 %v2687
      %3888 = vmatmul.mubr.bf16.gmra.mxu0 %v2678
      %v3889 = vpop.f32.mrf.mxu0
      %v3890 = vadd.f32 %v3690, %v3889
      %v3891 = vpop.f32.mrf.mxu0
      %v3892 = vpop.f32.mrf.mxu0
      %v3893 = vadd.f32 %v3693, %v3892
      %v3894 = vpop.f32.mrf.mxu0
      %3895 = vmatprep.mubr.bf16.mxu0 %v2686
      %3896 = vmatmul.mubr.bf16.gmra.mxu0 %v2677
      %v3897 = vpop.f32.mrf.mxu0
      %v3898 = vadd.f32 %v3698, %v3897
      %v3899 = vpop.f32.mrf.mxu0
      %v3900 = vpop.f32.mrf.mxu0
      %v3901 = vpop.f32.mrf.mxu0
      %3902 = vdwg.mxu0
      %3903 = vmatprep.subr.bf16.mxu0 0
      %3904 = vmatpush1.bf16.msra.mxu0 %v3214
      %3905 = vmatprep.subr.bf16.mxu0 0
      %3906 = vmatpush1.bf16.msra.mxu0 %v3213
      %3907 = vmatprep.subr.bf16.mxu0 0
      %3908 = vmatpush1.bf16.msra.mxu0 %v3212
      %3909 = vmatprep.subr.bf16.mxu0 0
      %3910 = vmatpush1.bf16.msra.mxu0 %v3211
      %3911 = vmatprep.subr.bf16.mxu0 0
      %3912 = vmatpush1.bf16.msra.mxu0 %v3210
      %3913 = vmatprep.subr.bf16.mxu0 0
      %3914 = vmatpush1.bf16.msra.mxu0 %v3209
      %3915 = vmatprep.subr.bf16.mxu0 0
      %3916 = vmatpush1.bf16.msra.mxu0 %v3208
      %3917 = vmatprep.subr.bf16.mxu0 0
      %3918 = vmatpush1.bf16.msra.mxu0 %v3207
      %3919 = vmatprep.subr.bf16.mxu0 0
      %3920 = vmatpush2.bf16.msra.mxu0 %v3222
      %3921 = vmatprep.subr.bf16.mxu0 0
      %3922 = vmatpush2.bf16.msra.mxu0 %v3221
      %3923 = vmatprep.subr.bf16.mxu0 0
      %3924 = vmatpush2.bf16.msra.mxu0 %v3220
      %3925 = vmatprep.subr.bf16.mxu0 0
      %3926 = vmatpush2.bf16.msra.mxu0 %v3219
      %3927 = vmatprep.subr.bf16.mxu0 0
      %3928 = vmatpush2.bf16.msra.mxu0 %v3218
      %3929 = vmatprep.subr.bf16.mxu0 0
      %3930 = vmatpush2.bf16.msra.mxu0 %v3217
      %3931 = vmatprep.subr.bf16.mxu0 0
      %3932 = vmatpush2.bf16.msra.mxu0 %v3216
      %3933 = vmatprep.subr.bf16.mxu0 0
      %3934 = vmatpush2.bf16.msra.mxu0 %v3215
      %3935 = vmatprep.mubr.bf16.mxu0 %v1566
      %3936 = vmatmul.mubr.bf16.gmra.mxu0 %v1549
      %v3937 = vpop.f32.mrf.mxu0
      %v3938 = vadd.f32 %v3738, %v3937
      %v3939 = vpop.f32.mrf.mxu0
      %v3940 = vpop.f32.mrf.mxu0
      %v3941 = vadd.f32 %v3741, %v3940
      %v3942 = vpop.f32.mrf.mxu0
      %3943 = vmatprep.mubr.bf16.mxu0 %v1634
      %3944 = vmatmul.mubr.bf16.gmra.mxu0 %v1625
      %v3945 = vpop.f32.mrf.mxu0
      %v3946 = vadd.f32 %v3746, %v3945
      %v3947 = vpop.f32.mrf.mxu0
      %v3948 = vpop.f32.mrf.mxu0
      %v3949 = vadd.f32 %v3749, %v3948
      %v3950 = vpop.f32.mrf.mxu0
      %3951 = vmatprep.mubr.bf16.mxu0 %v1692
      %3952 = vmatmul.mubr.bf16.gmra.mxu0 %v1683
      %v3953 = vpop.f32.mrf.mxu0
      %v3954 = vadd.f32 %v3754, %v3953
      %v3955 = vpop.f32.mrf.mxu0
      %v3956 = vpop.f32.mrf.mxu0
      %v3957 = vadd.f32 %v3757, %v3956
      %v3958 = vpop.f32.mrf.mxu0
      %3959 = vmatprep.mubr.bf16.mxu0 %v1750
      %3960 = vmatmul.mubr.bf16.gmra.mxu0 %v1741
      %v3961 = vpop.f32.mrf.mxu0
      %v3962 = vadd.f32 %v3762, %v3961
      %v3963 = vpop.f32.mrf.mxu0
      %v3964 = vpop.f32.mrf.mxu0
      %v3965 = vadd.f32 %v3765, %v3964
      %v3966 = vpop.f32.mrf.mxu0
      %3967 = vmatprep.mubr.bf16.mxu0 %v1808
      %3968 = vmatmul.mubr.bf16.gmra.mxu0 %v1799
      %v3969 = vpop.f32.mrf.mxu0
      %v3970 = vadd.f32 %v3770, %v3969
      %v3971 = vpop.f32.mrf.mxu0
      %v3972 = vpop.f32.mrf.mxu0
      %v3973 = vadd.f32 %v3773, %v3972
      %v3974 = vpop.f32.mrf.mxu0
      %3975 = vmatprep.mubr.bf16.mxu0 %v1866
      %3976 = vmatmul.mubr.bf16.gmra.mxu0 %v1857
      %v3977 = vpop.f32.mrf.mxu0
      %v3978 = vadd.f32 %v3778, %v3977
      %v3979 = vpop.f32.mrf.mxu0
      %v3980 = vpop.f32.mrf.mxu0
      %v3981 = vadd.f32 %v3781, %v3980
      %v3982 = vpop.f32.mrf.mxu0
      %3983 = vmatprep.mubr.bf16.mxu0 %v1924
      %3984 = vmatmul.mubr.bf16.gmra.mxu0 %v1915
      %v3985 = vpop.f32.mrf.mxu0
      %v3986 = vadd.f32 %v3786, %v3985
      %v3987 = vpop.f32.mrf.mxu0
      %v3988 = vpop.f32.mrf.mxu0
      %v3989 = vadd.f32 %v3789, %v3988
      %v3990 = vpop.f32.mrf.mxu0
      %3991 = vmatprep.mubr.bf16.mxu0 %v1982
      %3992 = vmatmul.mubr.bf16.gmra.mxu0 %v1973
      %v3993 = vpop.f32.mrf.mxu0
      %v3994 = vadd.f32 %v3794, %v3993
      %v3995 = vpop.f32.mrf.mxu0
      %v3996 = vpop.f32.mrf.mxu0
      %v3997 = vadd.f32 %v3797, %v3996
      %v3998 = vpop.f32.mrf.mxu0
      %3999 = vmatprep.mubr.bf16.mxu0 %v2040
      %4000 = vmatmul.mubr.bf16.gmra.mxu0 %v2031
      %v4001 = vpop.f32.mrf.mxu0
      %v4002 = vadd.f32 %v3802, %v4001
      %v4003 = vpop.f32.mrf.mxu0
      %v4004 = vpop.f32.mrf.mxu0
      %v4005 = vadd.f32 %v3805, %v4004
      %v4006 = vpop.f32.mrf.mxu0
      %4007 = vmatprep.mubr.bf16.mxu0 %v2098
      %4008 = vmatmul.mubr.bf16.gmra.mxu0 %v2089
      %v4009 = vpop.f32.mrf.mxu0
      %v4010 = vadd.f32 %v3810, %v4009
      %v4011 = vpop.f32.mrf.mxu0
      %v4012 = vpop.f32.mrf.mxu0
      %v4013 = vadd.f32 %v3813, %v4012
      %v4014 = vpop.f32.mrf.mxu0
      %4015 = vmatprep.mubr.bf16.mxu0 %v2156
      %4016 = vmatmul.mubr.bf16.gmra.mxu0 %v2147
      %v4017 = vpop.f32.mrf.mxu0
      %v4018 = vadd.f32 %v3818, %v4017
      %v4019 = vpop.f32.mrf.mxu0
      %v4020 = vpop.f32.mrf.mxu0
      %v4021 = vadd.f32 %v3821, %v4020
      %v4022 = vpop.f32.mrf.mxu0
      %4023 = vmatprep.mubr.bf16.mxu0 %v2214
      %4024 = vmatmul.mubr.bf16.gmra.mxu0 %v2205
      %v4025 = vpop.f32.mrf.mxu0
      %v4026 = vadd.f32 %v3826, %v4025
      %v4027 = vpop.f32.mrf.mxu0
      %v4028 = vpop.f32.mrf.mxu0
      %v4029 = vadd.f32 %v3829, %v4028
      %v4030 = vpop.f32.mrf.mxu0
      %4031 = vmatprep.mubr.bf16.mxu0 %v2272
      %4032 = vmatmul.mubr.bf16.gmra.mxu0 %v2263
      %v4033 = vpop.f32.mrf.mxu0
      %v4034 = vadd.f32 %v3834, %v4033
      %v4035 = vpop.f32.mrf.mxu0
      %v4036 = vpop.f32.mrf.mxu0
      %v4037 = vadd.f32 %v3837, %v4036
      %v4038 = vpop.f32.mrf.mxu0
      %4039 = vmatprep.mubr.bf16.mxu0 %v2330
      %4040 = vmatmul.mubr.bf16.gmra.mxu0 %v2321
      %v4041 = vpop.f32.mrf.mxu0
      %v4042 = vadd.f32 %v3842, %v4041
      %v4043 = vpop.f32.mrf.mxu0
      %v4044 = vpop.f32.mrf.mxu0
      %v4045 = vadd.f32 %v3845, %v4044
      %v4046 = vpop.f32.mrf.mxu0
      %4047 = vmatprep.mubr.bf16.mxu0 %v2388
      %4048 = vmatmul.mubr.bf16.gmra.mxu0 %v2379
      %v4049 = vpop.f32.mrf.mxu0
      %v4050 = vadd.f32 %v3850, %v4049
      %v4051 = vpop.f32.mrf.mxu0
      %v4052 = vpop.f32.mrf.mxu0
      %v4053 = vadd.f32 %v3853, %v4052
      %v4054 = vpop.f32.mrf.mxu0
      %4055 = vmatprep.mubr.bf16.mxu0 %v2446
      %4056 = vmatmul.mubr.bf16.gmra.mxu0 %v2437
      %v4057 = vpop.f32.mrf.mxu0
      %v4058 = vadd.f32 %v3858, %v4057
      %v4059 = vpop.f32.mrf.mxu0
      %v4060 = vpop.f32.mrf.mxu0
      %v4061 = vadd.f32 %v3861, %v4060
      %v4062 = vpop.f32.mrf.mxu0
      %4063 = vmatprep.mubr.bf16.mxu0 %v2504
      %4064 = vmatmul.mubr.bf16.gmra.mxu0 %v2495
      %v4065 = vpop.f32.mrf.mxu0
      %v4066 = vadd.f32 %v3866, %v4065
      %v4067 = vpop.f32.mrf.mxu0
      %v4068 = vpop.f32.mrf.mxu0
      %v4069 = vadd.f32 %v3869, %v4068
      %v4070 = vpop.f32.mrf.mxu0
      %4071 = vmatprep.mubr.bf16.mxu0 %v2562
      %4072 = vmatmul.mubr.bf16.gmra.mxu0 %v2553
      %v4073 = vpop.f32.mrf.mxu0
      %v4074 = vadd.f32 %v3874, %v4073
      %v4075 = vpop.f32.mrf.mxu0
      %v4076 = vpop.f32.mrf.mxu0
      %v4077 = vadd.f32 %v3877, %v4076
      %v4078 = vpop.f32.mrf.mxu0
      %4079 = vmatprep.mubr.bf16.mxu0 %v2629
      %4080 = vmatmul.mubr.bf16.gmra.mxu0 %v2620
      %v4081 = vpop.f32.mrf.mxu0
      %v4082 = vadd.f32 %v3882, %v4081
      %v4083 = vpop.f32.mrf.mxu0
      %v4084 = vpop.f32.mrf.mxu0
      %v4085 = vadd.f32 %v3885, %v4084
      %v4086 = vpop.f32.mrf.mxu0
      %4087 = vmatprep.mubr.bf16.mxu0 %v2705
      %4088 = vmatmul.mubr.bf16.gmra.mxu0 %v2696
      %v4089 = vpop.f32.mrf.mxu0
      %v4090 = vadd.f32 %v3890, %v4089
      %v4091 = vpop.f32.mrf.mxu0
      %v4092 = vpop.f32.mrf.mxu0
      %v4093 = vadd.f32 %v3893, %v4092
      %v4094 = vpop.f32.mrf.mxu0
      %4095 = vmatprep.mubr.bf16.mxu0 %v2704
      %4096 = vmatmul.mubr.bf16.gmra.mxu0 %v2695
      %v4097 = vpop.f32.mrf.mxu0
      %v4098 = vadd.f32 %v3898, %v4097
      %v4099 = vpop.f32.mrf.mxu0
      %v4100 = vpop.f32.mrf.mxu0
      %v4101 = vpop.f32.mrf.mxu0
      %4102 = vdwg.mxu0
      %4103 = vmatprep.subr.bf16.mxu0 0
      %4104 = vmatpush1.bf16.msra.mxu0 %v3230
      %4105 = vmatprep.subr.bf16.mxu0 0
      %4106 = vmatpush1.bf16.msra.mxu0 %v3229
      %4107 = vmatprep.subr.bf16.mxu0 0
      %4108 = vmatpush1.bf16.msra.mxu0 %v3228
      %4109 = vmatprep.subr.bf16.mxu0 0
      %4110 = vmatpush1.bf16.msra.mxu0 %v3227
      %4111 = vmatprep.subr.bf16.mxu0 0
      %4112 = vmatpush1.bf16.msra.mxu0 %v3226
      %4113 = vmatprep.subr.bf16.mxu0 0
      %4114 = vmatpush1.bf16.msra.mxu0 %v3225
      %4115 = vmatprep.subr.bf16.mxu0 0
      %4116 = vmatpush1.bf16.msra.mxu0 %v3224
      %4117 = vmatprep.subr.bf16.mxu0 0
      %4118 = vmatpush1.bf16.msra.mxu0 %v3223
      %4119 = vmatprep.subr.bf16.mxu0 0
      %4120 = vmatpush2.bf16.msra.mxu0 0
      %4121 = vmatprep.subr.bf16.mxu0 0
      %4122 = vmatpush2.bf16.msra.mxu0 0
      %4123 = vmatprep.subr.bf16.mxu0 0
      %4124 = vmatpush2.bf16.msra.mxu0 0
      %4125 = vmatprep.subr.bf16.mxu0 0
      %4126 = vmatpush2.bf16.msra.mxu0 0
      %4127 = vmatprep.subr.bf16.mxu0 0
      %4128 = vmatpush2.bf16.msra.mxu0 0
      %4129 = vmatprep.subr.bf16.mxu0 0
      %4130 = vmatpush2.bf16.msra.mxu0 0
      %4131 = vmatprep.subr.bf16.mxu0 0
      %4132 = vmatpush2.bf16.msra.mxu0 0
      %4133 = vmatprep.subr.bf16.mxu0 0
      %4134 = vmatpush2.bf16.msra.mxu0 0
      %4135 = vmatprep.mubr.bf16.mxu0 0
      %4136 = vmatmul.mubr.bf16.gmra.mxu0 %v1583
      %v4137 = vpop.f32.mrf.mxu0
      %v4138 = vadd.f32 %v3938, %v4137
      %v4139 = vpop.f32.mrf.mxu0
      %v4140 = vpop.f32.mrf.mxu0
      %v4141 = vadd.f32 %v3941, %v4140
      %v4142 = vpop.f32.mrf.mxu0
      %4143 = vmatprep.mubr.bf16.mxu0 0
      %4144 = vmatmul.mubr.bf16.gmra.mxu0 %v1643
      %v4145 = vpop.f32.mrf.mxu0
      %v4146 = vadd.f32 %v3946, %v4145
      %v4147 = vpop.f32.mrf.mxu0
      %v4148 = vpop.f32.mrf.mxu0
      %v4149 = vadd.f32 %v3949, %v4148
      %v4150 = vpop.f32.mrf.mxu0
      %4151 = vmatprep.mubr.bf16.mxu0 0
      %4152 = vmatmul.mubr.bf16.gmra.mxu0 %v1701
      %v4153 = vpop.f32.mrf.mxu0
      %v4154 = vadd.f32 %v3954, %v4153
      %v4155 = vpop.f32.mrf.mxu0
      %v4156 = vpop.f32.mrf.mxu0
      %v4157 = vadd.f32 %v3957, %v4156
      %v4158 = vpop.f32.mrf.mxu0
      %4159 = vmatprep.mubr.bf16.mxu0 0
      %4160 = vmatmul.mubr.bf16.gmra.mxu0 %v1759
      %v4161 = vpop.f32.mrf.mxu0
      %v4162 = vadd.f32 %v3962, %v4161
      %v4163 = vpop.f32.mrf.mxu0
      %v4164 = vpop.f32.mrf.mxu0
      %v4165 = vadd.f32 %v3965, %v4164
      %v4166 = vpop.f32.mrf.mxu0
      %4167 = vmatprep.mubr.bf16.mxu0 0
      %4168 = vmatmul.mubr.bf16.gmra.mxu0 %v1817
      %v4169 = vpop.f32.mrf.mxu0
      %v4170 = vadd.f32 %v3970, %v4169
      %v4171 = vpop.f32.mrf.mxu0
      %v4172 = vpop.f32.mrf.mxu0
      %v4173 = vadd.f32 %v3973, %v4172
      %v4174 = vpop.f32.mrf.mxu0
      %4175 = vmatprep.mubr.bf16.mxu0 0
      %4176 = vmatmul.mubr.bf16.gmra.mxu0 %v1875
      %v4177 = vpop.f32.mrf.mxu0
      %v4178 = vadd.f32 %v3978, %v4177
      %v4179 = vpop.f32.mrf.mxu0
      %v4180 = vpop.f32.mrf.mxu0
      %v4181 = vadd.f32 %v3981, %v4180
      %v4182 = vpop.f32.mrf.mxu0
      %4183 = vmatprep.mubr.bf16.mxu0 0
      %4184 = vmatmul.mubr.bf16.gmra.mxu0 %v1933
      %v4185 = vpop.f32.mrf.mxu0
      %v4186 = vadd.f32 %v3986, %v4185
      %v4187 = vpop.f32.mrf.mxu0
      %v4188 = vpop.f32.mrf.mxu0
      %v4189 = vadd.f32 %v3989, %v4188
      %v4190 = vpop.f32.mrf.mxu0
      %4191 = vmatprep.mubr.bf16.mxu0 0
      %4192 = vmatmul.mubr.bf16.gmra.mxu0 %v1991
      %v4193 = vpop.f32.mrf.mxu0
      %v4194 = vadd.f32 %v3994, %v4193
      %v4195 = vpop.f32.mrf.mxu0
      %v4196 = vpop.f32.mrf.mxu0
      %v4197 = vadd.f32 %v3997, %v4196
      %v4198 = vpop.f32.mrf.mxu0
      %4199 = vmatprep.mubr.bf16.mxu0 0
      %4200 = vmatmul.mubr.bf16.gmra.mxu0 %v2049
      %v4201 = vpop.f32.mrf.mxu0
      %v4202 = vadd.f32 %v4002, %v4201
      %v4203 = vpop.f32.mrf.mxu0
      %v4204 = vpop.f32.mrf.mxu0
      %v4205 = vadd.f32 %v4005, %v4204
      %v4206 = vpop.f32.mrf.mxu0
      %4207 = vmatprep.mubr.bf16.mxu0 0
      %4208 = vmatmul.mubr.bf16.gmra.mxu0 %v2107
      %v4209 = vpop.f32.mrf.mxu0
      %v4210 = vadd.f32 %v4010, %v4209
      %v4211 = vpop.f32.mrf.mxu0
      %v4212 = vpop.f32.mrf.mxu0
      %v4213 = vadd.f32 %v4013, %v4212
      %v4214 = vpop.f32.mrf.mxu0
      %4215 = vmatprep.mubr.bf16.mxu0 0
      %4216 = vmatmul.mubr.bf16.gmra.mxu0 %v2165
      %v4217 = vpop.f32.mrf.mxu0
      %v4218 = vadd.f32 %v4018, %v4217
      %v4219 = vpop.f32.mrf.mxu0
      %v4220 = vpop.f32.mrf.mxu0
      %v4221 = vadd.f32 %v4021, %v4220
      %v4222 = vpop.f32.mrf.mxu0
      %4223 = vmatprep.mubr.bf16.mxu0 0
      %4224 = vmatmul.mubr.bf16.gmra.mxu0 %v2223
      %v4225 = vpop.f32.mrf.mxu0
      %v4226 = vadd.f32 %v4026, %v4225
      %v4227 = vpop.f32.mrf.mxu0
      %v4228 = vpop.f32.mrf.mxu0
      %v4229 = vadd.f32 %v4029, %v4228
      %v4230 = vpop.f32.mrf.mxu0
      %4231 = vmatprep.mubr.bf16.mxu0 0
      %4232 = vmatmul.mubr.bf16.gmra.mxu0 %v2281
      %v4233 = vpop.f32.mrf.mxu0
      %v4234 = vadd.f32 %v4034, %v4233
      %v4235 = vpop.f32.mrf.mxu0
      %v4236 = vpop.f32.mrf.mxu0
      %v4237 = vadd.f32 %v4037, %v4236
      %v4238 = vpop.f32.mrf.mxu0
      %4239 = vmatprep.mubr.bf16.mxu0 0
      %4240 = vmatmul.mubr.bf16.gmra.mxu0 %v2339
      %v4241 = vpop.f32.mrf.mxu0
      %v4242 = vadd.f32 %v4042, %v4241
      %v4243 = vpop.f32.mrf.mxu0
      %v4244 = vpop.f32.mrf.mxu0
      %v4245 = vadd.f32 %v4045, %v4244
      %v4246 = vpop.f32.mrf.mxu0
      %4247 = vmatprep.mubr.bf16.mxu0 0
      %4248 = vmatmul.mubr.bf16.gmra.mxu0 %v2397
      %v4249 = vpop.f32.mrf.mxu0
      %v4250 = vadd.f32 %v4050, %v4249
      %v4251 = vpop.f32.mrf.mxu0
      %v4252 = vpop.f32.mrf.mxu0
      %v4253 = vadd.f32 %v4053, %v4252
      %v4254 = vpop.f32.mrf.mxu0
      %4255 = vmatprep.mubr.bf16.mxu0 0
      %4256 = vmatmul.mubr.bf16.gmra.mxu0 %v2455
      %v4257 = vpop.f32.mrf.mxu0
      %v4258 = vadd.f32 %v4058, %v4257
      %v4259 = vpop.f32.mrf.mxu0
      %v4260 = vpop.f32.mrf.mxu0
      %v4261 = vadd.f32 %v4061, %v4260
      %v4262 = vpop.f32.mrf.mxu0
      %4263 = vmatprep.mubr.bf16.mxu0 0
      %4264 = vmatmul.mubr.bf16.gmra.mxu0 %v2513
      %v4265 = vpop.f32.mrf.mxu0
      %v4266 = vadd.f32 %v4066, %v4265
      %v4267 = vpop.f32.mrf.mxu0
      %v4268 = vpop.f32.mrf.mxu0
      %v4269 = vadd.f32 %v4069, %v4268
      %v4270 = vpop.f32.mrf.mxu0
      %4271 = vmatprep.mubr.bf16.mxu0 0
      %4272 = vmatmul.mubr.bf16.gmra.mxu0 %v2571
      %v4273 = vpop.f32.mrf.mxu0
      %v4274 = vadd.f32 %v4074, %v4273
      %v4275 = vpop.f32.mrf.mxu0
      %v4276 = vpop.f32.mrf.mxu0
      %v4277 = vadd.f32 %v4077, %v4276
      %v4278 = vpop.f32.mrf.mxu0
      %4279 = vmatprep.mubr.bf16.mxu0 0
      %4280 = vmatmul.mubr.bf16.gmra.mxu0 %v2638
      %v4281 = vpop.f32.mrf.mxu0
      %v4282 = vadd.f32 %v4082, %v4281
      %v4283 = vpop.f32.mrf.mxu0
      %v4284 = vpop.f32.mrf.mxu0
      %v4285 = vadd.f32 %v4085, %v4284
      %v4286 = vpop.f32.mrf.mxu0
      %4287 = vmatprep.mubr.bf16.mxu0 0
      %4288 = vmatmul.mubr.bf16.gmra.mxu0 %v2714
      %v4289 = vpop.f32.mrf.mxu0
      %v4290 = vadd.f32 %v4090, %v4289
      %v4291 = vpop.f32.mrf.mxu0
      %v4292 = vpop.f32.mrf.mxu0
      %v4293 = vadd.f32 %v4093, %v4292
      %v4294 = vpop.f32.mrf.mxu0
      %4295 = vmatprep.mubr.bf16.mxu0 0
      %4296 = vmatmul.mubr.bf16.gmra.mxu0 %v2713
      %v4297 = vpop.f32.mrf.mxu0
      %v4298 = vadd.f32 %v4098, %v4297
      %v4299 = vpop.f32.mrf.mxu0
      %v4300 = vpop.f32.mrf.mxu0
      %v4301 = vpop.f32.mrf.mxu0
      %4302 = vdwg.mxu0
      %v4303 = vld [vmem:[%s3] sm:$0x1]
      %v4304 = vld [vmem:[%s4] sm:$0x1]
      %4306 = vset.pattern.permute.xlu0 0
      %4307 = vperm.xlu0 %4306, %v428
      %v4308 = vpop.permute.xlu0 %4307
      %4311 = vset.pattern.permute.xlu0 0
      %4312 = vperm.xlu0 %4311, %v429
      %v4313 = vpop.permute.xlu0 %4312
      %4316 = vset.pattern.permute.xlu0 0
      %4317 = vperm.xlu0 %4316, %v430
      %v4318 = vpop.permute.xlu0 %4317
      %4321 = vset.pattern.permute.xlu0 0
      %4322 = vperm.xlu0 %4321, %v431
      %v4323 = vpop.permute.xlu0 %4322
      %4326 = vset.pattern.permute.xlu0 0
      %4327 = vperm.xlu0 %4326, %v432
      %v4328 = vpop.permute.xlu0 %4327
      %4331 = vset.pattern.permute.xlu0 0
      %4332 = vperm.xlu0 %4331, %v433
      %v4333 = vpop.permute.xlu0 %4332
      %4336 = vset.pattern.permute.xlu0 0
      %4337 = vperm.xlu0 %4336, %v434
      %v4338 = vpop.permute.xlu0 %4337
      %4341 = vset.pattern.permute.xlu0 0
      %4342 = vperm.xlu0 %4341, %v435
      %v4343 = vpop.permute.xlu0 %4342
      %4346 = vset.pattern.permute.xlu0 0
      %4347 = vperm.xlu0 %4346, %v436
      %v4348 = vpop.permute.xlu0 %4347
      %4351 = vset.pattern.permute.xlu0 0
      %4352 = vperm.xlu0 %4351, %v437
      %v4353 = vpop.permute.xlu0 %4352
      %4356 = vset.pattern.permute.xlu0 0
      %4357 = vperm.xlu0 %4356, %v438
      %v4358 = vpop.permute.xlu0 %4357
      %4361 = vset.pattern.permute.xlu0 0
      %4362 = vperm.xlu0 %4361, %v439
      %v4363 = vpop.permute.xlu0 %4362
      %4366 = vset.pattern.permute.xlu0 0
      %4367 = vperm.xlu0 %4366, %v440
      %v4368 = vpop.permute.xlu0 %4367
      %4371 = vset.pattern.permute.xlu0 0
      %4372 = vperm.xlu0 %4371, %v441
      %v4373 = vpop.permute.xlu0 %4372
      %4376 = vset.pattern.permute.xlu0 0
      %4377 = vperm.xlu0 %4376, %v442
      %v4378 = vpop.permute.xlu0 %4377
      %4381 = vset.pattern.permute.xlu0 0
      %4382 = vperm.xlu0 %4381, %v443
      %v4383 = vpop.permute.xlu0 %4382
      %4386 = vset.pattern.permute.xlu0 0
      %4387 = vperm.xlu0 %4386, %v444
      %v4388 = vpop.permute.xlu0 %4387
      %4391 = vset.pattern.permute.xlu0 0
      %4392 = vperm.xlu0 %4391, %v445
      %v4393 = vpop.permute.xlu0 %4392
      %4396 = vset.pattern.permute.xlu0 0
      %4397 = vperm.xlu0 %4396, %v446
      %v4398 = vpop.permute.xlu0 %4397
      %4401 = vset.pattern.permute.xlu0 0
      %4402 = vperm.xlu0 %4401, %v447
      %v4403 = vpop.permute.xlu0 %4402
      %4406 = vset.pattern.permute.xlu0 0
      %4407 = vperm.xlu0 %4406, %v448
      %v4408 = vpop.permute.xlu0 %4407
      %4411 = vset.pattern.permute.xlu0 0
      %4412 = vperm.xlu0 %4411, %v449
      %v4413 = vpop.permute.xlu0 %4412
      %4416 = vset.pattern.permute.xlu0 0
      %4417 = vperm.xlu0 %4416, %v450
      %v4418 = vpop.permute.xlu0 %4417
      %4421 = vset.pattern.permute.xlu0 0
      %4422 = vperm.xlu0 %4421, %v451
      %v4423 = vpop.permute.xlu0 %4422
      %4426 = vset.pattern.permute.xlu0 0
      %4427 = vperm.xlu0 %4426, %v452
      %v4428 = vpop.permute.xlu0 %4427
      %4431 = vset.pattern.permute.xlu0 0
      %4432 = vperm.xlu0 %4431, %v453
      %v4433 = vpop.permute.xlu0 %4432
      %4436 = vset.pattern.permute.xlu0 0
      %4437 = vperm.xlu0 %4436, %v454
      %v4438 = vpop.permute.xlu0 %4437
      %4441 = vset.pattern.permute.xlu0 0
      %4442 = vperm.xlu0 %4441, %v455
      %v4443 = vpop.permute.xlu0 %4442
      %4446 = vset.pattern.permute.xlu0 0
      %4447 = vperm.xlu0 %4446, %v456
      %v4448 = vpop.permute.xlu0 %4447
      %4451 = vset.pattern.permute.xlu0 0
      %4452 = vperm.xlu0 %4451, %v457
      %v4453 = vpop.permute.xlu0 %4452
      %4456 = vset.pattern.permute.xlu0 0
      %4457 = vperm.xlu0 %4456, %v458
      %v4458 = vpop.permute.xlu0 %4457
      %4461 = vset.pattern.permute.xlu0 0
      %4462 = vperm.xlu0 %4461, %v459
      %v4463 = vpop.permute.xlu0 %4462
      %4466 = vset.pattern.permute.xlu0 0
      %4467 = vperm.xlu0 %4466, %v460
      %v4468 = vpop.permute.xlu0 %4467
      %4471 = vset.pattern.permute.xlu0 0
      %4472 = vperm.xlu0 %4471, %v461
      %v4473 = vpop.permute.xlu0 %4472
      %4476 = vset.pattern.permute.xlu0 0
      %4477 = vperm.xlu0 %4476, %v462
      %v4478 = vpop.permute.xlu0 %4477
      %4481 = vset.pattern.permute.xlu0 0
      %4482 = vperm.xlu0 %4481, %v463
      %v4483 = vpop.permute.xlu0 %4482
      %4486 = vset.pattern.permute.xlu0 0
      %4487 = vperm.xlu0 %4486, %v464
      %v4488 = vpop.permute.xlu0 %4487
      %4491 = vset.pattern.permute.xlu0 0
      %4492 = vperm.xlu0 %4491, %v465
      %v4493 = vpop.permute.xlu0 %4492
      %4496 = vset.pattern.permute.xlu0 0
      %4497 = vperm.xlu0 %4496, %v466
      %v4498 = vpop.permute.xlu0 %4497
      %4501 = vset.pattern.permute.xlu0 0
      %4502 = vperm.xlu0 %4501, %v467
      %v4503 = vpop.permute.xlu0 %4502
      %4506 = vset.pattern.permute.xlu0 0
      %4507 = vperm.xlu0 %4506, %v468
      %v4508 = vpop.permute.xlu0 %4507
      %v4510 = vmul.f32 %v4138, %v4308
      %v4511 = vmul.f32 %v4141, %v4313
      %v4512 = vmul.f32 %v4146, %v4318
      %v4513 = vmul.f32 %v4149, %v4323
      %v4514 = vmul.f32 %v4154, %v4328
      %v4515 = vmul.f32 %v4157, %v4333
      %v4516 = vmul.f32 %v4162, %v4338
      %v4517 = vmul.f32 %v4165, %v4343
      %v4518 = vmul.f32 %v4170, %v4348
      %v4519 = vmul.f32 %v4173, %v4353
      %v4520 = vmul.f32 %v4178, %v4358
      %v4521 = vmul.f32 %v4181, %v4363
      %v4522 = vmul.f32 %v4186, %v4368
      %v4523 = vmul.f32 %v4189, %v4373
      %v4524 = vmul.f32 %v4194, %v4378
      %v4525 = vmul.f32 %v4197, %v4383
      %v4526 = vmul.f32 %v4202, %v4388
      %v4527 = vmul.f32 %v4205, %v4393
      %v4528 = vmul.f32 %v4210, %v4398
      %v4529 = vmul.f32 %v4213, %v4403
      %v4530 = vmul.f32 %v4218, %v4408
      %v4531 = vmul.f32 %v4221, %v4413
      %v4532 = vmul.f32 %v4226, %v4418
      %v4533 = vmul.f32 %v4229, %v4423
      %v4534 = vmul.f32 %v4234, %v4428
      %v4535 = vmul.f32 %v4237, %v4433
      %v4536 = vmul.f32 %v4242, %v4438
      %v4537 = vmul.f32 %v4245, %v4443
      %v4538 = vmul.f32 %v4250, %v4448
      %v4539 = vmul.f32 %v4253, %v4453
      %v4540 = vmul.f32 %v4258, %v4458
      %v4541 = vmul.f32 %v4261, %v4463
      %v4542 = vmul.f32 %v4266, %v4468
      %v4543 = vmul.f32 %v4269, %v4473
      %v4544 = vmul.f32 %v4274, %v4478
      %v4545 = vmul.f32 %v4277, %v4483
      %v4546 = vmul.f32 %v4282, %v4488
      %v4547 = vmul.f32 %v4285, %v4493
      %v4548 = vmul.f32 %v4290, %v4498
      %v4549 = vmul.f32 %v4293, %v4503
      %v4550 = vmul.f32 %v4298, %v4508
      %v4551 = vadd.f32 %v4510, %v4511
      %v4552 = vadd.f32 %v4551, %v4512
      %v4553 = vadd.f32 %v4552, %v4513
      %v4554 = vadd.f32 %v4553, %v4514
      %v4555 = vadd.f32 %v4554, %v4515
      %v4556 = vadd.f32 %v4555, %v4516
      %v4557 = vadd.f32 %v4556, %v4517
      %v4558 = vadd.f32 %v4557, %v4518
      %v4559 = vadd.f32 %v4558, %v4519
      %v4560 = vadd.f32 %v4559, %v4520
      %v4561 = vadd.f32 %v4560, %v4521
      %v4562 = vadd.f32 %v4561, %v4522
      %v4563 = vadd.f32 %v4562, %v4523
      %v4564 = vadd.f32 %v4563, %v4524
      %v4565 = vadd.f32 %v4564, %v4525
      %v4566 = vadd.f32 %v4565, %v4526
      %v4567 = vadd.f32 %v4566, %v4527
      %v4568 = vadd.f32 %v4567, %v4528
      %v4569 = vadd.f32 %v4568, %v4529
      %v4570 = vadd.f32 %v4569, %v4530
      %v4571 = vadd.f32 %v4570, %v4531
      %v4572 = vadd.f32 %v4571, %v4532
      %v4573 = vadd.f32 %v4572, %v4533
      %v4574 = vadd.f32 %v4573, %v4534
      %v4575 = vadd.f32 %v4574, %v4535
      %v4576 = vadd.f32 %v4575, %v4536
      %v4577 = vadd.f32 %v4576, %v4537
      %v4578 = vadd.f32 %v4577, %v4538
      %v4579 = vadd.f32 %v4578, %v4539
      %v4580 = vadd.f32 %v4579, %v4540
      %v4581 = vadd.f32 %v4580, %v4541
      %v4582 = vadd.f32 %v4581, %v4542
      %v4583 = vadd.f32 %v4582, %v4543
      %v4584 = vadd.f32 %v4583, %v4544
      %v4585 = vadd.f32 %v4584, %v4545
      %v4586 = vadd.f32 %v4585, %v4546
      %v4587 = vadd.f32 %v4586, %v4547
      %v4588 = vadd.f32 %v4587, %v4548
      %v4589 = vadd.f32 %v4588, %v4549
      %vm4590 = vcmask 1043456
      %v4591 = vsel %vm4590, %v4550, 0.0
      %v4592 = vadd.f32 %v4589, %v4591
      %v4593 = vrot.slane %v4592, 4
      %v4594 = vadd.f32 %v4592, %v4593
      %v4595 = vrot.slane %v4594, 2
      %v4596 = vadd.f32 %v4594, %v4595
      %v4597 = vrot.slane %v4596, 1
      %v4598 = vadd.f32 %v4596, %v4597
      %v4599 = vmul.f32 %v4510, %v4510
      %v4600 = vmul.f32 %v4511, %v4511
      %v4601 = vmul.f32 %v4512, %v4512
      %v4602 = vmul.f32 %v4513, %v4513
      %v4603 = vmul.f32 %v4514, %v4514
      %v4604 = vmul.f32 %v4515, %v4515
      %v4605 = vmul.f32 %v4516, %v4516
      %v4606 = vmul.f32 %v4517, %v4517
      %v4607 = vmul.f32 %v4518, %v4518
      %v4608 = vmul.f32 %v4519, %v4519
      %v4609 = vmul.f32 %v4520, %v4520
      %v4610 = vmul.f32 %v4521, %v4521
      %v4611 = vmul.f32 %v4522, %v4522
      %v4612 = vmul.f32 %v4523, %v4523
      %v4613 = vmul.f32 %v4524, %v4524
      %v4614 = vmul.f32 %v4525, %v4525
      %v4615 = vmul.f32 %v4526, %v4526
      %v4616 = vmul.f32 %v4527, %v4527
      %v4617 = vmul.f32 %v4528, %v4528
      %v4618 = vmul.f32 %v4529, %v4529
      %v4619 = vmul.f32 %v4530, %v4530
      %v4620 = vmul.f32 %v4531, %v4531
      %v4621 = vmul.f32 %v4532, %v4532
      %v4622 = vmul.f32 %v4533, %v4533
      %v4623 = vmul.f32 %v4534, %v4534
      %v4624 = vmul.f32 %v4535, %v4535
      %v4625 = vmul.f32 %v4536, %v4536
      %v4626 = vmul.f32 %v4537, %v4537
      %v4627 = vmul.f32 %v4538, %v4538
      %v4628 = vmul.f32 %v4539, %v4539
      %v4629 = vmul.f32 %v4540, %v4540
      %v4630 = vmul.f32 %v4541, %v4541
      %v4631 = vmul.f32 %v4542, %v4542
      %v4632 = vmul.f32 %v4543, %v4543
      %v4633 = vmul.f32 %v4544, %v4544
      %v4634 = vmul.f32 %v4545, %v4545
      %v4635 = vmul.f32 %v4546, %v4546
      %v4636 = vmul.f32 %v4547, %v4547
      %v4637 = vmul.f32 %v4548, %v4548
      %v4638 = vmul.f32 %v4549, %v4549
      %v4639 = vmul.f32 %v4550, %v4550
      %v4640 = vadd.f32 %v4599, %v4600
      %v4641 = vadd.f32 %v4640, %v4601
      %v4642 = vadd.f32 %v4641, %v4602
      %v4643 = vadd.f32 %v4642, %v4603
      %v4644 = vadd.f32 %v4643, %v4604
      %v4645 = vadd.f32 %v4644, %v4605
      %v4646 = vadd.f32 %v4645, %v4606
      %v4647 = vadd.f32 %v4646, %v4607
      %v4648 = vadd.f32 %v4647, %v4608
      %v4649 = vadd.f32 %v4648, %v4609
      %v4650 = vadd.f32 %v4649, %v4610
      %v4651 = vadd.f32 %v4650, %v4611
      %v4652 = vadd.f32 %v4651, %v4612
      %v4653 = vadd.f32 %v4652, %v4613
      %v4654 = vadd.f32 %v4653, %v4614
      %v4655 = vadd.f32 %v4654, %v4615
      %v4656 = vadd.f32 %v4655, %v4616
      %v4657 = vadd.f32 %v4656, %v4617
      %v4658 = vadd.f32 %v4657, %v4618
      %v4659 = vadd.f32 %v4658, %v4619
      %v4660 = vadd.f32 %v4659, %v4620
      %v4661 = vadd.f32 %v4660, %v4621
      %v4662 = vadd.f32 %v4661, %v4622
      %v4663 = vadd.f32 %v4662, %v4623
      %v4664 = vadd.f32 %v4663, %v4624
      %v4665 = vadd.f32 %v4664, %v4625
      %v4666 = vadd.f32 %v4665, %v4626
      %v4667 = vadd.f32 %v4666, %v4627
      %v4668 = vadd.f32 %v4667, %v4628
      %v4669 = vadd.f32 %v4668, %v4629
      %v4670 = vadd.f32 %v4669, %v4630
      %v4671 = vadd.f32 %v4670, %v4631
      %v4672 = vadd.f32 %v4671, %v4632
      %v4673 = vadd.f32 %v4672, %v4633
      %v4674 = vadd.f32 %v4673, %v4634
      %v4675 = vadd.f32 %v4674, %v4635
      %v4676 = vadd.f32 %v4675, %v4636
      %v4677 = vadd.f32 %v4676, %v4637
      %v4678 = vadd.f32 %v4677, %v4638
      %v4679 = vsel %vm4590, %v4639, 0.0
      %v4680 = vadd.f32 %v4678, %v4679
      %v4681 = vrot.slane %v4680, 4
      %v4682 = vadd.f32 %v4680, %v4681
      %v4683 = vrot.slane %v4682, 2
      %v4684 = vadd.f32 %v4682, %v4683
      %v4685 = vrot.slane %v4684, 1
      %v4686 = vadd.f32 %v4684, %v4685
      %4687 = vmatprep.subr.mxu0 0.0
      %4688 = vmatpush1.msra.mxu0 %v484
      %4689 = vmatprep.subr.mxu0 0.0
      %4690 = vmatpush1.msra.mxu0 %v483
      %4691 = vmatprep.subr.mxu0 0.0
      %4692 = vmatpush1.msra.mxu0 %v482
      %4693 = vmatprep.subr.mxu0 0.0
      %4694 = vmatpush1.msra.mxu0 %v481
      %4695 = vmatprep.subr.mxu0 0.0
      %4696 = vmatpush1.msra.mxu0 %v480
      %4697 = vmatprep.subr.mxu0 0.0
      %4698 = vmatpush1.msra.mxu0 %v479
      %4699 = vmatprep.subr.mxu0 0.0
      %4700 = vmatpush1.msra.mxu0 %v478
      %4701 = vmatprep.subr.mxu0 0.0
      %4702 = vmatpush1.msra.mxu0 %v477
      %4703 = vmatprep.subr.mxu0 0.0
      %4704 = vmatpush1.msra.mxu0 %v476
      %4705 = vmatprep.subr.mxu0 0.0
      %4706 = vmatpush1.msra.mxu0 %v475
      %4707 = vmatprep.subr.mxu0 0.0
      %4708 = vmatpush1.msra.mxu0 %v474
      %4709 = vmatprep.subr.mxu0 0.0
      %4710 = vmatpush1.msra.mxu0 %v473
      %4711 = vmatprep.subr.mxu0 0.0
      %4712 = vmatpush1.msra.mxu0 %v472
      %4713 = vmatprep.subr.mxu0 0.0
      %4714 = vmatpush1.msra.mxu0 %v471
      %4715 = vmatprep.subr.mxu0 0.0
      %4716 = vmatpush1.msra.mxu0 %v470
      %4717 = vmatprep.subr.mxu0 0.0
      %4718 = vmatpush1.msra.mxu0 %v469
      %4719 = vmatprep.subr.mxu0 0.0
      %4720 = vmatpush2.msra.mxu0 0.0
      %4721 = vmatprep.subr.mxu0 0.0
      %4722 = vmatpush2.msra.mxu0 0.0
      %4723 = vmatprep.subr.mxu0 0.0
      %4724 = vmatpush2.msra.mxu0 0.0
      %4725 = vmatprep.subr.mxu0 0.0
      %4726 = vmatpush2.msra.mxu0 0.0
      %4727 = vmatprep.subr.mxu0 0.0
      %4728 = vmatpush2.msra.mxu0 0.0
      %4729 = vmatprep.subr.mxu0 0.0
      %4730 = vmatpush2.msra.mxu0 0.0
      %4731 = vmatprep.subr.mxu0 0.0
      %4732 = vmatpush2.msra.mxu0 0.0
      %4733 = vmatprep.subr.mxu0 0.0
      %4734 = vmatpush2.msra.mxu0 0.0
      %4735 = vmatprep.subr.mxu0 0.0
      %4736 = vmatpush2.msra.mxu0 0.0
      %4737 = vmatprep.subr.mxu0 0.0
      %4738 = vmatpush2.msra.mxu0 0.0
      %4739 = vmatprep.subr.mxu0 0.0
      %4740 = vmatpush2.msra.mxu0 0.0
      %4741 = vmatprep.subr.mxu0 0.0
      %4742 = vmatpush2.msra.mxu0 0.0
      %4743 = vmatprep.subr.mxu0 0.0
      %4744 = vmatpush2.msra.mxu0 0.0
      %4745 = vmatprep.subr.mxu0 0.0
      %4746 = vmatpush2.msra.mxu0 0.0
      %4747 = vmatprep.subr.mxu0 0.0
      %4748 = vmatpush2.msra.mxu0 0.0
      %4749 = vmatprep.subr.mxu0 0.0
      %4750 = vmatpush2.msra.mxu0 0.0
      %4751 = vmatprep.mubr.f32.mxu0 0.0
      %4752 = vmatmul.mubr.f32.gmra.mxu0 %v4598
      %v4753 = vpop.f32.mrf.mxu0
      %v4754 = vadd.f32 0.0, %v4753
      %v4755 = vpop.f32.mrf.mxu0
      %4756 = vdwg.mxu0
      %4757 = vmatprep.subr.mxu0 0.0
      %4758 = vmatpush1.msra.mxu0 %v484
      %4759 = vmatprep.subr.mxu0 0.0
      %4760 = vmatpush1.msra.mxu0 %v483
      %4761 = vmatprep.subr.mxu0 0.0
      %4762 = vmatpush1.msra.mxu0 %v482
      %4763 = vmatprep.subr.mxu0 0.0
      %4764 = vmatpush1.msra.mxu0 %v481
      %4765 = vmatprep.subr.mxu0 0.0
      %4766 = vmatpush1.msra.mxu0 %v480
      %4767 = vmatprep.subr.mxu0 0.0
      %4768 = vmatpush1.msra.mxu0 %v479
      %4769 = vmatprep.subr.mxu0 0.0
      %4770 = vmatpush1.msra.mxu0 %v478
      %4771 = vmatprep.subr.mxu0 0.0
      %4772 = vmatpush1.msra.mxu0 %v477
      %4773 = vmatprep.subr.mxu0 0.0
      %4774 = vmatpush1.msra.mxu0 %v476
      %4775 = vmatprep.subr.mxu0 0.0
      %4776 = vmatpush1.msra.mxu0 %v475
      %4777 = vmatprep.subr.mxu0 0.0
      %4778 = vmatpush1.msra.mxu0 %v474
      %4779 = vmatprep.subr.mxu0 0.0
      %4780 = vmatpush1.msra.mxu0 %v473
      %4781 = vmatprep.subr.mxu0 0.0
      %4782 = vmatpush1.msra.mxu0 %v472
      %4783 = vmatprep.subr.mxu0 0.0
      %4784 = vmatpush1.msra.mxu0 %v471
      %4785 = vmatprep.subr.mxu0 0.0
      %4786 = vmatpush1.msra.mxu0 %v470
      %4787 = vmatprep.subr.mxu0 0.0
      %4788 = vmatpush1.msra.mxu0 %v469
      %4789 = vmatprep.subr.mxu0 0.0
      %4790 = vmatpush2.msra.mxu0 0.0
      %4791 = vmatprep.subr.mxu0 0.0
      %4792 = vmatpush2.msra.mxu0 0.0
      %4793 = vmatprep.subr.mxu0 0.0
      %4794 = vmatpush2.msra.mxu0 0.0
      %4795 = vmatprep.subr.mxu0 0.0
      %4796 = vmatpush2.msra.mxu0 0.0
      %4797 = vmatprep.subr.mxu0 0.0
      %4798 = vmatpush2.msra.mxu0 0.0
      %4799 = vmatprep.subr.mxu0 0.0
      %4800 = vmatpush2.msra.mxu0 0.0
      %4801 = vmatprep.subr.mxu0 0.0
      %4802 = vmatpush2.msra.mxu0 0.0
      %4803 = vmatprep.subr.mxu0 0.0
      %4804 = vmatpush2.msra.mxu0 0.0
      %4805 = vmatprep.subr.mxu0 0.0
      %4806 = vmatpush2.msra.mxu0 0.0
      %4807 = vmatprep.subr.mxu0 0.0
      %4808 = vmatpush2.msra.mxu0 0.0
      %4809 = vmatprep.subr.mxu0 0.0
      %4810 = vmatpush2.msra.mxu0 0.0
      %4811 = vmatprep.subr.mxu0 0.0
      %4812 = vmatpush2.msra.mxu0 0.0
      %4813 = vmatprep.subr.mxu0 0.0
      %4814 = vmatpush2.msra.mxu0 0.0
      %4815 = vmatprep.subr.mxu0 0.0
      %4816 = vmatpush2.msra.mxu0 0.0
      %4817 = vmatprep.subr.mxu0 0.0
      %4818 = vmatpush2.msra.mxu0 0.0
      %4819 = vmatprep.subr.mxu0 0.0
      %4820 = vmatpush2.msra.mxu0 0.0
      %4821 = vmatprep.mubr.f32.mxu0 0.0
      %4822 = vmatmul.mubr.f32.gmra.mxu0 %v4686
      %v4823 = vpop.f32.mrf.mxu0
      %v4824 = vadd.f32 0.0, %v4823
      %v4825 = vpop.f32.mrf.mxu0
      %4826 = vdwg.mxu0
      %v4827 = vmul.f32 %v4754, 0.001953125
      %v4828 = vmul.f32 %v4824, 0.001953125
      %v4829 = vmul.f32 %v4827, %v4827
      %v4830 = vsub.f32 %v4828, %v4829
      %v4831 = vmax.f32 %v4830, 0.0
      %v4832 = vadd.f32 %v4831, 1e-05
      %v4833 = vrsqrt.pop %v4832
      %v4834 = vlaneseq
      %v4835 = vshrl.u32 %v4834, 7
      %v4836 = vsub.s32 0, %v4835
      %v4837 = vrot.slane %v4827, %v4836
      %v4838 = vsub.f32 %v4138, %v4837
      %v4839 = vsub.f32 %v4141, %v4837
      %v4840 = vsub.f32 %v4146, %v4837
      %v4841 = vsub.f32 %v4149, %v4837
      %v4842 = vsub.f32 %v4154, %v4837
      %v4843 = vsub.f32 %v4157, %v4837
      %v4844 = vsub.f32 %v4162, %v4837
      %v4845 = vsub.f32 %v4165, %v4837
      %v4846 = vsub.f32 %v4170, %v4837
      %v4847 = vsub.f32 %v4173, %v4837
      %v4848 = vsub.f32 %v4178, %v4837
      %v4849 = vsub.f32 %v4181, %v4837
      %v4850 = vsub.f32 %v4186, %v4837
      %v4851 = vsub.f32 %v4189, %v4837
      %v4852 = vsub.f32 %v4194, %v4837
      %v4853 = vsub.f32 %v4197, %v4837
      %v4854 = vsub.f32 %v4202, %v4837
      %v4855 = vsub.f32 %v4205, %v4837
      %v4856 = vsub.f32 %v4210, %v4837
      %v4857 = vsub.f32 %v4213, %v4837
      %v4858 = vsub.f32 %v4218, %v4837
      %v4859 = vsub.f32 %v4221, %v4837
      %v4860 = vsub.f32 %v4226, %v4837
      %v4861 = vsub.f32 %v4229, %v4837
      %v4862 = vsub.f32 %v4234, %v4837
      %v4863 = vsub.f32 %v4237, %v4837
      %v4864 = vsub.f32 %v4242, %v4837
      %v4865 = vsub.f32 %v4245, %v4837
      %v4866 = vsub.f32 %v4250, %v4837
      %v4867 = vsub.f32 %v4253, %v4837
      %v4868 = vsub.f32 %v4258, %v4837
      %v4869 = vsub.f32 %v4261, %v4837
      %v4870 = vsub.f32 %v4266, %v4837
      %v4871 = vsub.f32 %v4269, %v4837
      %v4872 = vsub.f32 %v4274, %v4837
      %v4873 = vsub.f32 %v4277, %v4837
      %v4874 = vsub.f32 %v4282, %v4837
      %v4875 = vsub.f32 %v4285, %v4837
      %v4876 = vsub.f32 %v4290, %v4837
      %v4877 = vsub.f32 %v4293, %v4837
      %v4878 = vsub.f32 %v4298, %v4837
      %v4879 = vlaneseq
      %v4880 = vshrl.u32 %v4879, 7
      %v4881 = vsub.s32 0, %v4880
      %v4882 = vrot.slane %v4833, %v4881
      %v4883 = vmul.f32 %v4838, %v4882
      %v4884 = vmul.f32 %v4839, %v4882
      %v4885 = vmul.f32 %v4840, %v4882
      %v4886 = vmul.f32 %v4841, %v4882
      %v4887 = vmul.f32 %v4842, %v4882
      %v4888 = vmul.f32 %v4843, %v4882
      %v4889 = vmul.f32 %v4844, %v4882
      %v4890 = vmul.f32 %v4845, %v4882
      %v4891 = vmul.f32 %v4846, %v4882
      %v4892 = vmul.f32 %v4847, %v4882
      %v4893 = vmul.f32 %v4848, %v4882
      %v4894 = vmul.f32 %v4849, %v4882
      %v4895 = vmul.f32 %v4850, %v4882
      %v4896 = vmul.f32 %v4851, %v4882
      %v4897 = vmul.f32 %v4852, %v4882
      %v4898 = vmul.f32 %v4853, %v4882
      %v4899 = vmul.f32 %v4854, %v4882
      %v4900 = vmul.f32 %v4855, %v4882
      %v4901 = vmul.f32 %v4856, %v4882
      %v4902 = vmul.f32 %v4857, %v4882
      %v4903 = vmul.f32 %v4858, %v4882
      %v4904 = vmul.f32 %v4859, %v4882
      %v4905 = vmul.f32 %v4860, %v4882
      %v4906 = vmul.f32 %v4861, %v4882
      %v4907 = vmul.f32 %v4862, %v4882
      %v4908 = vmul.f32 %v4863, %v4882
      %v4909 = vmul.f32 %v4864, %v4882
      %v4910 = vmul.f32 %v4865, %v4882
      %v4911 = vmul.f32 %v4866, %v4882
      %v4912 = vmul.f32 %v4867, %v4882
      %v4913 = vmul.f32 %v4868, %v4882
      %v4914 = vmul.f32 %v4869, %v4882
      %v4915 = vmul.f32 %v4870, %v4882
      %v4916 = vmul.f32 %v4871, %v4882
      %v4917 = vmul.f32 %v4872, %v4882
      %v4918 = vmul.f32 %v4873, %v4882
      %v4919 = vmul.f32 %v4874, %v4882
      %v4920 = vmul.f32 %v4875, %v4882
      %v4921 = vmul.f32 %v4876, %v4882
      %v4922 = vmul.f32 %v4877, %v4882
      %v4923 = vmul.f32 %v4878, %v4882
      %v4925 = vlaneseq
      %v4926 = vshrl.u32 %v4925, 7
      %v4927 = vsub.s32 0, %v4926
      %v4928 = vrot.slane %v4303, %v4927
      %v4930 = vmul.f32 %v4883, %v4928
      %v4931 = vmul.f32 %v4884, %v4928
      %v4932 = vmul.f32 %v4885, %v4928
      %v4933 = vmul.f32 %v4886, %v4928
      %v4934 = vmul.f32 %v4887, %v4928
      %v4935 = vmul.f32 %v4888, %v4928
      %v4936 = vmul.f32 %v4889, %v4928
      %v4937 = vmul.f32 %v4890, %v4928
      %v4938 = vmul.f32 %v4891, %v4928
      %v4939 = vmul.f32 %v4892, %v4928
      %v4940 = vmul.f32 %v4893, %v4928
      %v4941 = vmul.f32 %v4894, %v4928
      %v4942 = vmul.f32 %v4895, %v4928
      %v4943 = vmul.f32 %v4896, %v4928
      %v4944 = vmul.f32 %v4897, %v4928
      %v4945 = vmul.f32 %v4898, %v4928
      %v4946 = vmul.f32 %v4899, %v4928
      %v4947 = vmul.f32 %v4900, %v4928
      %v4948 = vmul.f32 %v4901, %v4928
      %v4949 = vmul.f32 %v4902, %v4928
      %v4950 = vmul.f32 %v4903, %v4928
      %v4951 = vmul.f32 %v4904, %v4928
      %v4952 = vmul.f32 %v4905, %v4928
      %v4953 = vmul.f32 %v4906, %v4928
      %v4954 = vmul.f32 %v4907, %v4928
      %v4955 = vmul.f32 %v4908, %v4928
      %v4956 = vmul.f32 %v4909, %v4928
      %v4957 = vmul.f32 %v4910, %v4928
      %v4958 = vmul.f32 %v4911, %v4928
      %v4959 = vmul.f32 %v4912, %v4928
      %v4960 = vmul.f32 %v4913, %v4928
      %v4961 = vmul.f32 %v4914, %v4928
      %v4962 = vmul.f32 %v4915, %v4928
      %v4963 = vmul.f32 %v4916, %v4928
      %v4964 = vmul.f32 %v4917, %v4928
      %v4965 = vmul.f32 %v4918, %v4928
      %v4966 = vmul.f32 %v4919, %v4928
      %v4967 = vmul.f32 %v4920, %v4928
      %v4968 = vmul.f32 %v4921, %v4928
      %v4969 = vmul.f32 %v4922, %v4928
      %v4970 = vmul.f32 %v4923, %v4928
      %v4972 = vlaneseq
      %v4973 = vshrl.u32 %v4972, 7
      %v4974 = vsub.s32 0, %v4973
      %v4975 = vrot.slane %v4304, %v4974
      %v4977 = vadd.f32 %v4930, %v4975
      %v4978 = vadd.f32 %v4931, %v4975
      %v4979 = vadd.f32 %v4932, %v4975
      %v4980 = vadd.f32 %v4933, %v4975
      %v4981 = vadd.f32 %v4934, %v4975
      %v4982 = vadd.f32 %v4935, %v4975
      %v4983 = vadd.f32 %v4936, %v4975
      %v4984 = vadd.f32 %v4937, %v4975
      %v4985 = vadd.f32 %v4938, %v4975
      %v4986 = vadd.f32 %v4939, %v4975
      %v4987 = vadd.f32 %v4940, %v4975
      %v4988 = vadd.f32 %v4941, %v4975
      %v4989 = vadd.f32 %v4942, %v4975
      %v4990 = vadd.f32 %v4943, %v4975
      %v4991 = vadd.f32 %v4944, %v4975
      %v4992 = vadd.f32 %v4945, %v4975
      %v4993 = vadd.f32 %v4946, %v4975
      %v4994 = vadd.f32 %v4947, %v4975
      %v4995 = vadd.f32 %v4948, %v4975
      %v4996 = vadd.f32 %v4949, %v4975
      %v4997 = vadd.f32 %v4950, %v4975
      %v4998 = vadd.f32 %v4951, %v4975
      %v4999 = vadd.f32 %v4952, %v4975
      %v5000 = vadd.f32 %v4953, %v4975
      %v5001 = vadd.f32 %v4954, %v4975
      %v5002 = vadd.f32 %v4955, %v4975
      %v5003 = vadd.f32 %v4956, %v4975
      %v5004 = vadd.f32 %v4957, %v4975
      %v5005 = vadd.f32 %v4958, %v4975
      %v5006 = vadd.f32 %v4959, %v4975
      %v5007 = vadd.f32 %v4960, %v4975
      %v5008 = vadd.f32 %v4961, %v4975
      %v5009 = vadd.f32 %v4962, %v4975
      %v5010 = vadd.f32 %v4963, %v4975
      %v5011 = vadd.f32 %v4964, %v4975
      %v5012 = vadd.f32 %v4965, %v4975
      %v5013 = vadd.f32 %v4966, %v4975
      %v5014 = vadd.f32 %v4967, %v4975
      %v5015 = vadd.f32 %v4968, %v4975
      %v5016 = vadd.f32 %v4969, %v4975
      %v5017 = vadd.f32 %v4970, %v4975
      %v5018 = vxor.u32 %v4977, 2147483648
      %v5019 = vxor.u32 %v4978, 2147483648
      %v5020 = vxor.u32 %v4979, 2147483648
      %v5021 = vxor.u32 %v4980, 2147483648
      %v5022 = vxor.u32 %v4981, 2147483648
      %v5023 = vxor.u32 %v4982, 2147483648
      %v5024 = vxor.u32 %v4983, 2147483648
      %v5025 = vxor.u32 %v4984, 2147483648
      %v5026 = vxor.u32 %v4985, 2147483648
      %v5027 = vxor.u32 %v4986, 2147483648
      %v5028 = vxor.u32 %v4987, 2147483648
      %v5029 = vxor.u32 %v4988, 2147483648
      %v5030 = vxor.u32 %v4989, 2147483648
      %v5031 = vxor.u32 %v4990, 2147483648
      %v5032 = vxor.u32 %v4991, 2147483648
      %v5033 = vxor.u32 %v4992, 2147483648
      %v5034 = vxor.u32 %v4993, 2147483648
      %v5035 = vxor.u32 %v4994, 2147483648
      %v5036 = vxor.u32 %v4995, 2147483648
      %v5037 = vxor.u32 %v4996, 2147483648
      %v5038 = vxor.u32 %v4997, 2147483648
      %v5039 = vxor.u32 %v4998, 2147483648
      %v5040 = vxor.u32 %v4999, 2147483648
      %v5041 = vxor.u32 %v5000, 2147483648
      %v5042 = vxor.u32 %v5001, 2147483648
      %v5043 = vxor.u32 %v5002, 2147483648
      %v5044 = vxor.u32 %v5003, 2147483648
      %v5045 = vxor.u32 %v5004, 2147483648
      %v5046 = vxor.u32 %v5005, 2147483648
      %v5047 = vxor.u32 %v5006, 2147483648
      %v5048 = vxor.u32 %v5007, 2147483648
      %v5049 = vxor.u32 %v5008, 2147483648
      %v5050 = vxor.u32 %v5009, 2147483648
      %v5051 = vxor.u32 %v5010, 2147483648
      %v5052 = vxor.u32 %v5011, 2147483648
      %v5053 = vxor.u32 %v5012, 2147483648
      %v5054 = vxor.u32 %v5013, 2147483648
      %v5055 = vxor.u32 %v5014, 2147483648
      %v5056 = vxor.u32 %v5015, 2147483648
      %v5057 = vxor.u32 %v5016, 2147483648
      %v5058 = vxor.u32 %v5017, 2147483648
      %v5059 = vmul.f32 %v5018, 1.442695
      %v5060 = vpow.pop %v5059
      %v5061 = vmul.f32 %v5019, 1.442695
      %v5062 = vpow.pop %v5061
      %v5063 = vmul.f32 %v5020, 1.442695
      %v5064 = vpow.pop %v5063
      %v5065 = vmul.f32 %v5021, 1.442695
      %v5066 = vpow.pop %v5065
      %v5067 = vmul.f32 %v5022, 1.442695
      %v5068 = vpow.pop %v5067
      %v5069 = vmul.f32 %v5023, 1.442695
      %v5070 = vpow.pop %v5069
      %v5071 = vmul.f32 %v5024, 1.442695
      %v5072 = vpow.pop %v5071
      %v5073 = vmul.f32 %v5025, 1.442695
      %v5074 = vpow.pop %v5073
      %v5075 = vmul.f32 %v5026, 1.442695
      %v5076 = vpow.pop %v5075
      %v5077 = vmul.f32 %v5027, 1.442695
      %v5078 = vpow.pop %v5077
      %v5079 = vmul.f32 %v5028, 1.442695
      %v5080 = vpow.pop %v5079
      %v5081 = vmul.f32 %v5029, 1.442695
      %v5082 = vpow.pop %v5081
      %v5083 = vmul.f32 %v5030, 1.442695
      %v5084 = vpow.pop %v5083
      %v5085 = vmul.f32 %v5031, 1.442695
      %v5086 = vpow.pop %v5085
      %v5087 = vmul.f32 %v5032, 1.442695
      %v5088 = vpow.pop %v5087
      %v5089 = vmul.f32 %v5033, 1.442695
      %v5090 = vpow.pop %v5089
      %v5091 = vmul.f32 %v5034, 1.442695
      %v5092 = vpow.pop %v5091
      %v5093 = vmul.f32 %v5035, 1.442695
      %v5094 = vpow.pop %v5093
      %v5095 = vmul.f32 %v5036, 1.442695
      %v5096 = vpow.pop %v5095
      %v5097 = vmul.f32 %v5037, 1.442695
      %v5098 = vpow.pop %v5097
      %v5099 = vmul.f32 %v5038, 1.442695
      %v5100 = vpow.pop %v5099
      %v5101 = vmul.f32 %v5039, 1.442695
      %v5102 = vpow.pop %v5101
      %v5103 = vmul.f32 %v5040, 1.442695
      %v5104 = vpow.pop %v5103
      %v5105 = vmul.f32 %v5041, 1.442695
      %v5106 = vpow.pop %v5105
      %v5107 = vmul.f32 %v5042, 1.442695
      %v5108 = vpow.pop %v5107
      %v5109 = vmul.f32 %v5043, 1.442695
      %v5110 = vpow.pop %v5109
      %v5111 = vmul.f32 %v5044, 1.442695
      %v5112 = vpow.pop %v5111
      %v5113 = vmul.f32 %v5045, 1.442695
      %v5114 = vpow.pop %v5113
      %v5115 = vmul.f32 %v5046, 1.442695
      %v5116 = vpow.pop %v5115
      %v5117 = vmul.f32 %v5047, 1.442695
      %v5118 = vpow.pop %v5117
      %v5119 = vmul.f32 %v5048, 1.442695
      %v5120 = vpow.pop %v5119
      %v5121 = vmul.f32 %v5049, 1.442695
      %v5122 = vpow.pop %v5121
      %v5123 = vmul.f32 %v5050, 1.442695
      %v5124 = vpow.pop %v5123
      %v5125 = vmul.f32 %v5051, 1.442695
      %v5126 = vpow.pop %v5125
      %v5127 = vmul.f32 %v5052, 1.442695
      %v5128 = vpow.pop %v5127
      %v5129 = vmul.f32 %v5053, 1.442695
      %v5130 = vpow.pop %v5129
      %v5131 = vmul.f32 %v5054, 1.442695
      %v5132 = vpow.pop %v5131
      %v5133 = vmul.f32 %v5055, 1.442695
      %v5134 = vpow.pop %v5133
      %v5135 = vmul.f32 %v5056, 1.442695
      %v5136 = vpow.pop %v5135
      %v5137 = vmul.f32 %v5057, 1.442695
      %v5138 = vpow.pop %v5137
      %v5139 = vmul.f32 %v5058, 1.442695
      %v5140 = vpow.pop %v5139
      %v5141 = vadd.f32 %v5060, 1.0
      %v5142 = vadd.f32 %v5062, 1.0
      %v5143 = vadd.f32 %v5064, 1.0
      %v5144 = vadd.f32 %v5066, 1.0
      %v5145 = vadd.f32 %v5068, 1.0
      %v5146 = vadd.f32 %v5070, 1.0
      %v5147 = vadd.f32 %v5072, 1.0
      %v5148 = vadd.f32 %v5074, 1.0
      %v5149 = vadd.f32 %v5076, 1.0
      %v5150 = vadd.f32 %v5078, 1.0
      %v5151 = vadd.f32 %v5080, 1.0
      %v5152 = vadd.f32 %v5082, 1.0
      %v5153 = vadd.f32 %v5084, 1.0
      %v5154 = vadd.f32 %v5086, 1.0
      %v5155 = vadd.f32 %v5088, 1.0
      %v5156 = vadd.f32 %v5090, 1.0
      %v5157 = vadd.f32 %v5092, 1.0
      %v5158 = vadd.f32 %v5094, 1.0
      %v5159 = vadd.f32 %v5096, 1.0
      %v5160 = vadd.f32 %v5098, 1.0
      %v5161 = vadd.f32 %v5100, 1.0
      %v5162 = vadd.f32 %v5102, 1.0
      %v5163 = vadd.f32 %v5104, 1.0
      %v5164 = vadd.f32 %v5106, 1.0
      %v5165 = vadd.f32 %v5108, 1.0
      %v5166 = vadd.f32 %v5110, 1.0
      %v5167 = vadd.f32 %v5112, 1.0
      %v5168 = vadd.f32 %v5114, 1.0
      %v5169 = vadd.f32 %v5116, 1.0
      %v5170 = vadd.f32 %v5118, 1.0
      %v5171 = vadd.f32 %v5120, 1.0
      %v5172 = vadd.f32 %v5122, 1.0
      %v5173 = vadd.f32 %v5124, 1.0
      %v5174 = vadd.f32 %v5126, 1.0
      %v5175 = vadd.f32 %v5128, 1.0
      %v5176 = vadd.f32 %v5130, 1.0
      %v5177 = vadd.f32 %v5132, 1.0
      %v5178 = vadd.f32 %v5134, 1.0
      %v5179 = vadd.f32 %v5136, 1.0
      %v5180 = vadd.f32 %v5138, 1.0
      %v5181 = vadd.f32 %v5140, 1.0
      %v5182 = vrcp.pop %v5141
      %v5183 = vmul.f32 1.0, %v5182
      %v5184 = vrcp.pop %v5142
      %v5185 = vmul.f32 1.0, %v5184
      %v5186 = vrcp.pop %v5143
      %v5187 = vmul.f32 1.0, %v5186
      %v5188 = vrcp.pop %v5144
      %v5189 = vmul.f32 1.0, %v5188
      %v5190 = vrcp.pop %v5145
      %v5191 = vmul.f32 1.0, %v5190
      %v5192 = vrcp.pop %v5146
      %v5193 = vmul.f32 1.0, %v5192
      %v5194 = vrcp.pop %v5147
      %v5195 = vmul.f32 1.0, %v5194
      %v5196 = vrcp.pop %v5148
      %v5197 = vmul.f32 1.0, %v5196
      %v5198 = vrcp.pop %v5149
      %v5199 = vmul.f32 1.0, %v5198
      %v5200 = vrcp.pop %v5150
      %v5201 = vmul.f32 1.0, %v5200
      %v5202 = vrcp.pop %v5151
      %v5203 = vmul.f32 1.0, %v5202
      %v5204 = vrcp.pop %v5152
      %v5205 = vmul.f32 1.0, %v5204
      %v5206 = vrcp.pop %v5153
      %v5207 = vmul.f32 1.0, %v5206
      %v5208 = vrcp.pop %v5154
      %v5209 = vmul.f32 1.0, %v5208
      %v5210 = vrcp.pop %v5155
      %v5211 = vmul.f32 1.0, %v5210
      %v5212 = vrcp.pop %v5156
      %v5213 = vmul.f32 1.0, %v5212
      %v5214 = vrcp.pop %v5157
      %v5215 = vmul.f32 1.0, %v5214
      %v5216 = vrcp.pop %v5158
      %v5217 = vmul.f32 1.0, %v5216
      %v5218 = vrcp.pop %v5159
      %v5219 = vmul.f32 1.0, %v5218
      %v5220 = vrcp.pop %v5160
      %v5221 = vmul.f32 1.0, %v5220
      %v5222 = vrcp.pop %v5161
      %v5223 = vmul.f32 1.0, %v5222
      %v5224 = vrcp.pop %v5162
      %v5225 = vmul.f32 1.0, %v5224
      %v5226 = vrcp.pop %v5163
      %v5227 = vmul.f32 1.0, %v5226
      %v5228 = vrcp.pop %v5164
      %v5229 = vmul.f32 1.0, %v5228
      %v5230 = vrcp.pop %v5165
      %v5231 = vmul.f32 1.0, %v5230
      %v5232 = vrcp.pop %v5166
      %v5233 = vmul.f32 1.0, %v5232
      %v5234 = vrcp.pop %v5167
      %v5235 = vmul.f32 1.0, %v5234
      %v5236 = vrcp.pop %v5168
      %v5237 = vmul.f32 1.0, %v5236
      %v5238 = vrcp.pop %v5169
      %v5239 = vmul.f32 1.0, %v5238
      %v5240 = vrcp.pop %v5170
      %v5241 = vmul.f32 1.0, %v5240
      %v5242 = vrcp.pop %v5171
      %v5243 = vmul.f32 1.0, %v5242
      %v5244 = vrcp.pop %v5172
      %v5245 = vmul.f32 1.0, %v5244
      %v5246 = vrcp.pop %v5173
      %v5247 = vmul.f32 1.0, %v5246
      %v5248 = vrcp.pop %v5174
      %v5249 = vmul.f32 1.0, %v5248
      %v5250 = vrcp.pop %v5175
      %v5251 = vmul.f32 1.0, %v5250
      %v5252 = vrcp.pop %v5176
      %v5253 = vmul.f32 1.0, %v5252
      %v5254 = vrcp.pop %v5177
      %v5255 = vmul.f32 1.0, %v5254
      %v5256 = vrcp.pop %v5178
      %v5257 = vmul.f32 1.0, %v5256
      %v5258 = vrcp.pop %v5179
      %v5259 = vmul.f32 1.0, %v5258
      %v5260 = vrcp.pop %v5180
      %v5261 = vmul.f32 1.0, %v5260
      %v5262 = vrcp.pop %v5181
      %v5263 = vmul.f32 1.0, %v5262
      %v5264 = vmul.f32 %v4977, %v5183
      %v5265 = vmul.f32 %v4978, %v5185
      %v5266 = vmul.f32 %v4979, %v5187
      %v5267 = vmul.f32 %v4980, %v5189
      %v5268 = vmul.f32 %v4981, %v5191
      %v5269 = vmul.f32 %v4982, %v5193
      %v5270 = vmul.f32 %v4983, %v5195
      %v5271 = vmul.f32 %v4984, %v5197
      %v5272 = vmul.f32 %v4985, %v5199
      %v5273 = vmul.f32 %v4986, %v5201
      %v5274 = vmul.f32 %v4987, %v5203
      %v5275 = vmul.f32 %v4988, %v5205
      %v5276 = vmul.f32 %v4989, %v5207
      %v5277 = vmul.f32 %v4990, %v5209
      %v5278 = vmul.f32 %v4991, %v5211
      %v5279 = vmul.f32 %v4992, %v5213
      %v5280 = vmul.f32 %v4993, %v5215
      %v5281 = vmul.f32 %v4994, %v5217
      %v5282 = vmul.f32 %v4995, %v5219
      %v5283 = vmul.f32 %v4996, %v5221
      %v5284 = vmul.f32 %v4997, %v5223
      %v5285 = vmul.f32 %v4998, %v5225
      %v5286 = vmul.f32 %v4999, %v5227
      %v5287 = vmul.f32 %v5000, %v5229
      %v5288 = vmul.f32 %v5001, %v5231
      %v5289 = vmul.f32 %v5002, %v5233
      %v5290 = vmul.f32 %v5003, %v5235
      %v5291 = vmul.f32 %v5004, %v5237
      %v5292 = vmul.f32 %v5005, %v5239
      %v5293 = vmul.f32 %v5006, %v5241
      %v5294 = vmul.f32 %v5007, %v5243
      %v5295 = vmul.f32 %v5008, %v5245
      %v5296 = vmul.f32 %v5009, %v5247
      %v5297 = vmul.f32 %v5010, %v5249
      %v5298 = vmul.f32 %v5011, %v5251
      %v5299 = vmul.f32 %v5012, %v5253
      %v5300 = vmul.f32 %v5013, %v5255
      %v5301 = vmul.f32 %v5014, %v5257
      %v5302 = vmul.f32 %v5015, %v5259
      %v5303 = vmul.f32 %v5016, %v5261
      %v5304 = vmul.f32 %v5017, %v5263
      %v5305 = vmul.f32 %v5264, %v4308
      %v5306 = vmul.f32 %v5265, %v4313
      %v5307 = vmul.f32 %v5266, %v4318
      %v5308 = vmul.f32 %v5267, %v4323
      %v5309 = vmul.f32 %v5268, %v4328
      %v5310 = vmul.f32 %v5269, %v4333
      %v5311 = vmul.f32 %v5270, %v4338
      %v5312 = vmul.f32 %v5271, %v4343
      %v5313 = vmul.f32 %v5272, %v4348
      %v5314 = vmul.f32 %v5273, %v4353
      %v5315 = vmul.f32 %v5274, %v4358
      %v5316 = vmul.f32 %v5275, %v4363
      %v5317 = vmul.f32 %v5276, %v4368
      %v5318 = vmul.f32 %v5277, %v4373
      %v5319 = vmul.f32 %v5278, %v4378
      %v5320 = vmul.f32 %v5279, %v4383
      %v5321 = vmul.f32 %v5280, %v4388
      %v5322 = vmul.f32 %v5281, %v4393
      %v5323 = vmul.f32 %v5282, %v4398
      %v5324 = vmul.f32 %v5283, %v4403
      %v5325 = vmul.f32 %v5284, %v4408
      %v5326 = vmul.f32 %v5285, %v4413
      %v5327 = vmul.f32 %v5286, %v4418
      %v5328 = vmul.f32 %v5287, %v4423
      %v5329 = vmul.f32 %v5288, %v4428
      %v5330 = vmul.f32 %v5289, %v4433
      %v5331 = vmul.f32 %v5290, %v4438
      %v5332 = vmul.f32 %v5291, %v4443
      %v5333 = vmul.f32 %v5292, %v4448
      %v5334 = vmul.f32 %v5293, %v4453
      %v5335 = vmul.f32 %v5294, %v4458
      %v5336 = vmul.f32 %v5295, %v4463
      %v5337 = vmul.f32 %v5296, %v4468
      %v5338 = vmul.f32 %v5297, %v4473
      %v5339 = vmul.f32 %v5298, %v4478
      %v5340 = vmul.f32 %v5299, %v4483
      %v5341 = vmul.f32 %v5300, %v4488
      %v5342 = vmul.f32 %v5301, %v4493
      %v5343 = vmul.f32 %v5302, %v4498
      %v5344 = vmul.f32 %v5303, %v4503
      %v5345 = vmul.f32 %v5304, %v4508
      %5346 = vst [vmem:[#allocation2] sm:$0xf] 0
      %5347 = vst [vmem:[#allocation2 + $0x4] sm:$0xf] 0
      %5348 = vst [vmem:[#allocation2 + $0x8] sm:$0xf] 0
      %5349 = vst [vmem:[#allocation2 + $0xac] sm:$0xc] 0
      %5350 = vst [vmem:[#allocation2 + $0xb0] sm:$0xf] 0
      %5351 = vst [vmem:[#allocation2 + $0xb4] sm:$0xf] 0
      %5352 = vst [vmem:[#allocation2 + $0xb8] sm:$0x3] 0
      %v5353 = vpack.c.bf16 %v5306, %v5305
      %v5354 = vpack.c.bf16 %v5308, %v5307
      %v5355 = vpack.c.bf16 %v5310, %v5309
      %v5356 = vpack.c.bf16 %v5312, %v5311
      %v5357 = vpack.c.bf16 %v5314, %v5313
      %v5358 = vpack.c.bf16 %v5316, %v5315
      %v5359 = vpack.c.bf16 %v5318, %v5317
      %v5360 = vpack.c.bf16 %v5320, %v5319
      %v5361 = vpack.c.bf16 %v5322, %v5321
      %v5362 = vpack.c.bf16 %v5324, %v5323
      %v5363 = vpack.c.bf16 %v5326, %v5325
      %v5364 = vpack.c.bf16 %v5328, %v5327
      %v5365 = vpack.c.bf16 %v5330, %v5329
      %v5366 = vpack.c.bf16 %v5332, %v5331
      %v5367 = vpack.c.bf16 %v5334, %v5333
      %v5368 = vpack.c.bf16 %v5336, %v5335
      %v5369 = vpack.c.bf16 %v5338, %v5337
      %v5370 = vpack.c.bf16 %v5340, %v5339
      %v5371 = vpack.c.bf16 %v5342, %v5341
      %v5372 = vpack.c.bf16 %v5344, %v5343
      %v5373 = vpack.c.bf16 %v5345, %v5345
      %v5395 = vunpack.c.l.b16 %v5353
      %v5396 = vunpack.c.h.b16 %v5353
      %v5397 = vunpack.c.l.b16 %v5354
      %v5398 = vunpack.c.h.b16 %v5354
      %v5399 = vunpack.c.l.b16 %v5355
      %v5400 = vunpack.c.h.b16 %v5355
      %v5401 = vunpack.c.l.b16 %v5356
      %v5402 = vunpack.c.h.b16 %v5356
      %v5403 = vunpack.c.l.b16 %v5357
      %v5404 = vunpack.c.h.b16 %v5357
      %v5405 = vunpack.c.l.b16 %v5358
      %v5406 = vunpack.c.h.b16 %v5358
      %v5407 = vunpack.c.l.b16 %v5359
      %v5408 = vunpack.c.h.b16 %v5359
      %v5409 = vunpack.c.l.b16 %v5360
      %v5410 = vunpack.c.h.b16 %v5360
      %v5411 = vunpack.c.l.b16 %v5361
      %v5412 = vunpack.c.h.b16 %v5361
      %v5413 = vunpack.c.l.b16 %v5362
      %v5414 = vunpack.c.h.b16 %v5362
      %v5415 = vunpack.c.l.b16 %v5363
      %v5416 = vunpack.c.h.b16 %v5363
      %v5417 = vunpack.c.l.b16 %v5364
      %v5418 = vunpack.c.h.b16 %v5364
      %v5419 = vunpack.c.l.b16 %v5365
      %v5420 = vunpack.c.h.b16 %v5365
      %v5421 = vunpack.c.l.b16 %v5366
      %v5422 = vunpack.c.h.b16 %v5366
      %v5423 = vunpack.c.l.b16 %v5367
      %v5424 = vunpack.c.h.b16 %v5367
      %v5425 = vunpack.c.l.b16 %v5368
      %v5426 = vunpack.c.h.b16 %v5368
      %v5427 = vunpack.c.l.b16 %v5369
      %v5428 = vunpack.c.h.b16 %v5369
      %v5429 = vunpack.c.l.b16 %v5370
      %v5430 = vunpack.c.h.b16 %v5370
      %v5431 = vunpack.c.l.b16 %v5371
      %v5432 = vunpack.c.h.b16 %v5371
      %v5433 = vunpack.c.l.b16 %v5372
      %v5434 = vunpack.c.h.b16 %v5372
      %v5435 = vunpack.c.l.b16 %v5373
      %v5436 = vpack.c.b16 %v5395, %v5395
      %v5437 = vpack.c.b16 %v5396, %v5396
      %v5438 = vpack.c.b16 %v5397, %v5397
      %v5439 = vpack.c.b16 %v5398, %v5398
      %v5440 = vpack.c.b16 %v5399, %v5399
      %v5441 = vpack.c.b16 %v5400, %v5400
      %v5442 = vpack.c.b16 %v5401, %v5401
      %v5443 = vpack.c.b16 %v5402, %v5402
      %v5444 = vpack.c.b16 %v5403, %v5403
      %v5445 = vpack.c.b16 %v5404, %v5404
      %v5446 = vpack.c.b16 %v5405, %v5405
      %v5447 = vpack.c.b16 %v5406, %v5406
      %v5448 = vpack.c.b16 %v5407, %v5407
      %v5449 = vpack.c.b16 %v5408, %v5408
      %v5450 = vpack.c.b16 %v5409, %v5409
      %v5451 = vpack.c.b16 %v5410, %v5410
      %v5452 = vpack.c.b16 %v5411, %v5411
      %v5453 = vpack.c.b16 %v5412, %v5412
      %v5454 = vpack.c.b16 %v5413, %v5413
      %v5455 = vpack.c.b16 %v5414, %v5414
      %v5456 = vpack.c.b16 %v5415, %v5415
      %v5457 = vpack.c.b16 %v5416, %v5416
      %v5458 = vpack.c.b16 %v5417, %v5417
      %v5459 = vpack.c.b16 %v5418, %v5418
      %v5460 = vpack.c.b16 %v5419, %v5419
      %v5461 = vpack.c.b16 %v5420, %v5420
      %v5462 = vpack.c.b16 %v5421, %v5421
      %v5463 = vpack.c.b16 %v5422, %v5422
      %v5464 = vpack.c.b16 %v5423, %v5423
      %v5465 = vpack.c.b16 %v5424, %v5424
      %v5466 = vpack.c.b16 %v5425, %v5425
      %v5467 = vpack.c.b16 %v5426, %v5426
      %v5468 = vpack.c.b16 %v5427, %v5427
      %v5469 = vpack.c.b16 %v5428, %v5428
      %v5470 = vpack.c.b16 %v5429, %v5429
      %v5471 = vpack.c.b16 %v5430, %v5430
      %v5472 = vpack.c.b16 %v5431, %v5431
      %v5473 = vpack.c.b16 %v5432, %v5432
      %v5474 = vpack.c.b16 %v5433, %v5433
      %v5475 = vpack.c.b16 %v5434, %v5434
      %v5476 = vpack.c.b16 %v5435, %v5435
      %5518 = vst [vmem:[#allocation2 + $0xc] sm:$0xf] %v5436
      %5519 = vst [vmem:[#allocation2 + $0x10] sm:$0xf] %v5437
      %5520 = vst [vmem:[#allocation2 + $0x14] sm:$0xf] %v5438
      %5521 = vst [vmem:[#allocation2 + $0x18] sm:$0xf] %v5439
      %5522 = vst [vmem:[#allocation2 + $0x1c] sm:$0xf] %v5440
      %5523 = vst [vmem:[#allocation2 + $0x20] sm:$0xf] %v5441
      %5524 = vst [vmem:[#allocation2 + $0x24] sm:$0xf] %v5442
      %5525 = vst [vmem:[#allocation2 + $0x28] sm:$0xf] %v5443
      %5526 = vst [vmem:[#allocation2 + $0x2c] sm:$0xf] %v5444
      %5527 = vst [vmem:[#allocation2 + $0x30] sm:$0xf] %v5445
      %5528 = vst [vmem:[#allocation2 + $0x34] sm:$0xf] %v5446
      %5529 = vst [vmem:[#allocation2 + $0x38] sm:$0xf] %v5447
      %5530 = vst [vmem:[#allocation2 + $0x3c] sm:$0xf] %v5448
      %5531 = vst [vmem:[#allocation2 + $0x40] sm:$0xf] %v5449
      %5532 = vst [vmem:[#allocation2 + $0x44] sm:$0xf] %v5450
      %5533 = vst [vmem:[#allocation2 + $0x48] sm:$0xf] %v5451
      %5534 = vst [vmem:[#allocation2 + $0x4c] sm:$0xf] %v5452
      %5535 = vst [vmem:[#allocation2 + $0x50] sm:$0xf] %v5453
      %5536 = vst [vmem:[#allocation2 + $0x54] sm:$0xf] %v5454
      %5537 = vst [vmem:[#allocation2 + $0x58] sm:$0xf] %v5455
      %5538 = vst [vmem:[#allocation2 + $0x5c] sm:$0xf] %v5456
      %5539 = vst [vmem:[#allocation2 + $0x60] sm:$0xf] %v5457
      %5540 = vst [vmem:[#allocation2 + $0x64] sm:$0xf] %v5458
      %5541 = vst [vmem:[#allocation2 + $0x68] sm:$0xf] %v5459
      %5542 = vst [vmem:[#allocation2 + $0x6c] sm:$0xf] %v5460
      %5543 = vst [vmem:[#allocation2 + $0x70] sm:$0xf] %v5461
      %5544 = vst [vmem:[#allocation2 + $0x74] sm:$0xf] %v5462
      %5545 = vst [vmem:[#allocation2 + $0x78] sm:$0xf] %v5463
      %5546 = vst [vmem:[#allocation2 + $0x7c] sm:$0xf] %v5464
      %5547 = vst [vmem:[#allocation2 + $0x80] sm:$0xf] %v5465
      %5548 = vst [vmem:[#allocation2 + $0x84] sm:$0xf] %v5466
      %5549 = vst [vmem:[#allocation2 + $0x88] sm:$0xf] %v5467
      %5550 = vst [vmem:[#allocation2 + $0x8c] sm:$0xf] %v5468
      %5551 = vst [vmem:[#allocation2 + $0x90] sm:$0xf] %v5469
      %5552 = vst [vmem:[#allocation2 + $0x94] sm:$0xf] %v5470
      %5553 = vst [vmem:[#allocation2 + $0x98] sm:$0xf] %v5471
      %5554 = vst [vmem:[#allocation2 + $0x9c] sm:$0xf] %v5472
      %5555 = vst [vmem:[#allocation2 + $0xa0] sm:$0xf] %v5473
      %5556 = vst [vmem:[#allocation2 + $0xa4] sm:$0xf] %v5474
      %5557 = vst [vmem:[#allocation2 + $0xa8] sm:$0xf] %v5475
      %5558 = vst [vmem:[#allocation2 + $0xac] sm:$0x3] %v5476
      %v5559 = vld [vmem:[#allocation2] sm:$0xc]
      %v5560 = vld [vmem:[#allocation2 + $0x4] sm:$0xf]
      %v5561 = vld [vmem:[#allocation2 + $0x8] sm:$0xf]
      %v5562 = vld [vmem:[#allocation2 + $0xc] sm:$0xf]
      %v5563 = vld [vmem:[#allocation2 + $0x10] sm:$0xf]
      %v5564 = vld [vmem:[#allocation2 + $0x14] sm:$0xf]
      %v5565 = vld [vmem:[#allocation2 + $0x18] sm:$0xf]
      %v5566 = vld [vmem:[#allocation2 + $0x1c] sm:$0xf]
      %v5567 = vld [vmem:[#allocation2 + $0x20] sm:$0xf]
      %v5568 = vld [vmem:[#allocation2 + $0x24] sm:$0xf]
      %v5569 = vld [vmem:[#allocation2 + $0x28] sm:$0xf]
      %v5570 = vld [vmem:[#allocation2 + $0x2c] sm:$0xf]
      %v5571 = vld [vmem:[#allocation2 + $0x30] sm:$0xf]
      %v5572 = vld [vmem:[#allocation2 + $0x34] sm:$0xf]
      %v5573 = vld [vmem:[#allocation2 + $0x38] sm:$0xf]
      %v5574 = vld [vmem:[#allocation2 + $0x3c] sm:$0xf]
      %v5575 = vld [vmem:[#allocation2 + $0x40] sm:$0xf]
      %v5576 = vld [vmem:[#allocation2 + $0x44] sm:$0xf]
      %v5577 = vld [vmem:[#allocation2 + $0x48] sm:$0xf]
      %v5578 = vld [vmem:[#allocation2 + $0x4c] sm:$0xf]
      %v5579 = vld [vmem:[#allocation2 + $0x50] sm:$0xf]
      %v5580 = vld [vmem:[#allocation2 + $0x54] sm:$0xf]
      %v5581 = vld [vmem:[#allocation2 + $0x58] sm:$0xf]
      %v5582 = vld [vmem:[#allocation2 + $0x5c] sm:$0xf]
      %v5583 = vld [vmem:[#allocation2 + $0x60] sm:$0xf]
      %v5584 = vld [vmem:[#allocation2 + $0x64] sm:$0xf]
      %v5585 = vld [vmem:[#allocation2 + $0x68] sm:$0xf]
      %v5586 = vld [vmem:[#allocation2 + $0x6c] sm:$0xf]
      %v5587 = vld [vmem:[#allocation2 + $0x70] sm:$0xf]
      %v5588 = vld [vmem:[#allocation2 + $0x74] sm:$0xf]
      %v5589 = vld [vmem:[#allocation2 + $0x78] sm:$0xf]
      %v5590 = vld [vmem:[#allocation2 + $0x7c] sm:$0xf]
      %v5591 = vld [vmem:[#allocation2 + $0x80] sm:$0xf]
      %v5592 = vld [vmem:[#allocation2 + $0x84] sm:$0xf]
      %v5593 = vld [vmem:[#allocation2 + $0x88] sm:$0xf]
      %v5594 = vld [vmem:[#allocation2 + $0x8c] sm:$0xf]
      %v5595 = vld [vmem:[#allocation2 + $0x90] sm:$0xf]
      %v5596 = vld [vmem:[#allocation2 + $0x94] sm:$0xf]
      %v5597 = vld [vmem:[#allocation2 + $0x98] sm:$0xf]
      %v5598 = vld [vmem:[#allocation2 + $0x9c] sm:$0xf]
      %v5599 = vld [vmem:[#allocation2 + $0xa0] sm:$0xf]
      %v5600 = vld [vmem:[#allocation2 + $0xa4] sm:$0x1]
      %v5601 = vld [vmem:[#allocation2] sm:$0x8]
      %v5602 = vld [vmem:[#allocation2 + $0xa4] sm:$0x3]
      %v5603 = vld [vmem:[#allocation2 + $0x8] sm:$0x8]
      %v5604 = vld [vmem:[#allocation2 + $0xa4] sm:$0xf]
      %v5605 = vld [vmem:[#allocation2 + $0xa8] sm:$0xf]
      %v5606 = vld [vmem:[#allocation2 + $0xac] sm:$0x3]
      %v5607 = vld [vmem:[#allocation2 + $0xac] sm:$0x7]
      %v5608 = vld [vmem:[#allocation2 + $0xac] sm:$0xf]
      %v5609 = vld [vmem:[#allocation2 + $0xb0] sm:$0xf]
      %v5610 = vld [vmem:[#allocation2 + $0xb4] sm:$0x7]
      %v5611 = vld [vmem:[#allocation2 + $0x14] sm:$0xe]
      %v5612 = vld [vmem:[#allocation2 + $0xb4] sm:$0xf]
      %v5655 = vunpack.c.l.b16 %v5559
      %v5656 = vunpack.c.l.b16 %v5560
      %v5657 = vunpack.c.l.b16 %v5561
      %v5658 = vunpack.c.l.b16 %v5562
      %v5659 = vunpack.c.l.b16 %v5563
      %v5660 = vunpack.c.l.b16 %v5564
      %v5661 = vunpack.c.l.b16 %v5565
      %v5662 = vunpack.c.l.b16 %v5566
      %v5663 = vunpack.c.l.b16 %v5567
      %v5664 = vunpack.c.l.b16 %v5568
      %v5665 = vunpack.c.l.b16 %v5569
      %v5666 = vunpack.c.l.b16 %v5570
      %v5667 = vunpack.c.l.b16 %v5571
      %v5668 = vunpack.c.l.b16 %v5572
      %v5669 = vunpack.c.l.b16 %v5573
      %v5670 = vunpack.c.l.b16 %v5574
      %v5671 = vunpack.c.l.b16 %v5575
      %v5672 = vunpack.c.l.b16 %v5576
      %v5673 = vunpack.c.l.b16 %v5577
      %v5674 = vunpack.c.l.b16 %v5578
      %v5675 = vunpack.c.l.b16 %v5579
      %v5676 = vunpack.c.l.b16 %v5580
      %v5677 = vunpack.c.l.b16 %v5581
      %v5678 = vunpack.c.l.b16 %v5582
      %v5679 = vunpack.c.l.b16 %v5583
      %v5680 = vunpack.c.l.b16 %v5584
      %v5681 = vunpack.c.l.b16 %v5585
      %v5682 = vunpack.c.l.b16 %v5586
      %v5683 = vunpack.c.l.b16 %v5587
      %v5684 = vunpack.c.l.b16 %v5588
      %v5685 = vunpack.c.l.b16 %v5589
      %v5686 = vunpack.c.l.b16 %v5590
      %v5687 = vunpack.c.l.b16 %v5591
      %v5688 = vunpack.c.l.b16 %v5592
      %v5689 = vunpack.c.l.b16 %v5593
      %v5690 = vunpack.c.l.b16 %v5594
      %v5691 = vunpack.c.l.b16 %v5595
      %v5692 = vunpack.c.l.b16 %v5596
      %v5693 = vunpack.c.l.b16 %v5597
      %v5694 = vunpack.c.l.b16 %v5598
      %v5695 = vunpack.c.l.b16 %v5599
      %v5696 = vunpack.c.l.b16 %v5600
      %v5697 = vpack.c.b16 %v5656, %v5655
      %v5698 = vpack.c.b16 %v5658, %v5657
      %v5699 = vpack.c.b16 %v5660, %v5659
      %v5700 = vpack.c.b16 %v5662, %v5661
      %v5701 = vpack.c.b16 %v5664, %v5663
      %v5702 = vpack.c.b16 %v5666, %v5665
      %v5703 = vpack.c.b16 %v5668, %v5667
      %v5704 = vpack.c.b16 %v5670, %v5669
      %v5705 = vpack.c.b16 %v5672, %v5671
      %v5706 = vpack.c.b16 %v5674, %v5673
      %v5707 = vpack.c.b16 %v5676, %v5675
      %v5708 = vpack.c.b16 %v5678, %v5677
      %v5709 = vpack.c.b16 %v5680, %v5679
      %v5710 = vpack.c.b16 %v5682, %v5681
      %v5711 = vpack.c.b16 %v5684, %v5683
      %v5712 = vpack.c.b16 %v5686, %v5685
      %v5713 = vpack.c.b16 %v5688, %v5687
      %v5714 = vpack.c.b16 %v5690, %v5689
      %v5715 = vpack.c.b16 %v5692, %v5691
      %v5716 = vpack.c.b16 %v5694, %v5693
      %v5717 = vpack.c.b16 %v5696, %v5695
      %v5719 = vunpack.c.l.b16 %v5601
      %v5720 = vpack.c.b16 %v5656, %v5719
      %v5722 = vshrl.u32 %v5720, 16
      %v5724 = vshll.u32 %v5720, 16
      %v5726 = vrot.slane %v5724, 1
      %v5727 = vor.u32 %v5722, %v5726
      %v5729 = vshll.u32 %v5698, 16
      %v5731 = vrot.slane %v5729, 1
      %v5732 = vsel %vm647, %v5727, %v5731
      %v5733 = vshrl.u32 %v5698, 16
      %v5735 = vor.u32 %v5733, %v5731
      %v5737 = vshll.u32 %v5699, 16
      %v5739 = vrot.slane %v5737, 1
      %v5740 = vsel %vm647, %v5735, %v5739
      %v5741 = vshrl.u32 %v5699, 16
      %v5743 = vor.u32 %v5741, %v5739
      %v5745 = vshll.u32 %v5700, 16
      %v5747 = vrot.slane %v5745, 1
      %v5748 = vsel %vm647, %v5743, %v5747
      %v5749 = vshrl.u32 %v5700, 16
      %v5751 = vor.u32 %v5749, %v5747
      %v5753 = vshll.u32 %v5701, 16
      %v5755 = vrot.slane %v5753, 1
      %v5756 = vsel %vm647, %v5751, %v5755
      %v5757 = vshrl.u32 %v5701, 16
      %v5759 = vor.u32 %v5757, %v5755
      %v5761 = vshll.u32 %v5702, 16
      %v5763 = vrot.slane %v5761, 1
      %v5764 = vsel %vm647, %v5759, %v5763
      %v5765 = vshrl.u32 %v5702, 16
      %v5767 = vor.u32 %v5765, %v5763
      %v5769 = vshll.u32 %v5703, 16
      %v5771 = vrot.slane %v5769, 1
      %v5772 = vsel %vm647, %v5767, %v5771
      %v5773 = vshrl.u32 %v5703, 16
      %v5775 = vor.u32 %v5773, %v5771
      %v5777 = vshll.u32 %v5704, 16
      %v5779 = vrot.slane %v5777, 1
      %v5780 = vsel %vm647, %v5775, %v5779
      %v5781 = vshrl.u32 %v5704, 16
      %v5783 = vor.u32 %v5781, %v5779
      %v5785 = vshll.u32 %v5705, 16
      %v5787 = vrot.slane %v5785, 1
      %v5788 = vsel %vm647, %v5783, %v5787
      %v5789 = vshrl.u32 %v5705, 16
      %v5791 = vor.u32 %v5789, %v5787
      %v5793 = vshll.u32 %v5706, 16
      %v5795 = vrot.slane %v5793, 1
      %v5796 = vsel %vm647, %v5791, %v5795
      %v5797 = vshrl.u32 %v5706, 16
      %v5799 = vor.u32 %v5797, %v5795
      %v5801 = vshll.u32 %v5707, 16
      %v5803 = vrot.slane %v5801, 1
      %v5804 = vsel %vm647, %v5799, %v5803
      %v5805 = vshrl.u32 %v5707, 16
      %v5807 = vor.u32 %v5805, %v5803
      %v5809 = vshll.u32 %v5708, 16
      %v5811 = vrot.slane %v5809, 1
      %v5812 = vsel %vm647, %v5807, %v5811
      %v5813 = vshrl.u32 %v5708, 16
      %v5815 = vor.u32 %v5813, %v5811
      %v5817 = vshll.u32 %v5709, 16
      %v5819 = vrot.slane %v5817, 1
      %v5820 = vsel %vm647, %v5815, %v5819
      %v5821 = vshrl.u32 %v5709, 16
      %v5823 = vor.u32 %v5821, %v5819
      %v5825 = vshll.u32 %v5710, 16
      %v5827 = vrot.slane %v5825, 1
      %v5828 = vsel %vm647, %v5823, %v5827
      %v5829 = vshrl.u32 %v5710, 16
      %v5831 = vor.u32 %v5829, %v5827
      %v5833 = vshll.u32 %v5711, 16
      %v5835 = vrot.slane %v5833, 1
      %v5836 = vsel %vm647, %v5831, %v5835
      %v5837 = vshrl.u32 %v5711, 16
      %v5839 = vor.u32 %v5837, %v5835
      %v5841 = vshll.u32 %v5712, 16
      %v5843 = vrot.slane %v5841, 1
      %v5844 = vsel %vm647, %v5839, %v5843
      %v5845 = vshrl.u32 %v5712, 16
      %v5847 = vor.u32 %v5845, %v5843
      %v5849 = vshll.u32 %v5713, 16
      %v5851 = vrot.slane %v5849, 1
      %v5852 = vsel %vm647, %v5847, %v5851
      %v5853 = vshrl.u32 %v5713, 16
      %v5855 = vor.u32 %v5853, %v5851
      %v5857 = vshll.u32 %v5714, 16
      %v5859 = vrot.slane %v5857, 1
      %v5860 = vsel %vm647, %v5855, %v5859
      %v5861 = vshrl.u32 %v5714, 16
      %v5863 = vor.u32 %v5861, %v5859
      %v5865 = vshll.u32 %v5715, 16
      %v5867 = vrot.slane %v5865, 1
      %v5868 = vsel %vm647, %v5863, %v5867
      %v5869 = vshrl.u32 %v5715, 16
      %v5871 = vor.u32 %v5869, %v5867
      %v5873 = vshll.u32 %v5716, 16
      %v5875 = vrot.slane %v5873, 1
      %v5876 = vsel %vm647, %v5871, %v5875
      %v5877 = vshrl.u32 %v5716, 16
      %v5879 = vor.u32 %v5877, %v5875
      %v5881 = vshll.u32 %v5717, 16
      %v5883 = vrot.slane %v5881, 1
      %v5884 = vsel %vm647, %v5879, %v5883
      %v5885 = vshrl.u32 %v5717, 16
      %v5887 = vor.u32 %v5885, %v5883
      %v5889 = vunpack.c.l.b16 %v5602
      %v5890 = vpack.c.b16 %v5889, %v5695
      %v5891 = vrot.slane %v5720, 1
      %v5892 = vrot.slane %v5698, 1
      %v5893 = vsel %vm818, %v5891, %v5892
      %v5894 = vrot.slane %v5699, 1
      %v5895 = vsel %vm818, %v5892, %v5894
      %v5896 = vrot.slane %v5700, 1
      %v5897 = vsel %vm818, %v5894, %v5896
      %v5898 = vrot.slane %v5701, 1
      %v5899 = vsel %vm818, %v5896, %v5898
      %v5900 = vrot.slane %v5702, 1
      %v5901 = vsel %vm818, %v5898, %v5900
      %v5902 = vrot.slane %v5703, 1
      %v5903 = vsel %vm818, %v5900, %v5902
      %v5904 = vrot.slane %v5704, 1
      %v5905 = vsel %vm818, %v5902, %v5904
      %v5906 = vrot.slane %v5705, 1
      %v5907 = vsel %vm818, %v5904, %v5906
      %v5908 = vrot.slane %v5706, 1
      %v5909 = vsel %vm818, %v5906, %v5908
      %v5910 = vrot.slane %v5707, 1
      %v5911 = vsel %vm818, %v5908, %v5910
      %v5912 = vrot.slane %v5708, 1
      %v5913 = vsel %vm818, %v5910, %v5912
      %v5914 = vrot.slane %v5709, 1
      %v5915 = vsel %vm818, %v5912, %v5914
      %v5916 = vrot.slane %v5710, 1
      %v5917 = vsel %vm818, %v5914, %v5916
      %v5918 = vrot.slane %v5711, 1
      %v5919 = vsel %vm818, %v5916, %v5918
      %v5920 = vrot.slane %v5712, 1
      %v5921 = vsel %vm818, %v5918, %v5920
      %v5922 = vrot.slane %v5713, 1
      %v5923 = vsel %vm818, %v5920, %v5922
      %v5924 = vrot.slane %v5714, 1
      %v5925 = vsel %vm818, %v5922, %v5924
      %v5926 = vrot.slane %v5715, 1
      %v5927 = vsel %vm818, %v5924, %v5926
      %v5928 = vrot.slane %v5716, 1
      %v5929 = vsel %vm818, %v5926, %v5928
      %v5930 = vrot.slane %v5890, 1
      %v5931 = vsel %vm818, %v5928, %v5930
      %v5936 = vunpack.c.l.b16 %v5603
      %v5937 = vunpack.c.l.b16 %v5604
      %v5938 = vunpack.c.l.b16 %v5605
      %v5939 = vunpack.c.l.b16 %v5606
      %v5940 = vpack.c.b16 %v5658, %v5936
      %v5941 = vpack.c.b16 %v5937, %v5695
      %v5942 = vpack.c.b16 %v5939, %v5938
      %v5943 = vrot.slane %v5940, 1
      %v5944 = vsel %vm818, %v5943, %v5894
      %v5945 = vrot.slane %v5941, 1
      %v5946 = vsel %vm818, %v5928, %v5945
      %v5947 = vrot.slane %v5942, 1
      %v5948 = vsel %vm818, %v5945, %v5947
      %v5949 = vpack.c.b16 %v5659, %v5658
      %v5950 = vpack.c.b16 %v5661, %v5660
      %v5951 = vpack.c.b16 %v5663, %v5662
      %v5952 = vpack.c.b16 %v5665, %v5664
      %v5953 = vpack.c.b16 %v5667, %v5666
      %v5954 = vpack.c.b16 %v5669, %v5668
      %v5955 = vpack.c.b16 %v5671, %v5670
      %v5956 = vpack.c.b16 %v5673, %v5672
      %v5957 = vpack.c.b16 %v5675, %v5674
      %v5958 = vpack.c.b16 %v5677, %v5676
      %v5959 = vpack.c.b16 %v5679, %v5678
      %v5960 = vpack.c.b16 %v5681, %v5680
      %v5961 = vpack.c.b16 %v5683, %v5682
      %v5962 = vpack.c.b16 %v5685, %v5684
      %v5963 = vpack.c.b16 %v5687, %v5686
      %v5964 = vpack.c.b16 %v5689, %v5688
      %v5965 = vpack.c.b16 %v5691, %v5690
      %v5966 = vpack.c.b16 %v5693, %v5692
      %v5967 = vpack.c.b16 %v5695, %v5694
      %v5968 = vpack.c.b16 %v5938, %v5937
      %v5969 = vpack.c.b16 %v5939, %v5939
      %v5971 = vshrl.u32 %v5949, 16
      %v5973 = vrot.slane %v5971, 5
      %v5974 = vshll.u32 %v5949, 16
      %v5976 = vrot.slane %v5974, 6
      %v5977 = vor.u32 %v5973, %v5976
      %v5979 = vshrl.u32 %v5950, 16
      %v5981 = vrot.slane %v5979, 5
      %v5982 = vshll.u32 %v5950, 16
      %v5984 = vrot.slane %v5982, 6
      %v5985 = vor.u32 %v5981, %v5984
      %v5986 = vsel %vm898, %v5977, %v5985
      %v5988 = vshrl.u32 %v5951, 16
      %v5990 = vrot.slane %v5988, 5
      %v5991 = vshll.u32 %v5951, 16
      %v5993 = vrot.slane %v5991, 6
      %v5994 = vor.u32 %v5990, %v5993
      %v5995 = vsel %vm898, %v5985, %v5994
      %v5997 = vshrl.u32 %v5952, 16
      %v5999 = vrot.slane %v5997, 5
      %v6000 = vshll.u32 %v5952, 16
      %v6002 = vrot.slane %v6000, 6
      %v6003 = vor.u32 %v5999, %v6002
      %v6004 = vsel %vm898, %v5994, %v6003
      %v6006 = vshrl.u32 %v5953, 16
      %v6008 = vrot.slane %v6006, 5
      %v6009 = vshll.u32 %v5953, 16
      %v6011 = vrot.slane %v6009, 6
      %v6012 = vor.u32 %v6008, %v6011
      %v6013 = vsel %vm898, %v6003, %v6012
      %v6015 = vshrl.u32 %v5954, 16
      %v6017 = vrot.slane %v6015, 5
      %v6018 = vshll.u32 %v5954, 16
      %v6020 = vrot.slane %v6018, 6
      %v6021 = vor.u32 %v6017, %v6020
      %v6022 = vsel %vm898, %v6012, %v6021
      %v6024 = vshrl.u32 %v5955, 16
      %v6026 = vrot.slane %v6024, 5
      %v6027 = vshll.u32 %v5955, 16
      %v6029 = vrot.slane %v6027, 6
      %v6030 = vor.u32 %v6026, %v6029
      %v6031 = vsel %vm898, %v6021, %v6030
      %v6033 = vshrl.u32 %v5956, 16
      %v6035 = vrot.slane %v6033, 5
      %v6036 = vshll.u32 %v5956, 16
      %v6038 = vrot.slane %v6036, 6
      %v6039 = vor.u32 %v6035, %v6038
      %v6040 = vsel %vm898, %v6030, %v6039
      %v6042 = vshrl.u32 %v5957, 16
      %v6044 = vrot.slane %v6042, 5
      %v6045 = vshll.u32 %v5957, 16
      %v6047 = vrot.slane %v6045, 6
      %v6048 = vor.u32 %v6044, %v6047
      %v6049 = vsel %vm898, %v6039, %v6048
      %v6051 = vshrl.u32 %v5958, 16
      %v6053 = vrot.slane %v6051, 5
      %v6054 = vshll.u32 %v5958, 16
      %v6056 = vrot.slane %v6054, 6
      %v6057 = vor.u32 %v6053, %v6056
      %v6058 = vsel %vm898, %v6048, %v6057
      %v6060 = vshrl.u32 %v5959, 16
      %v6062 = vrot.slane %v6060, 5
      %v6063 = vshll.u32 %v5959, 16
      %v6065 = vrot.slane %v6063, 6
      %v6066 = vor.u32 %v6062, %v6065
      %v6067 = vsel %vm898, %v6057, %v6066
      %v6069 = vshrl.u32 %v5960, 16
      %v6071 = vrot.slane %v6069, 5
      %v6072 = vshll.u32 %v5960, 16
      %v6074 = vrot.slane %v6072, 6
      %v6075 = vor.u32 %v6071, %v6074
      %v6076 = vsel %vm898, %v6066, %v6075
      %v6078 = vshrl.u32 %v5961, 16
      %v6080 = vrot.slane %v6078, 5
      %v6081 = vshll.u32 %v5961, 16
      %v6083 = vrot.slane %v6081, 6
      %v6084 = vor.u32 %v6080, %v6083
      %v6085 = vsel %vm898, %v6075, %v6084
      %v6087 = vshrl.u32 %v5962, 16
      %v6089 = vrot.slane %v6087, 5
      %v6090 = vshll.u32 %v5962, 16
      %v6092 = vrot.slane %v6090, 6
      %v6093 = vor.u32 %v6089, %v6092
      %v6094 = vsel %vm898, %v6084, %v6093
      %v6096 = vshrl.u32 %v5963, 16
      %v6098 = vrot.slane %v6096, 5
      %v6099 = vshll.u32 %v5963, 16
      %v6101 = vrot.slane %v6099, 6
      %v6102 = vor.u32 %v6098, %v6101
      %v6103 = vsel %vm898, %v6093, %v6102
      %v6105 = vshrl.u32 %v5964, 16
      %v6107 = vrot.slane %v6105, 5
      %v6108 = vshll.u32 %v5964, 16
      %v6110 = vrot.slane %v6108, 6
      %v6111 = vor.u32 %v6107, %v6110
      %v6112 = vsel %vm898, %v6102, %v6111
      %v6114 = vshrl.u32 %v5965, 16
      %v6116 = vrot.slane %v6114, 5
      %v6117 = vshll.u32 %v5965, 16
      %v6119 = vrot.slane %v6117, 6
      %v6120 = vor.u32 %v6116, %v6119
      %v6121 = vsel %vm898, %v6111, %v6120
      %v6123 = vshrl.u32 %v5966, 16
      %v6125 = vrot.slane %v6123, 5
      %v6126 = vshll.u32 %v5966, 16
      %v6128 = vrot.slane %v6126, 6
      %v6129 = vor.u32 %v6125, %v6128
      %v6130 = vsel %vm898, %v6120, %v6129
      %v6132 = vshrl.u32 %v5967, 16
      %v6134 = vrot.slane %v6132, 5
      %v6135 = vshll.u32 %v5967, 16
      %v6137 = vrot.slane %v6135, 6
      %v6138 = vor.u32 %v6134, %v6137
      %v6139 = vsel %vm898, %v6129, %v6138
      %v6141 = vshrl.u32 %v5968, 16
      %v6143 = vrot.slane %v6141, 5
      %v6144 = vshll.u32 %v5968, 16
      %v6146 = vrot.slane %v6144, 6
      %v6147 = vor.u32 %v6143, %v6146
      %v6148 = vsel %vm898, %v6138, %v6147
      %v6150 = vshrl.u32 %v5969, 16
      %v6152 = vrot.slane %v6150, 5
      %v6153 = vshll.u32 %v5969, 16
      %v6155 = vrot.slane %v6153, 6
      %v6156 = vor.u32 %v6152, %v6155
      %v6157 = vsel %vm898, %v6147, %v6156
      %v6159 = vunpack.c.l.b16 %v5607
      %v6160 = vpack.c.b16 %v6159, %v6159
      %v6161 = vrot.slane %v5949, 6
      %v6162 = vrot.slane %v5950, 6
      %v6163 = vsel %vm1090, %v6161, %v6162
      %v6164 = vrot.slane %v5951, 6
      %v6165 = vsel %vm1090, %v6162, %v6164
      %v6166 = vrot.slane %v5952, 6
      %v6167 = vsel %vm1090, %v6164, %v6166
      %v6168 = vrot.slane %v5953, 6
      %v6169 = vsel %vm1090, %v6166, %v6168
      %v6170 = vrot.slane %v5954, 6
      %v6171 = vsel %vm1090, %v6168, %v6170
      %v6172 = vrot.slane %v5955, 6
      %v6173 = vsel %vm1090, %v6170, %v6172
      %v6174 = vrot.slane %v5956, 6
      %v6175 = vsel %vm1090, %v6172, %v6174
      %v6176 = vrot.slane %v5957, 6
      %v6177 = vsel %vm1090, %v6174, %v6176
      %v6178 = vrot.slane %v5958, 6
      %v6179 = vsel %vm1090, %v6176, %v6178
      %v6180 = vrot.slane %v5959, 6
      %v6181 = vsel %vm1090, %v6178, %v6180
      %v6182 = vrot.slane %v5960, 6
      %v6183 = vsel %vm1090, %v6180, %v6182
      %v6184 = vrot.slane %v5961, 6
      %v6185 = vsel %vm1090, %v6182, %v6184
      %v6186 = vrot.slane %v5962, 6
      %v6187 = vsel %vm1090, %v6184, %v6186
      %v6188 = vrot.slane %v5963, 6
      %v6189 = vsel %vm1090, %v6186, %v6188
      %v6190 = vrot.slane %v5964, 6
      %v6191 = vsel %vm1090, %v6188, %v6190
      %v6192 = vrot.slane %v5965, 6
      %v6193 = vsel %vm1090, %v6190, %v6192
      %v6194 = vrot.slane %v5966, 6
      %v6195 = vsel %vm1090, %v6192, %v6194
      %v6196 = vrot.slane %v5967, 6
      %v6197 = vsel %vm1090, %v6194, %v6196
      %v6198 = vrot.slane %v5968, 6
      %v6199 = vsel %vm1090, %v6196, %v6198
      %v6200 = vrot.slane %v6160, 6
      %v6201 = vsel %vm1090, %v6198, %v6200
      %v6205 = vunpack.c.l.b16 %v5608
      %v6206 = vunpack.c.l.b16 %v5609
      %v6207 = vunpack.c.l.b16 %v5610
      %v6208 = vpack.c.b16 %v6206, %v6205
      %v6209 = vpack.c.b16 %v6207, %v6207
      %v6210 = vrot.slane %v6208, 6
      %v6211 = vsel %vm1090, %v6198, %v6210
      %v6212 = vrot.slane %v6209, 6
      %v6213 = vsel %vm1090, %v6210, %v6212
      %v6215 = vunpack.c.l.b16 %v5611
      %v6216 = vpack.c.b16 %v5661, %v6215
      %v6218 = vshrl.u32 %v6216, 16
      %v6220 = vrot.slane %v6218, 6
      %v6221 = vshll.u32 %v6216, 16
      %v6223 = vrot.slane %v6221, 7
      %v6224 = vor.u32 %v6220, %v6223
      %v6225 = vrot.slane %v5988, 6
      %v6226 = vrot.slane %v5991, 7
      %v6227 = vor.u32 %v6225, %v6226
      %v6228 = vsel %vm1147, %v6224, %v6227
      %v6229 = vrot.slane %v5997, 6
      %v6230 = vrot.slane %v6000, 7
      %v6231 = vor.u32 %v6229, %v6230
      %v6232 = vsel %vm1147, %v6227, %v6231
      %v6233 = vrot.slane %v6006, 6
      %v6234 = vrot.slane %v6009, 7
      %v6235 = vor.u32 %v6233, %v6234
      %v6236 = vsel %vm1147, %v6231, %v6235
      %v6237 = vrot.slane %v6015, 6
      %v6238 = vrot.slane %v6018, 7
      %v6239 = vor.u32 %v6237, %v6238
      %v6240 = vsel %vm1147, %v6235, %v6239
      %v6241 = vrot.slane %v6024, 6
      %v6242 = vrot.slane %v6027, 7
      %v6243 = vor.u32 %v6241, %v6242
      %v6244 = vsel %vm1147, %v6239, %v6243
      %v6245 = vrot.slane %v6033, 6
      %v6246 = vrot.slane %v6036, 7
      %v6247 = vor.u32 %v6245, %v6246
      %v6248 = vsel %vm1147, %v6243, %v6247
      %v6249 = vrot.slane %v6042, 6
      %v6250 = vrot.slane %v6045, 7
      %v6251 = vor.u32 %v6249, %v6250
      %v6252 = vsel %vm1147, %v6247, %v6251
      %v6253 = vrot.slane %v6051, 6
      %v6254 = vrot.slane %v6054, 7
      %v6255 = vor.u32 %v6253, %v6254
      %v6256 = vsel %vm1147, %v6251, %v6255
      %v6257 = vrot.slane %v6060, 6
      %v6258 = vrot.slane %v6063, 7
      %v6259 = vor.u32 %v6257, %v6258
      %v6260 = vsel %vm1147, %v6255, %v6259
      %v6261 = vrot.slane %v6069, 6
      %v6262 = vrot.slane %v6072, 7
      %v6263 = vor.u32 %v6261, %v6262
      %v6264 = vsel %vm1147, %v6259, %v6263
      %v6265 = vrot.slane %v6078, 6
      %v6266 = vrot.slane %v6081, 7
      %v6267 = vor.u32 %v6265, %v6266
      %v6268 = vsel %vm1147, %v6263, %v6267
      %v6269 = vrot.slane %v6087, 6
      %v6270 = vrot.slane %v6090, 7
      %v6271 = vor.u32 %v6269, %v6270
      %v6272 = vsel %vm1147, %v6267, %v6271
      %v6273 = vrot.slane %v6096, 6
      %v6274 = vrot.slane %v6099, 7
      %v6275 = vor.u32 %v6273, %v6274
      %v6276 = vsel %vm1147, %v6271, %v6275
      %v6277 = vrot.slane %v6105, 6
      %v6278 = vrot.slane %v6108, 7
      %v6279 = vor.u32 %v6277, %v6278
      %v6280 = vsel %vm1147, %v6275, %v6279
      %v6281 = vrot.slane %v6114, 6
      %v6282 = vrot.slane %v6117, 7
      %v6283 = vor.u32 %v6281, %v6282
      %v6284 = vsel %vm1147, %v6279, %v6283
      %v6285 = vrot.slane %v6123, 6
      %v6286 = vrot.slane %v6126, 7
      %v6287 = vor.u32 %v6285, %v6286
      %v6288 = vsel %vm1147, %v6283, %v6287
      %v6289 = vrot.slane %v6132, 6
      %v6290 = vrot.slane %v6135, 7
      %v6291 = vor.u32 %v6289, %v6290
      %v6292 = vsel %vm1147, %v6287, %v6291
      %v6293 = vrot.slane %v6141, 6
      %v6294 = vrot.slane %v6144, 7
      %v6295 = vor.u32 %v6293, %v6294
      %v6296 = vsel %vm1147, %v6291, %v6295
      %v6298 = vshrl.u32 %v6208, 16
      %v6300 = vrot.slane %v6298, 6
      %v6301 = vshll.u32 %v6208, 16
      %v6303 = vrot.slane %v6301, 7
      %v6304 = vor.u32 %v6300, %v6303
      %v6305 = vsel %vm1147, %v6295, %v6304
      %v6307 = vshrl.u32 %v6209, 16
      %v6309 = vrot.slane %v6307, 6
      %v6310 = vshll.u32 %v6209, 16
      %v6312 = vrot.slane %v6310, 7
      %v6313 = vor.u32 %v6309, %v6312
      %v6314 = vsel %vm1147, %v6304, %v6313
      %v6316 = vunpack.c.l.b16 %v5612
      %v6317 = vpack.c.b16 %v6316, %v6316
      %v6318 = vrot.slane %v6216, 7
      %v6319 = vrot.slane %v5951, 7
      %v6320 = vsel %vm1249, %v6318, %v6319
      %v6321 = vrot.slane %v5952, 7
      %v6322 = vsel %vm1249, %v6319, %v6321
      %v6323 = vrot.slane %v5953, 7
      %v6324 = vsel %vm1249, %v6321, %v6323
      %v6325 = vrot.slane %v5954, 7
      %v6326 = vsel %vm1249, %v6323, %v6325
      %v6327 = vrot.slane %v5955, 7
      %v6328 = vsel %vm1249, %v6325, %v6327
      %v6329 = vrot.slane %v5956, 7
      %v6330 = vsel %vm1249, %v6327, %v6329
      %v6331 = vrot.slane %v5957, 7
      %v6332 = vsel %vm1249, %v6329, %v6331
      %v6333 = vrot.slane %v5958, 7
      %v6334 = vsel %vm1249, %v6331, %v6333
      %v6335 = vrot.slane %v5959, 7
      %v6336 = vsel %vm1249, %v6333, %v6335
      %v6337 = vrot.slane %v5960, 7
      %v6338 = vsel %vm1249, %v6335, %v6337
      %v6339 = vrot.slane %v5961, 7
      %v6340 = vsel %vm1249, %v6337, %v6339
      %v6341 = vrot.slane %v5962, 7
      %v6342 = vsel %vm1249, %v6339, %v6341
      %v6343 = vrot.slane %v5963, 7
      %v6344 = vsel %vm1249, %v6341, %v6343
      %v6345 = vrot.slane %v5964, 7
      %v6346 = vsel %vm1249, %v6343, %v6345
      %v6347 = vrot.slane %v5965, 7
      %v6348 = vsel %vm1249, %v6345, %v6347
      %v6349 = vrot.slane %v5966, 7
      %v6350 = vsel %vm1249, %v6347, %v6349
      %v6351 = vrot.slane %v5967, 7
      %v6352 = vsel %vm1249, %v6349, %v6351
      %v6353 = vrot.slane %v5968, 7
      %v6354 = vsel %vm1249, %v6351, %v6353
      %v6355 = vrot.slane %v6208, 7
      %v6356 = vsel %vm1249, %v6353, %v6355
      %v6357 = vrot.slane %v6317, 7
      %v6358 = vsel %vm1249, %v6355, %v6357
      %v6359 = vld [vmem:[%s421] sm:$0xf]
      %v6360 = vld [vmem:[%s421 + $0x4] sm:$0xf]
      %v6361 = vld [vmem:[%s421 + $0x8] sm:$0xf]
      %v6362 = vld [vmem:[%s421 + $0xc] sm:$0xf]
      %v6363 = vld [vmem:[%s421 + $0x10] sm:$0xf]
      %v6364 = vld [vmem:[%s421 + $0x14] sm:$0xf]
      %v6365 = vld [vmem:[%s421 + $0x18] sm:$0xf]
      %v6366 = vld [vmem:[%s421 + $0x1c] sm:$0xf]
      %v6367 = vld [vmem:[%s421 + $0x20] sm:$0xf]
      %v6368 = vld [vmem:[%s421 + $0x24] sm:$0xf]
      %v6369 = vld [vmem:[%s421 + $0x28] sm:$0xf]
      %v6370 = vld [vmem:[%s421 + $0x2c] sm:$0xf]
      %v6371 = vld [vmem:[%s421 + $0x30] sm:$0xf]
      %v6372 = vld [vmem:[%s421 + $0x34] sm:$0xf]
      %v6373 = vld [vmem:[%s421 + $0x38] sm:$0xf]
      %v6374 = vld [vmem:[%s421 + $0x3c] sm:$0xf]
      %v6375 = vld [vmem:[%s421 + $0x40] sm:$0xf]
      %v6376 = vld [vmem:[%s421 + $0x44] sm:$0xf]
      %v6377 = vld [vmem:[%s421 + $0x48] sm:$0xf]
      %v6378 = vld [vmem:[%s421 + $0x4c] sm:$0xf]
      %v6379 = vld [vmem:[%s421 + $0x50] sm:$0xf]
      %v6380 = vld [vmem:[%s421 + $0x54] sm:$0xf]
      %v6381 = vld [vmem:[%s421 + $0x58] sm:$0xf]
      %v6382 = vld [vmem:[%s421 + $0x5c] sm:$0xf]
      %v6383 = vld [vmem:[%s421 + $0x60] sm:$0xf]
      %v6384 = vld [vmem:[%s421 + $0x64] sm:$0xf]
      %v6385 = vld [vmem:[%s421 + $0x68] sm:$0xf]
      %v6386 = vld [vmem:[%s421 + $0x6c] sm:$0xf]
      %v6387 = vld [vmem:[%s421 + $0x70] sm:$0xf]
      %v6388 = vld [vmem:[%s421 + $0x74] sm:$0xf]
      %v6389 = vld [vmem:[%s421 + $0x78] sm:$0xf]
      %v6390 = vld [vmem:[%s421 + $0x7c] sm:$0xf]
      %v6391 = vld [vmem:[%s421 + $0x80] sm:$0xf]
      %v6392 = vld [vmem:[%s421 + $0x84] sm:$0xf]
      %v6393 = vld [vmem:[%s421 + $0x88] sm:$0xf]
      %v6394 = vld [vmem:[%s421 + $0x8c] sm:$0xf]
      %v6395 = vld [vmem:[%s421 + $0x90] sm:$0xf]
      %v6396 = vld [vmem:[%s421 + $0x94] sm:$0xf]
      %v6397 = vld [vmem:[%s421 + $0x98] sm:$0xf]
      %v6398 = vld [vmem:[%s421 + $0x9c] sm:$0xf]
      %v6399 = vld [vmem:[%s421 + $0xa0] sm:$0xf]
      %v6400 = vld [vmem:[%s421 + $0xa4] sm:$0xf]
      %v6401 = vld [vmem:[%s421 + $0xa8] sm:$0xf]
      %v6402 = vld [vmem:[%s421 + $0xac] sm:$0xf]
      %v6403 = vld [vmem:[%s421 + $0xb0] sm:$0xf]
      %v6404 = vld [vmem:[%s421 + $0xb4] sm:$0xf]
      %v6405 = vld [vmem:[%s421 + $0xb8] sm:$0xf]
      %v6406 = vld [vmem:[%s421 + $0xbc] sm:$0xf]
      %v6407 = vld [vmem:[%s421 + $0xc0] sm:$0xf]
      %v6408 = vld [vmem:[%s421 + $0xc4] sm:$0xf]
      %v6409 = vld [vmem:[%s421 + $0xc8] sm:$0xf]
      %v6410 = vld [vmem:[%s421 + $0xcc] sm:$0xf]
      %v6411 = vld [vmem:[%s421 + $0xd0] sm:$0xf]
      %v6412 = vld [vmem:[%s421 + $0xd4] sm:$0xf]
      %v6413 = vld [vmem:[%s421 + $0xd8] sm:$0xf]
      %v6414 = vld [vmem:[%s421 + $0xdc] sm:$0xf]
      %v6415 = vld [vmem:[%s421 + $0xe0] sm:$0xf]
      %v6416 = vld [vmem:[%s421 + $0xe4] sm:$0xf]
      %v6417 = vld [vmem:[%s421 + $0xe8] sm:$0xf]
      %v6418 = vld [vmem:[%s421 + $0xec] sm:$0xf]
      %v6419 = vld [vmem:[%s421 + $0xf0] sm:$0xf]
      %v6420 = vld [vmem:[%s421 + $0xf4] sm:$0xf]
      %v6421 = vld [vmem:[%s421 + $0xf8] sm:$0xf]
      %v6422 = vld [vmem:[%s421 + $0xfc] sm:$0xf]
      %v6423 = vld [vmem:[%s421 + $0x100] sm:$0xf]
      %v6424 = vld [vmem:[%s421 + $0x104] sm:$0xf]
      %v6425 = vld [vmem:[%s421 + $0x108] sm:$0xf]
      %v6426 = vld [vmem:[%s421 + $0x10c] sm:$0xf]
      %v6427 = vld [vmem:[%s421 + $0x110] sm:$0xf]
      %v6428 = vld [vmem:[%s421 + $0x114] sm:$0xf]
      %v6429 = vld [vmem:[%s421 + $0x118] sm:$0xf]
      %v6430 = vld [vmem:[%s421 + $0x11c] sm:$0xf]
      %v6431 = vld [vmem:[%s421 + $0x120] sm:$0xf]
      %v6432 = vld [vmem:[%s421 + $0x124] sm:$0xf]
      %v6433 = vld [vmem:[%s421 + $0x128] sm:$0xf]
      %v6434 = vld [vmem:[%s421 + $0x12c] sm:$0xf]
      %v6435 = vld [vmem:[%s421 + $0x130] sm:$0xf]
      %v6436 = vld [vmem:[%s421 + $0x134] sm:$0xf]
      %v6437 = vld [vmem:[%s421 + $0x138] sm:$0xf]
      %v6438 = vld [vmem:[%s421 + $0x13c] sm:$0xf]
      %v6439 = vld [vmem:[%s421 + $0x140] sm:$0xf]
      %v6440 = vld [vmem:[%s421 + $0x144] sm:$0xf]
      %v6441 = vld [vmem:[%s421 + $0x148] sm:$0xf]
      %v6442 = vld [vmem:[%s421 + $0x14c] sm:$0xf]
      %v6443 = vld [vmem:[%s421 + $0x150] sm:$0xf]
      %v6444 = vld [vmem:[%s421 + $0x154] sm:$0xf]
      %v6445 = vld [vmem:[%s421 + $0x158] sm:$0xf]
      %v6446 = vld [vmem:[%s421 + $0x15c] sm:$0xf]
      %v6447 = vld [vmem:[%s421 + $0x160] sm:$0xf]
      %v6448 = vld [vmem:[%s421 + $0x164] sm:$0xf]
      %v6449 = vld [vmem:[%s421 + $0x168] sm:$0xf]
      %v6450 = vld [vmem:[%s421 + $0x16c] sm:$0xf]
      %v6451 = vld [vmem:[%s421 + $0x170] sm:$0xf]
      %v6452 = vld [vmem:[%s421 + $0x174] sm:$0xf]
      %v6453 = vld [vmem:[%s421 + $0x178] sm:$0xf]
      %v6454 = vld [vmem:[%s421 + $0x17c] sm:$0xf]
      %v6455 = vld [vmem:[%s421 + $0x180] sm:$0xf]
      %v6456 = vld [vmem:[%s421 + $0x184] sm:$0xf]
      %v6457 = vld [vmem:[%s421 + $0x188] sm:$0xf]
      %v6458 = vld [vmem:[%s421 + $0x18c] sm:$0xf]
      %v6459 = vld [vmem:[%s421 + $0x190] sm:$0xf]
      %v6460 = vld [vmem:[%s421 + $0x194] sm:$0xf]
      %v6461 = vld [vmem:[%s421 + $0x198] sm:$0xf]
      %v6462 = vld [vmem:[%s421 + $0x19c] sm:$0xf]
      %v6463 = vld [vmem:[%s421 + $0x1a0] sm:$0xf]
      %v6464 = vld [vmem:[%s421 + $0x1a4] sm:$0xf]
      %v6465 = vld [vmem:[%s421 + $0x1a8] sm:$0xf]
      %v6466 = vld [vmem:[%s421 + $0x1ac] sm:$0xf]
      %v6467 = vld [vmem:[%s421 + $0x1b0] sm:$0xf]
      %v6468 = vld [vmem:[%s421 + $0x1b4] sm:$0xf]
      %v6469 = vld [vmem:[%s421 + $0x1b8] sm:$0xf]
      %v6470 = vld [vmem:[%s421 + $0x1bc] sm:$0xf]
      %v6471 = vld [vmem:[%s421 + $0x1c0] sm:$0xf]
      %v6472 = vld [vmem:[%s421 + $0x1c4] sm:$0xf]
      %v6473 = vld [vmem:[%s421 + $0x1c8] sm:$0xf]
      %v6474 = vld [vmem:[%s421 + $0x1cc] sm:$0xf]
      %v6475 = vld [vmem:[%s421 + $0x1d0] sm:$0xf]
      %v6476 = vld [vmem:[%s421 + $0x1d4] sm:$0xf]
      %v6477 = vld [vmem:[%s421 + $0x1d8] sm:$0xf]
      %v6478 = vld [vmem:[%s421 + $0x1dc] sm:$0xf]
      %v6479 = vld [vmem:[%s421 + $0x1e0] sm:$0xf]
      %v6480 = vld [vmem:[%s421 + $0x1e4] sm:$0xf]
      %v6481 = vld [vmem:[%s421 + $0x1e8] sm:$0xf]
      %v6482 = vld [vmem:[%s421 + $0x1ec] sm:$0xf]
      %v6483 = vld [vmem:[%s421 + $0x1f0] sm:$0xf]
      %v6484 = vld [vmem:[%s421 + $0x1f4] sm:$0xf]
      %v6485 = vld [vmem:[%s421 + $0x1f8] sm:$0xf]
      %v6486 = vld [vmem:[%s421 + $0x1fc] sm:$0xf]
      %v6487 = vld [vmem:[%s421 + $0x200] sm:$0xf]
      %v6488 = vld [vmem:[%s421 + $0x204] sm:$0xf]
      %v6489 = vld [vmem:[%s421 + $0x208] sm:$0xf]
      %v6490 = vld [vmem:[%s421 + $0x20c] sm:$0xf]
      %v6491 = vld [vmem:[%s421 + $0x210] sm:$0xf]
      %v6492 = vld [vmem:[%s421 + $0x214] sm:$0xf]
      %v6493 = vld [vmem:[%s421 + $0x218] sm:$0xf]
      %v6494 = vld [vmem:[%s421 + $0x21c] sm:$0xf]
      %v6495 = vld [vmem:[%s421 + $0x220] sm:$0xf]
      %v6496 = vld [vmem:[%s421 + $0x224] sm:$0xf]
      %v6497 = vld [vmem:[%s421 + $0x228] sm:$0xf]
      %v6498 = vld [vmem:[%s421 + $0x22c] sm:$0xf]
      %v6499 = vld [vmem:[%s421 + $0x230] sm:$0xf]
      %v6500 = vld [vmem:[%s421 + $0x234] sm:$0xf]
      %v6501 = vld [vmem:[%s421 + $0x238] sm:$0xf]
      %v6502 = vld [vmem:[%s421 + $0x23c] sm:$0xf]
      %v6504 = vshrl.u32 %v5697, 16
      %v6506 = vrot.slane %v6504, 2
      %v6507 = vshll.u32 %v5697, 16
      %v6509 = vrot.slane %v6507, 3
      %v6510 = vor.u32 %v6506, %v6509
      %v6511 = vrot.slane %v5733, 2
      %v6512 = vrot.slane %v5729, 3
      %v6513 = vor.u32 %v6511, %v6512
      %v6514 = vsel %vm1435, %v6510, %v6513
      %v6516 = vshrl.u32 %v5732, 16
      %v6518 = vrot.slane %v6516, 2
      %v6519 = vshll.u32 %v5732, 16
      %v6521 = vrot.slane %v6519, 3
      %v6522 = vor.u32 %v6518, %v6521
      %v6524 = vshrl.u32 %v5740, 16
      %v6526 = vrot.slane %v6524, 2
      %v6527 = vshll.u32 %v5740, 16
      %v6529 = vrot.slane %v6527, 3
      %v6530 = vor.u32 %v6526, %v6529
      %v6531 = vsel %vm1435, %v6522, %v6530
      %v6533 = vshrl.u32 %v5893, 16
      %v6535 = vrot.slane %v6533, 2
      %v6536 = vshll.u32 %v5893, 16
      %v6538 = vrot.slane %v6536, 3
      %v6539 = vor.u32 %v6535, %v6538
      %v6541 = vshrl.u32 %v5895, 16
      %v6543 = vrot.slane %v6541, 2
      %v6544 = vshll.u32 %v5895, 16
      %v6546 = vrot.slane %v6544, 3
      %v6547 = vor.u32 %v6543, %v6546
      %v6548 = vsel %vm1435, %v6539, %v6547
      %v6550 = vshrl.u32 %v5944, 16
      %v6552 = vrot.slane %v6550, 2
      %v6553 = vshll.u32 %v5944, 16
      %v6555 = vrot.slane %v6553, 3
      %v6556 = vor.u32 %v6552, %v6555
      %v6558 = vshrl.u32 %v5897, 16
      %v6560 = vrot.slane %v6558, 2
      %v6561 = vshll.u32 %v5897, 16
      %v6563 = vrot.slane %v6561, 3
      %v6564 = vor.u32 %v6560, %v6563
      %v6565 = vsel %vm1435, %v6556, %v6564
      %v6567 = vshrl.u32 %v5977, 16
      %v6569 = vrot.slane %v6567, 2
      %v6570 = vshll.u32 %v5977, 16
      %v6572 = vrot.slane %v6570, 3
      %v6573 = vor.u32 %v6569, %v6572
      %v6575 = vshrl.u32 %v5986, 16
      %v6577 = vrot.slane %v6575, 2
      %v6578 = vshll.u32 %v5986, 16
      %v6580 = vrot.slane %v6578, 3
      %v6581 = vor.u32 %v6577, %v6580
      %v6582 = vsel %vm1435, %v6573, %v6581
      %v6584 = vshrl.u32 %v6161, 16
      %v6586 = vrot.slane %v6584, 2
      %v6587 = vshll.u32 %v6161, 16
      %v6589 = vrot.slane %v6587, 3
      %v6590 = vor.u32 %v6586, %v6589
      %v6592 = vshrl.u32 %v6163, 16
      %v6594 = vrot.slane %v6592, 2
      %v6595 = vshll.u32 %v6163, 16
      %v6597 = vrot.slane %v6595, 3
      %v6598 = vor.u32 %v6594, %v6597
      %v6599 = vsel %vm1435, %v6590, %v6598
      %v6601 = vshrl.u32 %v6162, 16
      %v6603 = vrot.slane %v6601, 2
      %v6604 = vshll.u32 %v6162, 16
      %v6606 = vrot.slane %v6604, 3
      %v6607 = vor.u32 %v6603, %v6606
      %v6609 = vshrl.u32 %v6165, 16
      %v6611 = vrot.slane %v6609, 2
      %v6612 = vshll.u32 %v6165, 16
      %v6614 = vrot.slane %v6612, 3
      %v6615 = vor.u32 %v6611, %v6614
      %v6616 = vsel %vm1435, %v6607, %v6615
      %v6618 = vshrl.u32 %v6224, 16
      %v6620 = vrot.slane %v6618, 2
      %v6621 = vshll.u32 %v6224, 16
      %v6623 = vrot.slane %v6621, 3
      %v6624 = vor.u32 %v6620, %v6623
      %v6626 = vshrl.u32 %v6228, 16
      %v6628 = vrot.slane %v6626, 2
      %v6629 = vshll.u32 %v6228, 16
      %v6631 = vrot.slane %v6629, 3
      %v6632 = vor.u32 %v6628, %v6631
      %v6633 = vsel %vm1435, %v6624, %v6632
      %v6635 = vshrl.u32 %v6318, 16
      %v6637 = vrot.slane %v6635, 2
      %v6638 = vshll.u32 %v6318, 16
      %v6640 = vrot.slane %v6638, 3
      %v6641 = vor.u32 %v6637, %v6640
      %v6643 = vshrl.u32 %v6320, 16
      %v6645 = vrot.slane %v6643, 2
      %v6646 = vshll.u32 %v6320, 16
      %v6648 = vrot.slane %v6646, 3
      %v6649 = vor.u32 %v6645, %v6648
      %v6650 = vsel %vm1435, %v6641, %v6649
      %v6651 = vrot.slane %v5741, 2
      %v6652 = vrot.slane %v5737, 3
      %v6653 = vor.u32 %v6651, %v6652
      %v6654 = vsel %vm1435, %v6513, %v6653
      %v6656 = vshrl.u32 %v5748, 16
      %v6658 = vrot.slane %v6656, 2
      %v6659 = vshll.u32 %v5748, 16
      %v6661 = vrot.slane %v6659, 3
      %v6662 = vor.u32 %v6658, %v6661
      %v6663 = vsel %vm1435, %v6530, %v6662
      %v6664 = vsel %vm1435, %v6547, %v6564
      %v6666 = vshrl.u32 %v5899, 16
      %v6668 = vrot.slane %v6666, 2
      %v6669 = vshll.u32 %v5899, 16
      %v6671 = vrot.slane %v6669, 3
      %v6672 = vor.u32 %v6668, %v6671
      %v6673 = vsel %vm1435, %v6564, %v6672
      %v6675 = vshrl.u32 %v5995, 16
      %v6677 = vrot.slane %v6675, 2
      %v6678 = vshll.u32 %v5995, 16
      %v6680 = vrot.slane %v6678, 3
      %v6681 = vor.u32 %v6677, %v6680
      %v6682 = vsel %vm1435, %v6581, %v6681
      %v6683 = vsel %vm1435, %v6598, %v6615
      %v6685 = vshrl.u32 %v6167, 16
      %v6687 = vrot.slane %v6685, 2
      %v6688 = vshll.u32 %v6167, 16
      %v6690 = vrot.slane %v6688, 3
      %v6691 = vor.u32 %v6687, %v6690
      %v6692 = vsel %vm1435, %v6615, %v6691
      %v6694 = vshrl.u32 %v6232, 16
      %v6696 = vrot.slane %v6694, 2
      %v6697 = vshll.u32 %v6232, 16
      %v6699 = vrot.slane %v6697, 3
      %v6700 = vor.u32 %v6696, %v6699
      %v6701 = vsel %vm1435, %v6632, %v6700
      %v6703 = vshrl.u32 %v6322, 16
      %v6705 = vrot.slane %v6703, 2
      %v6706 = vshll.u32 %v6322, 16
      %v6708 = vrot.slane %v6706, 3
      %v6709 = vor.u32 %v6705, %v6708
      %v6710 = vsel %vm1435, %v6649, %v6709
      %v6711 = vrot.slane %v5749, 2
      %v6712 = vrot.slane %v5745, 3
      %v6713 = vor.u32 %v6711, %v6712
      %v6714 = vsel %vm1435, %v6653, %v6713
      %v6716 = vshrl.u32 %v5756, 16
      %v6718 = vrot.slane %v6716, 2
      %v6719 = vshll.u32 %v5756, 16
      %v6721 = vrot.slane %v6719, 3
      %v6722 = vor.u32 %v6718, %v6721
      %v6723 = vsel %vm1435, %v6662, %v6722
      %v6725 = vshrl.u32 %v5901, 16
      %v6727 = vrot.slane %v6725, 2
      %v6728 = vshll.u32 %v5901, 16
      %v6730 = vrot.slane %v6728, 3
      %v6731 = vor.u32 %v6727, %v6730
      %v6732 = vsel %vm1435, %v6672, %v6731
      %v6734 = vshrl.u32 %v6004, 16
      %v6736 = vrot.slane %v6734, 2
      %v6737 = vshll.u32 %v6004, 16
      %v6739 = vrot.slane %v6737, 3
      %v6740 = vor.u32 %v6736, %v6739
      %v6741 = vsel %vm1435, %v6681, %v6740
      %v6743 = vshrl.u32 %v6169, 16
      %v6745 = vrot.slane %v6743, 2
      %v6746 = vshll.u32 %v6169, 16
      %v6748 = vrot.slane %v6746, 3
      %v6749 = vor.u32 %v6745, %v6748
      %v6750 = vsel %vm1435, %v6691, %v6749
      %v6752 = vshrl.u32 %v6236, 16
      %v6754 = vrot.slane %v6752, 2
      %v6755 = vshll.u32 %v6236, 16
      %v6757 = vrot.slane %v6755, 3
      %v6758 = vor.u32 %v6754, %v6757
      %v6759 = vsel %vm1435, %v6700, %v6758
      %v6761 = vshrl.u32 %v6324, 16
      %v6763 = vrot.slane %v6761, 2
      %v6764 = vshll.u32 %v6324, 16
      %v6766 = vrot.slane %v6764, 3
      %v6767 = vor.u32 %v6763, %v6766
      %v6768 = vsel %vm1435, %v6709, %v6767
      %v6769 = vrot.slane %v5757, 2
      %v6770 = vrot.slane %v5753, 3
      %v6771 = vor.u32 %v6769, %v6770
      %v6772 = vsel %vm1435, %v6713, %v6771
      %v6774 = vshrl.u32 %v5764, 16
      %v6776 = vrot.slane %v6774, 2
      %v6777 = vshll.u32 %v5764, 16
      %v6779 = vrot.slane %v6777, 3
      %v6780 = vor.u32 %v6776, %v6779
      %v6781 = vsel %vm1435, %v6722, %v6780
      %v6783 = vshrl.u32 %v5903, 16
      %v6785 = vrot.slane %v6783, 2
      %v6786 = vshll.u32 %v5903, 16
      %v6788 = vrot.slane %v6786, 3
      %v6789 = vor.u32 %v6785, %v6788
      %v6790 = vsel %vm1435, %v6731, %v6789
      %v6792 = vshrl.u32 %v6013, 16
      %v6794 = vrot.slane %v6792, 2
      %v6795 = vshll.u32 %v6013, 16
      %v6797 = vrot.slane %v6795, 3
      %v6798 = vor.u32 %v6794, %v6797
      %v6799 = vsel %vm1435, %v6740, %v6798
      %v6801 = vshrl.u32 %v6171, 16
      %v6803 = vrot.slane %v6801, 2
      %v6804 = vshll.u32 %v6171, 16
      %v6806 = vrot.slane %v6804, 3
      %v6807 = vor.u32 %v6803, %v6806
      %v6808 = vsel %vm1435, %v6749, %v6807
      %v6810 = vshrl.u32 %v6240, 16
      %v6812 = vrot.slane %v6810, 2
      %v6813 = vshll.u32 %v6240, 16
      %v6815 = vrot.slane %v6813, 3
      %v6816 = vor.u32 %v6812, %v6815
      %v6817 = vsel %vm1435, %v6758, %v6816
      %v6819 = vshrl.u32 %v6326, 16
      %v6821 = vrot.slane %v6819, 2
      %v6822 = vshll.u32 %v6326, 16
      %v6824 = vrot.slane %v6822, 3
      %v6825 = vor.u32 %v6821, %v6824
      %v6826 = vsel %vm1435, %v6767, %v6825
      %v6827 = vrot.slane %v5765, 2
      %v6828 = vrot.slane %v5761, 3
      %v6829 = vor.u32 %v6827, %v6828
      %v6830 = vsel %vm1435, %v6771, %v6829
      %v6832 = vshrl.u32 %v5772, 16
      %v6834 = vrot.slane %v6832, 2
      %v6835 = vshll.u32 %v5772, 16
      %v6837 = vrot.slane %v6835, 3
      %v6838 = vor.u32 %v6834, %v6837
      %v6839 = vsel %vm1435, %v6780, %v6838
      %v6841 = vshrl.u32 %v5905, 16
      %v6843 = vrot.slane %v6841, 2
      %v6844 = vshll.u32 %v5905, 16
      %v6846 = vrot.slane %v6844, 3
      %v6847 = vor.u32 %v6843, %v6846
      %v6848 = vsel %vm1435, %v6789, %v6847
      %v6850 = vshrl.u32 %v6022, 16
      %v6852 = vrot.slane %v6850, 2
      %v6853 = vshll.u32 %v6022, 16
      %v6855 = vrot.slane %v6853, 3
      %v6856 = vor.u32 %v6852, %v6855
      %v6857 = vsel %vm1435, %v6798, %v6856
      %v6859 = vshrl.u32 %v6173, 16
      %v6861 = vrot.slane %v6859, 2
      %v6862 = vshll.u32 %v6173, 16
      %v6864 = vrot.slane %v6862, 3
      %v6865 = vor.u32 %v6861, %v6864
      %v6866 = vsel %vm1435, %v6807, %v6865
      %v6868 = vshrl.u32 %v6244, 16
      %v6870 = vrot.slane %v6868, 2
      %v6871 = vshll.u32 %v6244, 16
      %v6873 = vrot.slane %v6871, 3
      %v6874 = vor.u32 %v6870, %v6873
      %v6875 = vsel %vm1435, %v6816, %v6874
      %v6877 = vshrl.u32 %v6328, 16
      %v6879 = vrot.slane %v6877, 2
      %v6880 = vshll.u32 %v6328, 16
      %v6882 = vrot.slane %v6880, 3
      %v6883 = vor.u32 %v6879, %v6882
      %v6884 = vsel %vm1435, %v6825, %v6883
      %v6885 = vrot.slane %v5773, 2
      %v6886 = vrot.slane %v5769, 3
      %v6887 = vor.u32 %v6885, %v6886
      %v6888 = vsel %vm1435, %v6829, %v6887
      %v6890 = vshrl.u32 %v5780, 16
      %v6892 = vrot.slane %v6890, 2
      %v6893 = vshll.u32 %v5780, 16
      %v6895 = vrot.slane %v6893, 3
      %v6896 = vor.u32 %v6892, %v6895
      %v6897 = vsel %vm1435, %v6838, %v6896
      %v6899 = vshrl.u32 %v5907, 16
      %v6901 = vrot.slane %v6899, 2
      %v6902 = vshll.u32 %v5907, 16
      %v6904 = vrot.slane %v6902, 3
      %v6905 = vor.u32 %v6901, %v6904
      %v6906 = vsel %vm1435, %v6847, %v6905
      %v6908 = vshrl.u32 %v6031, 16
      %v6910 = vrot.slane %v6908, 2
      %v6911 = vshll.u32 %v6031, 16
      %v6913 = vrot.slane %v6911, 3
      %v6914 = vor.u32 %v6910, %v6913
      %v6915 = vsel %vm1435, %v6856, %v6914
      %v6917 = vshrl.u32 %v6175, 16
      %v6919 = vrot.slane %v6917, 2
      %v6920 = vshll.u32 %v6175, 16
      %v6922 = vrot.slane %v6920, 3
      %v6923 = vor.u32 %v6919, %v6922
      %v6924 = vsel %vm1435, %v6865, %v6923
      %v6926 = vshrl.u32 %v6248, 16
      %v6928 = vrot.slane %v6926, 2
      %v6929 = vshll.u32 %v6248, 16
      %v6931 = vrot.slane %v6929, 3
      %v6932 = vor.u32 %v6928, %v6931
      %v6933 = vsel %vm1435, %v6874, %v6932
      %v6935 = vshrl.u32 %v6330, 16
      %v6937 = vrot.slane %v6935, 2
      %v6938 = vshll.u32 %v6330, 16
      %v6940 = vrot.slane %v6938, 3
      %v6941 = vor.u32 %v6937, %v6940
      %v6942 = vsel %vm1435, %v6883, %v6941
      %v6943 = vrot.slane %v5781, 2
      %v6944 = vrot.slane %v5777, 3
      %v6945 = vor.u32 %v6943, %v6944
      %v6946 = vsel %vm1435, %v6887, %v6945
      %v6948 = vshrl.u32 %v5788, 16
      %v6950 = vrot.slane %v6948, 2
      %v6951 = vshll.u32 %v5788, 16
      %v6953 = vrot.slane %v6951, 3
      %v6954 = vor.u32 %v6950, %v6953
      %v6955 = vsel %vm1435, %v6896, %v6954
      %v6957 = vshrl.u32 %v5909, 16
      %v6959 = vrot.slane %v6957, 2
      %v6960 = vshll.u32 %v5909, 16
      %v6962 = vrot.slane %v6960, 3
      %v6963 = vor.u32 %v6959, %v6962
      %v6964 = vsel %vm1435, %v6905, %v6963
      %v6966 = vshrl.u32 %v6040, 16
      %v6968 = vrot.slane %v6966, 2
      %v6969 = vshll.u32 %v6040, 16
      %v6971 = vrot.slane %v6969, 3
      %v6972 = vor.u32 %v6968, %v6971
      %v6973 = vsel %vm1435, %v6914, %v6972
      %v6975 = vshrl.u32 %v6177, 16
      %v6977 = vrot.slane %v6975, 2
      %v6978 = vshll.u32 %v6177, 16
      %v6980 = vrot.slane %v6978, 3
      %v6981 = vor.u32 %v6977, %v6980
      %v6982 = vsel %vm1435, %v6923, %v6981
      %v6984 = vshrl.u32 %v6252, 16
      %v6986 = vrot.slane %v6984, 2
      %v6987 = vshll.u32 %v6252, 16
      %v6989 = vrot.slane %v6987, 3
      %v6990 = vor.u32 %v6986, %v6989
      %v6991 = vsel %vm1435, %v6932, %v6990
      %v6993 = vshrl.u32 %v6332, 16
      %v6995 = vrot.slane %v6993, 2
      %v6996 = vshll.u32 %v6332, 16
      %v6998 = vrot.slane %v6996, 3
      %v6999 = vor.u32 %v6995, %v6998
      %v7000 = vsel %vm1435, %v6941, %v6999
      %v7001 = vrot.slane %v5789, 2
      %v7002 = vrot.slane %v5785, 3
      %v7003 = vor.u32 %v7001, %v7002
      %v7004 = vsel %vm1435, %v6945, %v7003
      %v7006 = vshrl.u32 %v5796, 16
      %v7008 = vrot.slane %v7006, 2
      %v7009 = vshll.u32 %v5796, 16
      %v7011 = vrot.slane %v7009, 3
      %v7012 = vor.u32 %v7008, %v7011
      %v7013 = vsel %vm1435, %v6954, %v7012
      %v7015 = vshrl.u32 %v5911, 16
      %v7017 = vrot.slane %v7015, 2
      %v7018 = vshll.u32 %v5911, 16
      %v7020 = vrot.slane %v7018, 3
      %v7021 = vor.u32 %v7017, %v7020
      %v7022 = vsel %vm1435, %v6963, %v7021
      %v7024 = vshrl.u32 %v6049, 16
      %v7026 = vrot.slane %v7024, 2
      %v7027 = vshll.u32 %v6049, 16
      %v7029 = vrot.slane %v7027, 3
      %v7030 = vor.u32 %v7026, %v7029
      %v7031 = vsel %vm1435, %v6972, %v7030
      %v7033 = vshrl.u32 %v6179, 16
      %v7035 = vrot.slane %v7033, 2
      %v7036 = vshll.u32 %v6179, 16
      %v7038 = vrot.slane %v7036, 3
      %v7039 = vor.u32 %v7035, %v7038
      %v7040 = vsel %vm1435, %v6981, %v7039
      %v7042 = vshrl.u32 %v6256, 16
      %v7044 = vrot.slane %v7042, 2
      %v7045 = vshll.u32 %v6256, 16
      %v7047 = vrot.slane %v7045, 3
      %v7048 = vor.u32 %v7044, %v7047
      %v7049 = vsel %vm1435, %v6990, %v7048
      %v7051 = vshrl.u32 %v6334, 16
      %v7053 = vrot.slane %v7051, 2
      %v7054 = vshll.u32 %v6334, 16
      %v7056 = vrot.slane %v7054, 3
      %v7057 = vor.u32 %v7053, %v7056
      %v7058 = vsel %vm1435, %v6999, %v7057
      %v7059 = vrot.slane %v5797, 2
      %v7060 = vrot.slane %v5793, 3
      %v7061 = vor.u32 %v7059, %v7060
      %v7062 = vsel %vm1435, %v7003, %v7061
      %v7064 = vshrl.u32 %v5804, 16
      %v7066 = vrot.slane %v7064, 2
      %v7067 = vshll.u32 %v5804, 16
      %v7069 = vrot.slane %v7067, 3
      %v7070 = vor.u32 %v7066, %v7069
      %v7071 = vsel %vm1435, %v7012, %v7070
      %v7073 = vshrl.u32 %v5913, 16
      %v7075 = vrot.slane %v7073, 2
      %v7076 = vshll.u32 %v5913, 16
      %v7078 = vrot.slane %v7076, 3
      %v7079 = vor.u32 %v7075, %v7078
      %v7080 = vsel %vm1435, %v7021, %v7079
      %v7082 = vshrl.u32 %v6058, 16
      %v7084 = vrot.slane %v7082, 2
      %v7085 = vshll.u32 %v6058, 16
      %v7087 = vrot.slane %v7085, 3
      %v7088 = vor.u32 %v7084, %v7087
      %v7089 = vsel %vm1435, %v7030, %v7088
      %v7091 = vshrl.u32 %v6181, 16
      %v7093 = vrot.slane %v7091, 2
      %v7094 = vshll.u32 %v6181, 16
      %v7096 = vrot.slane %v7094, 3
      %v7097 = vor.u32 %v7093, %v7096
      %v7098 = vsel %vm1435, %v7039, %v7097
      %v7100 = vshrl.u32 %v6260, 16
      %v7102 = vrot.slane %v7100, 2
      %v7103 = vshll.u32 %v6260, 16
      %v7105 = vrot.slane %v7103, 3
      %v7106 = vor.u32 %v7102, %v7105
      %v7107 = vsel %vm1435, %v7048, %v7106
      %v7109 = vshrl.u32 %v6336, 16
      %v7111 = vrot.slane %v7109, 2
      %v7112 = vshll.u32 %v6336, 16
      %v7114 = vrot.slane %v7112, 3
      %v7115 = vor.u32 %v7111, %v7114
      %v7116 = vsel %vm1435, %v7057, %v7115
      %v7117 = vrot.slane %v5805, 2
      %v7118 = vrot.slane %v5801, 3
      %v7119 = vor.u32 %v7117, %v7118
      %v7120 = vsel %vm1435, %v7061, %v7119
      %v7122 = vshrl.u32 %v5812, 16
      %v7124 = vrot.slane %v7122, 2
      %v7125 = vshll.u32 %v5812, 16
      %v7127 = vrot.slane %v7125, 3
      %v7128 = vor.u32 %v7124, %v7127
      %v7129 = vsel %vm1435, %v7070, %v7128
      %v7131 = vshrl.u32 %v5915, 16
      %v7133 = vrot.slane %v7131, 2
      %v7134 = vshll.u32 %v5915, 16
      %v7136 = vrot.slane %v7134, 3
      %v7137 = vor.u32 %v7133, %v7136
      %v7138 = vsel %vm1435, %v7079, %v7137
      %v7140 = vshrl.u32 %v6067, 16
      %v7142 = vrot.slane %v7140, 2
      %v7143 = vshll.u32 %v6067, 16
      %v7145 = vrot.slane %v7143, 3
      %v7146 = vor.u32 %v7142, %v7145
      %v7147 = vsel %vm1435, %v7088, %v7146
      %v7149 = vshrl.u32 %v6183, 16
      %v7151 = vrot.slane %v7149, 2
      %v7152 = vshll.u32 %v6183, 16
      %v7154 = vrot.slane %v7152, 3
      %v7155 = vor.u32 %v7151, %v7154
      %v7156 = vsel %vm1435, %v7097, %v7155
      %v7158 = vshrl.u32 %v6264, 16
      %v7160 = vrot.slane %v7158, 2
      %v7161 = vshll.u32 %v6264, 16
      %v7163 = vrot.slane %v7161, 3
      %v7164 = vor.u32 %v7160, %v7163
      %v7165 = vsel %vm1435, %v7106, %v7164
      %v7167 = vshrl.u32 %v6338, 16
      %v7169 = vrot.slane %v7167, 2
      %v7170 = vshll.u32 %v6338, 16
      %v7172 = vrot.slane %v7170, 3
      %v7173 = vor.u32 %v7169, %v7172
      %v7174 = vsel %vm1435, %v7115, %v7173
      %v7175 = vrot.slane %v5813, 2
      %v7176 = vrot.slane %v5809, 3
      %v7177 = vor.u32 %v7175, %v7176
      %v7178 = vsel %vm1435, %v7119, %v7177
      %v7180 = vshrl.u32 %v5820, 16
      %v7182 = vrot.slane %v7180, 2
      %v7183 = vshll.u32 %v5820, 16
      %v7185 = vrot.slane %v7183, 3
      %v7186 = vor.u32 %v7182, %v7185
      %v7187 = vsel %vm1435, %v7128, %v7186
      %v7189 = vshrl.u32 %v5917, 16
      %v7191 = vrot.slane %v7189, 2
      %v7192 = vshll.u32 %v5917, 16
      %v7194 = vrot.slane %v7192, 3
      %v7195 = vor.u32 %v7191, %v7194
      %v7196 = vsel %vm1435, %v7137, %v7195
      %v7198 = vshrl.u32 %v6076, 16
      %v7200 = vrot.slane %v7198, 2
      %v7201 = vshll.u32 %v6076, 16
      %v7203 = vrot.slane %v7201, 3
      %v7204 = vor.u32 %v7200, %v7203
      %v7205 = vsel %vm1435, %v7146, %v7204
      %v7207 = vshrl.u32 %v6185, 16
      %v7209 = vrot.slane %v7207, 2
      %v7210 = vshll.u32 %v6185, 16
      %v7212 = vrot.slane %v7210, 3
      %v7213 = vor.u32 %v7209, %v7212
      %v7214 = vsel %vm1435, %v7155, %v7213
      %v7216 = vshrl.u32 %v6268, 16
      %v7218 = vrot.slane %v7216, 2
      %v7219 = vshll.u32 %v6268, 16
      %v7221 = vrot.slane %v7219, 3
      %v7222 = vor.u32 %v7218, %v7221
      %v7223 = vsel %vm1435, %v7164, %v7222
      %v7225 = vshrl.u32 %v6340, 16
      %v7227 = vrot.slane %v7225, 2
      %v7228 = vshll.u32 %v6340, 16
      %v7230 = vrot.slane %v7228, 3
      %v7231 = vor.u32 %v7227, %v7230
      %v7232 = vsel %vm1435, %v7173, %v7231
      %v7233 = vrot.slane %v5821, 2
      %v7234 = vrot.slane %v5817, 3
      %v7235 = vor.u32 %v7233, %v7234
      %v7236 = vsel %vm1435, %v7177, %v7235
      %v7238 = vshrl.u32 %v5828, 16
      %v7240 = vrot.slane %v7238, 2
      %v7241 = vshll.u32 %v5828, 16
      %v7243 = vrot.slane %v7241, 3
      %v7244 = vor.u32 %v7240, %v7243
      %v7245 = vsel %vm1435, %v7186, %v7244
      %v7247 = vshrl.u32 %v5919, 16
      %v7249 = vrot.slane %v7247, 2
      %v7250 = vshll.u32 %v5919, 16
      %v7252 = vrot.slane %v7250, 3
      %v7253 = vor.u32 %v7249, %v7252
      %v7254 = vsel %vm1435, %v7195, %v7253
      %v7256 = vshrl.u32 %v6085, 16
      %v7258 = vrot.slane %v7256, 2
      %v7259 = vshll.u32 %v6085, 16
      %v7261 = vrot.slane %v7259, 3
      %v7262 = vor.u32 %v7258, %v7261
      %v7263 = vsel %vm1435, %v7204, %v7262
      %v7265 = vshrl.u32 %v6187, 16
      %v7267 = vrot.slane %v7265, 2
      %v7268 = vshll.u32 %v6187, 16
      %v7270 = vrot.slane %v7268, 3
      %v7271 = vor.u32 %v7267, %v7270
      %v7272 = vsel %vm1435, %v7213, %v7271
      %v7274 = vshrl.u32 %v6272, 16
      %v7276 = vrot.slane %v7274, 2
      %v7277 = vshll.u32 %v6272, 16
      %v7279 = vrot.slane %v7277, 3
      %v7280 = vor.u32 %v7276, %v7279
      %v7281 = vsel %vm1435, %v7222, %v7280
      %v7283 = vshrl.u32 %v6342, 16
      %v7285 = vrot.slane %v7283, 2
      %v7286 = vshll.u32 %v6342, 16
      %v7288 = vrot.slane %v7286, 3
      %v7289 = vor.u32 %v7285, %v7288
      %v7290 = vsel %vm1435, %v7231, %v7289
      %v7291 = vrot.slane %v5829, 2
      %v7292 = vrot.slane %v5825, 3
      %v7293 = vor.u32 %v7291, %v7292
      %v7294 = vsel %vm1435, %v7235, %v7293
      %v7296 = vshrl.u32 %v5836, 16
      %v7298 = vrot.slane %v7296, 2
      %v7299 = vshll.u32 %v5836, 16
      %v7301 = vrot.slane %v7299, 3
      %v7302 = vor.u32 %v7298, %v7301
      %v7303 = vsel %vm1435, %v7244, %v7302
      %v7305 = vshrl.u32 %v5921, 16
      %v7307 = vrot.slane %v7305, 2
      %v7308 = vshll.u32 %v5921, 16
      %v7310 = vrot.slane %v7308, 3
      %v7311 = vor.u32 %v7307, %v7310
      %v7312 = vsel %vm1435, %v7253, %v7311
      %v7314 = vshrl.u32 %v6094, 16
      %v7316 = vrot.slane %v7314, 2
      %v7317 = vshll.u32 %v6094, 16
      %v7319 = vrot.slane %v7317, 3
      %v7320 = vor.u32 %v7316, %v7319
      %v7321 = vsel %vm1435, %v7262, %v7320
      %v7323 = vshrl.u32 %v6189, 16
      %v7325 = vrot.slane %v7323, 2
      %v7326 = vshll.u32 %v6189, 16
      %v7328 = vrot.slane %v7326, 3
      %v7329 = vor.u32 %v7325, %v7328
      %v7330 = vsel %vm1435, %v7271, %v7329
      %v7332 = vshrl.u32 %v6276, 16
      %v7334 = vrot.slane %v7332, 2
      %v7335 = vshll.u32 %v6276, 16
      %v7337 = vrot.slane %v7335, 3
      %v7338 = vor.u32 %v7334, %v7337
      %v7339 = vsel %vm1435, %v7280, %v7338
      %v7341 = vshrl.u32 %v6344, 16
      %v7343 = vrot.slane %v7341, 2
      %v7344 = vshll.u32 %v6344, 16
      %v7346 = vrot.slane %v7344, 3
      %v7347 = vor.u32 %v7343, %v7346
      %v7348 = vsel %vm1435, %v7289, %v7347
      %v7349 = vrot.slane %v5837, 2
      %v7350 = vrot.slane %v5833, 3
      %v7351 = vor.u32 %v7349, %v7350
      %v7352 = vsel %vm1435, %v7293, %v7351
      %v7354 = vshrl.u32 %v5844, 16
      %v7356 = vrot.slane %v7354, 2
      %v7357 = vshll.u32 %v5844, 16
      %v7359 = vrot.slane %v7357, 3
      %v7360 = vor.u32 %v7356, %v7359
      %v7361 = vsel %vm1435, %v7302, %v7360
      %v7363 = vshrl.u32 %v5923, 16
      %v7365 = vrot.slane %v7363, 2
      %v7366 = vshll.u32 %v5923, 16
      %v7368 = vrot.slane %v7366, 3
      %v7369 = vor.u32 %v7365, %v7368
      %v7370 = vsel %vm1435, %v7311, %v7369
      %v7372 = vshrl.u32 %v6103, 16
      %v7374 = vrot.slane %v7372, 2
      %v7375 = vshll.u32 %v6103, 16
      %v7377 = vrot.slane %v7375, 3
      %v7378 = vor.u32 %v7374, %v7377
      %v7379 = vsel %vm1435, %v7320, %v7378
      %v7381 = vshrl.u32 %v6191, 16
      %v7383 = vrot.slane %v7381, 2
      %v7384 = vshll.u32 %v6191, 16
      %v7386 = vrot.slane %v7384, 3
      %v7387 = vor.u32 %v7383, %v7386
      %v7388 = vsel %vm1435, %v7329, %v7387
      %v7390 = vshrl.u32 %v6280, 16
      %v7392 = vrot.slane %v7390, 2
      %v7393 = vshll.u32 %v6280, 16
      %v7395 = vrot.slane %v7393, 3
      %v7396 = vor.u32 %v7392, %v7395
      %v7397 = vsel %vm1435, %v7338, %v7396
      %v7399 = vshrl.u32 %v6346, 16
      %v7401 = vrot.slane %v7399, 2
      %v7402 = vshll.u32 %v6346, 16
      %v7404 = vrot.slane %v7402, 3
      %v7405 = vor.u32 %v7401, %v7404
      %v7406 = vsel %vm1435, %v7347, %v7405
      %v7407 = vrot.slane %v5845, 2
      %v7408 = vrot.slane %v5841, 3
      %v7409 = vor.u32 %v7407, %v7408
      %v7410 = vsel %vm1435, %v7351, %v7409
      %v7412 = vshrl.u32 %v5852, 16
      %v7414 = vrot.slane %v7412, 2
      %v7415 = vshll.u32 %v5852, 16
      %v7417 = vrot.slane %v7415, 3
      %v7418 = vor.u32 %v7414, %v7417
      %v7419 = vsel %vm1435, %v7360, %v7418
      %v7421 = vshrl.u32 %v5925, 16
      %v7423 = vrot.slane %v7421, 2
      %v7424 = vshll.u32 %v5925, 16
      %v7426 = vrot.slane %v7424, 3
      %v7427 = vor.u32 %v7423, %v7426
      %v7428 = vsel %vm1435, %v7369, %v7427
      %v7430 = vshrl.u32 %v6112, 16
      %v7432 = vrot.slane %v7430, 2
      %v7433 = vshll.u32 %v6112, 16
      %v7435 = vrot.slane %v7433, 3
      %v7436 = vor.u32 %v7432, %v7435
      %v7437 = vsel %vm1435, %v7378, %v7436
      %v7439 = vshrl.u32 %v6193, 16
      %v7441 = vrot.slane %v7439, 2
      %v7442 = vshll.u32 %v6193, 16
      %v7444 = vrot.slane %v7442, 3
      %v7445 = vor.u32 %v7441, %v7444
      %v7446 = vsel %vm1435, %v7387, %v7445
      %v7448 = vshrl.u32 %v6284, 16
      %v7450 = vrot.slane %v7448, 2
      %v7451 = vshll.u32 %v6284, 16
      %v7453 = vrot.slane %v7451, 3
      %v7454 = vor.u32 %v7450, %v7453
      %v7455 = vsel %vm1435, %v7396, %v7454
      %v7457 = vshrl.u32 %v6348, 16
      %v7459 = vrot.slane %v7457, 2
      %v7460 = vshll.u32 %v6348, 16
      %v7462 = vrot.slane %v7460, 3
      %v7463 = vor.u32 %v7459, %v7462
      %v7464 = vsel %vm1435, %v7405, %v7463
      %v7465 = vrot.slane %v5853, 2
      %v7466 = vrot.slane %v5849, 3
      %v7467 = vor.u32 %v7465, %v7466
      %v7468 = vsel %vm1435, %v7409, %v7467
      %v7470 = vshrl.u32 %v5860, 16
      %v7472 = vrot.slane %v7470, 2
      %v7473 = vshll.u32 %v5860, 16
      %v7475 = vrot.slane %v7473, 3
      %v7476 = vor.u32 %v7472, %v7475
      %v7477 = vsel %vm1435, %v7418, %v7476
      %v7479 = vshrl.u32 %v5927, 16
      %v7481 = vrot.slane %v7479, 2
      %v7482 = vshll.u32 %v5927, 16
      %v7484 = vrot.slane %v7482, 3
      %v7485 = vor.u32 %v7481, %v7484
      %v7486 = vsel %vm1435, %v7427, %v7485
      %v7488 = vshrl.u32 %v6121, 16
      %v7490 = vrot.slane %v7488, 2
      %v7491 = vshll.u32 %v6121, 16
      %v7493 = vrot.slane %v7491, 3
      %v7494 = vor.u32 %v7490, %v7493
      %v7495 = vsel %vm1435, %v7436, %v7494
      %v7497 = vshrl.u32 %v6195, 16
      %v7499 = vrot.slane %v7497, 2
      %v7500 = vshll.u32 %v6195, 16
      %v7502 = vrot.slane %v7500, 3
      %v7503 = vor.u32 %v7499, %v7502
      %v7504 = vsel %vm1435, %v7445, %v7503
      %v7506 = vshrl.u32 %v6288, 16
      %v7508 = vrot.slane %v7506, 2
      %v7509 = vshll.u32 %v6288, 16
      %v7511 = vrot.slane %v7509, 3
      %v7512 = vor.u32 %v7508, %v7511
      %v7513 = vsel %vm1435, %v7454, %v7512
      %v7515 = vshrl.u32 %v6350, 16
      %v7517 = vrot.slane %v7515, 2
      %v7518 = vshll.u32 %v6350, 16
      %v7520 = vrot.slane %v7518, 3
      %v7521 = vor.u32 %v7517, %v7520
      %v7522 = vsel %vm1435, %v7463, %v7521
      %v7523 = vrot.slane %v5861, 2
      %v7524 = vrot.slane %v5857, 3
      %v7525 = vor.u32 %v7523, %v7524
      %v7526 = vsel %vm1435, %v7467, %v7525
      %v7528 = vshrl.u32 %v5868, 16
      %v7530 = vrot.slane %v7528, 2
      %v7531 = vshll.u32 %v5868, 16
      %v7533 = vrot.slane %v7531, 3
      %v7534 = vor.u32 %v7530, %v7533
      %v7535 = vsel %vm1435, %v7476, %v7534
      %v7537 = vshrl.u32 %v5929, 16
      %v7539 = vrot.slane %v7537, 2
      %v7540 = vshll.u32 %v5929, 16
      %v7542 = vrot.slane %v7540, 3
      %v7543 = vor.u32 %v7539, %v7542
      %v7544 = vsel %vm1435, %v7485, %v7543
      %v7546 = vshrl.u32 %v6130, 16
      %v7548 = vrot.slane %v7546, 2
      %v7549 = vshll.u32 %v6130, 16
      %v7551 = vrot.slane %v7549, 3
      %v7552 = vor.u32 %v7548, %v7551
      %v7553 = vsel %vm1435, %v7494, %v7552
      %v7555 = vshrl.u32 %v6197, 16
      %v7557 = vrot.slane %v7555, 2
      %v7558 = vshll.u32 %v6197, 16
      %v7560 = vrot.slane %v7558, 3
      %v7561 = vor.u32 %v7557, %v7560
      %v7562 = vsel %vm1435, %v7503, %v7561
      %v7564 = vshrl.u32 %v6292, 16
      %v7566 = vrot.slane %v7564, 2
      %v7567 = vshll.u32 %v6292, 16
      %v7569 = vrot.slane %v7567, 3
      %v7570 = vor.u32 %v7566, %v7569
      %v7571 = vsel %vm1435, %v7512, %v7570
      %v7573 = vshrl.u32 %v6352, 16
      %v7575 = vrot.slane %v7573, 2
      %v7576 = vshll.u32 %v6352, 16
      %v7578 = vrot.slane %v7576, 3
      %v7579 = vor.u32 %v7575, %v7578
      %v7580 = vsel %vm1435, %v7521, %v7579
      %v7581 = vrot.slane %v5869, 2
      %v7582 = vrot.slane %v5865, 3
      %v7583 = vor.u32 %v7581, %v7582
      %v7584 = vsel %vm1435, %v7525, %v7583
      %v7586 = vshrl.u32 %v5876, 16
      %v7588 = vrot.slane %v7586, 2
      %v7589 = vshll.u32 %v5876, 16
      %v7591 = vrot.slane %v7589, 3
      %v7592 = vor.u32 %v7588, %v7591
      %v7593 = vsel %vm1435, %v7534, %v7592
      %v7595 = vshrl.u32 %v5946, 16
      %v7597 = vrot.slane %v7595, 2
      %v7598 = vshll.u32 %v5946, 16
      %v7600 = vrot.slane %v7598, 3
      %v7601 = vor.u32 %v7597, %v7600
      %v7602 = vsel %vm1435, %v7543, %v7601
      %v7604 = vshrl.u32 %v6139, 16
      %v7606 = vrot.slane %v7604, 2
      %v7607 = vshll.u32 %v6139, 16
      %v7609 = vrot.slane %v7607, 3
      %v7610 = vor.u32 %v7606, %v7609
      %v7611 = vsel %vm1435, %v7552, %v7610
      %v7613 = vshrl.u32 %v6199, 16
      %v7615 = vrot.slane %v7613, 2
      %v7616 = vshll.u32 %v6199, 16
      %v7618 = vrot.slane %v7616, 3
      %v7619 = vor.u32 %v7615, %v7618
      %v7620 = vsel %vm1435, %v7561, %v7619
      %v7622 = vshrl.u32 %v6296, 16
      %v7624 = vrot.slane %v7622, 2
      %v7625 = vshll.u32 %v6296, 16
      %v7627 = vrot.slane %v7625, 3
      %v7628 = vor.u32 %v7624, %v7627
      %v7629 = vsel %vm1435, %v7570, %v7628
      %v7631 = vshrl.u32 %v6354, 16
      %v7633 = vrot.slane %v7631, 2
      %v7634 = vshll.u32 %v6354, 16
      %v7636 = vrot.slane %v7634, 3
      %v7637 = vor.u32 %v7633, %v7636
      %v7638 = vsel %vm1435, %v7579, %v7637
      %v7639 = vrot.slane %v5877, 2
      %v7640 = vrot.slane %v5873, 3
      %v7641 = vor.u32 %v7639, %v7640
      %v7642 = vsel %vm1435, %v7583, %v7641
      %v7644 = vshrl.u32 %v5884, 16
      %v7646 = vrot.slane %v7644, 2
      %v7647 = vshll.u32 %v5884, 16
      %v7649 = vrot.slane %v7647, 3
      %v7650 = vor.u32 %v7646, %v7649
      %v7651 = vsel %vm1435, %v7592, %v7650
      %v7653 = vshrl.u32 %v5931, 16
      %v7655 = vrot.slane %v7653, 2
      %v7656 = vshll.u32 %v5931, 16
      %v7658 = vrot.slane %v7656, 3
      %v7659 = vor.u32 %v7655, %v7658
      %v7660 = vsel %vm1435, %v7543, %v7659
      %v7662 = vshrl.u32 %v5948, 16
      %v7664 = vrot.slane %v7662, 2
      %v7665 = vshll.u32 %v5948, 16
      %v7667 = vrot.slane %v7665, 3
      %v7668 = vor.u32 %v7664, %v7667
      %v7669 = vsel %vm1435, %v7601, %v7668
      %v7671 = vshrl.u32 %v6148, 16
      %v7673 = vrot.slane %v7671, 2
      %v7674 = vshll.u32 %v6148, 16
      %v7676 = vrot.slane %v7674, 3
      %v7677 = vor.u32 %v7673, %v7676
      %v7678 = vsel %vm1435, %v7610, %v7677
      %v7680 = vshrl.u32 %v6211, 16
      %v7682 = vrot.slane %v7680, 2
      %v7683 = vshll.u32 %v6211, 16
      %v7685 = vrot.slane %v7683, 3
      %v7686 = vor.u32 %v7682, %v7685
      %v7687 = vsel %vm1435, %v7619, %v7686
      %v7689 = vshrl.u32 %v6305, 16
      %v7691 = vrot.slane %v7689, 2
      %v7692 = vshll.u32 %v6305, 16
      %v7694 = vrot.slane %v7692, 3
      %v7695 = vor.u32 %v7691, %v7694
      %v7696 = vsel %vm1435, %v7628, %v7695
      %v7698 = vshrl.u32 %v6356, 16
      %v7700 = vrot.slane %v7698, 2
      %v7701 = vshll.u32 %v6356, 16
      %v7703 = vrot.slane %v7701, 3
      %v7704 = vor.u32 %v7700, %v7703
      %v7705 = vsel %vm1435, %v7637, %v7704
      %v7706 = vrot.slane %v5885, 2
      %v7707 = vrot.slane %v5881, 3
      %v7708 = vor.u32 %v7706, %v7707
      %v7709 = vsel %vm1435, %v7641, %v7708
      %v7711 = vshrl.u32 %v5887, 16
      %v7713 = vrot.slane %v7711, 2
      %v7714 = vshll.u32 %v5887, 16
      %v7716 = vrot.slane %v7714, 3
      %v7717 = vor.u32 %v7713, %v7716
      %v7718 = vsel %vm1435, %v7650, %v7717
      %v7720 = vshrl.u32 %v5930, 16
      %v7722 = vrot.slane %v7720, 2
      %v7723 = vshll.u32 %v5930, 16
      %v7725 = vrot.slane %v7723, 3
      %v7726 = vor.u32 %v7722, %v7725
      %v7727 = vsel %vm1435, %v7659, %v7726
      %v7729 = vshrl.u32 %v5947, 16
      %v7731 = vrot.slane %v7729, 2
      %v7732 = vshll.u32 %v5947, 16
      %v7734 = vrot.slane %v7732, 3
      %v7735 = vor.u32 %v7731, %v7734
      %v7736 = vsel %vm1435, %v7668, %v7735
      %v7738 = vshrl.u32 %v6157, 16
      %v7740 = vrot.slane %v7738, 2
      %v7741 = vshll.u32 %v6157, 16
      %v7743 = vrot.slane %v7741, 3
      %v7744 = vor.u32 %v7740, %v7743
      %v7745 = vsel %vm1435, %v7677, %v7744
      %v7747 = vshrl.u32 %v6201, 16
      %v7749 = vrot.slane %v7747, 2
      %v7750 = vshll.u32 %v6201, 16
      %v7752 = vrot.slane %v7750, 3
      %v7753 = vor.u32 %v7749, %v7752
      %v7754 = vsel %vm1435, %v7619, %v7753
      %v7756 = vshrl.u32 %v6213, 16
      %v7758 = vrot.slane %v7756, 2
      %v7759 = vshll.u32 %v6213, 16
      %v7761 = vrot.slane %v7759, 3
      %v7762 = vor.u32 %v7758, %v7761
      %v7763 = vsel %vm1435, %v7686, %v7762
      %v7765 = vshrl.u32 %v6314, 16
      %v7767 = vrot.slane %v7765, 2
      %v7768 = vshll.u32 %v6314, 16
      %v7770 = vrot.slane %v7768, 3
      %v7771 = vor.u32 %v7767, %v7770
      %v7772 = vsel %vm1435, %v7695, %v7771
      %v7774 = vshrl.u32 %v6358, 16
      %v7776 = vrot.slane %v7774, 2
      %v7777 = vshll.u32 %v6358, 16
      %v7779 = vrot.slane %v7777, 3
      %v7780 = vor.u32 %v7776, %v7779
      %v7781 = vsel %vm1435, %v7704, %v7780
      %v8082 = vunpack.c.l.b16 %v6359
      %v8083 = vunpack.c.l.b16 %v6360
      %v8084 = vunpack.c.l.b16 %v6361
      %v8085 = vunpack.c.l.b16 %v6362
      %v8086 = vunpack.c.l.b16 %v6363
      %v8087 = vunpack.c.l.b16 %v6364
      %v8088 = vunpack.c.l.b16 %v6365
      %v8089 = vunpack.c.l.b16 %v6366
      %v8090 = vunpack.c.l.b16 %v6367
      %v8091 = vunpack.c.l.b16 %v6368
      %v8092 = vunpack.c.l.b16 %v6369
      %v8093 = vunpack.c.l.b16 %v6370
      %v8094 = vunpack.c.l.b16 %v6371
      %v8095 = vunpack.c.l.b16 %v6372
      %v8096 = vunpack.c.l.b16 %v6373
      %v8097 = vunpack.c.l.b16 %v6374
      %v8098 = vunpack.c.l.b16 %v6375
      %v8099 = vunpack.c.l.b16 %v6376
      %v8100 = vunpack.c.l.b16 %v6377
      %v8101 = vunpack.c.l.b16 %v6378
      %v8102 = vunpack.c.l.b16 %v6379
      %v8103 = vunpack.c.l.b16 %v6380
      %v8104 = vunpack.c.l.b16 %v6381
      %v8105 = vunpack.c.l.b16 %v6382
      %v8106 = vunpack.c.l.b16 %v6383
      %v8107 = vunpack.c.l.b16 %v6384
      %v8108 = vunpack.c.l.b16 %v6385
      %v8109 = vunpack.c.l.b16 %v6386
      %v8110 = vunpack.c.l.b16 %v6387
      %v8111 = vunpack.c.l.b16 %v6388
      %v8112 = vunpack.c.l.b16 %v6389
      %v8113 = vunpack.c.l.b16 %v6390
      %v8114 = vunpack.c.l.b16 %v6391
      %v8115 = vunpack.c.l.b16 %v6392
      %v8116 = vunpack.c.l.b16 %v6393
      %v8117 = vunpack.c.l.b16 %v6394
      %v8118 = vunpack.c.l.b16 %v6395
      %v8119 = vunpack.c.l.b16 %v6396
      %v8120 = vunpack.c.l.b16 %v6397
      %v8121 = vunpack.c.l.b16 %v6398
      %v8122 = vunpack.c.l.b16 %v6399
      %v8123 = vunpack.c.l.b16 %v6400
      %v8124 = vunpack.c.l.b16 %v6401
      %v8125 = vunpack.c.l.b16 %v6402
      %v8126 = vunpack.c.l.b16 %v6403
      %v8127 = vunpack.c.l.b16 %v6404
      %v8128 = vunpack.c.l.b16 %v6405
      %v8129 = vunpack.c.l.b16 %v6406
      %v8130 = vunpack.c.l.b16 %v6407
      %v8131 = vunpack.c.l.b16 %v6408
      %v8132 = vunpack.c.l.b16 %v6409
      %v8133 = vunpack.c.l.b16 %v6410
      %v8134 = vunpack.c.l.b16 %v6411
      %v8135 = vunpack.c.l.b16 %v6412
      %v8136 = vunpack.c.l.b16 %v6413
      %v8137 = vunpack.c.l.b16 %v6414
      %v8138 = vunpack.c.l.b16 %v6415
      %v8139 = vunpack.c.l.b16 %v6416
      %v8140 = vunpack.c.l.b16 %v6417
      %v8141 = vunpack.c.l.b16 %v6418
      %v8142 = vunpack.c.l.b16 %v6419
      %v8143 = vunpack.c.l.b16 %v6420
      %v8144 = vunpack.c.l.b16 %v6421
      %v8145 = vunpack.c.l.b16 %v6422
      %v8146 = vunpack.c.l.b16 %v6423
      %v8147 = vunpack.c.l.b16 %v6424
      %v8148 = vunpack.c.l.b16 %v6425
      %v8149 = vunpack.c.l.b16 %v6426
      %v8150 = vunpack.c.l.b16 %v6427
      %v8151 = vunpack.c.l.b16 %v6428
      %v8152 = vunpack.c.l.b16 %v6429
      %v8153 = vunpack.c.l.b16 %v6430
      %v8154 = vunpack.c.l.b16 %v6431
      %v8155 = vunpack.c.l.b16 %v6432
      %v8156 = vunpack.c.l.b16 %v6433
      %v8157 = vunpack.c.l.b16 %v6434
      %v8158 = vunpack.c.l.b16 %v6435
      %v8159 = vunpack.c.l.b16 %v6436
      %v8160 = vunpack.c.l.b16 %v6437
      %v8161 = vunpack.c.l.b16 %v6438
      %v8162 = vunpack.c.l.b16 %v6439
      %v8163 = vunpack.c.l.b16 %v6440
      %v8164 = vunpack.c.l.b16 %v6441
      %v8165 = vunpack.c.l.b16 %v6442
      %v8166 = vunpack.c.l.b16 %v6443
      %v8167 = vunpack.c.l.b16 %v6444
      %v8168 = vunpack.c.l.b16 %v6445
      %v8169 = vunpack.c.l.b16 %v6446
      %v8170 = vunpack.c.l.b16 %v6447
      %v8171 = vunpack.c.l.b16 %v6448
      %v8172 = vunpack.c.l.b16 %v6449
      %v8173 = vunpack.c.l.b16 %v6450
      %v8174 = vunpack.c.l.b16 %v6451
      %v8175 = vunpack.c.l.b16 %v6452
      %v8176 = vunpack.c.l.b16 %v6453
      %v8177 = vunpack.c.l.b16 %v6454
      %v8178 = vunpack.c.l.b16 %v6455
      %v8179 = vunpack.c.l.b16 %v6456
      %v8180 = vunpack.c.l.b16 %v6457
      %v8181 = vunpack.c.l.b16 %v6458
      %v8182 = vunpack.c.l.b16 %v6459
      %v8183 = vunpack.c.l.b16 %v6460
      %v8184 = vunpack.c.l.b16 %v6461
      %v8185 = vunpack.c.l.b16 %v6462
      %v8186 = vunpack.c.l.b16 %v6463
      %v8187 = vunpack.c.l.b16 %v6464
      %v8188 = vunpack.c.l.b16 %v6465
      %v8189 = vunpack.c.l.b16 %v6466
      %v8190 = vunpack.c.l.b16 %v6467
      %v8191 = vunpack.c.l.b16 %v6468
      %v8192 = vunpack.c.l.b16 %v6469
      %v8193 = vunpack.c.l.b16 %v6470
      %v8194 = vunpack.c.l.b16 %v6471
      %v8195 = vunpack.c.l.b16 %v6472
      %v8196 = vunpack.c.l.b16 %v6473
      %v8197 = vunpack.c.l.b16 %v6474
      %v8198 = vunpack.c.l.b16 %v6475
      %v8199 = vunpack.c.l.b16 %v6476
      %v8200 = vunpack.c.l.b16 %v6477
      %v8201 = vunpack.c.l.b16 %v6478
      %v8202 = vunpack.c.l.b16 %v6479
      %v8203 = vunpack.c.l.b16 %v6480
      %v8204 = vunpack.c.l.b16 %v6481
      %v8205 = vunpack.c.l.b16 %v6482
      %v8206 = vunpack.c.l.b16 %v6483
      %v8207 = vunpack.c.l.b16 %v6484
      %v8208 = vunpack.c.l.b16 %v6485
      %v8209 = vunpack.c.l.b16 %v6486
      %v8210 = vunpack.c.l.b16 %v6487
      %v8211 = vunpack.c.l.b16 %v6488
      %v8212 = vunpack.c.l.b16 %v6489
      %v8213 = vunpack.c.l.b16 %v6490
      %v8214 = vunpack.c.l.b16 %v6491
      %v8215 = vunpack.c.l.b16 %v6492
      %v8216 = vunpack.c.l.b16 %v6493
      %v8217 = vunpack.c.l.b16 %v6494
      %v8218 = vunpack.c.l.b16 %v6495
      %v8219 = vunpack.c.l.b16 %v6496
      %v8220 = vunpack.c.l.b16 %v6497
      %v8221 = vunpack.c.l.b16 %v6498
      %v8222 = vunpack.c.l.b16 %v6499
      %v8223 = vunpack.c.l.b16 %v6500
      %v8224 = vunpack.c.l.b16 %v6501
      %v8225 = vunpack.c.l.b16 %v6502
      %v8226 = vpack.c.b16 %v8083, %v8082
      %v8227 = vpack.c.b16 %v8085, %v8084
      %v8228 = vpack.c.b16 %v8087, %v8086
      %v8229 = vpack.c.b16 %v8089, %v8088
      %v8230 = vpack.c.b16 %v8091, %v8090
      %v8231 = vpack.c.b16 %v8093, %v8092
      %v8232 = vpack.c.b16 %v8095, %v8094
      %v8233 = vpack.c.b16 %v8097, %v8096
      %v8234 = vpack.c.b16 %v8099, %v8098
      %v8235 = vpack.c.b16 %v8101, %v8100
      %v8236 = vpack.c.b16 %v8103, %v8102
      %v8237 = vpack.c.b16 %v8105, %v8104
      %v8238 = vpack.c.b16 %v8107, %v8106
      %v8239 = vpack.c.b16 %v8109, %v8108
      %v8240 = vpack.c.b16 %v8111, %v8110
      %v8241 = vpack.c.b16 %v8113, %v8112
      %v8242 = vpack.c.b16 %v8115, %v8114
      %v8243 = vpack.c.b16 %v8117, %v8116
      %v8244 = vpack.c.b16 %v8119, %v8118
      %v8245 = vpack.c.b16 %v8121, %v8120
      %v8246 = vpack.c.b16 %v8123, %v8122
      %v8247 = vpack.c.b16 %v8125, %v8124
      %v8248 = vpack.c.b16 %v8127, %v8126
      %v8249 = vpack.c.b16 %v8129, %v8128
      %v8250 = vpack.c.b16 %v8131, %v8130
      %v8251 = vpack.c.b16 %v8133, %v8132
      %v8252 = vpack.c.b16 %v8135, %v8134
      %v8253 = vpack.c.b16 %v8137, %v8136
      %v8254 = vpack.c.b16 %v8139, %v8138
      %v8255 = vpack.c.b16 %v8141, %v8140
      %v8256 = vpack.c.b16 %v8143, %v8142
      %v8257 = vpack.c.b16 %v8145, %v8144
      %v8258 = vpack.c.b16 %v8147, %v8146
      %v8259 = vpack.c.b16 %v8149, %v8148
      %v8260 = vpack.c.b16 %v8151, %v8150
      %v8261 = vpack.c.b16 %v8153, %v8152
      %v8262 = vpack.c.b16 %v8155, %v8154
      %v8263 = vpack.c.b16 %v8157, %v8156
      %v8264 = vpack.c.b16 %v8159, %v8158
      %v8265 = vpack.c.b16 %v8161, %v8160
      %v8266 = vpack.c.b16 %v8163, %v8162
      %v8267 = vpack.c.b16 %v8165, %v8164
      %v8268 = vpack.c.b16 %v8167, %v8166
      %v8269 = vpack.c.b16 %v8169, %v8168
      %v8270 = vpack.c.b16 %v8171, %v8170
      %v8271 = vpack.c.b16 %v8173, %v8172
      %v8272 = vpack.c.b16 %v8175, %v8174
      %v8273 = vpack.c.b16 %v8177, %v8176
      %v8274 = vpack.c.b16 %v8179, %v8178
      %v8275 = vpack.c.b16 %v8181, %v8180
      %v8276 = vpack.c.b16 %v8183, %v8182
      %v8277 = vpack.c.b16 %v8185, %v8184
      %v8278 = vpack.c.b16 %v8187, %v8186
      %v8279 = vpack.c.b16 %v8189, %v8188
      %v8280 = vpack.c.b16 %v8191, %v8190
      %v8281 = vpack.c.b16 %v8193, %v8192
      %v8282 = vpack.c.b16 %v8195, %v8194
      %v8283 = vpack.c.b16 %v8197, %v8196
      %v8284 = vpack.c.b16 %v8199, %v8198
      %v8285 = vpack.c.b16 %v8201, %v8200
      %v8286 = vpack.c.b16 %v8203, %v8202
      %v8287 = vpack.c.b16 %v8205, %v8204
      %v8288 = vpack.c.b16 %v8207, %v8206
      %v8289 = vpack.c.b16 %v8209, %v8208
      %v8290 = vpack.c.b16 %v8211, %v8210
      %v8291 = vpack.c.b16 %v8213, %v8212
      %v8292 = vpack.c.b16 %v8215, %v8214
      %v8293 = vpack.c.b16 %v8217, %v8216
      %v8294 = vpack.c.b16 %v8219, %v8218
      %v8295 = vpack.c.b16 %v8221, %v8220
      %v8296 = vpack.c.b16 %v8223, %v8222
      %v8297 = vpack.c.b16 %v8225, %v8224
      %8370 = vmatprep.subr.bf16.mxu0 0
      %8371 = vmatpush1.bf16.msra.mxu0 %v8233
      %8372 = vmatprep.subr.bf16.mxu0 0
      %8373 = vmatpush1.bf16.msra.mxu0 %v8232
      %8374 = vmatprep.subr.bf16.mxu0 0
      %8375 = vmatpush1.bf16.msra.mxu0 %v8231
      %8376 = vmatprep.subr.bf16.mxu0 0
      %8377 = vmatpush1.bf16.msra.mxu0 %v8230
      %8378 = vmatprep.subr.bf16.mxu0 0
      %8379 = vmatpush1.bf16.msra.mxu0 %v8229
      %8380 = vmatprep.subr.bf16.mxu0 0
      %8381 = vmatpush1.bf16.msra.mxu0 %v8228
      %8382 = vmatprep.subr.bf16.mxu0 0
      %8383 = vmatpush1.bf16.msra.mxu0 %v8227
      %8384 = vmatprep.subr.bf16.mxu0 0
      %8385 = vmatpush1.bf16.msra.mxu0 %v8226
      %8386 = vmatprep.subr.bf16.mxu0 0
      %8387 = vmatpush2.bf16.msra.mxu0 %v8241
      %8388 = vmatprep.subr.bf16.mxu0 0
      %8389 = vmatpush2.bf16.msra.mxu0 %v8240
      %8390 = vmatprep.subr.bf16.mxu0 0
      %8391 = vmatpush2.bf16.msra.mxu0 %v8239
      %8392 = vmatprep.subr.bf16.mxu0 0
      %8393 = vmatpush2.bf16.msra.mxu0 %v8238
      %8394 = vmatprep.subr.bf16.mxu0 0
      %8395 = vmatpush2.bf16.msra.mxu0 %v8237
      %8396 = vmatprep.subr.bf16.mxu0 0
      %8397 = vmatpush2.bf16.msra.mxu0 %v8236
      %8398 = vmatprep.subr.bf16.mxu0 0
      %8399 = vmatpush2.bf16.msra.mxu0 %v8235
      %8400 = vmatprep.subr.bf16.mxu0 0
      %8401 = vmatpush2.bf16.msra.mxu0 %v8234
      %8402 = vmatprep.mubr.bf16.mxu0 %v6531
      %8403 = vmatmul.mubr.bf16.gmra.mxu0 %v6514
      %v8404 = vpop.f32.mrf.mxu0
      %v8405 = vadd.f32 0.0, %v8404
      %v8406 = vpop.f32.mrf.mxu0
      %v8407 = vpop.f32.mrf.mxu0
      %v8408 = vadd.f32 0.0, %v8407
      %v8409 = vpop.f32.mrf.mxu0
      %8410 = vmatprep.mubr.bf16.mxu0 %v6663
      %8411 = vmatmul.mubr.bf16.gmra.mxu0 %v6654
      %v8412 = vpop.f32.mrf.mxu0
      %v8413 = vadd.f32 0.0, %v8412
      %v8414 = vpop.f32.mrf.mxu0
      %v8415 = vpop.f32.mrf.mxu0
      %v8416 = vadd.f32 0.0, %v8415
      %v8417 = vpop.f32.mrf.mxu0
      %8418 = vmatprep.mubr.bf16.mxu0 %v6723
      %8419 = vmatmul.mubr.bf16.gmra.mxu0 %v6714
      %v8420 = vpop.f32.mrf.mxu0
      %v8421 = vadd.f32 0.0, %v8420
      %v8422 = vpop.f32.mrf.mxu0
      %v8423 = vpop.f32.mrf.mxu0
      %v8424 = vadd.f32 0.0, %v8423
      %v8425 = vpop.f32.mrf.mxu0
      %8426 = vmatprep.mubr.bf16.mxu0 %v6781
      %8427 = vmatmul.mubr.bf16.gmra.mxu0 %v6772
      %v8428 = vpop.f32.mrf.mxu0
      %v8429 = vadd.f32 0.0, %v8428
      %v8430 = vpop.f32.mrf.mxu0
      %v8431 = vpop.f32.mrf.mxu0
      %v8432 = vadd.f32 0.0, %v8431
      %v8433 = vpop.f32.mrf.mxu0
      %8434 = vmatprep.mubr.bf16.mxu0 %v6839
      %8435 = vmatmul.mubr.bf16.gmra.mxu0 %v6830
      %v8436 = vpop.f32.mrf.mxu0
      %v8437 = vadd.f32 0.0, %v8436
      %v8438 = vpop.f32.mrf.mxu0
      %v8439 = vpop.f32.mrf.mxu0
      %v8440 = vadd.f32 0.0, %v8439
      %v8441 = vpop.f32.mrf.mxu0
      %8442 = vmatprep.mubr.bf16.mxu0 %v6897
      %8443 = vmatmul.mubr.bf16.gmra.mxu0 %v6888
      %v8444 = vpop.f32.mrf.mxu0
      %v8445 = vadd.f32 0.0, %v8444
      %v8446 = vpop.f32.mrf.mxu0
      %v8447 = vpop.f32.mrf.mxu0
      %v8448 = vadd.f32 0.0, %v8447
      %v8449 = vpop.f32.mrf.mxu0
      %8450 = vmatprep.mubr.bf16.mxu0 %v6955
      %8451 = vmatmul.mubr.bf16.gmra.mxu0 %v6946
      %v8452 = vpop.f32.mrf.mxu0
      %v8453 = vadd.f32 0.0, %v8452
      %v8454 = vpop.f32.mrf.mxu0
      %v8455 = vpop.f32.mrf.mxu0
      %v8456 = vadd.f32 0.0, %v8455
      %v8457 = vpop.f32.mrf.mxu0
      %8458 = vmatprep.mubr.bf16.mxu0 %v7013
      %8459 = vmatmul.mubr.bf16.gmra.mxu0 %v7004
      %v8460 = vpop.f32.mrf.mxu0
      %v8461 = vadd.f32 0.0, %v8460
      %v8462 = vpop.f32.mrf.mxu0
      %v8463 = vpop.f32.mrf.mxu0
      %v8464 = vadd.f32 0.0, %v8463
      %v8465 = vpop.f32.mrf.mxu0
      %8466 = vmatprep.mubr.bf16.mxu0 %v7071
      %8467 = vmatmul.mubr.bf16.gmra.mxu0 %v7062
      %v8468 = vpop.f32.mrf.mxu0
      %v8469 = vadd.f32 0.0, %v8468
      %v8470 = vpop.f32.mrf.mxu0
      %v8471 = vpop.f32.mrf.mxu0
      %v8472 = vadd.f32 0.0, %v8471
      %v8473 = vpop.f32.mrf.mxu0
      %8474 = vmatprep.mubr.bf16.mxu0 %v7129
      %8475 = vmatmul.mubr.bf16.gmra.mxu0 %v7120
      %v8476 = vpop.f32.mrf.mxu0
      %v8477 = vadd.f32 0.0, %v8476
      %v8478 = vpop.f32.mrf.mxu0
      %v8479 = vpop.f32.mrf.mxu0
      %v8480 = vadd.f32 0.0, %v8479
      %v8481 = vpop.f32.mrf.mxu0
      %8482 = vmatprep.mubr.bf16.mxu0 %v7187
      %8483 = vmatmul.mubr.bf16.gmra.mxu0 %v7178
      %v8484 = vpop.f32.mrf.mxu0
      %v8485 = vadd.f32 0.0, %v8484
      %v8486 = vpop.f32.mrf.mxu0
      %v8487 = vpop.f32.mrf.mxu0
      %v8488 = vadd.f32 0.0, %v8487
      %v8489 = vpop.f32.mrf.mxu0
      %8490 = vmatprep.mubr.bf16.mxu0 %v7245
      %8491 = vmatmul.mubr.bf16.gmra.mxu0 %v7236
      %v8492 = vpop.f32.mrf.mxu0
      %v8493 = vadd.f32 0.0, %v8492
      %v8494 = vpop.f32.mrf.mxu0
      %v8495 = vpop.f32.mrf.mxu0
      %v8496 = vadd.f32 0.0, %v8495
      %v8497 = vpop.f32.mrf.mxu0
      %8498 = vmatprep.mubr.bf16.mxu0 %v7303
      %8499 = vmatmul.mubr.bf16.gmra.mxu0 %v7294
      %v8500 = vpop.f32.mrf.mxu0
      %v8501 = vadd.f32 0.0, %v8500
      %v8502 = vpop.f32.mrf.mxu0
      %v8503 = vpop.f32.mrf.mxu0
      %v8504 = vadd.f32 0.0, %v8503
      %v8505 = vpop.f32.mrf.mxu0
      %8506 = vmatprep.mubr.bf16.mxu0 %v7361
      %8507 = vmatmul.mubr.bf16.gmra.mxu0 %v7352
      %v8508 = vpop.f32.mrf.mxu0
      %v8509 = vadd.f32 0.0, %v8508
      %v8510 = vpop.f32.mrf.mxu0
      %v8511 = vpop.f32.mrf.mxu0
      %v8512 = vadd.f32 0.0, %v8511
      %v8513 = vpop.f32.mrf.mxu0
      %8514 = vmatprep.mubr.bf16.mxu0 %v7419
      %8515 = vmatmul.mubr.bf16.gmra.mxu0 %v7410
      %v8516 = vpop.f32.mrf.mxu0
      %v8517 = vadd.f32 0.0, %v8516
      %v8518 = vpop.f32.mrf.mxu0
      %v8519 = vpop.f32.mrf.mxu0
      %v8520 = vadd.f32 0.0, %v8519
      %v8521 = vpop.f32.mrf.mxu0
      %8522 = vmatprep.mubr.bf16.mxu0 %v7477
      %8523 = vmatmul.mubr.bf16.gmra.mxu0 %v7468
      %v8524 = vpop.f32.mrf.mxu0
      %v8525 = vadd.f32 0.0, %v8524
      %v8526 = vpop.f32.mrf.mxu0
      %v8527 = vpop.f32.mrf.mxu0
      %v8528 = vadd.f32 0.0, %v8527
      %v8529 = vpop.f32.mrf.mxu0
      %8530 = vmatprep.mubr.bf16.mxu0 %v7535
      %8531 = vmatmul.mubr.bf16.gmra.mxu0 %v7526
      %v8532 = vpop.f32.mrf.mxu0
      %v8533 = vadd.f32 0.0, %v8532
      %v8534 = vpop.f32.mrf.mxu0
      %v8535 = vpop.f32.mrf.mxu0
      %v8536 = vadd.f32 0.0, %v8535
      %v8537 = vpop.f32.mrf.mxu0
      %8538 = vmatprep.mubr.bf16.mxu0 %v7593
      %8539 = vmatmul.mubr.bf16.gmra.mxu0 %v7584
      %v8540 = vpop.f32.mrf.mxu0
      %v8541 = vadd.f32 0.0, %v8540
      %v8542 = vpop.f32.mrf.mxu0
      %v8543 = vpop.f32.mrf.mxu0
      %v8544 = vadd.f32 0.0, %v8543
      %v8545 = vpop.f32.mrf.mxu0
      %8546 = vmatprep.mubr.bf16.mxu0 %v7651
      %8547 = vmatmul.mubr.bf16.gmra.mxu0 %v7642
      %v8548 = vpop.f32.mrf.mxu0
      %v8549 = vadd.f32 0.0, %v8548
      %v8550 = vpop.f32.mrf.mxu0
      %v8551 = vpop.f32.mrf.mxu0
      %v8552 = vadd.f32 0.0, %v8551
      %v8553 = vpop.f32.mrf.mxu0
      %8554 = vmatprep.mubr.bf16.mxu0 %v7718
      %8555 = vmatmul.mubr.bf16.gmra.mxu0 %v7709
      %v8556 = vpop.f32.mrf.mxu0
      %v8557 = vadd.f32 0.0, %v8556
      %v8558 = vpop.f32.mrf.mxu0
      %v8559 = vpop.f32.mrf.mxu0
      %v8560 = vadd.f32 0.0, %v8559
      %v8561 = vpop.f32.mrf.mxu0
      %8562 = vmatprep.mubr.bf16.mxu0 %v7717
      %8563 = vmatmul.mubr.bf16.gmra.mxu0 %v7708
      %v8564 = vpop.f32.mrf.mxu0
      %v8565 = vadd.f32 0.0, %v8564
      %v8566 = vpop.f32.mrf.mxu0
      %v8567 = vpop.f32.mrf.mxu0
      %v8568 = vpop.f32.mrf.mxu0
      %8569 = vdwg.mxu0
      %8570 = vmatprep.subr.bf16.mxu0 0
      %8571 = vmatpush1.bf16.msra.mxu0 %v8249
      %8572 = vmatprep.subr.bf16.mxu0 0
      %8573 = vmatpush1.bf16.msra.mxu0 %v8248
      %8574 = vmatprep.subr.bf16.mxu0 0
      %8575 = vmatpush1.bf16.msra.mxu0 %v8247
      %8576 = vmatprep.subr.bf16.mxu0 0
      %8577 = vmatpush1.bf16.msra.mxu0 %v8246
      %8578 = vmatprep.subr.bf16.mxu0 0
      %8579 = vmatpush1.bf16.msra.mxu0 %v8245
      %8580 = vmatprep.subr.bf16.mxu0 0
      %8581 = vmatpush1.bf16.msra.mxu0 %v8244
      %8582 = vmatprep.subr.bf16.mxu0 0
      %8583 = vmatpush1.bf16.msra.mxu0 %v8243
      %8584 = vmatprep.subr.bf16.mxu0 0
      %8585 = vmatpush1.bf16.msra.mxu0 %v8242
      %8586 = vmatprep.subr.bf16.mxu0 0
      %8587 = vmatpush2.bf16.msra.mxu0 %v8257
      %8588 = vmatprep.subr.bf16.mxu0 0
      %8589 = vmatpush2.bf16.msra.mxu0 %v8256
      %8590 = vmatprep.subr.bf16.mxu0 0
      %8591 = vmatpush2.bf16.msra.mxu0 %v8255
      %8592 = vmatprep.subr.bf16.mxu0 0
      %8593 = vmatpush2.bf16.msra.mxu0 %v8254
      %8594 = vmatprep.subr.bf16.mxu0 0
      %8595 = vmatpush2.bf16.msra.mxu0 %v8253
      %8596 = vmatprep.subr.bf16.mxu0 0
      %8597 = vmatpush2.bf16.msra.mxu0 %v8252
      %8598 = vmatprep.subr.bf16.mxu0 0
      %8599 = vmatpush2.bf16.msra.mxu0 %v8251
      %8600 = vmatprep.subr.bf16.mxu0 0
      %8601 = vmatpush2.bf16.msra.mxu0 %v8250
      %8602 = vmatprep.mubr.bf16.mxu0 %v6565
      %8603 = vmatmul.mubr.bf16.gmra.mxu0 %v6548
      %v8604 = vpop.f32.mrf.mxu0
      %v8605 = vadd.f32 %v8405, %v8604
      %v8606 = vpop.f32.mrf.mxu0
      %v8607 = vpop.f32.mrf.mxu0
      %v8608 = vadd.f32 %v8408, %v8607
      %v8609 = vpop.f32.mrf.mxu0
      %8610 = vmatprep.mubr.bf16.mxu0 %v6673
      %8611 = vmatmul.mubr.bf16.gmra.mxu0 %v6664
      %v8612 = vpop.f32.mrf.mxu0
      %v8613 = vadd.f32 %v8413, %v8612
      %v8614 = vpop.f32.mrf.mxu0
      %v8615 = vpop.f32.mrf.mxu0
      %v8616 = vadd.f32 %v8416, %v8615
      %v8617 = vpop.f32.mrf.mxu0
      %8618 = vmatprep.mubr.bf16.mxu0 %v6732
      %8619 = vmatmul.mubr.bf16.gmra.mxu0 %v6673
      %v8620 = vpop.f32.mrf.mxu0
      %v8621 = vadd.f32 %v8421, %v8620
      %v8622 = vpop.f32.mrf.mxu0
      %v8623 = vpop.f32.mrf.mxu0
      %v8624 = vadd.f32 %v8424, %v8623
      %v8625 = vpop.f32.mrf.mxu0
      %8626 = vmatprep.mubr.bf16.mxu0 %v6790
      %8627 = vmatmul.mubr.bf16.gmra.mxu0 %v6732
      %v8628 = vpop.f32.mrf.mxu0
      %v8629 = vadd.f32 %v8429, %v8628
      %v8630 = vpop.f32.mrf.mxu0
      %v8631 = vpop.f32.mrf.mxu0
      %v8632 = vadd.f32 %v8432, %v8631
      %v8633 = vpop.f32.mrf.mxu0
      %8634 = vmatprep.mubr.bf16.mxu0 %v6848
      %8635 = vmatmul.mubr.bf16.gmra.mxu0 %v6790
      %v8636 = vpop.f32.mrf.mxu0
      %v8637 = vadd.f32 %v8437, %v8636
      %v8638 = vpop.f32.mrf.mxu0
      %v8639 = vpop.f32.mrf.mxu0
      %v8640 = vadd.f32 %v8440, %v8639
      %v8641 = vpop.f32.mrf.mxu0
      %8642 = vmatprep.mubr.bf16.mxu0 %v6906
      %8643 = vmatmul.mubr.bf16.gmra.mxu0 %v6848
      %v8644 = vpop.f32.mrf.mxu0
      %v8645 = vadd.f32 %v8445, %v8644
      %v8646 = vpop.f32.mrf.mxu0
      %v8647 = vpop.f32.mrf.mxu0
      %v8648 = vadd.f32 %v8448, %v8647
      %v8649 = vpop.f32.mrf.mxu0
      %8650 = vmatprep.mubr.bf16.mxu0 %v6964
      %8651 = vmatmul.mubr.bf16.gmra.mxu0 %v6906
      %v8652 = vpop.f32.mrf.mxu0
      %v8653 = vadd.f32 %v8453, %v8652
      %v8654 = vpop.f32.mrf.mxu0
      %v8655 = vpop.f32.mrf.mxu0
      %v8656 = vadd.f32 %v8456, %v8655
      %v8657 = vpop.f32.mrf.mxu0
      %8658 = vmatprep.mubr.bf16.mxu0 %v7022
      %8659 = vmatmul.mubr.bf16.gmra.mxu0 %v6964
      %v8660 = vpop.f32.mrf.mxu0
      %v8661 = vadd.f32 %v8461, %v8660
      %v8662 = vpop.f32.mrf.mxu0
      %v8663 = vpop.f32.mrf.mxu0
      %v8664 = vadd.f32 %v8464, %v8663
      %v8665 = vpop.f32.mrf.mxu0
      %8666 = vmatprep.mubr.bf16.mxu0 %v7080
      %8667 = vmatmul.mubr.bf16.gmra.mxu0 %v7022
      %v8668 = vpop.f32.mrf.mxu0
      %v8669 = vadd.f32 %v8469, %v8668
      %v8670 = vpop.f32.mrf.mxu0
      %v8671 = vpop.f32.mrf.mxu0
      %v8672 = vadd.f32 %v8472, %v8671
      %v8673 = vpop.f32.mrf.mxu0
      %8674 = vmatprep.mubr.bf16.mxu0 %v7138
      %8675 = vmatmul.mubr.bf16.gmra.mxu0 %v7080
      %v8676 = vpop.f32.mrf.mxu0
      %v8677 = vadd.f32 %v8477, %v8676
      %v8678 = vpop.f32.mrf.mxu0
      %v8679 = vpop.f32.mrf.mxu0
      %v8680 = vadd.f32 %v8480, %v8679
      %v8681 = vpop.f32.mrf.mxu0
      %8682 = vmatprep.mubr.bf16.mxu0 %v7196
      %8683 = vmatmul.mubr.bf16.gmra.mxu0 %v7138
      %v8684 = vpop.f32.mrf.mxu0
      %v8685 = vadd.f32 %v8485, %v8684
      %v8686 = vpop.f32.mrf.mxu0
      %v8687 = vpop.f32.mrf.mxu0
      %v8688 = vadd.f32 %v8488, %v8687
      %v8689 = vpop.f32.mrf.mxu0
      %8690 = vmatprep.mubr.bf16.mxu0 %v7254
      %8691 = vmatmul.mubr.bf16.gmra.mxu0 %v7196
      %v8692 = vpop.f32.mrf.mxu0
      %v8693 = vadd.f32 %v8493, %v8692
      %v8694 = vpop.f32.mrf.mxu0
      %v8695 = vpop.f32.mrf.mxu0
      %v8696 = vadd.f32 %v8496, %v8695
      %v8697 = vpop.f32.mrf.mxu0
      %8698 = vmatprep.mubr.bf16.mxu0 %v7312
      %8699 = vmatmul.mubr.bf16.gmra.mxu0 %v7254
      %v8700 = vpop.f32.mrf.mxu0
      %v8701 = vadd.f32 %v8501, %v8700
      %v8702 = vpop.f32.mrf.mxu0
      %v8703 = vpop.f32.mrf.mxu0
      %v8704 = vadd.f32 %v8504, %v8703
      %v8705 = vpop.f32.mrf.mxu0
      %8706 = vmatprep.mubr.bf16.mxu0 %v7370
      %8707 = vmatmul.mubr.bf16.gmra.mxu0 %v7312
      %v8708 = vpop.f32.mrf.mxu0
      %v8709 = vadd.f32 %v8509, %v8708
      %v8710 = vpop.f32.mrf.mxu0
      %v8711 = vpop.f32.mrf.mxu0
      %v8712 = vadd.f32 %v8512, %v8711
      %v8713 = vpop.f32.mrf.mxu0
      %8714 = vmatprep.mubr.bf16.mxu0 %v7428
      %8715 = vmatmul.mubr.bf16.gmra.mxu0 %v7370
      %v8716 = vpop.f32.mrf.mxu0
      %v8717 = vadd.f32 %v8517, %v8716
      %v8718 = vpop.f32.mrf.mxu0
      %v8719 = vpop.f32.mrf.mxu0
      %v8720 = vadd.f32 %v8520, %v8719
      %v8721 = vpop.f32.mrf.mxu0
      %8722 = vmatprep.mubr.bf16.mxu0 %v7486
      %8723 = vmatmul.mubr.bf16.gmra.mxu0 %v7428
      %v8724 = vpop.f32.mrf.mxu0
      %v8725 = vadd.f32 %v8525, %v8724
      %v8726 = vpop.f32.mrf.mxu0
      %v8727 = vpop.f32.mrf.mxu0
      %v8728 = vadd.f32 %v8528, %v8727
      %v8729 = vpop.f32.mrf.mxu0
      %8730 = vmatprep.mubr.bf16.mxu0 %v7544
      %8731 = vmatmul.mubr.bf16.gmra.mxu0 %v7486
      %v8732 = vpop.f32.mrf.mxu0
      %v8733 = vadd.f32 %v8533, %v8732
      %v8734 = vpop.f32.mrf.mxu0
      %v8735 = vpop.f32.mrf.mxu0
      %v8736 = vadd.f32 %v8536, %v8735
      %v8737 = vpop.f32.mrf.mxu0
      %8738 = vmatprep.mubr.bf16.mxu0 %v7602
      %8739 = vmatmul.mubr.bf16.gmra.mxu0 %v7544
      %v8740 = vpop.f32.mrf.mxu0
      %v8741 = vadd.f32 %v8541, %v8740
      %v8742 = vpop.f32.mrf.mxu0
      %v8743 = vpop.f32.mrf.mxu0
      %v8744 = vadd.f32 %v8544, %v8743
      %v8745 = vpop.f32.mrf.mxu0
      %8746 = vmatprep.mubr.bf16.mxu0 %v7669
      %8747 = vmatmul.mubr.bf16.gmra.mxu0 %v7660
      %v8748 = vpop.f32.mrf.mxu0
      %v8749 = vadd.f32 %v8549, %v8748
      %v8750 = vpop.f32.mrf.mxu0
      %v8751 = vpop.f32.mrf.mxu0
      %v8752 = vadd.f32 %v8552, %v8751
      %v8753 = vpop.f32.mrf.mxu0
      %8754 = vmatprep.mubr.bf16.mxu0 %v7736
      %8755 = vmatmul.mubr.bf16.gmra.mxu0 %v7727
      %v8756 = vpop.f32.mrf.mxu0
      %v8757 = vadd.f32 %v8557, %v8756
      %v8758 = vpop.f32.mrf.mxu0
      %v8759 = vpop.f32.mrf.mxu0
      %v8760 = vadd.f32 %v8560, %v8759
      %v8761 = vpop.f32.mrf.mxu0
      %8762 = vmatprep.mubr.bf16.mxu0 %v7735
      %8763 = vmatmul.mubr.bf16.gmra.mxu0 %v7726
      %v8764 = vpop.f32.mrf.mxu0
      %v8765 = vadd.f32 %v8565, %v8764
      %v8766 = vpop.f32.mrf.mxu0
      %v8767 = vpop.f32.mrf.mxu0
      %v8768 = vpop.f32.mrf.mxu0
      %8769 = vdwg.mxu0
      %8770 = vmatprep.subr.bf16.mxu0 0
      %8771 = vmatpush1.bf16.msra.mxu0 %v8265
      %8772 = vmatprep.subr.bf16.mxu0 0
      %8773 = vmatpush1.bf16.msra.mxu0 %v8264
      %8774 = vmatprep.subr.bf16.mxu0 0
      %8775 = vmatpush1.bf16.msra.mxu0 %v8263
      %8776 = vmatprep.subr.bf16.mxu0 0
      %8777 = vmatpush1.bf16.msra.mxu0 %v8262
      %8778 = vmatprep.subr.bf16.mxu0 0
      %8779 = vmatpush1.bf16.msra.mxu0 %v8261
      %8780 = vmatprep.subr.bf16.mxu0 0
      %8781 = vmatpush1.bf16.msra.mxu0 %v8260
      %8782 = vmatprep.subr.bf16.mxu0 0
      %8783 = vmatpush1.bf16.msra.mxu0 %v8259
      %8784 = vmatprep.subr.bf16.mxu0 0
      %8785 = vmatpush1.bf16.msra.mxu0 %v8258
      %8786 = vmatprep.subr.bf16.mxu0 0
      %8787 = vmatpush2.bf16.msra.mxu0 %v8273
      %8788 = vmatprep.subr.bf16.mxu0 0
      %8789 = vmatpush2.bf16.msra.mxu0 %v8272
      %8790 = vmatprep.subr.bf16.mxu0 0
      %8791 = vmatpush2.bf16.msra.mxu0 %v8271
      %8792 = vmatprep.subr.bf16.mxu0 0
      %8793 = vmatpush2.bf16.msra.mxu0 %v8270
      %8794 = vmatprep.subr.bf16.mxu0 0
      %8795 = vmatpush2.bf16.msra.mxu0 %v8269
      %8796 = vmatprep.subr.bf16.mxu0 0
      %8797 = vmatpush2.bf16.msra.mxu0 %v8268
      %8798 = vmatprep.subr.bf16.mxu0 0
      %8799 = vmatpush2.bf16.msra.mxu0 %v8267
      %8800 = vmatprep.subr.bf16.mxu0 0
      %8801 = vmatpush2.bf16.msra.mxu0 %v8266
      %8802 = vmatprep.mubr.bf16.mxu0 %v6599
      %8803 = vmatmul.mubr.bf16.gmra.mxu0 %v6582
      %v8804 = vpop.f32.mrf.mxu0
      %v8805 = vadd.f32 %v8605, %v8804
      %v8806 = vpop.f32.mrf.mxu0
      %v8807 = vpop.f32.mrf.mxu0
      %v8808 = vadd.f32 %v8608, %v8807
      %v8809 = vpop.f32.mrf.mxu0
      %8810 = vmatprep.mubr.bf16.mxu0 %v6683
      %8811 = vmatmul.mubr.bf16.gmra.mxu0 %v6682
      %v8812 = vpop.f32.mrf.mxu0
      %v8813 = vadd.f32 %v8613, %v8812
      %v8814 = vpop.f32.mrf.mxu0
      %v8815 = vpop.f32.mrf.mxu0
      %v8816 = vadd.f32 %v8616, %v8815
      %v8817 = vpop.f32.mrf.mxu0
      %8818 = vmatprep.mubr.bf16.mxu0 %v6692
      %8819 = vmatmul.mubr.bf16.gmra.mxu0 %v6741
      %v8820 = vpop.f32.mrf.mxu0
      %v8821 = vadd.f32 %v8621, %v8820
      %v8822 = vpop.f32.mrf.mxu0
      %v8823 = vpop.f32.mrf.mxu0
      %v8824 = vadd.f32 %v8624, %v8823
      %v8825 = vpop.f32.mrf.mxu0
      %8826 = vmatprep.mubr.bf16.mxu0 %v6750
      %8827 = vmatmul.mubr.bf16.gmra.mxu0 %v6799
      %v8828 = vpop.f32.mrf.mxu0
      %v8829 = vadd.f32 %v8629, %v8828
      %v8830 = vpop.f32.mrf.mxu0
      %v8831 = vpop.f32.mrf.mxu0
      %v8832 = vadd.f32 %v8632, %v8831
      %v8833 = vpop.f32.mrf.mxu0
      %8834 = vmatprep.mubr.bf16.mxu0 %v6808
      %8835 = vmatmul.mubr.bf16.gmra.mxu0 %v6857
      %v8836 = vpop.f32.mrf.mxu0
      %v8837 = vadd.f32 %v8637, %v8836
      %v8838 = vpop.f32.mrf.mxu0
      %v8839 = vpop.f32.mrf.mxu0
      %v8840 = vadd.f32 %v8640, %v8839
      %v8841 = vpop.f32.mrf.mxu0
      %8842 = vmatprep.mubr.bf16.mxu0 %v6866
      %8843 = vmatmul.mubr.bf16.gmra.mxu0 %v6915
      %v8844 = vpop.f32.mrf.mxu0
      %v8845 = vadd.f32 %v8645, %v8844
      %v8846 = vpop.f32.mrf.mxu0
      %v8847 = vpop.f32.mrf.mxu0
      %v8848 = vadd.f32 %v8648, %v8847
      %v8849 = vpop.f32.mrf.mxu0
      %8850 = vmatprep.mubr.bf16.mxu0 %v6924
      %8851 = vmatmul.mubr.bf16.gmra.mxu0 %v6973
      %v8852 = vpop.f32.mrf.mxu0
      %v8853 = vadd.f32 %v8653, %v8852
      %v8854 = vpop.f32.mrf.mxu0
      %v8855 = vpop.f32.mrf.mxu0
      %v8856 = vadd.f32 %v8656, %v8855
      %v8857 = vpop.f32.mrf.mxu0
      %8858 = vmatprep.mubr.bf16.mxu0 %v6982
      %8859 = vmatmul.mubr.bf16.gmra.mxu0 %v7031
      %v8860 = vpop.f32.mrf.mxu0
      %v8861 = vadd.f32 %v8661, %v8860
      %v8862 = vpop.f32.mrf.mxu0
      %v8863 = vpop.f32.mrf.mxu0
      %v8864 = vadd.f32 %v8664, %v8863
      %v8865 = vpop.f32.mrf.mxu0
      %8866 = vmatprep.mubr.bf16.mxu0 %v7040
      %8867 = vmatmul.mubr.bf16.gmra.mxu0 %v7089
      %v8868 = vpop.f32.mrf.mxu0
      %v8869 = vadd.f32 %v8669, %v8868
      %v8870 = vpop.f32.mrf.mxu0
      %v8871 = vpop.f32.mrf.mxu0
      %v8872 = vadd.f32 %v8672, %v8871
      %v8873 = vpop.f32.mrf.mxu0
      %8874 = vmatprep.mubr.bf16.mxu0 %v7098
      %8875 = vmatmul.mubr.bf16.gmra.mxu0 %v7147
      %v8876 = vpop.f32.mrf.mxu0
      %v8877 = vadd.f32 %v8677, %v8876
      %v8878 = vpop.f32.mrf.mxu0
      %v8879 = vpop.f32.mrf.mxu0
      %v8880 = vadd.f32 %v8680, %v8879
      %v8881 = vpop.f32.mrf.mxu0
      %8882 = vmatprep.mubr.bf16.mxu0 %v7156
      %8883 = vmatmul.mubr.bf16.gmra.mxu0 %v7205
      %v8884 = vpop.f32.mrf.mxu0
      %v8885 = vadd.f32 %v8685, %v8884
      %v8886 = vpop.f32.mrf.mxu0
      %v8887 = vpop.f32.mrf.mxu0
      %v8888 = vadd.f32 %v8688, %v8887
      %v8889 = vpop.f32.mrf.mxu0
      %8890 = vmatprep.mubr.bf16.mxu0 %v7214
      %8891 = vmatmul.mubr.bf16.gmra.mxu0 %v7263
      %v8892 = vpop.f32.mrf.mxu0
      %v8893 = vadd.f32 %v8693, %v8892
      %v8894 = vpop.f32.mrf.mxu0
      %v8895 = vpop.f32.mrf.mxu0
      %v8896 = vadd.f32 %v8696, %v8895
      %v8897 = vpop.f32.mrf.mxu0
      %8898 = vmatprep.mubr.bf16.mxu0 %v7272
      %8899 = vmatmul.mubr.bf16.gmra.mxu0 %v7321
      %v8900 = vpop.f32.mrf.mxu0
      %v8901 = vadd.f32 %v8701, %v8900
      %v8902 = vpop.f32.mrf.mxu0
      %v8903 = vpop.f32.mrf.mxu0
      %v8904 = vadd.f32 %v8704, %v8903
      %v8905 = vpop.f32.mrf.mxu0
      %8906 = vmatprep.mubr.bf16.mxu0 %v7330
      %8907 = vmatmul.mubr.bf16.gmra.mxu0 %v7379
      %v8908 = vpop.f32.mrf.mxu0
      %v8909 = vadd.f32 %v8709, %v8908
      %v8910 = vpop.f32.mrf.mxu0
      %v8911 = vpop.f32.mrf.mxu0
      %v8912 = vadd.f32 %v8712, %v8911
      %v8913 = vpop.f32.mrf.mxu0
      %8914 = vmatprep.mubr.bf16.mxu0 %v7388
      %8915 = vmatmul.mubr.bf16.gmra.mxu0 %v7437
      %v8916 = vpop.f32.mrf.mxu0
      %v8917 = vadd.f32 %v8717, %v8916
      %v8918 = vpop.f32.mrf.mxu0
      %v8919 = vpop.f32.mrf.mxu0
      %v8920 = vadd.f32 %v8720, %v8919
      %v8921 = vpop.f32.mrf.mxu0
      %8922 = vmatprep.mubr.bf16.mxu0 %v7446
      %8923 = vmatmul.mubr.bf16.gmra.mxu0 %v7495
      %v8924 = vpop.f32.mrf.mxu0
      %v8925 = vadd.f32 %v8725, %v8924
      %v8926 = vpop.f32.mrf.mxu0
      %v8927 = vpop.f32.mrf.mxu0
      %v8928 = vadd.f32 %v8728, %v8927
      %v8929 = vpop.f32.mrf.mxu0
      %8930 = vmatprep.mubr.bf16.mxu0 %v7504
      %8931 = vmatmul.mubr.bf16.gmra.mxu0 %v7553
      %v8932 = vpop.f32.mrf.mxu0
      %v8933 = vadd.f32 %v8733, %v8932
      %v8934 = vpop.f32.mrf.mxu0
      %v8935 = vpop.f32.mrf.mxu0
      %v8936 = vadd.f32 %v8736, %v8935
      %v8937 = vpop.f32.mrf.mxu0
      %8938 = vmatprep.mubr.bf16.mxu0 %v7562
      %8939 = vmatmul.mubr.bf16.gmra.mxu0 %v7611
      %v8940 = vpop.f32.mrf.mxu0
      %v8941 = vadd.f32 %v8741, %v8940
      %v8942 = vpop.f32.mrf.mxu0
      %v8943 = vpop.f32.mrf.mxu0
      %v8944 = vadd.f32 %v8744, %v8943
      %v8945 = vpop.f32.mrf.mxu0
      %8946 = vmatprep.mubr.bf16.mxu0 %v7620
      %8947 = vmatmul.mubr.bf16.gmra.mxu0 %v7678
      %v8948 = vpop.f32.mrf.mxu0
      %v8949 = vadd.f32 %v8749, %v8948
      %v8950 = vpop.f32.mrf.mxu0
      %v8951 = vpop.f32.mrf.mxu0
      %v8952 = vadd.f32 %v8752, %v8951
      %v8953 = vpop.f32.mrf.mxu0
      %8954 = vmatprep.mubr.bf16.mxu0 %v7754
      %8955 = vmatmul.mubr.bf16.gmra.mxu0 %v7745
      %v8956 = vpop.f32.mrf.mxu0
      %v8957 = vadd.f32 %v8757, %v8956
      %v8958 = vpop.f32.mrf.mxu0
      %v8959 = vpop.f32.mrf.mxu0
      %v8960 = vadd.f32 %v8760, %v8959
      %v8961 = vpop.f32.mrf.mxu0
      %8962 = vmatprep.mubr.bf16.mxu0 %v7753
      %8963 = vmatmul.mubr.bf16.gmra.mxu0 %v7744
      %v8964 = vpop.f32.mrf.mxu0
      %v8965 = vadd.f32 %v8765, %v8964
      %v8966 = vpop.f32.mrf.mxu0
      %v8967 = vpop.f32.mrf.mxu0
      %v8968 = vpop.f32.mrf.mxu0
      %8969 = vdwg.mxu0
      %8970 = vmatprep.subr.bf16.mxu0 0
      %8971 = vmatpush1.bf16.msra.mxu0 %v8281
      %8972 = vmatprep.subr.bf16.mxu0 0
      %8973 = vmatpush1.bf16.msra.mxu0 %v8280
      %8974 = vmatprep.subr.bf16.mxu0 0
      %8975 = vmatpush1.bf16.msra.mxu0 %v8279
      %8976 = vmatprep.subr.bf16.mxu0 0
      %8977 = vmatpush1.bf16.msra.mxu0 %v8278
      %8978 = vmatprep.subr.bf16.mxu0 0
      %8979 = vmatpush1.bf16.msra.mxu0 %v8277
      %8980 = vmatprep.subr.bf16.mxu0 0
      %8981 = vmatpush1.bf16.msra.mxu0 %v8276
      %8982 = vmatprep.subr.bf16.mxu0 0
      %8983 = vmatpush1.bf16.msra.mxu0 %v8275
      %8984 = vmatprep.subr.bf16.mxu0 0
      %8985 = vmatpush1.bf16.msra.mxu0 %v8274
      %8986 = vmatprep.subr.bf16.mxu0 0
      %8987 = vmatpush2.bf16.msra.mxu0 %v8289
      %8988 = vmatprep.subr.bf16.mxu0 0
      %8989 = vmatpush2.bf16.msra.mxu0 %v8288
      %8990 = vmatprep.subr.bf16.mxu0 0
      %8991 = vmatpush2.bf16.msra.mxu0 %v8287
      %8992 = vmatprep.subr.bf16.mxu0 0
      %8993 = vmatpush2.bf16.msra.mxu0 %v8286
      %8994 = vmatprep.subr.bf16.mxu0 0
      %8995 = vmatpush2.bf16.msra.mxu0 %v8285
      %8996 = vmatprep.subr.bf16.mxu0 0
      %8997 = vmatpush2.bf16.msra.mxu0 %v8284
      %8998 = vmatprep.subr.bf16.mxu0 0
      %8999 = vmatpush2.bf16.msra.mxu0 %v8283
      %9000 = vmatprep.subr.bf16.mxu0 0
      %9001 = vmatpush2.bf16.msra.mxu0 %v8282
      %9002 = vmatprep.mubr.bf16.mxu0 %v6633
      %9003 = vmatmul.mubr.bf16.gmra.mxu0 %v6616
      %v9004 = vpop.f32.mrf.mxu0
      %v9005 = vadd.f32 %v8805, %v9004
      %v9006 = vpop.f32.mrf.mxu0
      %v9007 = vpop.f32.mrf.mxu0
      %v9008 = vadd.f32 %v8808, %v9007
      %v9009 = vpop.f32.mrf.mxu0
      %9010 = vmatprep.mubr.bf16.mxu0 %v6701
      %9011 = vmatmul.mubr.bf16.gmra.mxu0 %v6692
      %v9012 = vpop.f32.mrf.mxu0
      %v9013 = vadd.f32 %v8813, %v9012
      %v9014 = vpop.f32.mrf.mxu0
      %v9015 = vpop.f32.mrf.mxu0
      %v9016 = vadd.f32 %v8816, %v9015
      %v9017 = vpop.f32.mrf.mxu0
      %9018 = vmatprep.mubr.bf16.mxu0 %v6759
      %9019 = vmatmul.mubr.bf16.gmra.mxu0 %v6750
      %v9020 = vpop.f32.mrf.mxu0
      %v9021 = vadd.f32 %v8821, %v9020
      %v9022 = vpop.f32.mrf.mxu0
      %v9023 = vpop.f32.mrf.mxu0
      %v9024 = vadd.f32 %v8824, %v9023
      %v9025 = vpop.f32.mrf.mxu0
      %9026 = vmatprep.mubr.bf16.mxu0 %v6817
      %9027 = vmatmul.mubr.bf16.gmra.mxu0 %v6808
      %v9028 = vpop.f32.mrf.mxu0
      %v9029 = vadd.f32 %v8829, %v9028
      %v9030 = vpop.f32.mrf.mxu0
      %v9031 = vpop.f32.mrf.mxu0
      %v9032 = vadd.f32 %v8832, %v9031
      %v9033 = vpop.f32.mrf.mxu0
      %9034 = vmatprep.mubr.bf16.mxu0 %v6875
      %9035 = vmatmul.mubr.bf16.gmra.mxu0 %v6866
      %v9036 = vpop.f32.mrf.mxu0
      %v9037 = vadd.f32 %v8837, %v9036
      %v9038 = vpop.f32.mrf.mxu0
      %v9039 = vpop.f32.mrf.mxu0
      %v9040 = vadd.f32 %v8840, %v9039
      %v9041 = vpop.f32.mrf.mxu0
      %9042 = vmatprep.mubr.bf16.mxu0 %v6933
      %9043 = vmatmul.mubr.bf16.gmra.mxu0 %v6924
      %v9044 = vpop.f32.mrf.mxu0
      %v9045 = vadd.f32 %v8845, %v9044
      %v9046 = vpop.f32.mrf.mxu0
      %v9047 = vpop.f32.mrf.mxu0
      %v9048 = vadd.f32 %v8848, %v9047
      %v9049 = vpop.f32.mrf.mxu0
      %9050 = vmatprep.mubr.bf16.mxu0 %v6991
      %9051 = vmatmul.mubr.bf16.gmra.mxu0 %v6982
      %v9052 = vpop.f32.mrf.mxu0
      %v9053 = vadd.f32 %v8853, %v9052
      %v9054 = vpop.f32.mrf.mxu0
      %v9055 = vpop.f32.mrf.mxu0
      %v9056 = vadd.f32 %v8856, %v9055
      %v9057 = vpop.f32.mrf.mxu0
      %9058 = vmatprep.mubr.bf16.mxu0 %v7049
      %9059 = vmatmul.mubr.bf16.gmra.mxu0 %v7040
      %v9060 = vpop.f32.mrf.mxu0
      %v9061 = vadd.f32 %v8861, %v9060
      %v9062 = vpop.f32.mrf.mxu0
      %v9063 = vpop.f32.mrf.mxu0
      %v9064 = vadd.f32 %v8864, %v9063
      %v9065 = vpop.f32.mrf.mxu0
      %9066 = vmatprep.mubr.bf16.mxu0 %v7107
      %9067 = vmatmul.mubr.bf16.gmra.mxu0 %v7098
      %v9068 = vpop.f32.mrf.mxu0
      %v9069 = vadd.f32 %v8869, %v9068
      %v9070 = vpop.f32.mrf.mxu0
      %v9071 = vpop.f32.mrf.mxu0
      %v9072 = vadd.f32 %v8872, %v9071
      %v9073 = vpop.f32.mrf.mxu0
      %9074 = vmatprep.mubr.bf16.mxu0 %v7165
      %9075 = vmatmul.mubr.bf16.gmra.mxu0 %v7156
      %v9076 = vpop.f32.mrf.mxu0
      %v9077 = vadd.f32 %v8877, %v9076
      %v9078 = vpop.f32.mrf.mxu0
      %v9079 = vpop.f32.mrf.mxu0
      %v9080 = vadd.f32 %v8880, %v9079
      %v9081 = vpop.f32.mrf.mxu0
      %9082 = vmatprep.mubr.bf16.mxu0 %v7223
      %9083 = vmatmul.mubr.bf16.gmra.mxu0 %v7214
      %v9084 = vpop.f32.mrf.mxu0
      %v9085 = vadd.f32 %v8885, %v9084
      %v9086 = vpop.f32.mrf.mxu0
      %v9087 = vpop.f32.mrf.mxu0
      %v9088 = vadd.f32 %v8888, %v9087
      %v9089 = vpop.f32.mrf.mxu0
      %9090 = vmatprep.mubr.bf16.mxu0 %v7281
      %9091 = vmatmul.mubr.bf16.gmra.mxu0 %v7272
      %v9092 = vpop.f32.mrf.mxu0
      %v9093 = vadd.f32 %v8893, %v9092
      %v9094 = vpop.f32.mrf.mxu0
      %v9095 = vpop.f32.mrf.mxu0
      %v9096 = vadd.f32 %v8896, %v9095
      %v9097 = vpop.f32.mrf.mxu0
      %9098 = vmatprep.mubr.bf16.mxu0 %v7339
      %9099 = vmatmul.mubr.bf16.gmra.mxu0 %v7330
      %v9100 = vpop.f32.mrf.mxu0
      %v9101 = vadd.f32 %v8901, %v9100
      %v9102 = vpop.f32.mrf.mxu0
      %v9103 = vpop.f32.mrf.mxu0
      %v9104 = vadd.f32 %v8904, %v9103
      %v9105 = vpop.f32.mrf.mxu0
      %9106 = vmatprep.mubr.bf16.mxu0 %v7397
      %9107 = vmatmul.mubr.bf16.gmra.mxu0 %v7388
      %v9108 = vpop.f32.mrf.mxu0
      %v9109 = vadd.f32 %v8909, %v9108
      %v9110 = vpop.f32.mrf.mxu0
      %v9111 = vpop.f32.mrf.mxu0
      %v9112 = vadd.f32 %v8912, %v9111
      %v9113 = vpop.f32.mrf.mxu0
      %9114 = vmatprep.mubr.bf16.mxu0 %v7455
      %9115 = vmatmul.mubr.bf16.gmra.mxu0 %v7446
      %v9116 = vpop.f32.mrf.mxu0
      %v9117 = vadd.f32 %v8917, %v9116
      %v9118 = vpop.f32.mrf.mxu0
      %v9119 = vpop.f32.mrf.mxu0
      %v9120 = vadd.f32 %v8920, %v9119
      %v9121 = vpop.f32.mrf.mxu0
      %9122 = vmatprep.mubr.bf16.mxu0 %v7513
      %9123 = vmatmul.mubr.bf16.gmra.mxu0 %v7504
      %v9124 = vpop.f32.mrf.mxu0
      %v9125 = vadd.f32 %v8925, %v9124
      %v9126 = vpop.f32.mrf.mxu0
      %v9127 = vpop.f32.mrf.mxu0
      %v9128 = vadd.f32 %v8928, %v9127
      %v9129 = vpop.f32.mrf.mxu0
      %9130 = vmatprep.mubr.bf16.mxu0 %v7571
      %9131 = vmatmul.mubr.bf16.gmra.mxu0 %v7562
      %v9132 = vpop.f32.mrf.mxu0
      %v9133 = vadd.f32 %v8933, %v9132
      %v9134 = vpop.f32.mrf.mxu0
      %v9135 = vpop.f32.mrf.mxu0
      %v9136 = vadd.f32 %v8936, %v9135
      %v9137 = vpop.f32.mrf.mxu0
      %9138 = vmatprep.mubr.bf16.mxu0 %v7629
      %9139 = vmatmul.mubr.bf16.gmra.mxu0 %v7620
      %v9140 = vpop.f32.mrf.mxu0
      %v9141 = vadd.f32 %v8941, %v9140
      %v9142 = vpop.f32.mrf.mxu0
      %v9143 = vpop.f32.mrf.mxu0
      %v9144 = vadd.f32 %v8944, %v9143
      %v9145 = vpop.f32.mrf.mxu0
      %9146 = vmatprep.mubr.bf16.mxu0 %v7696
      %9147 = vmatmul.mubr.bf16.gmra.mxu0 %v7687
      %v9148 = vpop.f32.mrf.mxu0
      %v9149 = vadd.f32 %v8949, %v9148
      %v9150 = vpop.f32.mrf.mxu0
      %v9151 = vpop.f32.mrf.mxu0
      %v9152 = vadd.f32 %v8952, %v9151
      %v9153 = vpop.f32.mrf.mxu0
      %9154 = vmatprep.mubr.bf16.mxu0 %v7772
      %9155 = vmatmul.mubr.bf16.gmra.mxu0 %v7763
      %v9156 = vpop.f32.mrf.mxu0
      %v9157 = vadd.f32 %v8957, %v9156
      %v9158 = vpop.f32.mrf.mxu0
      %v9159 = vpop.f32.mrf.mxu0
      %v9160 = vadd.f32 %v8960, %v9159
      %v9161 = vpop.f32.mrf.mxu0
      %9162 = vmatprep.mubr.bf16.mxu0 %v7771
      %9163 = vmatmul.mubr.bf16.gmra.mxu0 %v7762
      %v9164 = vpop.f32.mrf.mxu0
      %v9165 = vadd.f32 %v8965, %v9164
      %v9166 = vpop.f32.mrf.mxu0
      %v9167 = vpop.f32.mrf.mxu0
      %v9168 = vpop.f32.mrf.mxu0
      %9169 = vdwg.mxu0
      %9170 = vmatprep.subr.bf16.mxu0 0
      %9171 = vmatpush1.bf16.msra.mxu0 %v8297
      %9172 = vmatprep.subr.bf16.mxu0 0
      %9173 = vmatpush1.bf16.msra.mxu0 %v8296
      %9174 = vmatprep.subr.bf16.mxu0 0
      %9175 = vmatpush1.bf16.msra.mxu0 %v8295
      %9176 = vmatprep.subr.bf16.mxu0 0
      %9177 = vmatpush1.bf16.msra.mxu0 %v8294
      %9178 = vmatprep.subr.bf16.mxu0 0
      %9179 = vmatpush1.bf16.msra.mxu0 %v8293
      %9180 = vmatprep.subr.bf16.mxu0 0
      %9181 = vmatpush1.bf16.msra.mxu0 %v8292
      %9182 = vmatprep.subr.bf16.mxu0 0
      %9183 = vmatpush1.bf16.msra.mxu0 %v8291
      %9184 = vmatprep.subr.bf16.mxu0 0
      %9185 = vmatpush1.bf16.msra.mxu0 %v8290
      %9186 = vmatprep.subr.bf16.mxu0 0
      %9187 = vmatpush2.bf16.msra.mxu0 0
      %9188 = vmatprep.subr.bf16.mxu0 0
      %9189 = vmatpush2.bf16.msra.mxu0 0
      %9190 = vmatprep.subr.bf16.mxu0 0
      %9191 = vmatpush2.bf16.msra.mxu0 0
      %9192 = vmatprep.subr.bf16.mxu0 0
      %9193 = vmatpush2.bf16.msra.mxu0 0
      %9194 = vmatprep.subr.bf16.mxu0 0
      %9195 = vmatpush2.bf16.msra.mxu0 0
      %9196 = vmatprep.subr.bf16.mxu0 0
      %9197 = vmatpush2.bf16.msra.mxu0 0
      %9198 = vmatprep.subr.bf16.mxu0 0
      %9199 = vmatpush2.bf16.msra.mxu0 0
      %9200 = vmatprep.subr.bf16.mxu0 0
      %9201 = vmatpush2.bf16.msra.mxu0 0
      %9202 = vmatprep.mubr.bf16.mxu0 0
      %9203 = vmatmul.mubr.bf16.gmra.mxu0 %v6650
      %v9204 = vpop.f32.mrf.mxu0
      %v9205 = vadd.f32 %v9005, %v9204
      %v9206 = vpop.f32.mrf.mxu0
      %v9207 = vpop.f32.mrf.mxu0
      %v9208 = vadd.f32 %v9008, %v9207
      %v9209 = vpop.f32.mrf.mxu0
      %9210 = vmatprep.mubr.bf16.mxu0 0
      %9211 = vmatmul.mubr.bf16.gmra.mxu0 %v6710
      %v9212 = vpop.f32.mrf.mxu0
      %v9213 = vadd.f32 %v9013, %v9212
      %v9214 = vpop.f32.mrf.mxu0
      %v9215 = vpop.f32.mrf.mxu0
      %v9216 = vadd.f32 %v9016, %v9215
      %v9217 = vpop.f32.mrf.mxu0
      %9218 = vmatprep.mubr.bf16.mxu0 0
      %9219 = vmatmul.mubr.bf16.gmra.mxu0 %v6768
      %v9220 = vpop.f32.mrf.mxu0
      %v9221 = vadd.f32 %v9021, %v9220
      %v9222 = vpop.f32.mrf.mxu0
      %v9223 = vpop.f32.mrf.mxu0
      %v9224 = vadd.f32 %v9024, %v9223
      %v9225 = vpop.f32.mrf.mxu0
      %9226 = vmatprep.mubr.bf16.mxu0 0
      %9227 = vmatmul.mubr.bf16.gmra.mxu0 %v6826
      %v9228 = vpop.f32.mrf.mxu0
      %v9229 = vadd.f32 %v9029, %v9228
      %v9230 = vpop.f32.mrf.mxu0
      %v9231 = vpop.f32.mrf.mxu0
      %v9232 = vadd.f32 %v9032, %v9231
      %v9233 = vpop.f32.mrf.mxu0
      %9234 = vmatprep.mubr.bf16.mxu0 0
      %9235 = vmatmul.mubr.bf16.gmra.mxu0 %v6884
      %v9236 = vpop.f32.mrf.mxu0
      %v9237 = vadd.f32 %v9037, %v9236
      %v9238 = vpop.f32.mrf.mxu0
      %v9239 = vpop.f32.mrf.mxu0
      %v9240 = vadd.f32 %v9040, %v9239
      %v9241 = vpop.f32.mrf.mxu0
      %9242 = vmatprep.mubr.bf16.mxu0 0
      %9243 = vmatmul.mubr.bf16.gmra.mxu0 %v6942
      %v9244 = vpop.f32.mrf.mxu0
      %v9245 = vadd.f32 %v9045, %v9244
      %v9246 = vpop.f32.mrf.mxu0
      %v9247 = vpop.f32.mrf.mxu0
      %v9248 = vadd.f32 %v9048, %v9247
      %v9249 = vpop.f32.mrf.mxu0
      %9250 = vmatprep.mubr.bf16.mxu0 0
      %9251 = vmatmul.mubr.bf16.gmra.mxu0 %v7000
      %v9252 = vpop.f32.mrf.mxu0
      %v9253 = vadd.f32 %v9053, %v9252
      %v9254 = vpop.f32.mrf.mxu0
      %v9255 = vpop.f32.mrf.mxu0
      %v9256 = vadd.f32 %v9056, %v9255
      %v9257 = vpop.f32.mrf.mxu0
      %9258 = vmatprep.mubr.bf16.mxu0 0
      %9259 = vmatmul.mubr.bf16.gmra.mxu0 %v7058
      %v9260 = vpop.f32.mrf.mxu0
      %v9261 = vadd.f32 %v9061, %v9260
      %v9262 = vpop.f32.mrf.mxu0
      %v9263 = vpop.f32.mrf.mxu0
      %v9264 = vadd.f32 %v9064, %v9263
      %v9265 = vpop.f32.mrf.mxu0
      %9266 = vmatprep.mubr.bf16.mxu0 0
      %9267 = vmatmul.mubr.bf16.gmra.mxu0 %v7116
      %v9268 = vpop.f32.mrf.mxu0
      %v9269 = vadd.f32 %v9069, %v9268
      %v9270 = vpop.f32.mrf.mxu0
      %v9271 = vpop.f32.mrf.mxu0
      %v9272 = vadd.f32 %v9072, %v9271
      %v9273 = vpop.f32.mrf.mxu0
      %9274 = vmatprep.mubr.bf16.mxu0 0
      %9275 = vmatmul.mubr.bf16.gmra.mxu0 %v7174
      %v9276 = vpop.f32.mrf.mxu0
      %v9277 = vadd.f32 %v9077, %v9276
      %v9278 = vpop.f32.mrf.mxu0
      %v9279 = vpop.f32.mrf.mxu0
      %v9280 = vadd.f32 %v9080, %v9279
      %v9281 = vpop.f32.mrf.mxu0
      %9282 = vmatprep.mubr.bf16.mxu0 0
      %9283 = vmatmul.mubr.bf16.gmra.mxu0 %v7232
      %v9284 = vpop.f32.mrf.mxu0
      %v9285 = vadd.f32 %v9085, %v9284
      %v9286 = vpop.f32.mrf.mxu0
      %v9287 = vpop.f32.mrf.mxu0
      %v9288 = vadd.f32 %v9088, %v9287
      %v9289 = vpop.f32.mrf.mxu0
      %9290 = vmatprep.mubr.bf16.mxu0 0
      %9291 = vmatmul.mubr.bf16.gmra.mxu0 %v7290
      %v9292 = vpop.f32.mrf.mxu0
      %v9293 = vadd.f32 %v9093, %v9292
      %v9294 = vpop.f32.mrf.mxu0
      %v9295 = vpop.f32.mrf.mxu0
      %v9296 = vadd.f32 %v9096, %v9295
      %v9297 = vpop.f32.mrf.mxu0
      %9298 = vmatprep.mubr.bf16.mxu0 0
      %9299 = vmatmul.mubr.bf16.gmra.mxu0 %v7348
      %v9300 = vpop.f32.mrf.mxu0
      %v9301 = vadd.f32 %v9101, %v9300
      %v9302 = vpop.f32.mrf.mxu0
      %v9303 = vpop.f32.mrf.mxu0
      %v9304 = vadd.f32 %v9104, %v9303
      %v9305 = vpop.f32.mrf.mxu0
      %9306 = vmatprep.mubr.bf16.mxu0 0
      %9307 = vmatmul.mubr.bf16.gmra.mxu0 %v7406
      %v9308 = vpop.f32.mrf.mxu0
      %v9309 = vadd.f32 %v9109, %v9308
      %v9310 = vpop.f32.mrf.mxu0
      %v9311 = vpop.f32.mrf.mxu0
      %v9312 = vadd.f32 %v9112, %v9311
      %v9313 = vpop.f32.mrf.mxu0
      %9314 = vmatprep.mubr.bf16.mxu0 0
      %9315 = vmatmul.mubr.bf16.gmra.mxu0 %v7464
      %v9316 = vpop.f32.mrf.mxu0
      %v9317 = vadd.f32 %v9117, %v9316
      %v9318 = vpop.f32.mrf.mxu0
      %v9319 = vpop.f32.mrf.mxu0
      %v9320 = vadd.f32 %v9120, %v9319
      %v9321 = vpop.f32.mrf.mxu0
      %9322 = vmatprep.mubr.bf16.mxu0 0
      %9323 = vmatmul.mubr.bf16.gmra.mxu0 %v7522
      %v9324 = vpop.f32.mrf.mxu0
      %v9325 = vadd.f32 %v9125, %v9324
      %v9326 = vpop.f32.mrf.mxu0
      %v9327 = vpop.f32.mrf.mxu0
      %v9328 = vadd.f32 %v9128, %v9327
      %v9329 = vpop.f32.mrf.mxu0
      %9330 = vmatprep.mubr.bf16.mxu0 0
      %9331 = vmatmul.mubr.bf16.gmra.mxu0 %v7580
      %v9332 = vpop.f32.mrf.mxu0
      %v9333 = vadd.f32 %v9133, %v9332
      %v9334 = vpop.f32.mrf.mxu0
      %v9335 = vpop.f32.mrf.mxu0
      %v9336 = vadd.f32 %v9136, %v9335
      %v9337 = vpop.f32.mrf.mxu0
      %9338 = vmatprep.mubr.bf16.mxu0 0
      %9339 = vmatmul.mubr.bf16.gmra.mxu0 %v7638
      %v9340 = vpop.f32.mrf.mxu0
      %v9341 = vadd.f32 %v9141, %v9340
      %v9342 = vpop.f32.mrf.mxu0
      %v9343 = vpop.f32.mrf.mxu0
      %v9344 = vadd.f32 %v9144, %v9343
      %v9345 = vpop.f32.mrf.mxu0
      %9346 = vmatprep.mubr.bf16.mxu0 0
      %9347 = vmatmul.mubr.bf16.gmra.mxu0 %v7705
      %v9348 = vpop.f32.mrf.mxu0
      %v9349 = vadd.f32 %v9149, %v9348
      %v9350 = vpop.f32.mrf.mxu0
      %v9351 = vpop.f32.mrf.mxu0
      %v9352 = vadd.f32 %v9152, %v9351
      %v9353 = vpop.f32.mrf.mxu0
      %9354 = vmatprep.mubr.bf16.mxu0 0
      %9355 = vmatmul.mubr.bf16.gmra.mxu0 %v7781
      %v9356 = vpop.f32.mrf.mxu0
      %v9357 = vadd.f32 %v9157, %v9356
      %v9358 = vpop.f32.mrf.mxu0
      %v9359 = vpop.f32.mrf.mxu0
      %v9360 = vadd.f32 %v9160, %v9359
      %v9361 = vpop.f32.mrf.mxu0
      %9362 = vmatprep.mubr.bf16.mxu0 0
      %9363 = vmatmul.mubr.bf16.gmra.mxu0 %v7780
      %v9364 = vpop.f32.mrf.mxu0
      %v9365 = vadd.f32 %v9165, %v9364
      %v9366 = vpop.f32.mrf.mxu0
      %v9367 = vpop.f32.mrf.mxu0
      %v9368 = vpop.f32.mrf.mxu0
      %9369 = vdwg.mxu0
      %v9370 = vld [vmem:[%s5] sm:$0x1]
      %v9371 = vld [vmem:[%s6] sm:$0x1]
      %v9372 = vmul.f32 %v9205, %v4308
      %v9373 = vmul.f32 %v9208, %v4313
      %v9374 = vmul.f32 %v9213, %v4318
      %v9375 = vmul.f32 %v9216, %v4323
      %v9376 = vmul.f32 %v9221, %v4328
      %v9377 = vmul.f32 %v9224, %v4333
      %v9378 = vmul.f32 %v9229, %v4338
      %v9379 = vmul.f32 %v9232, %v4343
      %v9380 = vmul.f32 %v9237, %v4348
      %v9381 = vmul.f32 %v9240, %v4353
      %v9382 = vmul.f32 %v9245, %v4358
      %v9383 = vmul.f32 %v9248, %v4363
      %v9384 = vmul.f32 %v9253, %v4368
      %v9385 = vmul.f32 %v9256, %v4373
      %v9386 = vmul.f32 %v9261, %v4378
      %v9387 = vmul.f32 %v9264, %v4383
      %v9388 = vmul.f32 %v9269, %v4388
      %v9389 = vmul.f32 %v9272, %v4393
      %v9390 = vmul.f32 %v9277, %v4398
      %v9391 = vmul.f32 %v9280, %v4403
      %v9392 = vmul.f32 %v9285, %v4408
      %v9393 = vmul.f32 %v9288, %v4413
      %v9394 = vmul.f32 %v9293, %v4418
      %v9395 = vmul.f32 %v9296, %v4423
      %v9396 = vmul.f32 %v9301, %v4428
      %v9397 = vmul.f32 %v9304, %v4433
      %v9398 = vmul.f32 %v9309, %v4438
      %v9399 = vmul.f32 %v9312, %v4443
      %v9400 = vmul.f32 %v9317, %v4448
      %v9401 = vmul.f32 %v9320, %v4453
      %v9402 = vmul.f32 %v9325, %v4458
      %v9403 = vmul.f32 %v9328, %v4463
      %v9404 = vmul.f32 %v9333, %v4468
      %v9405 = vmul.f32 %v9336, %v4473
      %v9406 = vmul.f32 %v9341, %v4478
      %v9407 = vmul.f32 %v9344, %v4483
      %v9408 = vmul.f32 %v9349, %v4488
      %v9409 = vmul.f32 %v9352, %v4493
      %v9410 = vmul.f32 %v9357, %v4498
      %v9411 = vmul.f32 %v9360, %v4503
      %v9412 = vmul.f32 %v9365, %v4508
      %v9413 = vadd.f32 %v9372, %v9373
      %v9414 = vadd.f32 %v9413, %v9374
      %v9415 = vadd.f32 %v9414, %v9375
      %v9416 = vadd.f32 %v9415, %v9376
      %v9417 = vadd.f32 %v9416, %v9377
      %v9418 = vadd.f32 %v9417, %v9378
      %v9419 = vadd.f32 %v9418, %v9379
      %v9420 = vadd.f32 %v9419, %v9380
      %v9421 = vadd.f32 %v9420, %v9381
      %v9422 = vadd.f32 %v9421, %v9382
      %v9423 = vadd.f32 %v9422, %v9383
      %v9424 = vadd.f32 %v9423, %v9384
      %v9425 = vadd.f32 %v9424, %v9385
      %v9426 = vadd.f32 %v9425, %v9386
      %v9427 = vadd.f32 %v9426, %v9387
      %v9428 = vadd.f32 %v9427, %v9388
      %v9429 = vadd.f32 %v9428, %v9389
      %v9430 = vadd.f32 %v9429, %v9390
      %v9431 = vadd.f32 %v9430, %v9391
      %v9432 = vadd.f32 %v9431, %v9392
      %v9433 = vadd.f32 %v9432, %v9393
      %v9434 = vadd.f32 %v9433, %v9394
      %v9435 = vadd.f32 %v9434, %v9395
      %v9436 = vadd.f32 %v9435, %v9396
      %v9437 = vadd.f32 %v9436, %v9397
      %v9438 = vadd.f32 %v9437, %v9398
      %v9439 = vadd.f32 %v9438, %v9399
      %v9440 = vadd.f32 %v9439, %v9400
      %v9441 = vadd.f32 %v9440, %v9401
      %v9442 = vadd.f32 %v9441, %v9402
      %v9443 = vadd.f32 %v9442, %v9403
      %v9444 = vadd.f32 %v9443, %v9404
      %v9445 = vadd.f32 %v9444, %v9405
      %v9446 = vadd.f32 %v9445, %v9406
      %v9447 = vadd.f32 %v9446, %v9407
      %v9448 = vadd.f32 %v9447, %v9408
      %v9449 = vadd.f32 %v9448, %v9409
      %v9450 = vadd.f32 %v9449, %v9410
      %v9451 = vadd.f32 %v9450, %v9411
      %v9452 = vsel %vm4590, %v9412, 0.0
      %v9453 = vadd.f32 %v9451, %v9452
      %v9454 = vrot.slane %v9453, 4
      %v9455 = vadd.f32 %v9453, %v9454
      %v9456 = vrot.slane %v9455, 2
      %v9457 = vadd.f32 %v9455, %v9456
      %v9458 = vrot.slane %v9457, 1
      %v9459 = vadd.f32 %v9457, %v9458
      %v9460 = vmul.f32 %v9372, %v9372
      %v9461 = vmul.f32 %v9373, %v9373
      %v9462 = vmul.f32 %v9374, %v9374
      %v9463 = vmul.f32 %v9375, %v9375
      %v9464 = vmul.f32 %v9376, %v9376
      %v9465 = vmul.f32 %v9377, %v9377
      %v9466 = vmul.f32 %v9378, %v9378
      %v9467 = vmul.f32 %v9379, %v9379
      %v9468 = vmul.f32 %v9380, %v9380
      %v9469 = vmul.f32 %v9381, %v9381
      %v9470 = vmul.f32 %v9382, %v9382
      %v9471 = vmul.f32 %v9383, %v9383
      %v9472 = vmul.f32 %v9384, %v9384
      %v9473 = vmul.f32 %v9385, %v9385
      %v9474 = vmul.f32 %v9386, %v9386
      %v9475 = vmul.f32 %v9387, %v9387
      %v9476 = vmul.f32 %v9388, %v9388
      %v9477 = vmul.f32 %v9389, %v9389
      %v9478 = vmul.f32 %v9390, %v9390
      %v9479 = vmul.f32 %v9391, %v9391
      %v9480 = vmul.f32 %v9392, %v9392
      %v9481 = vmul.f32 %v9393, %v9393
      %v9482 = vmul.f32 %v9394, %v9394
      %v9483 = vmul.f32 %v9395, %v9395
      %v9484 = vmul.f32 %v9396, %v9396
      %v9485 = vmul.f32 %v9397, %v9397
      %v9486 = vmul.f32 %v9398, %v9398
      %v9487 = vmul.f32 %v9399, %v9399
      %v9488 = vmul.f32 %v9400, %v9400
      %v9489 = vmul.f32 %v9401, %v9401
      %v9490 = vmul.f32 %v9402, %v9402
      %v9491 = vmul.f32 %v9403, %v9403
      %v9492 = vmul.f32 %v9404, %v9404
      %v9493 = vmul.f32 %v9405, %v9405
      %v9494 = vmul.f32 %v9406, %v9406
      %v9495 = vmul.f32 %v9407, %v9407
      %v9496 = vmul.f32 %v9408, %v9408
      %v9497 = vmul.f32 %v9409, %v9409
      %v9498 = vmul.f32 %v9410, %v9410
      %v9499 = vmul.f32 %v9411, %v9411
      %v9500 = vmul.f32 %v9412, %v9412
      %v9501 = vadd.f32 %v9460, %v9461
      %v9502 = vadd.f32 %v9501, %v9462
      %v9503 = vadd.f32 %v9502, %v9463
      %v9504 = vadd.f32 %v9503, %v9464
      %v9505 = vadd.f32 %v9504, %v9465
      %v9506 = vadd.f32 %v9505, %v9466
      %v9507 = vadd.f32 %v9506, %v9467
      %v9508 = vadd.f32 %v9507, %v9468
      %v9509 = vadd.f32 %v9508, %v9469
      %v9510 = vadd.f32 %v9509, %v9470
      %v9511 = vadd.f32 %v9510, %v9471
      %v9512 = vadd.f32 %v9511, %v9472
      %v9513 = vadd.f32 %v9512, %v9473
      %v9514 = vadd.f32 %v9513, %v9474
      %v9515 = vadd.f32 %v9514, %v9475
      %v9516 = vadd.f32 %v9515, %v9476
      %v9517 = vadd.f32 %v9516, %v9477
      %v9518 = vadd.f32 %v9517, %v9478
      %v9519 = vadd.f32 %v9518, %v9479
      %v9520 = vadd.f32 %v9519, %v9480
      %v9521 = vadd.f32 %v9520, %v9481
      %v9522 = vadd.f32 %v9521, %v9482
      %v9523 = vadd.f32 %v9522, %v9483
      %v9524 = vadd.f32 %v9523, %v9484
      %v9525 = vadd.f32 %v9524, %v9485
      %v9526 = vadd.f32 %v9525, %v9486
      %v9527 = vadd.f32 %v9526, %v9487
      %v9528 = vadd.f32 %v9527, %v9488
      %v9529 = vadd.f32 %v9528, %v9489
      %v9530 = vadd.f32 %v9529, %v9490
      %v9531 = vadd.f32 %v9530, %v9491
      %v9532 = vadd.f32 %v9531, %v9492
      %v9533 = vadd.f32 %v9532, %v9493
      %v9534 = vadd.f32 %v9533, %v9494
      %v9535 = vadd.f32 %v9534, %v9495
      %v9536 = vadd.f32 %v9535, %v9496
      %v9537 = vadd.f32 %v9536, %v9497
      %v9538 = vadd.f32 %v9537, %v9498
      %v9539 = vadd.f32 %v9538, %v9499
      %v9540 = vsel %vm4590, %v9500, 0.0
      %v9541 = vadd.f32 %v9539, %v9540
      %v9542 = vrot.slane %v9541, 4
      %v9543 = vadd.f32 %v9541, %v9542
      %v9544 = vrot.slane %v9543, 2
      %v9545 = vadd.f32 %v9543, %v9544
      %v9546 = vrot.slane %v9545, 1
      %v9547 = vadd.f32 %v9545, %v9546
      %9548 = vmatprep.subr.mxu0 0.0
      %9549 = vmatpush1.msra.mxu0 %v484
      %9550 = vmatprep.subr.mxu0 0.0
      %9551 = vmatpush1.msra.mxu0 %v483
      %9552 = vmatprep.subr.mxu0 0.0
      %9553 = vmatpush1.msra.mxu0 %v482
      %9554 = vmatprep.subr.mxu0 0.0
      %9555 = vmatpush1.msra.mxu0 %v481
      %9556 = vmatprep.subr.mxu0 0.0
      %9557 = vmatpush1.msra.mxu0 %v480
      %9558 = vmatprep.subr.mxu0 0.0
      %9559 = vmatpush1.msra.mxu0 %v479
      %9560 = vmatprep.subr.mxu0 0.0
      %9561 = vmatpush1.msra.mxu0 %v478
      %9562 = vmatprep.subr.mxu0 0.0
      %9563 = vmatpush1.msra.mxu0 %v477
      %9564 = vmatprep.subr.mxu0 0.0
      %9565 = vmatpush1.msra.mxu0 %v476
      %9566 = vmatprep.subr.mxu0 0.0
      %9567 = vmatpush1.msra.mxu0 %v475
      %9568 = vmatprep.subr.mxu0 0.0
      %9569 = vmatpush1.msra.mxu0 %v474
      %9570 = vmatprep.subr.mxu0 0.0
      %9571 = vmatpush1.msra.mxu0 %v473
      %9572 = vmatprep.subr.mxu0 0.0
      %9573 = vmatpush1.msra.mxu0 %v472
      %9574 = vmatprep.subr.mxu0 0.0
      %9575 = vmatpush1.msra.mxu0 %v471
      %9576 = vmatprep.subr.mxu0 0.0
      %9577 = vmatpush1.msra.mxu0 %v470
      %9578 = vmatprep.subr.mxu0 0.0
      %9579 = vmatpush1.msra.mxu0 %v469
      %9580 = vmatprep.subr.mxu0 0.0
      %9581 = vmatpush2.msra.mxu0 0.0
      %9582 = vmatprep.subr.mxu0 0.0
      %9583 = vmatpush2.msra.mxu0 0.0
      %9584 = vmatprep.subr.mxu0 0.0
      %9585 = vmatpush2.msra.mxu0 0.0
      %9586 = vmatprep.subr.mxu0 0.0
      %9587 = vmatpush2.msra.mxu0 0.0
      %9588 = vmatprep.subr.mxu0 0.0
      %9589 = vmatpush2.msra.mxu0 0.0
      %9590 = vmatprep.subr.mxu0 0.0
      %9591 = vmatpush2.msra.mxu0 0.0
      %9592 = vmatprep.subr.mxu0 0.0
      %9593 = vmatpush2.msra.mxu0 0.0
      %9594 = vmatprep.subr.mxu0 0.0
      %9595 = vmatpush2.msra.mxu0 0.0
      %9596 = vmatprep.subr.mxu0 0.0
      %9597 = vmatpush2.msra.mxu0 0.0
      %9598 = vmatprep.subr.mxu0 0.0
      %9599 = vmatpush2.msra.mxu0 0.0
      %9600 = vmatprep.subr.mxu0 0.0
      %9601 = vmatpush2.msra.mxu0 0.0
      %9602 = vmatprep.subr.mxu0 0.0
      %9603 = vmatpush2.msra.mxu0 0.0
      %9604 = vmatprep.subr.mxu0 0.0
      %9605 = vmatpush2.msra.mxu0 0.0
      %9606 = vmatprep.subr.mxu0 0.0
      %9607 = vmatpush2.msra.mxu0 0.0
      %9608 = vmatprep.subr.mxu0 0.0
      %9609 = vmatpush2.msra.mxu0 0.0
      %9610 = vmatprep.subr.mxu0 0.0
      %9611 = vmatpush2.msra.mxu0 0.0
      %9612 = vmatprep.mubr.f32.mxu0 0.0
      %9613 = vmatmul.mubr.f32.gmra.mxu0 %v9459
      %v9614 = vpop.f32.mrf.mxu0
      %v9615 = vadd.f32 0.0, %v9614
      %v9616 = vpop.f32.mrf.mxu0
      %9617 = vdwg.mxu0
      %9618 = vmatprep.subr.mxu0 0.0
      %9619 = vmatpush1.msra.mxu0 %v484
      %9620 = vmatprep.subr.mxu0 0.0
      %9621 = vmatpush1.msra.mxu0 %v483
      %9622 = vmatprep.subr.mxu0 0.0
      %9623 = vmatpush1.msra.mxu0 %v482
      %9624 = vmatprep.subr.mxu0 0.0
      %9625 = vmatpush1.msra.mxu0 %v481
      %9626 = vmatprep.subr.mxu0 0.0
      %9627 = vmatpush1.msra.mxu0 %v480
      %9628 = vmatprep.subr.mxu0 0.0
      %9629 = vmatpush1.msra.mxu0 %v479
      %9630 = vmatprep.subr.mxu0 0.0
      %9631 = vmatpush1.msra.mxu0 %v478
      %9632 = vmatprep.subr.mxu0 0.0
      %9633 = vmatpush1.msra.mxu0 %v477
      %9634 = vmatprep.subr.mxu0 0.0
      %9635 = vmatpush1.msra.mxu0 %v476
      %9636 = vmatprep.subr.mxu0 0.0
      %9637 = vmatpush1.msra.mxu0 %v475
      %9638 = vmatprep.subr.mxu0 0.0
      %9639 = vmatpush1.msra.mxu0 %v474
      %9640 = vmatprep.subr.mxu0 0.0
      %9641 = vmatpush1.msra.mxu0 %v473
      %9642 = vmatprep.subr.mxu0 0.0
      %9643 = vmatpush1.msra.mxu0 %v472
      %9644 = vmatprep.subr.mxu0 0.0
      %9645 = vmatpush1.msra.mxu0 %v471
      %9646 = vmatprep.subr.mxu0 0.0
      %9647 = vmatpush1.msra.mxu0 %v470
      %9648 = vmatprep.subr.mxu0 0.0
      %9649 = vmatpush1.msra.mxu0 %v469
      %9650 = vmatprep.subr.mxu0 0.0
      %9651 = vmatpush2.msra.mxu0 0.0
      %9652 = vmatprep.subr.mxu0 0.0
      %9653 = vmatpush2.msra.mxu0 0.0
      %9654 = vmatprep.subr.mxu0 0.0
      %9655 = vmatpush2.msra.mxu0 0.0
      %9656 = vmatprep.subr.mxu0 0.0
      %9657 = vmatpush2.msra.mxu0 0.0
      %9658 = vmatprep.subr.mxu0 0.0
      %9659 = vmatpush2.msra.mxu0 0.0
      %9660 = vmatprep.subr.mxu0 0.0
      %9661 = vmatpush2.msra.mxu0 0.0
      %9662 = vmatprep.subr.mxu0 0.0
      %9663 = vmatpush2.msra.mxu0 0.0
      %9664 = vmatprep.subr.mxu0 0.0
      %9665 = vmatpush2.msra.mxu0 0.0
      %9666 = vmatprep.subr.mxu0 0.0
      %9667 = vmatpush2.msra.mxu0 0.0
      %9668 = vmatprep.subr.mxu0 0.0
      %9669 = vmatpush2.msra.mxu0 0.0
      %9670 = vmatprep.subr.mxu0 0.0
      %9671 = vmatpush2.msra.mxu0 0.0
      %9672 = vmatprep.subr.mxu0 0.0
      %9673 = vmatpush2.msra.mxu0 0.0
      %9674 = vmatprep.subr.mxu0 0.0
      %9675 = vmatpush2.msra.mxu0 0.0
      %9676 = vmatprep.subr.mxu0 0.0
      %9677 = vmatpush2.msra.mxu0 0.0
      %9678 = vmatprep.subr.mxu0 0.0
      %9679 = vmatpush2.msra.mxu0 0.0
      %9680 = vmatprep.subr.mxu0 0.0
      %9681 = vmatpush2.msra.mxu0 0.0
      %9682 = vmatprep.mubr.f32.mxu0 0.0
      %9683 = vmatmul.mubr.f32.gmra.mxu0 %v9547
      %v9684 = vpop.f32.mrf.mxu0
      %v9685 = vadd.f32 0.0, %v9684
      %v9686 = vpop.f32.mrf.mxu0
      %9687 = vdwg.mxu0
      %v9688 = vmul.f32 %v9615, 0.001953125
      %v9689 = vmul.f32 %v9685, 0.001953125
      %v9690 = vmul.f32 %v9688, %v9688
      %v9691 = vsub.f32 %v9689, %v9690
      %v9692 = vmax.f32 %v9691, 0.0
      %v9693 = vadd.f32 %v9692, 1e-05
      %v9694 = vrsqrt.pop %v9693
      %v9695 = vlaneseq
      %v9696 = vshrl.u32 %v9695, 7
      %v9697 = vsub.s32 0, %v9696
      %v9698 = vrot.slane %v9688, %v9697
      %v9699 = vsub.f32 %v9205, %v9698
      %v9700 = vsub.f32 %v9208, %v9698
      %v9701 = vsub.f32 %v9213, %v9698
      %v9702 = vsub.f32 %v9216, %v9698
      %v9703 = vsub.f32 %v9221, %v9698
      %v9704 = vsub.f32 %v9224, %v9698
      %v9705 = vsub.f32 %v9229, %v9698
      %v9706 = vsub.f32 %v9232, %v9698
      %v9707 = vsub.f32 %v9237, %v9698
      %v9708 = vsub.f32 %v9240, %v9698
      %v9709 = vsub.f32 %v9245, %v9698
      %v9710 = vsub.f32 %v9248, %v9698
      %v9711 = vsub.f32 %v9253, %v9698
      %v9712 = vsub.f32 %v9256, %v9698
      %v9713 = vsub.f32 %v9261, %v9698
      %v9714 = vsub.f32 %v9264, %v9698
      %v9715 = vsub.f32 %v9269, %v9698
      %v9716 = vsub.f32 %v9272, %v9698
      %v9717 = vsub.f32 %v9277, %v9698
      %v9718 = vsub.f32 %v9280, %v9698
      %v9719 = vsub.f32 %v9285, %v9698
      %v9720 = vsub.f32 %v9288, %v9698
      %v9721 = vsub.f32 %v9293, %v9698
      %v9722 = vsub.f32 %v9296, %v9698
      %v9723 = vsub.f32 %v9301, %v9698
      %v9724 = vsub.f32 %v9304, %v9698
      %v9725 = vsub.f32 %v9309, %v9698
      %v9726 = vsub.f32 %v9312, %v9698
      %v9727 = vsub.f32 %v9317, %v9698
      %v9728 = vsub.f32 %v9320, %v9698
      %v9729 = vsub.f32 %v9325, %v9698
      %v9730 = vsub.f32 %v9328, %v9698
      %v9731 = vsub.f32 %v9333, %v9698
      %v9732 = vsub.f32 %v9336, %v9698
      %v9733 = vsub.f32 %v9341, %v9698
      %v9734 = vsub.f32 %v9344, %v9698
      %v9735 = vsub.f32 %v9349, %v9698
      %v9736 = vsub.f32 %v9352, %v9698
      %v9737 = vsub.f32 %v9357, %v9698
      %v9738 = vsub.f32 %v9360, %v9698
      %v9739 = vsub.f32 %v9365, %v9698
      %v9740 = vlaneseq
      %v9741 = vshrl.u32 %v9740, 7
      %v9742 = vsub.s32 0, %v9741
      %v9743 = vrot.slane %v9694, %v9742
      %v9744 = vmul.f32 %v9699, %v9743
      %v9745 = vmul.f32 %v9700, %v9743
      %v9746 = vmul.f32 %v9701, %v9743
      %v9747 = vmul.f32 %v9702, %v9743
      %v9748 = vmul.f32 %v9703, %v9743
      %v9749 = vmul.f32 %v9704, %v9743
      %v9750 = vmul.f32 %v9705, %v9743
      %v9751 = vmul.f32 %v9706, %v9743
      %v9752 = vmul.f32 %v9707, %v9743
      %v9753 = vmul.f32 %v9708, %v9743
      %v9754 = vmul.f32 %v9709, %v9743
      %v9755 = vmul.f32 %v9710, %v9743
      %v9756 = vmul.f32 %v9711, %v9743
      %v9757 = vmul.f32 %v9712, %v9743
      %v9758 = vmul.f32 %v9713, %v9743
      %v9759 = vmul.f32 %v9714, %v9743
      %v9760 = vmul.f32 %v9715, %v9743
      %v9761 = vmul.f32 %v9716, %v9743
      %v9762 = vmul.f32 %v9717, %v9743
      %v9763 = vmul.f32 %v9718, %v9743
      %v9764 = vmul.f32 %v9719, %v9743
      %v9765 = vmul.f32 %v9720, %v9743
      %v9766 = vmul.f32 %v9721, %v9743
      %v9767 = vmul.f32 %v9722, %v9743
      %v9768 = vmul.f32 %v9723, %v9743
      %v9769 = vmul.f32 %v9724, %v9743
      %v9770 = vmul.f32 %v9725, %v9743
      %v9771 = vmul.f32 %v9726, %v9743
      %v9772 = vmul.f32 %v9727, %v9743
      %v9773 = vmul.f32 %v9728, %v9743
      %v9774 = vmul.f32 %v9729, %v9743
      %v9775 = vmul.f32 %v9730, %v9743
      %v9776 = vmul.f32 %v9731, %v9743
      %v9777 = vmul.f32 %v9732, %v9743
      %v9778 = vmul.f32 %v9733, %v9743
      %v9779 = vmul.f32 %v9734, %v9743
      %v9780 = vmul.f32 %v9735, %v9743
      %v9781 = vmul.f32 %v9736, %v9743
      %v9782 = vmul.f32 %v9737, %v9743
      %v9783 = vmul.f32 %v9738, %v9743
      %v9784 = vmul.f32 %v9739, %v9743
      %v9786 = vlaneseq
      %v9787 = vshrl.u32 %v9786, 7
      %v9788 = vsub.s32 0, %v9787
      %v9789 = vrot.slane %v9370, %v9788
      %v9791 = vmul.f32 %v9744, %v9789
      %v9792 = vmul.f32 %v9745, %v9789
      %v9793 = vmul.f32 %v9746, %v9789
      %v9794 = vmul.f32 %v9747, %v9789
      %v9795 = vmul.f32 %v9748, %v9789
      %v9796 = vmul.f32 %v9749, %v9789
      %v9797 = vmul.f32 %v9750, %v9789
      %v9798 = vmul.f32 %v9751, %v9789
      %v9799 = vmul.f32 %v9752, %v9789
      %v9800 = vmul.f32 %v9753, %v9789
      %v9801 = vmul.f32 %v9754, %v9789
      %v9802 = vmul.f32 %v9755, %v9789
      %v9803 = vmul.f32 %v9756, %v9789
      %v9804 = vmul.f32 %v9757, %v9789
      %v9805 = vmul.f32 %v9758, %v9789
      %v9806 = vmul.f32 %v9759, %v9789
      %v9807 = vmul.f32 %v9760, %v9789
      %v9808 = vmul.f32 %v9761, %v9789
      %v9809 = vmul.f32 %v9762, %v9789
      %v9810 = vmul.f32 %v9763, %v9789
      %v9811 = vmul.f32 %v9764, %v9789
      %v9812 = vmul.f32 %v9765, %v9789
      %v9813 = vmul.f32 %v9766, %v9789
      %v9814 = vmul.f32 %v9767, %v9789
      %v9815 = vmul.f32 %v9768, %v9789
      %v9816 = vmul.f32 %v9769, %v9789
      %v9817 = vmul.f32 %v9770, %v9789
      %v9818 = vmul.f32 %v9771, %v9789
      %v9819 = vmul.f32 %v9772, %v9789
      %v9820 = vmul.f32 %v9773, %v9789
      %v9821 = vmul.f32 %v9774, %v9789
      %v9822 = vmul.f32 %v9775, %v9789
      %v9823 = vmul.f32 %v9776, %v9789
      %v9824 = vmul.f32 %v9777, %v9789
      %v9825 = vmul.f32 %v9778, %v9789
      %v9826 = vmul.f32 %v9779, %v9789
      %v9827 = vmul.f32 %v9780, %v9789
      %v9828 = vmul.f32 %v9781, %v9789
      %v9829 = vmul.f32 %v9782, %v9789
      %v9830 = vmul.f32 %v9783, %v9789
      %v9831 = vmul.f32 %v9784, %v9789
      %v9833 = vlaneseq
      %v9834 = vshrl.u32 %v9833, 7
      %v9835 = vsub.s32 0, %v9834
      %v9836 = vrot.slane %v9371, %v9835
      %v9838 = vadd.f32 %v9791, %v9836
      %v9839 = vadd.f32 %v9792, %v9836
      %v9840 = vadd.f32 %v9793, %v9836
      %v9841 = vadd.f32 %v9794, %v9836
      %v9842 = vadd.f32 %v9795, %v9836
      %v9843 = vadd.f32 %v9796, %v9836
      %v9844 = vadd.f32 %v9797, %v9836
      %v9845 = vadd.f32 %v9798, %v9836
      %v9846 = vadd.f32 %v9799, %v9836
      %v9847 = vadd.f32 %v9800, %v9836
      %v9848 = vadd.f32 %v9801, %v9836
      %v9849 = vadd.f32 %v9802, %v9836
      %v9850 = vadd.f32 %v9803, %v9836
      %v9851 = vadd.f32 %v9804, %v9836
      %v9852 = vadd.f32 %v9805, %v9836
      %v9853 = vadd.f32 %v9806, %v9836
      %v9854 = vadd.f32 %v9807, %v9836
      %v9855 = vadd.f32 %v9808, %v9836
      %v9856 = vadd.f32 %v9809, %v9836
      %v9857 = vadd.f32 %v9810, %v9836
      %v9858 = vadd.f32 %v9811, %v9836
      %v9859 = vadd.f32 %v9812, %v9836
      %v9860 = vadd.f32 %v9813, %v9836
      %v9861 = vadd.f32 %v9814, %v9836
      %v9862 = vadd.f32 %v9815, %v9836
      %v9863 = vadd.f32 %v9816, %v9836
      %v9864 = vadd.f32 %v9817, %v9836
      %v9865 = vadd.f32 %v9818, %v9836
      %v9866 = vadd.f32 %v9819, %v9836
      %v9867 = vadd.f32 %v9820, %v9836
      %v9868 = vadd.f32 %v9821, %v9836
      %v9869 = vadd.f32 %v9822, %v9836
      %v9870 = vadd.f32 %v9823, %v9836
      %v9871 = vadd.f32 %v9824, %v9836
      %v9872 = vadd.f32 %v9825, %v9836
      %v9873 = vadd.f32 %v9826, %v9836
      %v9874 = vadd.f32 %v9827, %v9836
      %v9875 = vadd.f32 %v9828, %v9836
      %v9876 = vadd.f32 %v9829, %v9836
      %v9877 = vadd.f32 %v9830, %v9836
      %v9878 = vadd.f32 %v9831, %v9836
      %v9879 = vxor.u32 %v9838, 2147483648
      %v9880 = vxor.u32 %v9839, 2147483648
      %v9881 = vxor.u32 %v9840, 2147483648
      %v9882 = vxor.u32 %v9841, 2147483648
      %v9883 = vxor.u32 %v9842, 2147483648
      %v9884 = vxor.u32 %v9843, 2147483648
      %v9885 = vxor.u32 %v9844, 2147483648
      %v9886 = vxor.u32 %v9845, 2147483648
      %v9887 = vxor.u32 %v9846, 2147483648
      %v9888 = vxor.u32 %v9847, 2147483648
      %v9889 = vxor.u32 %v9848, 2147483648
      %v9890 = vxor.u32 %v9849, 2147483648
      %v9891 = vxor.u32 %v9850, 2147483648
      %v9892 = vxor.u32 %v9851, 2147483648
      %v9893 = vxor.u32 %v9852, 2147483648
      %v9894 = vxor.u32 %v9853, 2147483648
      %v9895 = vxor.u32 %v9854, 2147483648
      %v9896 = vxor.u32 %v9855, 2147483648
      %v9897 = vxor.u32 %v9856, 2147483648
      %v9898 = vxor.u32 %v9857, 2147483648
      %v9899 = vxor.u32 %v9858, 2147483648
      %v9900 = vxor.u32 %v9859, 2147483648
      %v9901 = vxor.u32 %v9860, 2147483648
      %v9902 = vxor.u32 %v9861, 2147483648
      %v9903 = vxor.u32 %v9862, 2147483648
      %v9904 = vxor.u32 %v9863, 2147483648
      %v9905 = vxor.u32 %v9864, 2147483648
      %v9906 = vxor.u32 %v9865, 2147483648
      %v9907 = vxor.u32 %v9866, 2147483648
      %v9908 = vxor.u32 %v9867, 2147483648
      %v9909 = vxor.u32 %v9868, 2147483648
      %v9910 = vxor.u32 %v9869, 2147483648
      %v9911 = vxor.u32 %v9870, 2147483648
      %v9912 = vxor.u32 %v9871, 2147483648
      %v9913 = vxor.u32 %v9872, 2147483648
      %v9914 = vxor.u32 %v9873, 2147483648
      %v9915 = vxor.u32 %v9874, 2147483648
      %v9916 = vxor.u32 %v9875, 2147483648
      %v9917 = vxor.u32 %v9876, 2147483648
      %v9918 = vxor.u32 %v9877, 2147483648
      %v9919 = vxor.u32 %v9878, 2147483648
      %v9920 = vmul.f32 %v9879, 1.442695
      %v9921 = vpow.pop %v9920
      %v9922 = vmul.f32 %v9880, 1.442695
      %v9923 = vpow.pop %v9922
      %v9924 = vmul.f32 %v9881, 1.442695
      %v9925 = vpow.pop %v9924
      %v9926 = vmul.f32 %v9882, 1.442695
      %v9927 = vpow.pop %v9926
      %v9928 = vmul.f32 %v9883, 1.442695
      %v9929 = vpow.pop %v9928
      %v9930 = vmul.f32 %v9884, 1.442695
      %v9931 = vpow.pop %v9930
      %v9932 = vmul.f32 %v9885, 1.442695
      %v9933 = vpow.pop %v9932
      %v9934 = vmul.f32 %v9886, 1.442695
      %v9935 = vpow.pop %v9934
      %v9936 = vmul.f32 %v9887, 1.442695
      %v9937 = vpow.pop %v9936
      %v9938 = vmul.f32 %v9888, 1.442695
      %v9939 = vpow.pop %v9938
      %v9940 = vmul.f32 %v9889, 1.442695
      %v9941 = vpow.pop %v9940
      %v9942 = vmul.f32 %v9890, 1.442695
      %v9943 = vpow.pop %v9942
      %v9944 = vmul.f32 %v9891, 1.442695
      %v9945 = vpow.pop %v9944
      %v9946 = vmul.f32 %v9892, 1.442695
      %v9947 = vpow.pop %v9946
      %v9948 = vmul.f32 %v9893, 1.442695
      %v9949 = vpow.pop %v9948
      %v9950 = vmul.f32 %v9894, 1.442695
      %v9951 = vpow.pop %v9950
      %v9952 = vmul.f32 %v9895, 1.442695
      %v9953 = vpow.pop %v9952
      %v9954 = vmul.f32 %v9896, 1.442695
      %v9955 = vpow.pop %v9954
      %v9956 = vmul.f32 %v9897, 1.442695
      %v9957 = vpow.pop %v9956
      %v9958 = vmul.f32 %v9898, 1.442695
      %v9959 = vpow.pop %v9958
      %v9960 = vmul.f32 %v9899, 1.442695
      %v9961 = vpow.pop %v9960
      %v9962 = vmul.f32 %v9900, 1.442695
      %v9963 = vpow.pop %v9962
      %v9964 = vmul.f32 %v9901, 1.442695
      %v9965 = vpow.pop %v9964
      %v9966 = vmul.f32 %v9902, 1.442695
      %v9967 = vpow.pop %v9966
      %v9968 = vmul.f32 %v9903, 1.442695
      %v9969 = vpow.pop %v9968
      %v9970 = vmul.f32 %v9904, 1.442695
      %v9971 = vpow.pop %v9970
      %v9972 = vmul.f32 %v9905, 1.442695
      %v9973 = vpow.pop %v9972
      %v9974 = vmul.f32 %v9906, 1.442695
      %v9975 = vpow.pop %v9974
      %v9976 = vmul.f32 %v9907, 1.442695
      %v9977 = vpow.pop %v9976
      %v9978 = vmul.f32 %v9908, 1.442695
      %v9979 = vpow.pop %v9978
      %v9980 = vmul.f32 %v9909, 1.442695
      %v9981 = vpow.pop %v9980
      %v9982 = vmul.f32 %v9910, 1.442695
      %v9983 = vpow.pop %v9982
      %v9984 = vmul.f32 %v9911, 1.442695
      %v9985 = vpow.pop %v9984
      %v9986 = vmul.f32 %v9912, 1.442695
      %v9987 = vpow.pop %v9986
      %v9988 = vmul.f32 %v9913, 1.442695
      %v9989 = vpow.pop %v9988
      %v9990 = vmul.f32 %v9914, 1.442695
      %v9991 = vpow.pop %v9990
      %v9992 = vmul.f32 %v9915, 1.442695
      %v9993 = vpow.pop %v9992
      %v9994 = vmul.f32 %v9916, 1.442695
      %v9995 = vpow.pop %v9994
      %v9996 = vmul.f32 %v9917, 1.442695
      %v9997 = vpow.pop %v9996
      %v9998 = vmul.f32 %v9918, 1.442695
      %v9999 = vpow.pop %v9998
      %v10000 = vmul.f32 %v9919, 1.442695
      %v10001 = vpow.pop %v10000
      %v10002 = vadd.f32 %v9921, 1.0
      %v10003 = vadd.f32 %v9923, 1.0
      %v10004 = vadd.f32 %v9925, 1.0
      %v10005 = vadd.f32 %v9927, 1.0
      %v10006 = vadd.f32 %v9929, 1.0
      %v10007 = vadd.f32 %v9931, 1.0
      %v10008 = vadd.f32 %v9933, 1.0
      %v10009 = vadd.f32 %v9935, 1.0
      %v10010 = vadd.f32 %v9937, 1.0
      %v10011 = vadd.f32 %v9939, 1.0
      %v10012 = vadd.f32 %v9941, 1.0
      %v10013 = vadd.f32 %v9943, 1.0
      %v10014 = vadd.f32 %v9945, 1.0
      %v10015 = vadd.f32 %v9947, 1.0
      %v10016 = vadd.f32 %v9949, 1.0
      %v10017 = vadd.f32 %v9951, 1.0
      %v10018 = vadd.f32 %v9953, 1.0
      %v10019 = vadd.f32 %v9955, 1.0
      %v10020 = vadd.f32 %v9957, 1.0
      %v10021 = vadd.f32 %v9959, 1.0
      %v10022 = vadd.f32 %v9961, 1.0
      %v10023 = vadd.f32 %v9963, 1.0
      %v10024 = vadd.f32 %v9965, 1.0
      %v10025 = vadd.f32 %v9967, 1.0
      %v10026 = vadd.f32 %v9969, 1.0
      %v10027 = vadd.f32 %v9971, 1.0
      %v10028 = vadd.f32 %v9973, 1.0
      %v10029 = vadd.f32 %v9975, 1.0
      %v10030 = vadd.f32 %v9977, 1.0
      %v10031 = vadd.f32 %v9979, 1.0
      %v10032 = vadd.f32 %v9981, 1.0
      %v10033 = vadd.f32 %v9983, 1.0
      %v10034 = vadd.f32 %v9985, 1.0
      %v10035 = vadd.f32 %v9987, 1.0
      %v10036 = vadd.f32 %v9989, 1.0
      %v10037 = vadd.f32 %v9991, 1.0
      %v10038 = vadd.f32 %v9993, 1.0
      %v10039 = vadd.f32 %v9995, 1.0
      %v10040 = vadd.f32 %v9997, 1.0
      %v10041 = vadd.f32 %v9999, 1.0
      %v10042 = vadd.f32 %v10001, 1.0
      %v10043 = vrcp.pop %v10002
      %v10044 = vmul.f32 1.0, %v10043
      %v10045 = vrcp.pop %v10003
      %v10046 = vmul.f32 1.0, %v10045
      %v10047 = vrcp.pop %v10004
      %v10048 = vmul.f32 1.0, %v10047
      %v10049 = vrcp.pop %v10005
      %v10050 = vmul.f32 1.0, %v10049
      %v10051 = vrcp.pop %v10006
      %v10052 = vmul.f32 1.0, %v10051
      %v10053 = vrcp.pop %v10007
      %v10054 = vmul.f32 1.0, %v10053
      %v10055 = vrcp.pop %v10008
      %v10056 = vmul.f32 1.0, %v10055
      %v10057 = vrcp.pop %v10009
      %v10058 = vmul.f32 1.0, %v10057
      %v10059 = vrcp.pop %v10010
      %v10060 = vmul.f32 1.0, %v10059
      %v10061 = vrcp.pop %v10011
      %v10062 = vmul.f32 1.0, %v10061
      %v10063 = vrcp.pop %v10012
      %v10064 = vmul.f32 1.0, %v10063
      %v10065 = vrcp.pop %v10013
      %v10066 = vmul.f32 1.0, %v10065
      %v10067 = vrcp.pop %v10014
      %v10068 = vmul.f32 1.0, %v10067
      %v10069 = vrcp.pop %v10015
      %v10070 = vmul.f32 1.0, %v10069
      %v10071 = vrcp.pop %v10016
      %v10072 = vmul.f32 1.0, %v10071
      %v10073 = vrcp.pop %v10017
      %v10074 = vmul.f32 1.0, %v10073
      %v10075 = vrcp.pop %v10018
      %v10076 = vmul.f32 1.0, %v10075
      %v10077 = vrcp.pop %v10019
      %v10078 = vmul.f32 1.0, %v10077
      %v10079 = vrcp.pop %v10020
      %v10080 = vmul.f32 1.0, %v10079
      %v10081 = vrcp.pop %v10021
      %v10082 = vmul.f32 1.0, %v10081
      %v10083 = vrcp.pop %v10022
      %v10084 = vmul.f32 1.0, %v10083
      %v10085 = vrcp.pop %v10023
      %v10086 = vmul.f32 1.0, %v10085
      %v10087 = vrcp.pop %v10024
      %v10088 = vmul.f32 1.0, %v10087
      %v10089 = vrcp.pop %v10025
      %v10090 = vmul.f32 1.0, %v10089
      %v10091 = vrcp.pop %v10026
      %v10092 = vmul.f32 1.0, %v10091
      %v10093 = vrcp.pop %v10027
      %v10094 = vmul.f32 1.0, %v10093
      %v10095 = vrcp.pop %v10028
      %v10096 = vmul.f32 1.0, %v10095
      %v10097 = vrcp.pop %v10029
      %v10098 = vmul.f32 1.0, %v10097
      %v10099 = vrcp.pop %v10030
      %v10100 = vmul.f32 1.0, %v10099
      %v10101 = vrcp.pop %v10031
      %v10102 = vmul.f32 1.0, %v10101
      %v10103 = vrcp.pop %v10032
      %v10104 = vmul.f32 1.0, %v10103
      %v10105 = vrcp.pop %v10033
      %v10106 = vmul.f32 1.0, %v10105
      %v10107 = vrcp.pop %v10034
      %v10108 = vmul.f32 1.0, %v10107
      %v10109 = vrcp.pop %v10035
      %v10110 = vmul.f32 1.0, %v10109
      %v10111 = vrcp.pop %v10036
      %v10112 = vmul.f32 1.0, %v10111
      %v10113 = vrcp.pop %v10037
      %v10114 = vmul.f32 1.0, %v10113
      %v10115 = vrcp.pop %v10038
      %v10116 = vmul.f32 1.0, %v10115
      %v10117 = vrcp.pop %v10039
      %v10118 = vmul.f32 1.0, %v10117
      %v10119 = vrcp.pop %v10040
      %v10120 = vmul.f32 1.0, %v10119
      %v10121 = vrcp.pop %v10041
      %v10122 = vmul.f32 1.0, %v10121
      %v10123 = vrcp.pop %v10042
      %v10124 = vmul.f32 1.0, %v10123
      %v10125 = vmul.f32 %v9838, %v10044
      %v10126 = vmul.f32 %v9839, %v10046
      %v10127 = vmul.f32 %v9840, %v10048
      %v10128 = vmul.f32 %v9841, %v10050
      %v10129 = vmul.f32 %v9842, %v10052
      %v10130 = vmul.f32 %v9843, %v10054
      %v10131 = vmul.f32 %v9844, %v10056
      %v10132 = vmul.f32 %v9845, %v10058
      %v10133 = vmul.f32 %v9846, %v10060
      %v10134 = vmul.f32 %v9847, %v10062
      %v10135 = vmul.f32 %v9848, %v10064
      %v10136 = vmul.f32 %v9849, %v10066
      %v10137 = vmul.f32 %v9850, %v10068
      %v10138 = vmul.f32 %v9851, %v10070
      %v10139 = vmul.f32 %v9852, %v10072
      %v10140 = vmul.f32 %v9853, %v10074
      %v10141 = vmul.f32 %v9854, %v10076
      %v10142 = vmul.f32 %v9855, %v10078
      %v10143 = vmul.f32 %v9856, %v10080
      %v10144 = vmul.f32 %v9857, %v10082
      %v10145 = vmul.f32 %v9858, %v10084
      %v10146 = vmul.f32 %v9859, %v10086
      %v10147 = vmul.f32 %v9860, %v10088
      %v10148 = vmul.f32 %v9861, %v10090
      %v10149 = vmul.f32 %v9862, %v10092
      %v10150 = vmul.f32 %v9863, %v10094
      %v10151 = vmul.f32 %v9864, %v10096
      %v10152 = vmul.f32 %v9865, %v10098
      %v10153 = vmul.f32 %v9866, %v10100
      %v10154 = vmul.f32 %v9867, %v10102
      %v10155 = vmul.f32 %v9868, %v10104
      %v10156 = vmul.f32 %v9869, %v10106
      %v10157 = vmul.f32 %v9870, %v10108
      %v10158 = vmul.f32 %v9871, %v10110
      %v10159 = vmul.f32 %v9872, %v10112
      %v10160 = vmul.f32 %v9873, %v10114
      %v10161 = vmul.f32 %v9874, %v10116
      %v10162 = vmul.f32 %v9875, %v10118
      %v10163 = vmul.f32 %v9876, %v10120
      %v10164 = vmul.f32 %v9877, %v10122
      %v10165 = vmul.f32 %v9878, %v10124
      %v10166 = vld [vmem:[%s411 + $0xc] sm:$0xf]
      %v10167 = vld [vmem:[%s411 + $0x10] sm:$0xf]
      %v10168 = vld [vmem:[%s411 + $0x14] sm:$0xf]
      %v10169 = vld [vmem:[%s411 + $0x18] sm:$0xf]
      %v10170 = vld [vmem:[%s411 + $0x1c] sm:$0xf]
      %v10171 = vld [vmem:[%s411 + $0x20] sm:$0xf]
      %v10172 = vld [vmem:[%s411 + $0x24] sm:$0xf]
      %v10173 = vld [vmem:[%s411 + $0x28] sm:$0xf]
      %v10174 = vld [vmem:[%s411 + $0x2c] sm:$0xf]
      %v10175 = vld [vmem:[%s411 + $0x30] sm:$0xf]
      %v10176 = vld [vmem:[%s411 + $0x34] sm:$0xf]
      %v10177 = vld [vmem:[%s411 + $0x38] sm:$0xf]
      %v10178 = vld [vmem:[%s411 + $0x3c] sm:$0xf]
      %v10179 = vld [vmem:[%s411 + $0x40] sm:$0xf]
      %v10180 = vld [vmem:[%s411 + $0x44] sm:$0xf]
      %v10181 = vld [vmem:[%s411 + $0x48] sm:$0xf]
      %v10182 = vld [vmem:[%s411 + $0x4c] sm:$0xf]
      %v10183 = vld [vmem:[%s411 + $0x50] sm:$0xf]
      %v10184 = vld [vmem:[%s411 + $0x54] sm:$0xf]
      %v10185 = vld [vmem:[%s411 + $0x58] sm:$0xf]
      %v10186 = vld [vmem:[%s411 + $0x5c] sm:$0xf]
      %v10187 = vld [vmem:[%s411 + $0x60] sm:$0xf]
      %v10188 = vld [vmem:[%s411 + $0x64] sm:$0xf]
      %v10189 = vld [vmem:[%s411 + $0x68] sm:$0xf]
      %v10190 = vld [vmem:[%s411 + $0x6c] sm:$0xf]
      %v10191 = vld [vmem:[%s411 + $0x70] sm:$0xf]
      %v10192 = vld [vmem:[%s411 + $0x74] sm:$0xf]
      %v10193 = vld [vmem:[%s411 + $0x78] sm:$0xf]
      %v10194 = vld [vmem:[%s411 + $0x7c] sm:$0xf]
      %v10195 = vld [vmem:[%s411 + $0x80] sm:$0xf]
      %v10196 = vld [vmem:[%s411 + $0x84] sm:$0xf]
      %v10197 = vld [vmem:[%s411 + $0x88] sm:$0xf]
      %v10198 = vld [vmem:[%s411 + $0x8c] sm:$0xf]
      %v10199 = vld [vmem:[%s411 + $0x90] sm:$0xf]
      %v10200 = vld [vmem:[%s411 + $0x94] sm:$0xf]
      %v10201 = vld [vmem:[%s411 + $0x98] sm:$0xf]
      %v10202 = vld [vmem:[%s411 + $0x9c] sm:$0xf]
      %v10203 = vld [vmem:[%s411 + $0xa0] sm:$0xf]
      %v10204 = vld [vmem:[%s411 + $0xa4] sm:$0xf]
      %v10205 = vld [vmem:[%s411 + $0xa8] sm:$0xf]
      %v10206 = vld [vmem:[%s411 + $0xac] sm:$0x3]
      %v10207 = vld [vmem:[%s9] sm:$0xf]
      %v10208 = vld [vmem:[%s9 + $0x4] sm:$0xf]
      %v10209 = vld [vmem:[%s9 + $0x8] sm:$0xf]
      %v10210 = vld [vmem:[%s9 + $0xc] sm:$0xf]
      %v10211 = vld [vmem:[%s9 + $0x10] sm:$0xf]
      %v10212 = vld [vmem:[%s9 + $0x14] sm:$0xf]
      %v10213 = vld [vmem:[%s9 + $0x18] sm:$0xf]
      %v10214 = vld [vmem:[%s9 + $0x1c] sm:$0xf]
      %v10215 = vld [vmem:[%s9 + $0x20] sm:$0xf]
      %v10216 = vld [vmem:[%s9 + $0x24] sm:$0xf]
      %v10217 = vld [vmem:[%s9 + $0x28] sm:$0xf]
      %v10218 = vld [vmem:[%s9 + $0x2c] sm:$0xf]
      %v10219 = vld [vmem:[%s9 + $0x30] sm:$0xf]
      %v10220 = vld [vmem:[%s9 + $0x34] sm:$0xf]
      %v10221 = vld [vmem:[%s9 + $0x38] sm:$0xf]
      %v10222 = vld [vmem:[%s9 + $0x3c] sm:$0xf]
      %v10223 = vld [vmem:[%s10] sm:$0x1]
      %v10225 = vlaneseq
      %v10226 = vshrl.u32 %v10225, 7
      %v10227 = vsub.s32 0, %v10226
      %v10228 = vrot.slane %v10223, %v10227
      %v10271 = vunpack.c.l.b16 %v10166
      %v10272 = vunpack.c.l.b16 %v10167
      %v10273 = vunpack.c.l.b16 %v10168
      %v10274 = vunpack.c.l.b16 %v10169
      %v10275 = vunpack.c.l.b16 %v10170
      %v10276 = vunpack.c.l.b16 %v10171
      %v10277 = vunpack.c.l.b16 %v10172
      %v10278 = vunpack.c.l.b16 %v10173
      %v10279 = vunpack.c.l.b16 %v10174
      %v10280 = vunpack.c.l.b16 %v10175
      %v10281 = vunpack.c.l.b16 %v10176
      %v10282 = vunpack.c.l.b16 %v10177
      %v10283 = vunpack.c.l.b16 %v10178
      %v10284 = vunpack.c.l.b16 %v10179
      %v10285 = vunpack.c.l.b16 %v10180
      %v10286 = vunpack.c.l.b16 %v10181
      %v10287 = vunpack.c.l.b16 %v10182
      %v10288 = vunpack.c.l.b16 %v10183
      %v10289 = vunpack.c.l.b16 %v10184
      %v10290 = vunpack.c.l.b16 %v10185
      %v10291 = vunpack.c.l.b16 %v10186
      %v10292 = vunpack.c.l.b16 %v10187
      %v10293 = vunpack.c.l.b16 %v10188
      %v10294 = vunpack.c.l.b16 %v10189
      %v10295 = vunpack.c.l.b16 %v10190
      %v10296 = vunpack.c.l.b16 %v10191
      %v10297 = vunpack.c.l.b16 %v10192
      %v10298 = vunpack.c.l.b16 %v10193
      %v10299 = vunpack.c.l.b16 %v10194
      %v10300 = vunpack.c.l.b16 %v10195
      %v10301 = vunpack.c.l.b16 %v10196
      %v10302 = vunpack.c.l.b16 %v10197
      %v10303 = vunpack.c.l.b16 %v10198
      %v10304 = vunpack.c.l.b16 %v10199
      %v10305 = vunpack.c.l.b16 %v10200
      %v10306 = vunpack.c.l.b16 %v10201
      %v10307 = vunpack.c.l.b16 %v10202
      %v10308 = vunpack.c.l.b16 %v10203
      %v10309 = vunpack.c.l.b16 %v10204
      %v10310 = vunpack.c.l.b16 %v10205
      %v10311 = vunpack.c.l.b16 %v10206
      %v10312 = vpack.c.b16 %v10272, %v10271
      %v10313 = vpack.c.b16 %v10274, %v10273
      %v10314 = vpack.c.b16 %v10276, %v10275
      %v10315 = vpack.c.b16 %v10278, %v10277
      %v10316 = vpack.c.b16 %v10280, %v10279
      %v10317 = vpack.c.b16 %v10282, %v10281
      %v10318 = vpack.c.b16 %v10284, %v10283
      %v10319 = vpack.c.b16 %v10286, %v10285
      %v10320 = vpack.c.b16 %v10288, %v10287
      %v10321 = vpack.c.b16 %v10290, %v10289
      %v10322 = vpack.c.b16 %v10292, %v10291
      %v10323 = vpack.c.b16 %v10294, %v10293
      %v10324 = vpack.c.b16 %v10296, %v10295
      %v10325 = vpack.c.b16 %v10298, %v10297
      %v10326 = vpack.c.b16 %v10300, %v10299
      %v10327 = vpack.c.b16 %v10302, %v10301
      %v10328 = vpack.c.b16 %v10304, %v10303
      %v10329 = vpack.c.b16 %v10306, %v10305
      %v10330 = vpack.c.b16 %v10308, %v10307
      %v10331 = vpack.c.b16 %v10310, %v10309
      %v10332 = vpack.c.b16 %v10311, %v10311
      %v10370 = vunpack.c.l.b16 %v10207
      %v10371 = vunpack.c.l.b16 %v10208
      %v10372 = vunpack.c.l.b16 %v10209
      %v10373 = vunpack.c.l.b16 %v10210
      %v10374 = vunpack.c.l.b16 %v10211
      %v10375 = vunpack.c.l.b16 %v10212
      %v10376 = vunpack.c.l.b16 %v10213
      %v10377 = vunpack.c.l.b16 %v10214
      %v10378 = vunpack.c.l.b16 %v10215
      %v10379 = vunpack.c.l.b16 %v10216
      %v10380 = vunpack.c.l.b16 %v10217
      %v10381 = vunpack.c.l.b16 %v10218
      %v10382 = vunpack.c.l.b16 %v10219
      %v10383 = vunpack.c.l.b16 %v10220
      %v10384 = vunpack.c.l.b16 %v10221
      %v10385 = vunpack.c.l.b16 %v10222
      %v10386 = vpack.c.b16 %v10371, %v10370
      %v10387 = vpack.c.b16 %v10373, %v10372
      %v10388 = vpack.c.b16 %v10375, %v10374
      %v10389 = vpack.c.b16 %v10377, %v10376
      %v10390 = vpack.c.b16 %v10379, %v10378
      %v10391 = vpack.c.b16 %v10381, %v10380
      %v10392 = vpack.c.b16 %v10383, %v10382
      %v10393 = vpack.c.b16 %v10385, %v10384
      %10402 = vmatprep.subr.bf16.mxu0 0
      %10403 = vmatpush1.bf16.msra.mxu0 %v10393
      %10404 = vmatprep.subr.bf16.mxu0 0
      %10405 = vmatpush1.bf16.msra.mxu0 %v10392
      %10406 = vmatprep.subr.bf16.mxu0 0
      %10407 = vmatpush1.bf16.msra.mxu0 %v10391
      %10408 = vmatprep.subr.bf16.mxu0 0
      %10409 = vmatpush1.bf16.msra.mxu0 %v10390
      %10410 = vmatprep.subr.bf16.mxu0 0
      %10411 = vmatpush1.bf16.msra.mxu0 %v10389
      %10412 = vmatprep.subr.bf16.mxu0 0
      %10413 = vmatpush1.bf16.msra.mxu0 %v10388
      %10414 = vmatprep.subr.bf16.mxu0 0
      %10415 = vmatpush1.bf16.msra.mxu0 %v10387
      %10416 = vmatprep.subr.bf16.mxu0 0
      %10417 = vmatpush1.bf16.msra.mxu0 %v10386
      %10418 = vmatprep.subr.bf16.mxu0 0
      %10419 = vmatpush2.bf16.msra.mxu0 0
      %10420 = vmatprep.subr.bf16.mxu0 0
      %10421 = vmatpush2.bf16.msra.mxu0 0
      %10422 = vmatprep.subr.bf16.mxu0 0
      %10423 = vmatpush2.bf16.msra.mxu0 0
      %10424 = vmatprep.subr.bf16.mxu0 0
      %10425 = vmatpush2.bf16.msra.mxu0 0
      %10426 = vmatprep.subr.bf16.mxu0 0
      %10427 = vmatpush2.bf16.msra.mxu0 0
      %10428 = vmatprep.subr.bf16.mxu0 0
      %10429 = vmatpush2.bf16.msra.mxu0 0
      %10430 = vmatprep.subr.bf16.mxu0 0
      %10431 = vmatpush2.bf16.msra.mxu0 0
      %10432 = vmatprep.subr.bf16.mxu0 0
      %10433 = vmatpush2.bf16.msra.mxu0 0
      %10434 = vmatprep.mubr.bf16.mxu0 0
      %10435 = vmatmul.mubr.bf16.gmra.mxu0 %v10312
      %v10436 = vpop.f32.mrf.mxu0
      %v10437 = vadd.f32 %v10228, %v10436
      %v10438 = vpop.f32.mrf.mxu0
      %v10439 = vpop.f32.mrf.mxu0
      %v10440 = vadd.f32 %v10228, %v10439
      %v10441 = vpop.f32.mrf.mxu0
      %10442 = vmatprep.mubr.bf16.mxu0 0
      %10443 = vmatmul.mubr.bf16.gmra.mxu0 %v10313
      %v10444 = vpop.f32.mrf.mxu0
      %v10445 = vadd.f32 %v10228, %v10444
      %v10446 = vpop.f32.mrf.mxu0
      %v10447 = vpop.f32.mrf.mxu0
      %v10448 = vadd.f32 %v10228, %v10447
      %v10449 = vpop.f32.mrf.mxu0
      %10450 = vmatprep.mubr.bf16.mxu0 0
      %10451 = vmatmul.mubr.bf16.gmra.mxu0 %v10314
      %v10452 = vpop.f32.mrf.mxu0
      %v10453 = vadd.f32 %v10228, %v10452
      %v10454 = vpop.f32.mrf.mxu0
      %v10455 = vpop.f32.mrf.mxu0
      %v10456 = vadd.f32 %v10228, %v10455
      %v10457 = vpop.f32.mrf.mxu0
      %10458 = vmatprep.mubr.bf16.mxu0 0
      %10459 = vmatmul.mubr.bf16.gmra.mxu0 %v10315
      %v10460 = vpop.f32.mrf.mxu0
      %v10461 = vadd.f32 %v10228, %v10460
      %v10462 = vpop.f32.mrf.mxu0
      %v10463 = vpop.f32.mrf.mxu0
      %v10464 = vadd.f32 %v10228, %v10463
      %v10465 = vpop.f32.mrf.mxu0
      %10466 = vmatprep.mubr.bf16.mxu0 0
      %10467 = vmatmul.mubr.bf16.gmra.mxu0 %v10316
      %v10468 = vpop.f32.mrf.mxu0
      %v10469 = vadd.f32 %v10228, %v10468
      %v10470 = vpop.f32.mrf.mxu0
      %v10471 = vpop.f32.mrf.mxu0
      %v10472 = vadd.f32 %v10228, %v10471
      %v10473 = vpop.f32.mrf.mxu0
      %10474 = vmatprep.mubr.bf16.mxu0 0
      %10475 = vmatmul.mubr.bf16.gmra.mxu0 %v10317
      %v10476 = vpop.f32.mrf.mxu0
      %v10477 = vadd.f32 %v10228, %v10476
      %v10478 = vpop.f32.mrf.mxu0
      %v10479 = vpop.f32.mrf.mxu0
      %v10480 = vadd.f32 %v10228, %v10479
      %v10481 = vpop.f32.mrf.mxu0
      %10482 = vmatprep.mubr.bf16.mxu0 0
      %10483 = vmatmul.mubr.bf16.gmra.mxu0 %v10318
      %v10484 = vpop.f32.mrf.mxu0
      %v10485 = vadd.f32 %v10228, %v10484
      %v10486 = vpop.f32.mrf.mxu0
      %v10487 = vpop.f32.mrf.mxu0
      %v10488 = vadd.f32 %v10228, %v10487
      %v10489 = vpop.f32.mrf.mxu0
      %10490 = vmatprep.mubr.bf16.mxu0 0
      %10491 = vmatmul.mubr.bf16.gmra.mxu0 %v10319
      %v10492 = vpop.f32.mrf.mxu0
      %v10493 = vadd.f32 %v10228, %v10492
      %v10494 = vpop.f32.mrf.mxu0
      %v10495 = vpop.f32.mrf.mxu0
      %v10496 = vadd.f32 %v10228, %v10495
      %v10497 = vpop.f32.mrf.mxu0
      %10498 = vmatprep.mubr.bf16.mxu0 0
      %10499 = vmatmul.mubr.bf16.gmra.mxu0 %v10320
      %v10500 = vpop.f32.mrf.mxu0
      %v10501 = vadd.f32 %v10228, %v10500
      %v10502 = vpop.f32.mrf.mxu0
      %v10503 = vpop.f32.mrf.mxu0
      %v10504 = vadd.f32 %v10228, %v10503
      %v10505 = vpop.f32.mrf.mxu0
      %10506 = vmatprep.mubr.bf16.mxu0 0
      %10507 = vmatmul.mubr.bf16.gmra.mxu0 %v10321
      %v10508 = vpop.f32.mrf.mxu0
      %v10509 = vadd.f32 %v10228, %v10508
      %v10510 = vpop.f32.mrf.mxu0
      %v10511 = vpop.f32.mrf.mxu0
      %v10512 = vadd.f32 %v10228, %v10511
      %v10513 = vpop.f32.mrf.mxu0
      %10514 = vmatprep.mubr.bf16.mxu0 0
      %10515 = vmatmul.mubr.bf16.gmra.mxu0 %v10322
      %v10516 = vpop.f32.mrf.mxu0
      %v10517 = vadd.f32 %v10228, %v10516
      %v10518 = vpop.f32.mrf.mxu0
      %v10519 = vpop.f32.mrf.mxu0
      %v10520 = vadd.f32 %v10228, %v10519
      %v10521 = vpop.f32.mrf.mxu0
      %10522 = vmatprep.mubr.bf16.mxu0 0
      %10523 = vmatmul.mubr.bf16.gmra.mxu0 %v10323
      %v10524 = vpop.f32.mrf.mxu0
      %v10525 = vadd.f32 %v10228, %v10524
      %v10526 = vpop.f32.mrf.mxu0
      %v10527 = vpop.f32.mrf.mxu0
      %v10528 = vadd.f32 %v10228, %v10527
      %v10529 = vpop.f32.mrf.mxu0
      %10530 = vmatprep.mubr.bf16.mxu0 0
      %10531 = vmatmul.mubr.bf16.gmra.mxu0 %v10324
      %v10532 = vpop.f32.mrf.mxu0
      %v10533 = vadd.f32 %v10228, %v10532
      %v10534 = vpop.f32.mrf.mxu0
      %v10535 = vpop.f32.mrf.mxu0
      %v10536 = vadd.f32 %v10228, %v10535
      %v10537 = vpop.f32.mrf.mxu0
      %10538 = vmatprep.mubr.bf16.mxu0 0
      %10539 = vmatmul.mubr.bf16.gmra.mxu0 %v10325
      %v10540 = vpop.f32.mrf.mxu0
      %v10541 = vadd.f32 %v10228, %v10540
      %v10542 = vpop.f32.mrf.mxu0
      %v10543 = vpop.f32.mrf.mxu0
      %v10544 = vadd.f32 %v10228, %v10543
      %v10545 = vpop.f32.mrf.mxu0
      %10546 = vmatprep.mubr.bf16.mxu0 0
      %10547 = vmatmul.mubr.bf16.gmra.mxu0 %v10326
      %v10548 = vpop.f32.mrf.mxu0
      %v10549 = vadd.f32 %v10228, %v10548
      %v10550 = vpop.f32.mrf.mxu0
      %v10551 = vpop.f32.mrf.mxu0
      %v10552 = vadd.f32 %v10228, %v10551
      %v10553 = vpop.f32.mrf.mxu0
      %10554 = vmatprep.mubr.bf16.mxu0 0
      %10555 = vmatmul.mubr.bf16.gmra.mxu0 %v10327
      %v10556 = vpop.f32.mrf.mxu0
      %v10557 = vadd.f32 %v10228, %v10556
      %v10558 = vpop.f32.mrf.mxu0
      %v10559 = vpop.f32.mrf.mxu0
      %v10560 = vadd.f32 %v10228, %v10559
      %v10561 = vpop.f32.mrf.mxu0
      %10562 = vmatprep.mubr.bf16.mxu0 0
      %10563 = vmatmul.mubr.bf16.gmra.mxu0 %v10328
      %v10564 = vpop.f32.mrf.mxu0
      %v10565 = vadd.f32 %v10228, %v10564
      %v10566 = vpop.f32.mrf.mxu0
      %v10567 = vpop.f32.mrf.mxu0
      %v10568 = vadd.f32 %v10228, %v10567
      %v10569 = vpop.f32.mrf.mxu0
      %10570 = vmatprep.mubr.bf16.mxu0 0
      %10571 = vmatmul.mubr.bf16.gmra.mxu0 %v10329
      %v10572 = vpop.f32.mrf.mxu0
      %v10573 = vadd.f32 %v10228, %v10572
      %v10574 = vpop.f32.mrf.mxu0
      %v10575 = vpop.f32.mrf.mxu0
      %v10576 = vadd.f32 %v10228, %v10575
      %v10577 = vpop.f32.mrf.mxu0
      %10578 = vmatprep.mubr.bf16.mxu0 0
      %10579 = vmatmul.mubr.bf16.gmra.mxu0 %v10330
      %v10580 = vpop.f32.mrf.mxu0
      %v10581 = vadd.f32 %v10228, %v10580
      %v10582 = vpop.f32.mrf.mxu0
      %v10583 = vpop.f32.mrf.mxu0
      %v10584 = vadd.f32 %v10228, %v10583
      %v10585 = vpop.f32.mrf.mxu0
      %10586 = vmatprep.mubr.bf16.mxu0 0
      %10587 = vmatmul.mubr.bf16.gmra.mxu0 %v10331
      %v10588 = vpop.f32.mrf.mxu0
      %v10589 = vadd.f32 %v10228, %v10588
      %v10590 = vpop.f32.mrf.mxu0
      %v10591 = vpop.f32.mrf.mxu0
      %v10592 = vadd.f32 %v10228, %v10591
      %v10593 = vpop.f32.mrf.mxu0
      %10594 = vmatprep.mubr.bf16.mxu0 0
      %10595 = vmatmul.mubr.bf16.gmra.mxu0 %v10332
      %v10596 = vpop.f32.mrf.mxu0
      %v10597 = vadd.f32 %v10228, %v10596
      %v10598 = vpop.f32.mrf.mxu0
      %v10599 = vpop.f32.mrf.mxu0
      %v10600 = vpop.f32.mrf.mxu0
      %10601 = vdwg.mxu0
      %v10602 = vadd.f32 %v10125, %v10437
      %v10603 = vadd.f32 %v10126, %v10440
      %v10604 = vadd.f32 %v10127, %v10445
      %v10605 = vadd.f32 %v10128, %v10448
      %v10606 = vadd.f32 %v10129, %v10453
      %v10607 = vadd.f32 %v10130, %v10456
      %v10608 = vadd.f32 %v10131, %v10461
      %v10609 = vadd.f32 %v10132, %v10464
      %v10610 = vadd.f32 %v10133, %v10469
      %v10611 = vadd.f32 %v10134, %v10472
      %v10612 = vadd.f32 %v10135, %v10477
      %v10613 = vadd.f32 %v10136, %v10480
      %v10614 = vadd.f32 %v10137, %v10485
      %v10615 = vadd.f32 %v10138, %v10488
      %v10616 = vadd.f32 %v10139, %v10493
      %v10617 = vadd.f32 %v10140, %v10496
      %v10618 = vadd.f32 %v10141, %v10501
      %v10619 = vadd.f32 %v10142, %v10504
      %v10620 = vadd.f32 %v10143, %v10509
      %v10621 = vadd.f32 %v10144, %v10512
      %v10622 = vadd.f32 %v10145, %v10517
      %v10623 = vadd.f32 %v10146, %v10520
      %v10624 = vadd.f32 %v10147, %v10525
      %v10625 = vadd.f32 %v10148, %v10528
      %v10626 = vadd.f32 %v10149, %v10533
      %v10627 = vadd.f32 %v10150, %v10536
      %v10628 = vadd.f32 %v10151, %v10541
      %v10629 = vadd.f32 %v10152, %v10544
      %v10630 = vadd.f32 %v10153, %v10549
      %v10631 = vadd.f32 %v10154, %v10552
      %v10632 = vadd.f32 %v10155, %v10557
      %v10633 = vadd.f32 %v10156, %v10560
      %v10634 = vadd.f32 %v10157, %v10565
      %v10635 = vadd.f32 %v10158, %v10568
      %v10636 = vadd.f32 %v10159, %v10573
      %v10637 = vadd.f32 %v10160, %v10576
      %v10638 = vadd.f32 %v10161, %v10581
      %v10639 = vadd.f32 %v10162, %v10584
      %v10640 = vadd.f32 %v10163, %v10589
      %v10641 = vadd.f32 %v10164, %v10592
      %v10642 = vadd.f32 %v10165, %v10597
      %10643 = vst [vmem:[%s426] sm:$0xff] %v10602
      %10644 = vst [vmem:[%s426 + $0x8] sm:$0xff] %v10603
      %10645 = vst [vmem:[%s426 + $0x10] sm:$0xff] %v10604
      %10646 = vst [vmem:[%s426 + $0x18] sm:$0xff] %v10605
      %10647 = vst [vmem:[%s426 + $0x20] sm:$0xff] %v10606
      %10648 = vst [vmem:[%s426 + $0x28] sm:$0xff] %v10607
      %10649 = vst [vmem:[%s426 + $0x30] sm:$0xff] %v10608
      %10650 = vst [vmem:[%s426 + $0x38] sm:$0xff] %v10609
      %10651 = vst [vmem:[%s426 + $0x40] sm:$0xff] %v10610
      %10652 = vst [vmem:[%s426 + $0x48] sm:$0xff] %v10611
      %10653 = vst [vmem:[%s426 + $0x50] sm:$0xff] %v10612
      %10654 = vst [vmem:[%s426 + $0x58] sm:$0xff] %v10613
      %10655 = vst [vmem:[%s426 + $0x60] sm:$0xff] %v10614
      %10656 = vst [vmem:[%s426 + $0x68] sm:$0xff] %v10615
      %10657 = vst [vmem:[%s426 + $0x70] sm:$0xff] %v10616
      %10658 = vst [vmem:[%s426 + $0x78] sm:$0xff] %v10617
      %10659 = vst [vmem:[%s426 + $0x80] sm:$0xff] %v10618
      %10660 = vst [vmem:[%s426 + $0x88] sm:$0xff] %v10619
      %10661 = vst [vmem:[%s426 + $0x90] sm:$0xff] %v10620
      %10662 = vst [vmem:[%s426 + $0x98] sm:$0xff] %v10621
      %10663 = vst [vmem:[%s426 + $0xa0] sm:$0xff] %v10622
      %10664 = vst [vmem:[%s426 + $0xa8] sm:$0xff] %v10623
      %10665 = vst [vmem:[%s426 + $0xb0] sm:$0xff] %v10624
      %10666 = vst [vmem:[%s426 + $0xb8] sm:$0xff] %v10625
      %10667 = vst [vmem:[%s426 + $0xc0] sm:$0xff] %v10626
      %10668 = vst [vmem:[%s426 + $0xc8] sm:$0xff] %v10627
      %10669 = vst [vmem:[%s426 + $0xd0] sm:$0xff] %v10628
      %10670 = vst [vmem:[%s426 + $0xd8] sm:$0xff] %v10629
      %10671 = vst [vmem:[%s426 + $0xe0] sm:$0xff] %v10630
      %10672 = vst [vmem:[%s426 + $0xe8] sm:$0xff] %v10631
      %10673 = vst [vmem:[%s426 + $0xf0] sm:$0xff] %v10632
      %10674 = vst [vmem:[%s426 + $0xf8] sm:$0xff] %v10633
      %10675 = vst [vmem:[%s426 + $0x100] sm:$0xff] %v10634
      %10676 = vst [vmem:[%s426 + $0x108] sm:$0xff] %v10635
      %10677 = vst [vmem:[%s426 + $0x110] sm:$0xff] %v10636
      %10678 = vst [vmem:[%s426 + $0x118] sm:$0xff] %v10637
      %10679 = vst [vmem:[%s426 + $0x120] sm:$0xff] %v10638
      %10680 = vst [vmem:[%s426 + $0x128] sm:$0xff] %v10639
      %10681 = vst [vmem:[%s426 + $0x130] sm:$0xff] %v10640
      %10682 = vst [vmem:[%s426 + $0x138] sm:$0xff] %v10641
      %10683 = vst [vmem:[%s426 + $0x140] sm:$0xf] %v10642
      %p10684 = scmp.lt.s32.totalorder %s22, 1
      %s10685 = scalar_select %p10684, %s22, 1
      %s10686 = smul.addr %s10685, 41
      %s10687 = smul.addr %s10686, 8
      %s10688 = scalar_lea.vmem %s11, %s10687
      // Predicated region
      $region65: #{resnet_block_forward.1} parent=63 // pred_check
        %p10689 = pneg %p286
      $region66: #{resnet_block_forward.1} parent=63 // pred_check_branch
        %10691 = sbr.rel (%p10689) target = $region68
      $region67: #{resnet_block_forward.1} parent=63 // pred_region
        _
      $region68: #{resnet_block_forward.1} parent=63 // pred_fallthru
        _
    $region64: #{resnet_block_forward.1} parent=5 // pred_fallthru
      _
    %p10692 = scmp.le.s32.totalorder 2, %s17
    // Predicated region
    $region69: #{resnet_block_forward.1} parent=5 // pred_check
      %p10693 = pneg %p10692
    $region70: #{resnet_block_forward.1} parent=5 // pred_check_branch
      %10695 = sbr.rel (%p10693) target = $region72
    $region71: #{resnet_block_forward.1} parent=5 // pred_region
      %s10696 = ssub.s32 %s17, 2
      // Predicated region
      $region73: #{resnet_block_forward.1} parent=71 // pred_check
        %p10697 = pneg %p292
      $region74: #{resnet_block_forward.1} parent=71 // pred_check_branch
        %10699 = sbr.rel (%p10697) target = $region76
      $region75: #{resnet_block_forward.1} parent=71 // pred_region
        %p10700 = scmp.lt.s32.totalorder %s23, 1
        %s10701 = scalar_select %p10700, %s23, 1
        %s10702 = smul.addr %s10701, 41
        %s10703 = smul.addr %s10702, 8
        %s10704 = scalar_lea.vmem %s11, %s10703
      $region76: #{resnet_block_forward.1} parent=71 // pred_fallthru
        _
    $region72: #{resnet_block_forward.1} parent=5 // pred_fallthru
      _
  $region6: #{resnet_block_forward.1} parent=0 // loop_footer
    %s21 = sadd.s32 1, %s17
  $region7: #{resnet_block_forward.1} parent=0 // loop_footer_branch
    %16 = sbr.rel target = $region3
  $region8: #{resnet_block_forward.1} parent=0 // loop_exit
    _

</llo_original>
